<compile_context>
chip_gen: v5e
topology: v5e:2x2
jax: 0.10.0
libtpu: 0.0.40
codegen_flags: <defaults>
</compile_context>

<pallas_src>
import math

import jax
import jax.numpy as jnp
from jax import lax
from jax.experimental import pallas as pl
from jax.experimental.pallas import tpu as pltpu


# --------------------------------------------------------------------------------------
# Pallas kernel
# --------------------------------------------------------------------------------------
def _make_kernel(H, W, CIN, HID, NB, N, left, right, min_bw, min_bh, min_d):
    """Per-grid-step kernel: BB images (N = BB*H*W lanes), masked ConvNet + RQS."""
    STEP = 3 * NB - 1
    CGRP = 3 * NB                # padded per-channel group in h3 (8-row aligned slices)
    f32 = jnp.float32
    BDRY = 1.0                   # min_d + softplus(log(expm1(1 - min_d))) == 1.0

    def softmax0(u):             # softmax along the (small) sublane axis 0
        m = jnp.max(u, axis=0, keepdims=True)
        e = jnp.exp(u - m)
        return e / jnp.sum(e, axis=0, keepdims=True)

    def softplus(u):             # stable, Mosaic-friendly
        return jnp.maximum(u, 0.0) + jnp.log(1.0 + jnp.exp(-jnp.abs(u)))

    def kernel(p1_ref, xa_ref, xf_ref, tmask_ref, csT_ref,
               w1_ref, b1_ref, w2_ref, b2_ref, w3_ref, b3_ref,
               z_ref, ld_ref):
        # ---- ConvNet: 3x3 conv -> ReLU -> 1x1 conv -> ReLU -> 3x3 conv ----
        # conv1: patches precomputed in the wrapper (already lane-dense).
        h1 = jnp.maximum(
            jnp.dot(w1_ref[...], p1_ref[...], preferred_element_type=f32) + b1_ref[...],
            0.0)                                                    # (HID, N)
        # conv2 (1x1)
        h2 = jnp.maximum(
            jnp.dot(w2_ref[...], h1, preferred_element_type=f32) + b2_ref[...],
            0.0)                                                    # (HID, N)

        # conv3 patches: lane rolls of h2 + precomputed boundary masks (XLU work,
        # no per-image pad/slice/reshape copies).
        tmask = tmask_ref[...]                                      # (9, N)
        rows = []
        for k in range(9):
            dy, dx = divmod(k, 3)
            off = (dy - 1) * W + (dx - 1)
            if off == 0:
                rows.append(h2)
            else:
                shifted = pltpu.roll(h2, shift=(-off) % N, axis=1)  # out[l] = h2[l+off]
                rows.append(shifted * tmask[k:k + 1, :])
        patches3 = jnp.concatenate(rows, axis=0)                    # (9*HID, N)
        h3 = (jnp.dot(w3_ref[...], patches3, preferred_element_type=f32)
              + b3_ref[...])                                        # (CIN*CGRP, N)

        xa = xa_ref[...]                                            # (CIN, N) active (0 on frozen px)
        xf = xf_ref[...]                                            # (CIN, N) frozen part of x
        xcl = jnp.clip(xa, left, right)
        csT = csT_ref[...]                                          # (NB+1, NB) lower triangular

        # ---- per-channel spline parameterisation + bin picks ----
        picks = [[] for _ in range(6)]                              # cw, w, ch, h, d, dp1
        for c in range(CIN):
            base = c * CGRP                                         # 8-row aligned
            uw = h3[base:base + NB, :]                              # (NB, N)
            uh = h3[base + NB:base + 2 * NB, :]
            ud = h3[base + 2 * NB:base + STEP, :]                   # (NB-1, N)

            wb = min_bw + (1.0 - min_bw * NB) * softmax0(uw)
            hb = min_bh + (1.0 - min_bh * NB) * softmax0(uh)
            # knot locations via a constant lower-triangular matmul (MXU, no serial chain)
            cw_b = left + (right - left) * jnp.dot(csT, wb, preferred_element_type=f32)
            ch_b = left + (right - left) * jnp.dot(csT, hb, preferred_element_type=f32)
            cw = jnp.concatenate([cw_b[:NB], jnp.full((1, N), right, f32)], axis=0)
            ch = jnp.concatenate([ch_b[:NB], jnp.full((1, N), right, f32)], axis=0)
            wadj = cw[1:] - cw[:NB]                                 # (NB, N)
            hadj = ch[1:] - ch[:NB]

            brow = jnp.full((1, N), BDRY, f32)
            d = jnp.concatenate([brow, min_d + softplus(ud), brow], axis=0)  # (NB+1, N)

            x_c = xcl[c:c + 1, :]                                   # (1, N)
            upper = jnp.concatenate(
                [cw[1:NB], jnp.full((1, N), right + 1.0, f32)], axis=0)
            sel = ((x_c >= cw[:NB]) & (x_c < upper)).astype(f32)    # one-hot (NB, N)

            for j, v in enumerate((cw[:NB], wadj, ch[:NB], hadj, d[:NB], d[1:NB + 1])):
                picks[j].append(jnp.sum(sel * v, axis=0, keepdims=True))

        in_cw, in_w, in_ch, in_h, in_d, in_dp1 = [
            jnp.concatenate(p, axis=0) for p in picks]              # each (CIN, N)

        # ---- RQS forward, vectorized over all channels at once ----
        inv_w = 1.0 / in_w
        in_delta = in_h * inv_w
        theta = (xcl - in_cw) * inv_w
        th2 = theta * theta
        t1m = theta * (1.0 - theta)
        om = 1.0 - theta
        numer = in_h * (in_delta * th2 + in_d * t1m)
        denom = in_delta + (in_d + in_dp1 - 2.0 * in_delta) * t1m
        y_sp = in_ch + numer / denom
        dnum = (in_delta * in_delta) * (in_dp1 * th2 + 2.0 * in_delta * t1m
                                        + in_d * om * om)
        lad = jnp.log(dnum) - 2.0 * jnp.log(denom)

        inside = (xa >= left) & (xa <= right)
        y = jnp.where(inside, y_sp, xa)                             # linear tails: identity
        lad = jnp.where(inside, lad, 0.0)

        # single lane-dense stores
        z_ref[...] = xf + y                                         # (CIN, N)
        ld_ref[...] = jnp.sum(lad, axis=0, keepdims=True)           # (1, N)

    return kernel


# --------------------------------------------------------------------------------------
# Wrapper (PyTorch-style NCHW in / out)
# --------------------------------------------------------------------------------------
def rqs_checkerboard_forward(x_nchw, cond_nchw, logdet, params, *, parity=0,
                             num_bins=8, tail_bound=3.0, min_bin_width=1e-3,
                             min_bin_height=1e-3, min_derivative=1e-3):
    """Equivalent of MyCheckerboardRQS_per_channel.forward(x, logdet, cond, reverse=False)."""
    f32 = jnp.float32
    B, CIN, H, W = x_nchw.shape
    COND = cond_nchw.shape[1]
    CNET_IN = CIN + COND
    HID = params['w2'].shape[0]
    NB = num_bins
    STEP = 3 * NB - 1
    CGRP = 3 * NB
    COUT = CIN * STEP
    HW = H * W

    # Two parallel grid steps when possible (both v7x TensorCores busy); on a single
    # TC (v5e/v6e) the extra step only adds ~0.35us of fixed overhead.
    nsteps = 2 if (B % 2 == 0) else 1
    BB = B // nsteps
    N = BB * HW

    x = x_nchw.astype(f32)
    cond = cond_nchw.astype(f32)

    # checkerboard mask (make_checker_mask semantics): mask==1 -> frozen
    ii = jnp.arange(H)[:, None]
    jj = jnp.arange(W)[None, :]
    mask2d = jnp.where((ii + jj) % 2 == 0, float(parity), float(1 - parity)).astype(f32)

    x_frozen = mask2d[None, None] * x
    x_active = (1.0 - mask2d)[None, None] * x

    # ---- wrapper-side im2col for conv1: (9*CNET_IN, B*HW), HW on lanes ----
    inp = jnp.concatenate([x_frozen, cond], axis=1)               # (B, CNET_IN, H, W)
    inp_pad = jnp.pad(inp, ((0, 0), (0, 0), (1, 1), (1, 1)))
    taps = [inp_pad[:, :, dy:dy + H, dx:dx + W] for dy in range(3) for dx in range(3)]
    p1 = jnp.stack(taps, axis=1).reshape(B, 9 * CNET_IN, HW)      # row = k*CNET_IN + c
    patches1 = jnp.transpose(p1, (1, 0, 2)).reshape(9 * CNET_IN, B * HW)

    # ---- lane-dense per-channel active / frozen x rows ----
    xa_flat = jnp.transpose(x_active, (1, 0, 2, 3)).reshape(CIN, B * HW)
    xf_flat = jnp.transpose(x_frozen, (1, 0, 2, 3)).reshape(CIN, B * HW)

    # ---- per-tap boundary masks for the in-kernel rolled conv3 patches ----
    tap_rows = []
    for dy in range(3):
        for dx in range(3):
            oy, ox = dy - 1, dx - 1
            m = ((ii + oy >= 0) & (ii + oy < H) & (jj + ox >= 0) & (jj + ox < W))
            tap_rows.append(m.astype(f32).reshape(1, HW))
    tap_masks = jnp.tile(jnp.concatenate(tap_rows, axis=0), (1, BB))      # (9, BB*HW)

    # lower-triangular cumsum matrix for the spline knots
    rr = jnp.arange(NB + 1)[:, None]
    kk = jnp.arange(NB)[None, :]
    csT = (kk < rr).astype(f32)                                           # (NB+1, NB)

    # ConvNet weights pre-transposed for "W^T @ patches" matmuls.
    w1t = params['w1'].reshape(9 * CNET_IN, HID).T.astype(f32)            # (HID, 9*CNET_IN)
    b1c = params['b1'].reshape(HID, 1).astype(f32)
    w2t = params['w2'].T.astype(f32)                                      # (HID, HID)
    b2c = params['b2'].reshape(HID, 1).astype(f32)
    # conv3 weight rows reordered per channel to [widths(NB), heights(NB), derivs(NB-1), pad]
    # so every in-kernel h3 slice starts on an 8-row (sublane) boundary.
    w3t_full = params['w3'].reshape(9 * HID, COUT).T.astype(f32)          # (COUT, 9*HID)
    b3_full = params['b3'].reshape(COUT, 1).astype(f32)
    wrows, brows = [], []
    for c in range(CIN):
        wrows += [w3t_full[c * STEP:(c + 1) * STEP], jnp.zeros((1, 9 * HID), f32)]
        brows += [b3_full[c * STEP:(c + 1) * STEP], jnp.zeros((1, 1), f32)]
    w3t = jnp.concatenate(wrows, axis=0)                                  # (CIN*CGRP, 9*HID)
    b3c = jnp.concatenate(brows, axis=0)                                  # (CIN*CGRP, 1)

    kernel = _make_kernel(H, W, CIN, HID, NB, N, -tail_bound, tail_bound,
                          min_bin_width, min_bin_height, min_derivative)

    grid_spec = pltpu.PrefetchScalarGridSpec(
        num_scalar_prefetch=0,
        grid=(nsteps,),
        in_specs=[
            pl.BlockSpec((9 * CNET_IN, N), lambda b: (0, b)),     # conv1 patches
            pl.BlockSpec((CIN, N), lambda b: (0, b)),             # x active
            pl.BlockSpec((CIN, N), lambda b: (0, b)),             # x frozen
            pl.BlockSpec((9, N), lambda b: (0, 0)),               # tap boundary masks
            pl.BlockSpec((NB + 1, NB), lambda b: (0, 0)),         # cumsum matrix
            pl.BlockSpec((HID, 9 * CNET_IN), lambda b: (0, 0)),
            pl.BlockSpec((HID, 1), lambda b: (0, 0)),
            pl.BlockSpec((HID, HID), lambda b: (0, 0)),
            pl.BlockSpec((HID, 1), lambda b: (0, 0)),
            pl.BlockSpec((CIN * CGRP, 9 * HID), lambda b: (0, 0)),
            pl.BlockSpec((CIN * CGRP, 1), lambda b: (0, 0)),
        ],
        out_specs=[
            pl.BlockSpec((CIN, N), lambda b: (0, b)),             # z (channel, b*HW+hw)
            pl.BlockSpec((1, N), lambda b: (0, b)),               # per-pixel logdet row
        ],
    )

    z_cn, ld_row = pl.pallas_call(
        kernel,
        out_shape=(jax.ShapeDtypeStruct((CIN, B * HW), f32),
                   jax.ShapeDtypeStruct((1, B * HW), f32)),
        grid_spec=grid_spec,
        compiler_params=pltpu.CompilerParams(dimension_semantics=("parallel",)),
    )(patches1, xa_flat, xf_flat, tap_masks, csT, w1t, b1c, w2t, b2c, w3t, b3c)

    # layout plumbing only (small XLA transpose / reshape)
    z = jnp.transpose(z_cn.reshape(CIN, B, H, W), (1, 0, 2, 3))
    logdet_out = logdet + jnp.sum(ld_row.reshape(B, HW), axis=1)
    return z, logdet_out


# --------------------------------------------------------------------------------------
# Pure-JAX reference (standard nflows unconstrained RQS, linear tails)
# --------------------------------------------------------------------------------------
def _reference_unconstrained_rqs(x, uw, uh, ud, num_bins, tail_bound,
                                 min_bw, min_bh, min_d):
    left = bottom = -tail_bound
    right = top = tail_bound
    K = num_bins
    inside = (x >= left) & (x <= right)

    constant = math.log(math.expm1(1.0 - min_d))
    pad_shape = ud.shape[:-1] + (1,)
    ud = jnp.concatenate([jnp.full(pad_shape, constant, ud.dtype), ud,
                          jnp.full(pad_shape, constant, ud.dtype)], axis=-1)

    widths = jax.nn.softmax(uw, axis=-1)
    widths = min_bw + (1.0 - min_bw * K) * widths
    cumw = jnp.concatenate([jnp.zeros(pad_shape, uw.dtype),
                            jnp.cumsum(widths, axis=-1)], axis=-1)
    cumw = (right - left) * cumw + left
    cumw = cumw.at[..., 0].set(left).at[..., -1].set(right)
    widths = cumw[..., 1:] - cumw[..., :-1]

    derivs = min_d + jax.nn.softplus(ud)

    heights = jax.nn.softmax(uh, axis=-1)
    heights = min_bh + (1.0 - min_bh * K) * heights
    cumh = jnp.concatenate([jnp.zeros(pad_shape, uh.dtype),
                            jnp.cumsum(heights, axis=-1)], axis=-1)
    cumh = (top - bottom) * cumh + bottom
    cumh = cumh.at[..., 0].set(bottom).at[..., -1].set(top)
    heights = cumh[..., 1:] - cumh[..., :-1]

    xcl = jnp.clip(x, left, right)
    bin_loc = cumw.at[..., -1].add(1e-6)
    idx = jnp.sum((xcl[..., None] >= bin_loc).astype(jnp.int32), axis=-1) - 1
    idx = jnp.clip(idx, 0, K - 1)

    def gather(v):
        return jnp.take_along_axis(v, idx[..., None], axis=-1)[..., 0]

    in_cw = gather(cumw[..., :K]);  in_w = gather(widths)
    in_ch = gather(cumh[..., :K]);  in_h = gather(heights)
    in_delta = gather(heights / widths)
    in_d = gather(derivs[..., :K]); in_dp1 = gather(derivs[..., 1:K + 1])

    theta = (xcl - in_cw) / in_w
    t1m = theta * (1.0 - theta)
    numer = in_h * (in_delta * theta ** 2 + in_d * t1m)
    denom = in_delta + (in_d + in_dp1 - 2.0 * in_delta) * t1m
    y = in_ch + numer / denom
    dnum = in_delta ** 2 * (in_dp1 * theta ** 2 + 2.0 * in_delta * t1m
                            + in_d * (1.0 - theta) ** 2)
    lad = jnp.log(dnum) - 2.0 * jnp.log(denom)

    y = jnp.where(inside, y, x)
    lad = jnp.where(inside, lad, jnp.zeros_like(lad))
    return y, lad


def reference_forward(x, cond, logdet, params, *, parity=0, num_bins=8,
                      tail_bound=3.0, min_bw=1e-3, min_bh=1e-3, min_d=1e-3):
    B, CIN, H, W = x.shape
    f32 = jnp.float32
    step = 3 * num_bins - 1

    ii = jnp.arange(H)[:, None]
    jj = jnp.arange(W)[None, :]
    mask = jnp.where((ii + jj) % 2 == 0, float(parity), float(1 - parity))
    mask = mask.astype(f32)[None, None]                           # (1,1,H,W)

    def conv(xx, w_hwio, b, pad):
        out = lax.conv_general_dilated(
            xx, w_hwio, (1, 1), [(pad, pad), (pad, pad)],
            dimension_numbers=('NCHW', 'HWIO', 'NCHW'),
            precision=lax.Precision.HIGHEST)
        return out + b.reshape(1, -1, 1, 1)

    x_frozen = mask * x
    x_active = (1.0 - mask) * x
    inp = jnp.concatenate([x_frozen, cond], axis=1)
    h = jax.nn.relu(conv(inp, params['w1'], params['b1'], 1))
    h = jax.nn.relu(conv(h, params['w2'][None, None], params['b2'], 0))
    pr = conv(h, params['w3'], params['b3'], 1)                   # (B, CIN*step, H, W)

    z = jnp.zeros_like(x)
    ld = logdet
    for c in range(CIN):
        cp = pr[:, c * step:(c + 1) * step]                       # (B, step, H, W)
        cp = jnp.transpose(cp, (0, 2, 3, 1)).reshape(-1, step)    # per-pixel params
        xa = x_active[:, c].reshape(-1)
        y, lad = _reference_unconstrained_rqs(
            xa, cp[:, :num_bins], cp[:, num_bins:2 * num_bins], cp[:, 2 * num_bins:],
            num_bins, tail_bound, min_bw, min_bh, min_d)
        z = z.at[:, c].set(x_frozen[:, c] + y.reshape(B, H, W))
        ld = ld + jnp.sum(lad.reshape(B, H, W), axis=(1, 2))
    return z, ld


# --------------------------------------------------------------------------------------
if __name__ == "__main__":
    B, CIN, H, W, HID = 4, 4, 16, 16, 32
    NUM_BINS = 8
    COND = CIN // 3                     # module: in_channels // 3 conditioning channels
    STEP = 3 * NUM_BINS - 1
    COUT = CIN * STEP

    key = jax.random.PRNGKey(0)
    ks = jax.random.split(key, 8)
    params = {
        'w1': jax.random.normal(ks[0], (3, 3, CIN + COND, HID), jnp.float32) * 0.1,
        'b1': jax.random.normal(ks[1], (HID,), jnp.float32) * 0.1,
        'w2': jax.random.normal(ks[2], (HID, HID), jnp.float32) * 0.1,
        'b2': jax.random.normal(ks[3], (HID,), jnp.float32) * 0.1,
        'w3': jax.random.normal(ks[4], (3, 3, HID, COUT), jnp.float32) * 0.1,
        'b3': jax.random.normal(ks[5], (COUT,), jnp.float32) * 0.1,
    }
    x = jax.random.normal(ks[6], (B, CIN, H, W), jnp.float32)
    cond = jax.random.normal(ks[7], (B, COND, H, W), jnp.float32)
    logdet = jnp.zeros((B,), jnp.float32)

    z, ld = rqs_checkerboard_forward(x, cond, logdet, params, parity=0, num_bins=NUM_BINS)
    jax.block_until_ready((z, ld))

    z_ref, ld_ref = reference_forward(x, cond, logdet, params, parity=0, num_bins=NUM_BINS)
    assert z.shape == (B, CIN, H, W) and ld.shape == (B,)
    err_z = float(jnp.max(jnp.abs(z - z_ref)))
    err_l = float(jnp.max(jnp.abs(ld - ld_ref)))
    assert jnp.allclose(z, z_ref, atol=1e-2, rtol=1e-2), \
        f"z mismatch vs reference (max abs err {err_z})"
    assert jnp.allclose(ld, ld_ref, atol=0.5, rtol=1e-2), \
        f"logdet mismatch vs reference (max abs err {err_l})"

    print("KERNEL_OK")
</pallas_src>

<mosaic_0001>
module attributes {stable_mosaic.version = 11 : i64} {
  func.func @kernel(%arg0: i32, %arg1: memref<45x512xf32, #tpu.memory_space<vmem>>, %arg2: memref<4x512xf32, #tpu.memory_space<vmem>>, %arg3: memref<4x512xf32, #tpu.memory_space<vmem>>, %arg4: memref<9x512xf32, #tpu.memory_space<vmem>>, %arg5: memref<9x8xf32, #tpu.memory_space<vmem>>, %arg6: memref<32x45xf32, #tpu.memory_space<vmem>>, %arg7: memref<32x1xf32, #tpu.memory_space<vmem>>, %arg8: memref<32x32xf32, #tpu.memory_space<vmem>>, %arg9: memref<32x1xf32, #tpu.memory_space<vmem>>, %arg10: memref<96x288xf32, #tpu.memory_space<vmem>>, %arg11: memref<96x1xf32, #tpu.memory_space<vmem>>, %arg12: memref<4x512xf32, #tpu.memory_space<vmem>>, %arg13: memref<1x512xf32, #tpu.memory_space<vmem>>) attributes {dimension_semantics = [#tpu.dimension_semantics<parallel>], iteration_bounds = array<i64: 2>, scalar_prefetch = 0 : i64, scratch_operands = 0 : i64, tpu.core_type = #tpu.core_type<tc>, window_params = [{transform_indices = @transform_0, window_bounds = array<i64: 45, 512>}, {transform_indices = @transform_1, window_bounds = array<i64: 4, 512>}, {transform_indices = @transform_2, window_bounds = array<i64: 4, 512>}, {pipeline_mode = #tpu.pipeline_mode<synchronous>, transform_indices = @transform_3, window_bounds = array<i64: 9, 512>}, {pipeline_mode = #tpu.pipeline_mode<synchronous>, transform_indices = @transform_4, window_bounds = array<i64: 9, 8>}, {pipeline_mode = #tpu.pipeline_mode<synchronous>, transform_indices = @transform_5, window_bounds = array<i64: 32, 45>}, {pipeline_mode = #tpu.pipeline_mode<synchronous>, transform_indices = @transform_6, window_bounds = array<i64: 32, 1>}, {pipeline_mode = #tpu.pipeline_mode<synchronous>, transform_indices = @transform_7, window_bounds = array<i64: 32, 32>}, {pipeline_mode = #tpu.pipeline_mode<synchronous>, transform_indices = @transform_8, window_bounds = array<i64: 32, 1>}, {pipeline_mode = #tpu.pipeline_mode<synchronous>, transform_indices = @transform_9, window_bounds = array<i64: 96, 288>}, {pipeline_mode = #tpu.pipeline_mode<synchronous>, transform_indices = @transform_10, window_bounds = array<i64: 96, 1>}, {transform_indices = @transform_11, window_bounds = array<i64: 4, 512>}, {transform_indices = @transform_12, window_bounds = array<i64: 1, 512>}]} {
    %c0 = arith.constant 0 : index
    %c0_0 = arith.constant 0 : index
    %0 = vector.load %arg6[%c0, %c0_0] : memref<32x45xf32, #tpu.memory_space<vmem>>, vector<32x45xf32>
    %c0_1 = arith.constant 0 : index
    %c0_2 = arith.constant 0 : index
    %1 = vector.load %arg1[%c0_1, %c0_2] : memref<45x512xf32, #tpu.memory_space<vmem>>, vector<45x512xf32>
    %cst = arith.constant dense<0.000000e+00> : vector<32x512xf32>
    %2 = tpu.matmul %0, %1, %cst {dimension_numbers = #tpu.dot_dimension_numbers<[1], [0], [0], [1], [0, 0, 1, 1], [], []>} : vector<32x45xf32>, vector<45x512xf32>, vector<32x512xf32> -> vector<32x512xf32>
    %c0_3 = arith.constant 0 : index
    %c0_4 = arith.constant 0 : index
    %3 = vector.load %arg7[%c0_3, %c0_4] : memref<32x1xf32, #tpu.memory_space<vmem>>, vector<32x1xf32>
    %4 = vector.broadcast %3 : vector<32x1xf32> to vector<32x512xf32>
    %5 = arith.addf %2, %4 : vector<32x512xf32>
    %cst_5 = arith.constant 0.000000e+00 : f32
    %6 = vector.broadcast %cst_5 : f32 to vector<32x512xf32>
    %7 = arith.maximumf %5, %6 : vector<32x512xf32>
    %c0_6 = arith.constant 0 : index
    %c0_7 = arith.constant 0 : index
    %8 = vector.load %arg8[%c0_6, %c0_7] : memref<32x32xf32, #tpu.memory_space<vmem>>, vector<32x32xf32>
    %cst_8 = arith.constant dense<0.000000e+00> : vector<32x512xf32>
    %9 = tpu.matmul %8, %7, %cst_8 {dimension_numbers = #tpu.dot_dimension_numbers<[1], [0], [0], [1], [0, 0, 1, 1], [], []>} : vector<32x32xf32>, vector<32x512xf32>, vector<32x512xf32> -> vector<32x512xf32>
    %c0_9 = arith.constant 0 : index
    %c0_10 = arith.constant 0 : index
    %10 = vector.load %arg9[%c0_9, %c0_10] : memref<32x1xf32, #tpu.memory_space<vmem>>, vector<32x1xf32>
    %11 = vector.broadcast %10 : vector<32x1xf32> to vector<32x512xf32>
    %12 = arith.addf %9, %11 : vector<32x512xf32>
    %cst_11 = arith.constant 0.000000e+00 : f32
    %13 = vector.broadcast %cst_11 : f32 to vector<32x512xf32>
    %14 = arith.maximumf %12, %13 : vector<32x512xf32>
    %c0_12 = arith.constant 0 : index
    %c0_13 = arith.constant 0 : index
    %15 = vector.load %arg4[%c0_12, %c0_13] : memref<9x512xf32, #tpu.memory_space<vmem>>, vector<9x512xf32>
    %c17_i32 = arith.constant 17 : i32
    %16 = tpu.dynamic_rotate %14 by %c17_i32 dim 1 : vector<32x512xf32>, i32 -> vector<32x512xf32>
    %17 = vector.extract_strided_slice %15 {offsets = [0, 0], sizes = [1, 512], strides = [1, 1]} : vector<9x512xf32> to vector<1x512xf32>
    %18 = vector.broadcast %17 : vector<1x512xf32> to vector<32x512xf32>
    %19 = arith.mulf %16, %18 : vector<32x512xf32>
    %c16_i32 = arith.constant 16 : i32
    %20 = tpu.dynamic_rotate %14 by %c16_i32 dim 1 : vector<32x512xf32>, i32 -> vector<32x512xf32>
    %21 = vector.extract_strided_slice %15 {offsets = [1, 0], sizes = [1, 512], strides = [1, 1]} : vector<9x512xf32> to vector<1x512xf32>
    %22 = vector.broadcast %21 : vector<1x512xf32> to vector<32x512xf32>
    %23 = arith.mulf %20, %22 : vector<32x512xf32>
    %c15_i32 = arith.constant 15 : i32
    %24 = tpu.dynamic_rotate %14 by %c15_i32 dim 1 : vector<32x512xf32>, i32 -> vector<32x512xf32>
    %25 = vector.extract_strided_slice %15 {offsets = [2, 0], sizes = [1, 512], strides = [1, 1]} : vector<9x512xf32> to vector<1x512xf32>
    %26 = vector.broadcast %25 : vector<1x512xf32> to vector<32x512xf32>
    %27 = arith.mulf %24, %26 : vector<32x512xf32>
    %c1_i32 = arith.constant 1 : i32
    %28 = tpu.dynamic_rotate %14 by %c1_i32 dim 1 : vector<32x512xf32>, i32 -> vector<32x512xf32>
    %29 = vector.extract_strided_slice %15 {offsets = [3, 0], sizes = [1, 512], strides = [1, 1]} : vector<9x512xf32> to vector<1x512xf32>
    %30 = vector.broadcast %29 : vector<1x512xf32> to vector<32x512xf32>
    %31 = arith.mulf %28, %30 : vector<32x512xf32>
    %c511_i32 = arith.constant 511 : i32
    %32 = tpu.dynamic_rotate %14 by %c511_i32 dim 1 : vector<32x512xf32>, i32 -> vector<32x512xf32>
    %33 = vector.extract_strided_slice %15 {offsets = [5, 0], sizes = [1, 512], strides = [1, 1]} : vector<9x512xf32> to vector<1x512xf32>
    %34 = vector.broadcast %33 : vector<1x512xf32> to vector<32x512xf32>
    %35 = arith.mulf %32, %34 : vector<32x512xf32>
    %c497_i32 = arith.constant 497 : i32
    %36 = tpu.dynamic_rotate %14 by %c497_i32 dim 1 : vector<32x512xf32>, i32 -> vector<32x512xf32>
    %37 = vector.extract_strided_slice %15 {offsets = [6, 0], sizes = [1, 512], strides = [1, 1]} : vector<9x512xf32> to vector<1x512xf32>
    %38 = vector.broadcast %37 : vector<1x512xf32> to vector<32x512xf32>
    %39 = arith.mulf %36, %38 : vector<32x512xf32>
    %c496_i32 = arith.constant 496 : i32
    %40 = tpu.dynamic_rotate %14 by %c496_i32 dim 1 : vector<32x512xf32>, i32 -> vector<32x512xf32>
    %41 = vector.extract_strided_slice %15 {offsets = [7, 0], sizes = [1, 512], strides = [1, 1]} : vector<9x512xf32> to vector<1x512xf32>
    %42 = vector.broadcast %41 : vector<1x512xf32> to vector<32x512xf32>
    %43 = arith.mulf %40, %42 : vector<32x512xf32>
    %c495_i32 = arith.constant 495 : i32
    %44 = tpu.dynamic_rotate %14 by %c495_i32 dim 1 : vector<32x512xf32>, i32 -> vector<32x512xf32>
    %45 = vector.extract_strided_slice %15 {offsets = [8, 0], sizes = [1, 512], strides = [1, 1]} : vector<9x512xf32> to vector<1x512xf32>
    %46 = vector.broadcast %45 : vector<1x512xf32> to vector<32x512xf32>
    %47 = arith.mulf %44, %46 : vector<32x512xf32>
    %48 = tpu.concatenate %19, %23, %27, %31, %14, %35, %39, %43, %47 in 0 : vector<32x512xf32>, vector<32x512xf32>, vector<32x512xf32>, vector<32x512xf32>, vector<32x512xf32>, vector<32x512xf32>, vector<32x512xf32>, vector<32x512xf32>, vector<32x512xf32> -> vector<288x512xf32>
    %c0_14 = arith.constant 0 : index
    %c0_15 = arith.constant 0 : index
    %49 = vector.load %arg10[%c0_14, %c0_15] : memref<96x288xf32, #tpu.memory_space<vmem>>, vector<96x288xf32>
    %cst_16 = arith.constant dense<0.000000e+00> : vector<96x512xf32>
    %50 = tpu.matmul %49, %48, %cst_16 {dimension_numbers = #tpu.dot_dimension_numbers<[1], [0], [0], [1], [0, 0, 1, 1], [], []>} : vector<96x288xf32>, vector<288x512xf32>, vector<96x512xf32> -> vector<96x512xf32>
    %c0_17 = arith.constant 0 : index
    %c0_18 = arith.constant 0 : index
    %51 = vector.load %arg11[%c0_17, %c0_18] : memref<96x1xf32, #tpu.memory_space<vmem>>, vector<96x1xf32>
    %52 = vector.broadcast %51 : vector<96x1xf32> to vector<96x512xf32>
    %53 = arith.addf %50, %52 : vector<96x512xf32>
    %c0_19 = arith.constant 0 : index
    %c0_20 = arith.constant 0 : index
    %54 = vector.load %arg2[%c0_19, %c0_20] : memref<4x512xf32, #tpu.memory_space<vmem>>, vector<4x512xf32>
    %c0_21 = arith.constant 0 : index
    %c0_22 = arith.constant 0 : index
    %55 = vector.load %arg3[%c0_21, %c0_22] : memref<4x512xf32, #tpu.memory_space<vmem>>, vector<4x512xf32>
    %cst_23 = arith.constant -3.000000e+00 : f32
    %cst_24 = arith.constant 3.000000e+00 : f32
    %56 = vector.broadcast %cst_23 : f32 to vector<4x512xf32>
    %57 = arith.maximumf %56, %54 : vector<4x512xf32>
    %58 = vector.broadcast %cst_24 : f32 to vector<4x512xf32>
    %59 = arith.minimumf %58, %57 : vector<4x512xf32>
    %c0_25 = arith.constant 0 : index
    %c0_26 = arith.constant 0 : index
    %60 = vector.load %arg5[%c0_25, %c0_26] : memref<9x8xf32, #tpu.memory_space<vmem>>, vector<9x8xf32>
    %61 = vector.extract_strided_slice %53 {offsets = [0, 0], sizes = [8, 512], strides = [1, 1]} : vector<96x512xf32> to vector<8x512xf32>
    %62 = vector.extract_strided_slice %53 {offsets = [8, 0], sizes = [8, 512], strides = [1, 1]} : vector<96x512xf32> to vector<8x512xf32>
    %63 = vector.extract_strided_slice %53 {offsets = [16, 0], sizes = [7, 512], strides = [1, 1]} : vector<96x512xf32> to vector<7x512xf32>
    %cst_27 = arith.constant dense<0xFF800000> : vector<512xf32>
    %64 = vector.multi_reduction <maximumf>, %61, %cst_27 [0] : vector<8x512xf32> to vector<512xf32>
    %65 = vector.shape_cast %64 : vector<512xf32> to vector<1x512xf32>
    %66 = vector.broadcast %65 : vector<1x512xf32> to vector<8x512xf32>
    %67 = arith.subf %61, %66 : vector<8x512xf32>
    %68 = math.exp %67 : vector<8x512xf32>
    %cst_28 = arith.constant dense<0.000000e+00> : vector<512xf32>
    %69 = vector.multi_reduction <add>, %68, %cst_28 [0] : vector<8x512xf32> to vector<512xf32>
    %70 = vector.shape_cast %69 : vector<512xf32> to vector<1x512xf32>
    %71 = vector.broadcast %70 : vector<1x512xf32> to vector<8x512xf32>
    %72 = arith.divf %68, %71 : vector<8x512xf32>
    %cst_29 = arith.constant 0.991999983 : f32
    %73 = vector.broadcast %cst_29 : f32 to vector<8x512xf32>
    %74 = arith.mulf %73, %72 : vector<8x512xf32>
    %cst_30 = arith.constant 1.000000e-03 : f32
    %75 = vector.broadcast %cst_30 : f32 to vector<8x512xf32>
    %76 = arith.addf %75, %74 : vector<8x512xf32>
    %cst_31 = arith.constant dense<0xFF800000> : vector<512xf32>
    %77 = vector.multi_reduction <maximumf>, %62, %cst_31 [0] : vector<8x512xf32> to vector<512xf32>
    %78 = vector.shape_cast %77 : vector<512xf32> to vector<1x512xf32>
    %79 = vector.broadcast %78 : vector<1x512xf32> to vector<8x512xf32>
    %80 = arith.subf %62, %79 : vector<8x512xf32>
    %81 = math.exp %80 : vector<8x512xf32>
    %cst_32 = arith.constant dense<0.000000e+00> : vector<512xf32>
    %82 = vector.multi_reduction <add>, %81, %cst_32 [0] : vector<8x512xf32> to vector<512xf32>
    %83 = vector.shape_cast %82 : vector<512xf32> to vector<1x512xf32>
    %84 = vector.broadcast %83 : vector<1x512xf32> to vector<8x512xf32>
    %85 = arith.divf %81, %84 : vector<8x512xf32>
    %cst_33 = arith.constant 0.991999983 : f32
    %86 = vector.broadcast %cst_33 : f32 to vector<8x512xf32>
    %87 = arith.mulf %86, %85 : vector<8x512xf32>
    %cst_34 = arith.constant 1.000000e-03 : f32
    %88 = vector.broadcast %cst_34 : f32 to vector<8x512xf32>
    %89 = arith.addf %88, %87 : vector<8x512xf32>
    %cst_35 = arith.constant dense<0.000000e+00> : vector<9x512xf32>
    %90 = tpu.matmul %60, %76, %cst_35 {dimension_numbers = #tpu.dot_dimension_numbers<[1], [0], [0], [1], [0, 0, 1, 1], [], []>} : vector<9x8xf32>, vector<8x512xf32>, vector<9x512xf32> -> vector<9x512xf32>
    %cst_36 = arith.constant 6.000000e+00 : f32
    %91 = vector.broadcast %cst_36 : f32 to vector<9x512xf32>
    %92 = arith.mulf %91, %90 : vector<9x512xf32>
    %cst_37 = arith.constant -3.000000e+00 : f32
    %93 = vector.broadcast %cst_37 : f32 to vector<9x512xf32>
    %94 = arith.addf %93, %92 : vector<9x512xf32>
    %cst_38 = arith.constant dense<0.000000e+00> : vector<9x512xf32>
    %95 = tpu.matmul %60, %89, %cst_38 {dimension_numbers = #tpu.dot_dimension_numbers<[1], [0], [0], [1], [0, 0, 1, 1], [], []>} : vector<9x8xf32>, vector<8x512xf32>, vector<9x512xf32> -> vector<9x512xf32>
    %cst_39 = arith.constant 6.000000e+00 : f32
    %96 = vector.broadcast %cst_39 : f32 to vector<9x512xf32>
    %97 = arith.mulf %96, %95 : vector<9x512xf32>
    %cst_40 = arith.constant -3.000000e+00 : f32
    %98 = vector.broadcast %cst_40 : f32 to vector<9x512xf32>
    %99 = arith.addf %98, %97 : vector<9x512xf32>
    %100 = vector.extract_strided_slice %94 {offsets = [0, 0], sizes = [8, 512], strides = [1, 1]} : vector<9x512xf32> to vector<8x512xf32>
    %cst_41 = arith.constant 3.000000e+00 : f32
    %101 = vector.broadcast %cst_41 : f32 to vector<1x512xf32>
    %102 = tpu.concatenate %100, %101 in 0 : vector<8x512xf32>, vector<1x512xf32> -> vector<9x512xf32>
    %103 = vector.extract_strided_slice %99 {offsets = [0, 0], sizes = [8, 512], strides = [1, 1]} : vector<9x512xf32> to vector<8x512xf32>
    %cst_42 = arith.constant 3.000000e+00 : f32
    %104 = vector.broadcast %cst_42 : f32 to vector<1x512xf32>
    %105 = tpu.concatenate %103, %104 in 0 : vector<8x512xf32>, vector<1x512xf32> -> vector<9x512xf32>
    %106 = vector.extract_strided_slice %102 {offsets = [1, 0], sizes = [8, 512], strides = [1, 1]} : vector<9x512xf32> to vector<8x512xf32>
    %107 = vector.extract_strided_slice %102 {offsets = [0, 0], sizes = [8, 512], strides = [1, 1]} : vector<9x512xf32> to vector<8x512xf32>
    %108 = arith.subf %106, %107 : vector<8x512xf32>
    %109 = vector.extract_strided_slice %105 {offsets = [1, 0], sizes = [8, 512], strides = [1, 1]} : vector<9x512xf32> to vector<8x512xf32>
    %110 = vector.extract_strided_slice %105 {offsets = [0, 0], sizes = [8, 512], strides = [1, 1]} : vector<9x512xf32> to vector<8x512xf32>
    %111 = arith.subf %109, %110 : vector<8x512xf32>
    %cst_43 = arith.constant 1.000000e+00 : f32
    %112 = vector.broadcast %cst_43 : f32 to vector<1x512xf32>
    %cst_44 = arith.constant 0.000000e+00 : f32
    %113 = vector.broadcast %cst_44 : f32 to vector<7x512xf32>
    %114 = arith.maximumf %63, %113 : vector<7x512xf32>
    %115 = math.absf %63 : vector<7x512xf32>
    %cst_45 = arith.constant 0.000000e+00 : f32
    %116 = vector.broadcast %cst_45 : f32 to vector<7x512xf32>
    %117 = arith.subf %116, %115 : vector<7x512xf32>
    %118 = math.exp %117 : vector<7x512xf32>
    %cst_46 = arith.constant 1.000000e+00 : f32
    %119 = vector.broadcast %cst_46 : f32 to vector<7x512xf32>
    %120 = arith.addf %119, %118 : vector<7x512xf32>
    %121 = math.log %120 : vector<7x512xf32>
    %122 = arith.addf %114, %121 : vector<7x512xf32>
    %cst_47 = arith.constant 1.000000e-03 : f32
    %123 = vector.broadcast %cst_47 : f32 to vector<7x512xf32>
    %124 = arith.addf %123, %122 : vector<7x512xf32>
    %125 = tpu.concatenate %112, %124, %112 in 0 : vector<1x512xf32>, vector<7x512xf32>, vector<1x512xf32> -> vector<9x512xf32>
    %126 = vector.extract_strided_slice %59 {offsets = [0, 0], sizes = [1, 512], strides = [1, 1]} : vector<4x512xf32> to vector<1x512xf32>
    %127 = vector.extract_strided_slice %102 {offsets = [1, 0], sizes = [7, 512], strides = [1, 1]} : vector<9x512xf32> to vector<7x512xf32>
    %cst_48 = arith.constant 4.000000e+00 : f32
    %128 = vector.broadcast %cst_48 : f32 to vector<1x512xf32>
    %129 = tpu.concatenate %127, %128 in 0 : vector<7x512xf32>, vector<1x512xf32> -> vector<8x512xf32>
    %130 = vector.extract_strided_slice %102 {offsets = [0, 0], sizes = [8, 512], strides = [1, 1]} : vector<9x512xf32> to vector<8x512xf32>
    %131 = vector.broadcast %126 : vector<1x512xf32> to vector<8x512xf32>
    %132 = arith.cmpf oge, %131, %130 : vector<8x512xf32>
    %133 = vector.broadcast %126 : vector<1x512xf32> to vector<8x512xf32>
    %134 = arith.cmpf olt, %133, %129 : vector<8x512xf32>
    %135 = arith.andi %132, %134 : vector<8x512xi1>
    %136 = arith.extui %135 : vector<8x512xi1> to vector<8x512xi32>
    %137 = arith.sitofp %136 : vector<8x512xi32> to vector<8x512xf32>
    %138 = vector.extract_strided_slice %102 {offsets = [0, 0], sizes = [8, 512], strides = [1, 1]} : vector<9x512xf32> to vector<8x512xf32>
    %139 = vector.extract_strided_slice %105 {offsets = [0, 0], sizes = [8, 512], strides = [1, 1]} : vector<9x512xf32> to vector<8x512xf32>
    %140 = vector.extract_strided_slice %125 {offsets = [0, 0], sizes = [8, 512], strides = [1, 1]} : vector<9x512xf32> to vector<8x512xf32>
    %141 = vector.extract_strided_slice %125 {offsets = [1, 0], sizes = [8, 512], strides = [1, 1]} : vector<9x512xf32> to vector<8x512xf32>
    %142 = arith.mulf %137, %138 : vector<8x512xf32>
    %cst_49 = arith.constant dense<0.000000e+00> : vector<512xf32>
    %143 = vector.multi_reduction <add>, %142, %cst_49 [0] : vector<8x512xf32> to vector<512xf32>
    %144 = vector.shape_cast %143 : vector<512xf32> to vector<1x512xf32>
    %145 = arith.mulf %137, %108 : vector<8x512xf32>
    %cst_50 = arith.constant dense<0.000000e+00> : vector<512xf32>
    %146 = vector.multi_reduction <add>, %145, %cst_50 [0] : vector<8x512xf32> to vector<512xf32>
    %147 = vector.shape_cast %146 : vector<512xf32> to vector<1x512xf32>
    %148 = arith.mulf %137, %139 : vector<8x512xf32>
    %cst_51 = arith.constant dense<0.000000e+00> : vector<512xf32>
    %149 = vector.multi_reduction <add>, %148, %cst_51 [0] : vector<8x512xf32> to vector<512xf32>
    %150 = vector.shape_cast %149 : vector<512xf32> to vector<1x512xf32>
    %151 = arith.mulf %137, %111 : vector<8x512xf32>
    %cst_52 = arith.constant dense<0.000000e+00> : vector<512xf32>
    %152 = vector.multi_reduction <add>, %151, %cst_52 [0] : vector<8x512xf32> to vector<512xf32>
    %153 = vector.shape_cast %152 : vector<512xf32> to vector<1x512xf32>
    %154 = arith.mulf %137, %140 : vector<8x512xf32>
    %cst_53 = arith.constant dense<0.000000e+00> : vector<512xf32>
    %155 = vector.multi_reduction <add>, %154, %cst_53 [0] : vector<8x512xf32> to vector<512xf32>
    %156 = vector.shape_cast %155 : vector<512xf32> to vector<1x512xf32>
    %157 = arith.mulf %137, %141 : vector<8x512xf32>
    %cst_54 = arith.constant dense<0.000000e+00> : vector<512xf32>
    %158 = vector.multi_reduction <add>, %157, %cst_54 [0] : vector<8x512xf32> to vector<512xf32>
    %159 = vector.shape_cast %158 : vector<512xf32> to vector<1x512xf32>
    %160 = vector.extract_strided_slice %53 {offsets = [24, 0], sizes = [8, 512], strides = [1, 1]} : vector<96x512xf32> to vector<8x512xf32>
    %161 = vector.extract_strided_slice %53 {offsets = [32, 0], sizes = [8, 512], strides = [1, 1]} : vector<96x512xf32> to vector<8x512xf32>
    %162 = vector.extract_strided_slice %53 {offsets = [40, 0], sizes = [7, 512], strides = [1, 1]} : vector<96x512xf32> to vector<7x512xf32>
    %cst_55 = arith.constant dense<0xFF800000> : vector<512xf32>
    %163 = vector.multi_reduction <maximumf>, %160, %cst_55 [0] : vector<8x512xf32> to vector<512xf32>
    %164 = vector.shape_cast %163 : vector<512xf32> to vector<1x512xf32>
    %165 = vector.broadcast %164 : vector<1x512xf32> to vector<8x512xf32>
    %166 = arith.subf %160, %165 : vector<8x512xf32>
    %167 = math.exp %166 : vector<8x512xf32>
    %cst_56 = arith.constant dense<0.000000e+00> : vector<512xf32>
    %168 = vector.multi_reduction <add>, %167, %cst_56 [0] : vector<8x512xf32> to vector<512xf32>
    %169 = vector.shape_cast %168 : vector<512xf32> to vector<1x512xf32>
    %170 = vector.broadcast %169 : vector<1x512xf32> to vector<8x512xf32>
    %171 = arith.divf %167, %170 : vector<8x512xf32>
    %cst_57 = arith.constant 0.991999983 : f32
    %172 = vector.broadcast %cst_57 : f32 to vector<8x512xf32>
    %173 = arith.mulf %172, %171 : vector<8x512xf32>
    %cst_58 = arith.constant 1.000000e-03 : f32
    %174 = vector.broadcast %cst_58 : f32 to vector<8x512xf32>
    %175 = arith.addf %174, %173 : vector<8x512xf32>
    %cst_59 = arith.constant dense<0xFF800000> : vector<512xf32>
    %176 = vector.multi_reduction <maximumf>, %161, %cst_59 [0] : vector<8x512xf32> to vector<512xf32>
    %177 = vector.shape_cast %176 : vector<512xf32> to vector<1x512xf32>
    %178 = vector.broadcast %177 : vector<1x512xf32> to vector<8x512xf32>
    %179 = arith.subf %161, %178 : vector<8x512xf32>
    %180 = math.exp %179 : vector<8x512xf32>
    %cst_60 = arith.constant dense<0.000000e+00> : vector<512xf32>
    %181 = vector.multi_reduction <add>, %180, %cst_60 [0] : vector<8x512xf32> to vector<512xf32>
    %182 = vector.shape_cast %181 : vector<512xf32> to vector<1x512xf32>
    %183 = vector.broadcast %182 : vector<1x512xf32> to vector<8x512xf32>
    %184 = arith.divf %180, %183 : vector<8x512xf32>
    %cst_61 = arith.constant 0.991999983 : f32
    %185 = vector.broadcast %cst_61 : f32 to vector<8x512xf32>
    %186 = arith.mulf %185, %184 : vector<8x512xf32>
    %cst_62 = arith.constant 1.000000e-03 : f32
    %187 = vector.broadcast %cst_62 : f32 to vector<8x512xf32>
    %188 = arith.addf %187, %186 : vector<8x512xf32>
    %cst_63 = arith.constant dense<0.000000e+00> : vector<9x512xf32>
    %189 = tpu.matmul %60, %175, %cst_63 {dimension_numbers = #tpu.dot_dimension_numbers<[1], [0], [0], [1], [0, 0, 1, 1], [], []>} : vector<9x8xf32>, vector<8x512xf32>, vector<9x512xf32> -> vector<9x512xf32>
    %cst_64 = arith.constant 6.000000e+00 : f32
    %190 = vector.broadcast %cst_64 : f32 to vector<9x512xf32>
    %191 = arith.mulf %190, %189 : vector<9x512xf32>
    %cst_65 = arith.constant -3.000000e+00 : f32
    %192 = vector.broadcast %cst_65 : f32 to vector<9x512xf32>
    %193 = arith.addf %192, %191 : vector<9x512xf32>
    %cst_66 = arith.constant dense<0.000000e+00> : vector<9x512xf32>
    %194 = tpu.matmul %60, %188, %cst_66 {dimension_numbers = #tpu.dot_dimension_numbers<[1], [0], [0], [1], [0, 0, 1, 1], [], []>} : vector<9x8xf32>, vector<8x512xf32>, vector<9x512xf32> -> vector<9x512xf32>
    %cst_67 = arith.constant 6.000000e+00 : f32
    %195 = vector.broadcast %cst_67 : f32 to vector<9x512xf32>
    %196 = arith.mulf %195, %194 : vector<9x512xf32>
    %cst_68 = arith.constant -3.000000e+00 : f32
    %197 = vector.broadcast %cst_68 : f32 to vector<9x512xf32>
    %198 = arith.addf %197, %196 : vector<9x512xf32>
    %199 = vector.extract_strided_slice %193 {offsets = [0, 0], sizes = [8, 512], strides = [1, 1]} : vector<9x512xf32> to vector<8x512xf32>
    %cst_69 = arith.constant 3.000000e+00 : f32
    %200 = vector.broadcast %cst_69 : f32 to vector<1x512xf32>
    %201 = tpu.concatenate %199, %200 in 0 : vector<8x512xf32>, vector<1x512xf32> -> vector<9x512xf32>
    %202 = vector.extract_strided_slice %198 {offsets = [0, 0], sizes = [8, 512], strides = [1, 1]} : vector<9x512xf32> to vector<8x512xf32>
    %cst_70 = arith.constant 3.000000e+00 : f32
    %203 = vector.broadcast %cst_70 : f32 to vector<1x512xf32>
    %204 = tpu.concatenate %202, %203 in 0 : vector<8x512xf32>, vector<1x512xf32> -> vector<9x512xf32>
    %205 = vector.extract_strided_slice %201 {offsets = [1, 0], sizes = [8, 512], strides = [1, 1]} : vector<9x512xf32> to vector<8x512xf32>
    %206 = vector.extract_strided_slice %201 {offsets = [0, 0], sizes = [8, 512], strides = [1, 1]} : vector<9x512xf32> to vector<8x512xf32>
    %207 = arith.subf %205, %206 : vector<8x512xf32>
    %208 = vector.extract_strided_slice %204 {offsets = [1, 0], sizes = [8, 512], strides = [1, 1]} : vector<9x512xf32> to vector<8x512xf32>
    %209 = vector.extract_strided_slice %204 {offsets = [0, 0], sizes = [8, 512], strides = [1, 1]} : vector<9x512xf32> to vector<8x512xf32>
    %210 = arith.subf %208, %209 : vector<8x512xf32>
    %cst_71 = arith.constant 1.000000e+00 : f32
    %211 = vector.broadcast %cst_71 : f32 to vector<1x512xf32>
    %cst_72 = arith.constant 0.000000e+00 : f32
    %212 = vector.broadcast %cst_72 : f32 to vector<7x512xf32>
    %213 = arith.maximumf %162, %212 : vector<7x512xf32>
    %214 = math.absf %162 : vector<7x512xf32>
    %cst_73 = arith.constant 0.000000e+00 : f32
    %215 = vector.broadcast %cst_73 : f32 to vector<7x512xf32>
    %216 = arith.subf %215, %214 : vector<7x512xf32>
    %217 = math.exp %216 : vector<7x512xf32>
    %cst_74 = arith.constant 1.000000e+00 : f32
    %218 = vector.broadcast %cst_74 : f32 to vector<7x512xf32>
    %219 = arith.addf %218, %217 : vector<7x512xf32>
    %220 = math.log %219 : vector<7x512xf32>
    %221 = arith.addf %213, %220 : vector<7x512xf32>
    %cst_75 = arith.constant 1.000000e-03 : f32
    %222 = vector.broadcast %cst_75 : f32 to vector<7x512xf32>
    %223 = arith.addf %222, %221 : vector<7x512xf32>
    %224 = tpu.concatenate %211, %223, %211 in 0 : vector<1x512xf32>, vector<7x512xf32>, vector<1x512xf32> -> vector<9x512xf32>
    %225 = vector.extract_strided_slice %59 {offsets = [1, 0], sizes = [1, 512], strides = [1, 1]} : vector<4x512xf32> to vector<1x512xf32>
    %226 = vector.extract_strided_slice %201 {offsets = [1, 0], sizes = [7, 512], strides = [1, 1]} : vector<9x512xf32> to vector<7x512xf32>
    %cst_76 = arith.constant 4.000000e+00 : f32
    %227 = vector.broadcast %cst_76 : f32 to vector<1x512xf32>
    %228 = tpu.concatenate %226, %227 in 0 : vector<7x512xf32>, vector<1x512xf32> -> vector<8x512xf32>
    %229 = vector.extract_strided_slice %201 {offsets = [0, 0], sizes = [8, 512], strides = [1, 1]} : vector<9x512xf32> to vector<8x512xf32>
    %230 = vector.broadcast %225 : vector<1x512xf32> to vector<8x512xf32>
    %231 = arith.cmpf oge, %230, %229 : vector<8x512xf32>
    %232 = vector.broadcast %225 : vector<1x512xf32> to vector<8x512xf32>
    %233 = arith.cmpf olt, %232, %228 : vector<8x512xf32>
    %234 = arith.andi %231, %233 : vector<8x512xi1>
    %235 = arith.extui %234 : vector<8x512xi1> to vector<8x512xi32>
    %236 = arith.sitofp %235 : vector<8x512xi32> to vector<8x512xf32>
    %237 = vector.extract_strided_slice %201 {offsets = [0, 0], sizes = [8, 512], strides = [1, 1]} : vector<9x512xf32> to vector<8x512xf32>
    %238 = vector.extract_strided_slice %204 {offsets = [0, 0], sizes = [8, 512], strides = [1, 1]} : vector<9x512xf32> to vector<8x512xf32>
    %239 = vector.extract_strided_slice %224 {offsets = [0, 0], sizes = [8, 512], strides = [1, 1]} : vector<9x512xf32> to vector<8x512xf32>
    %240 = vector.extract_strided_slice %224 {offsets = [1, 0], sizes = [8, 512], strides = [1, 1]} : vector<9x512xf32> to vector<8x512xf32>
    %241 = arith.mulf %236, %237 : vector<8x512xf32>
    %cst_77 = arith.constant dense<0.000000e+00> : vector<512xf32>
    %242 = vector.multi_reduction <add>, %241, %cst_77 [0] : vector<8x512xf32> to vector<512xf32>
    %243 = vector.shape_cast %242 : vector<512xf32> to vector<1x512xf32>
    %244 = arith.mulf %236, %207 : vector<8x512xf32>
    %cst_78 = arith.constant dense<0.000000e+00> : vector<512xf32>
    %245 = vector.multi_reduction <add>, %244, %cst_78 [0] : vector<8x512xf32> to vector<512xf32>
    %246 = vector.shape_cast %245 : vector<512xf32> to vector<1x512xf32>
    %247 = arith.mulf %236, %238 : vector<8x512xf32>
    %cst_79 = arith.constant dense<0.000000e+00> : vector<512xf32>
    %248 = vector.multi_reduction <add>, %247, %cst_79 [0] : vector<8x512xf32> to vector<512xf32>
    %249 = vector.shape_cast %248 : vector<512xf32> to vector<1x512xf32>
    %250 = arith.mulf %236, %210 : vector<8x512xf32>
    %cst_80 = arith.constant dense<0.000000e+00> : vector<512xf32>
    %251 = vector.multi_reduction <add>, %250, %cst_80 [0] : vector<8x512xf32> to vector<512xf32>
    %252 = vector.shape_cast %251 : vector<512xf32> to vector<1x512xf32>
    %253 = arith.mulf %236, %239 : vector<8x512xf32>
    %cst_81 = arith.constant dense<0.000000e+00> : vector<512xf32>
    %254 = vector.multi_reduction <add>, %253, %cst_81 [0] : vector<8x512xf32> to vector<512xf32>
    %255 = vector.shape_cast %254 : vector<512xf32> to vector<1x512xf32>
    %256 = arith.mulf %236, %240 : vector<8x512xf32>
    %cst_82 = arith.constant dense<0.000000e+00> : vector<512xf32>
    %257 = vector.multi_reduction <add>, %256, %cst_82 [0] : vector<8x512xf32> to vector<512xf32>
    %258 = vector.shape_cast %257 : vector<512xf32> to vector<1x512xf32>
    %259 = vector.extract_strided_slice %53 {offsets = [48, 0], sizes = [8, 512], strides = [1, 1]} : vector<96x512xf32> to vector<8x512xf32>
    %260 = vector.extract_strided_slice %53 {offsets = [56, 0], sizes = [8, 512], strides = [1, 1]} : vector<96x512xf32> to vector<8x512xf32>
    %261 = vector.extract_strided_slice %53 {offsets = [64, 0], sizes = [7, 512], strides = [1, 1]} : vector<96x512xf32> to vector<7x512xf32>
    %cst_83 = arith.constant dense<0xFF800000> : vector<512xf32>
    %262 = vector.multi_reduction <maximumf>, %259, %cst_83 [0] : vector<8x512xf32> to vector<512xf32>
    %263 = vector.shape_cast %262 : vector<512xf32> to vector<1x512xf32>
    %264 = vector.broadcast %263 : vector<1x512xf32> to vector<8x512xf32>
    %265 = arith.subf %259, %264 : vector<8x512xf32>
    %266 = math.exp %265 : vector<8x512xf32>
    %cst_84 = arith.constant dense<0.000000e+00> : vector<512xf32>
    %267 = vector.multi_reduction <add>, %266, %cst_84 [0] : vector<8x512xf32> to vector<512xf32>
    %268 = vector.shape_cast %267 : vector<512xf32> to vector<1x512xf32>
    %269 = vector.broadcast %268 : vector<1x512xf32> to vector<8x512xf32>
    %270 = arith.divf %266, %269 : vector<8x512xf32>
    %cst_85 = arith.constant 0.991999983 : f32
    %271 = vector.broadcast %cst_85 : f32 to vector<8x512xf32>
    %272 = arith.mulf %271, %270 : vector<8x512xf32>
    %cst_86 = arith.constant 1.000000e-03 : f32
    %273 = vector.broadcast %cst_86 : f32 to vector<8x512xf32>
    %274 = arith.addf %273, %272 : vector<8x512xf32>
    %cst_87 = arith.constant dense<0xFF800000> : vector<512xf32>
    %275 = vector.multi_reduction <maximumf>, %260, %cst_87 [0] : vector<8x512xf32> to vector<512xf32>
    %276 = vector.shape_cast %275 : vector<512xf32> to vector<1x512xf32>
    %277 = vector.broadcast %276 : vector<1x512xf32> to vector<8x512xf32>
    %278 = arith.subf %260, %277 : vector<8x512xf32>
    %279 = math.exp %278 : vector<8x512xf32>
    %cst_88 = arith.constant dense<0.000000e+00> : vector<512xf32>
    %280 = vector.multi_reduction <add>, %279, %cst_88 [0] : vector<8x512xf32> to vector<512xf32>
    %281 = vector.shape_cast %280 : vector<512xf32> to vector<1x512xf32>
    %282 = vector.broadcast %281 : vector<1x512xf32> to vector<8x512xf32>
    %283 = arith.divf %279, %282 : vector<8x512xf32>
    %cst_89 = arith.constant 0.991999983 : f32
    %284 = vector.broadcast %cst_89 : f32 to vector<8x512xf32>
    %285 = arith.mulf %284, %283 : vector<8x512xf32>
    %cst_90 = arith.constant 1.000000e-03 : f32
    %286 = vector.broadcast %cst_90 : f32 to vector<8x512xf32>
    %287 = arith.addf %286, %285 : vector<8x512xf32>
    %cst_91 = arith.constant dense<0.000000e+00> : vector<9x512xf32>
    %288 = tpu.matmul %60, %274, %cst_91 {dimension_numbers = #tpu.dot_dimension_numbers<[1], [0], [0], [1], [0, 0, 1, 1], [], []>} : vector<9x8xf32>, vector<8x512xf32>, vector<9x512xf32> -> vector<9x512xf32>
    %cst_92 = arith.constant 6.000000e+00 : f32
    %289 = vector.broadcast %cst_92 : f32 to vector<9x512xf32>
    %290 = arith.mulf %289, %288 : vector<9x512xf32>
    %cst_93 = arith.constant -3.000000e+00 : f32
    %291 = vector.broadcast %cst_93 : f32 to vector<9x512xf32>
    %292 = arith.addf %291, %290 : vector<9x512xf32>
    %cst_94 = arith.constant dense<0.000000e+00> : vector<9x512xf32>
    %293 = tpu.matmul %60, %287, %cst_94 {dimension_numbers = #tpu.dot_dimension_numbers<[1], [0], [0], [1], [0, 0, 1, 1], [], []>} : vector<9x8xf32>, vector<8x512xf32>, vector<9x512xf32> -> vector<9x512xf32>
    %cst_95 = arith.constant 6.000000e+00 : f32
    %294 = vector.broadcast %cst_95 : f32 to vector<9x512xf32>
    %295 = arith.mulf %294, %293 : vector<9x512xf32>
    %cst_96 = arith.constant -3.000000e+00 : f32
    %296 = vector.broadcast %cst_96 : f32 to vector<9x512xf32>
    %297 = arith.addf %296, %295 : vector<9x512xf32>
    %298 = vector.extract_strided_slice %292 {offsets = [0, 0], sizes = [8, 512], strides = [1, 1]} : vector<9x512xf32> to vector<8x512xf32>
    %cst_97 = arith.constant 3.000000e+00 : f32
    %299 = vector.broadcast %cst_97 : f32 to vector<1x512xf32>
    %300 = tpu.concatenate %298, %299 in 0 : vector<8x512xf32>, vector<1x512xf32> -> vector<9x512xf32>
    %301 = vector.extract_strided_slice %297 {offsets = [0, 0], sizes = [8, 512], strides = [1, 1]} : vector<9x512xf32> to vector<8x512xf32>
    %cst_98 = arith.constant 3.000000e+00 : f32
    %302 = vector.broadcast %cst_98 : f32 to vector<1x512xf32>
    %303 = tpu.concatenate %301, %302 in 0 : vector<8x512xf32>, vector<1x512xf32> -> vector<9x512xf32>
    %304 = vector.extract_strided_slice %300 {offsets = [1, 0], sizes = [8, 512], strides = [1, 1]} : vector<9x512xf32> to vector<8x512xf32>
    %305 = vector.extract_strided_slice %300 {offsets = [0, 0], sizes = [8, 512], strides = [1, 1]} : vector<9x512xf32> to vector<8x512xf32>
    %306 = arith.subf %304, %305 : vector<8x512xf32>
    %307 = vector.extract_strided_slice %303 {offsets = [1, 0], sizes = [8, 512], strides = [1, 1]} : vector<9x512xf32> to vector<8x512xf32>
    %308 = vector.extract_strided_slice %303 {offsets = [0, 0], sizes = [8, 512], strides = [1, 1]} : vector<9x512xf32> to vector<8x512xf32>
    %309 = arith.subf %307, %308 : vector<8x512xf32>
    %cst_99 = arith.constant 1.000000e+00 : f32
    %310 = vector.broadcast %cst_99 : f32 to vector<1x512xf32>
    %cst_100 = arith.constant 0.000000e+00 : f32
    %311 = vector.broadcast %cst_100 : f32 to vector<7x512xf32>
    %312 = arith.maximumf %261, %311 : vector<7x512xf32>
    %313 = math.absf %261 : vector<7x512xf32>
    %cst_101 = arith.constant 0.000000e+00 : f32
    %314 = vector.broadcast %cst_101 : f32 to vector<7x512xf32>
    %315 = arith.subf %314, %313 : vector<7x512xf32>
    %316 = math.exp %315 : vector<7x512xf32>
    %cst_102 = arith.constant 1.000000e+00 : f32
    %317 = vector.broadcast %cst_102 : f32 to vector<7x512xf32>
    %318 = arith.addf %317, %316 : vector<7x512xf32>
    %319 = math.log %318 : vector<7x512xf32>
    %320 = arith.addf %312, %319 : vector<7x512xf32>
    %cst_103 = arith.constant 1.000000e-03 : f32
    %321 = vector.broadcast %cst_103 : f32 to vector<7x512xf32>
    %322 = arith.addf %321, %320 : vector<7x512xf32>
    %323 = tpu.concatenate %310, %322, %310 in 0 : vector<1x512xf32>, vector<7x512xf32>, vector<1x512xf32> -> vector<9x512xf32>
    %324 = vector.extract_strided_slice %59 {offsets = [2, 0], sizes = [1, 512], strides = [1, 1]} : vector<4x512xf32> to vector<1x512xf32>
    %325 = vector.extract_strided_slice %300 {offsets = [1, 0], sizes = [7, 512], strides = [1, 1]} : vector<9x512xf32> to vector<7x512xf32>
    %cst_104 = arith.constant 4.000000e+00 : f32
    %326 = vector.broadcast %cst_104 : f32 to vector<1x512xf32>
    %327 = tpu.concatenate %325, %326 in 0 : vector<7x512xf32>, vector<1x512xf32> -> vector<8x512xf32>
    %328 = vector.extract_strided_slice %300 {offsets = [0, 0], sizes = [8, 512], strides = [1, 1]} : vector<9x512xf32> to vector<8x512xf32>
    %329 = vector.broadcast %324 : vector<1x512xf32> to vector<8x512xf32>
    %330 = arith.cmpf oge, %329, %328 : vector<8x512xf32>
    %331 = vector.broadcast %324 : vector<1x512xf32> to vector<8x512xf32>
    %332 = arith.cmpf olt, %331, %327 : vector<8x512xf32>
    %333 = arith.andi %330, %332 : vector<8x512xi1>
    %334 = arith.extui %333 : vector<8x512xi1> to vector<8x512xi32>
    %335 = arith.sitofp %334 : vector<8x512xi32> to vector<8x512xf32>
    %336 = vector.extract_strided_slice %300 {offsets = [0, 0], sizes = [8, 512], strides = [1, 1]} : vector<9x512xf32> to vector<8x512xf32>
    %337 = vector.extract_strided_slice %303 {offsets = [0, 0], sizes = [8, 512], strides = [1, 1]} : vector<9x512xf32> to vector<8x512xf32>
    %338 = vector.extract_strided_slice %323 {offsets = [0, 0], sizes = [8, 512], strides = [1, 1]} : vector<9x512xf32> to vector<8x512xf32>
    %339 = vector.extract_strided_slice %323 {offsets = [1, 0], sizes = [8, 512], strides = [1, 1]} : vector<9x512xf32> to vector<8x512xf32>
    %340 = arith.mulf %335, %336 : vector<8x512xf32>
    %cst_105 = arith.constant dense<0.000000e+00> : vector<512xf32>
    %341 = vector.multi_reduction <add>, %340, %cst_105 [0] : vector<8x512xf32> to vector<512xf32>
    %342 = vector.shape_cast %341 : vector<512xf32> to vector<1x512xf32>
    %343 = arith.mulf %335, %306 : vector<8x512xf32>
    %cst_106 = arith.constant dense<0.000000e+00> : vector<512xf32>
    %344 = vector.multi_reduction <add>, %343, %cst_106 [0] : vector<8x512xf32> to vector<512xf32>
    %345 = vector.shape_cast %344 : vector<512xf32> to vector<1x512xf32>
    %346 = arith.mulf %335, %337 : vector<8x512xf32>
    %cst_107 = arith.constant dense<0.000000e+00> : vector<512xf32>
    %347 = vector.multi_reduction <add>, %346, %cst_107 [0] : vector<8x512xf32> to vector<512xf32>
    %348 = vector.shape_cast %347 : vector<512xf32> to vector<1x512xf32>
    %349 = arith.mulf %335, %309 : vector<8x512xf32>
    %cst_108 = arith.constant dense<0.000000e+00> : vector<512xf32>
    %350 = vector.multi_reduction <add>, %349, %cst_108 [0] : vector<8x512xf32> to vector<512xf32>
    %351 = vector.shape_cast %350 : vector<512xf32> to vector<1x512xf32>
    %352 = arith.mulf %335, %338 : vector<8x512xf32>
    %cst_109 = arith.constant dense<0.000000e+00> : vector<512xf32>
    %353 = vector.multi_reduction <add>, %352, %cst_109 [0] : vector<8x512xf32> to vector<512xf32>
    %354 = vector.shape_cast %353 : vector<512xf32> to vector<1x512xf32>
    %355 = arith.mulf %335, %339 : vector<8x512xf32>
    %cst_110 = arith.constant dense<0.000000e+00> : vector<512xf32>
    %356 = vector.multi_reduction <add>, %355, %cst_110 [0] : vector<8x512xf32> to vector<512xf32>
    %357 = vector.shape_cast %356 : vector<512xf32> to vector<1x512xf32>
    %358 = vector.extract_strided_slice %53 {offsets = [72, 0], sizes = [8, 512], strides = [1, 1]} : vector<96x512xf32> to vector<8x512xf32>
    %359 = vector.extract_strided_slice %53 {offsets = [80, 0], sizes = [8, 512], strides = [1, 1]} : vector<96x512xf32> to vector<8x512xf32>
    %360 = vector.extract_strided_slice %53 {offsets = [88, 0], sizes = [7, 512], strides = [1, 1]} : vector<96x512xf32> to vector<7x512xf32>
    %cst_111 = arith.constant dense<0xFF800000> : vector<512xf32>
    %361 = vector.multi_reduction <maximumf>, %358, %cst_111 [0] : vector<8x512xf32> to vector<512xf32>
    %362 = vector.shape_cast %361 : vector<512xf32> to vector<1x512xf32>
    %363 = vector.broadcast %362 : vector<1x512xf32> to vector<8x512xf32>
    %364 = arith.subf %358, %363 : vector<8x512xf32>
    %365 = math.exp %364 : vector<8x512xf32>
    %cst_112 = arith.constant dense<0.000000e+00> : vector<512xf32>
    %366 = vector.multi_reduction <add>, %365, %cst_112 [0] : vector<8x512xf32> to vector<512xf32>
    %367 = vector.shape_cast %366 : vector<512xf32> to vector<1x512xf32>
    %368 = vector.broadcast %367 : vector<1x512xf32> to vector<8x512xf32>
    %369 = arith.divf %365, %368 : vector<8x512xf32>
    %cst_113 = arith.constant 0.991999983 : f32
    %370 = vector.broadcast %cst_113 : f32 to vector<8x512xf32>
    %371 = arith.mulf %370, %369 : vector<8x512xf32>
    %cst_114 = arith.constant 1.000000e-03 : f32
    %372 = vector.broadcast %cst_114 : f32 to vector<8x512xf32>
    %373 = arith.addf %372, %371 : vector<8x512xf32>
    %cst_115 = arith.constant dense<0xFF800000> : vector<512xf32>
    %374 = vector.multi_reduction <maximumf>, %359, %cst_115 [0] : vector<8x512xf32> to vector<512xf32>
    %375 = vector.shape_cast %374 : vector<512xf32> to vector<1x512xf32>
    %376 = vector.broadcast %375 : vector<1x512xf32> to vector<8x512xf32>
    %377 = arith.subf %359, %376 : vector<8x512xf32>
    %378 = math.exp %377 : vector<8x512xf32>
    %cst_116 = arith.constant dense<0.000000e+00> : vector<512xf32>
    %379 = vector.multi_reduction <add>, %378, %cst_116 [0] : vector<8x512xf32> to vector<512xf32>
    %380 = vector.shape_cast %379 : vector<512xf32> to vector<1x512xf32>
    %381 = vector.broadcast %380 : vector<1x512xf32> to vector<8x512xf32>
    %382 = arith.divf %378, %381 : vector<8x512xf32>
    %cst_117 = arith.constant 0.991999983 : f32
    %383 = vector.broadcast %cst_117 : f32 to vector<8x512xf32>
    %384 = arith.mulf %383, %382 : vector<8x512xf32>
    %cst_118 = arith.constant 1.000000e-03 : f32
    %385 = vector.broadcast %cst_118 : f32 to vector<8x512xf32>
    %386 = arith.addf %385, %384 : vector<8x512xf32>
    %cst_119 = arith.constant dense<0.000000e+00> : vector<9x512xf32>
    %387 = tpu.matmul %60, %373, %cst_119 {dimension_numbers = #tpu.dot_dimension_numbers<[1], [0], [0], [1], [0, 0, 1, 1], [], []>} : vector<9x8xf32>, vector<8x512xf32>, vector<9x512xf32> -> vector<9x512xf32>
    %cst_120 = arith.constant 6.000000e+00 : f32
    %388 = vector.broadcast %cst_120 : f32 to vector<9x512xf32>
    %389 = arith.mulf %388, %387 : vector<9x512xf32>
    %cst_121 = arith.constant -3.000000e+00 : f32
    %390 = vector.broadcast %cst_121 : f32 to vector<9x512xf32>
    %391 = arith.addf %390, %389 : vector<9x512xf32>
    %cst_122 = arith.constant dense<0.000000e+00> : vector<9x512xf32>
    %392 = tpu.matmul %60, %386, %cst_122 {dimension_numbers = #tpu.dot_dimension_numbers<[1], [0], [0], [1], [0, 0, 1, 1], [], []>} : vector<9x8xf32>, vector<8x512xf32>, vector<9x512xf32> -> vector<9x512xf32>
    %cst_123 = arith.constant 6.000000e+00 : f32
    %393 = vector.broadcast %cst_123 : f32 to vector<9x512xf32>
    %394 = arith.mulf %393, %392 : vector<9x512xf32>
    %cst_124 = arith.constant -3.000000e+00 : f32
    %395 = vector.broadcast %cst_124 : f32 to vector<9x512xf32>
    %396 = arith.addf %395, %394 : vector<9x512xf32>
    %397 = vector.extract_strided_slice %391 {offsets = [0, 0], sizes = [8, 512], strides = [1, 1]} : vector<9x512xf32> to vector<8x512xf32>
    %cst_125 = arith.constant 3.000000e+00 : f32
    %398 = vector.broadcast %cst_125 : f32 to vector<1x512xf32>
    %399 = tpu.concatenate %397, %398 in 0 : vector<8x512xf32>, vector<1x512xf32> -> vector<9x512xf32>
    %400 = vector.extract_strided_slice %396 {offsets = [0, 0], sizes = [8, 512], strides = [1, 1]} : vector<9x512xf32> to vector<8x512xf32>
    %cst_126 = arith.constant 3.000000e+00 : f32
    %401 = vector.broadcast %cst_126 : f32 to vector<1x512xf32>
    %402 = tpu.concatenate %400, %401 in 0 : vector<8x512xf32>, vector<1x512xf32> -> vector<9x512xf32>
    %403 = vector.extract_strided_slice %399 {offsets = [1, 0], sizes = [8, 512], strides = [1, 1]} : vector<9x512xf32> to vector<8x512xf32>
    %404 = vector.extract_strided_slice %399 {offsets = [0, 0], sizes = [8, 512], strides = [1, 1]} : vector<9x512xf32> to vector<8x512xf32>
    %405 = arith.subf %403, %404 : vector<8x512xf32>
    %406 = vector.extract_strided_slice %402 {offsets = [1, 0], sizes = [8, 512], strides = [1, 1]} : vector<9x512xf32> to vector<8x512xf32>
    %407 = vector.extract_strided_slice %402 {offsets = [0, 0], sizes = [8, 512], strides = [1, 1]} : vector<9x512xf32> to vector<8x512xf32>
    %408 = arith.subf %406, %407 : vector<8x512xf32>
    %cst_127 = arith.constant 1.000000e+00 : f32
    %409 = vector.broadcast %cst_127 : f32 to vector<1x512xf32>
    %cst_128 = arith.constant 0.000000e+00 : f32
    %410 = vector.broadcast %cst_128 : f32 to vector<7x512xf32>
    %411 = arith.maximumf %360, %410 : vector<7x512xf32>
    %412 = math.absf %360 : vector<7x512xf32>
    %cst_129 = arith.constant 0.000000e+00 : f32
    %413 = vector.broadcast %cst_129 : f32 to vector<7x512xf32>
    %414 = arith.subf %413, %412 : vector<7x512xf32>
    %415 = math.exp %414 : vector<7x512xf32>
    %cst_130 = arith.constant 1.000000e+00 : f32
    %416 = vector.broadcast %cst_130 : f32 to vector<7x512xf32>
    %417 = arith.addf %416, %415 : vector<7x512xf32>
    %418 = math.log %417 : vector<7x512xf32>
    %419 = arith.addf %411, %418 : vector<7x512xf32>
    %cst_131 = arith.constant 1.000000e-03 : f32
    %420 = vector.broadcast %cst_131 : f32 to vector<7x512xf32>
    %421 = arith.addf %420, %419 : vector<7x512xf32>
    %422 = tpu.concatenate %409, %421, %409 in 0 : vector<1x512xf32>, vector<7x512xf32>, vector<1x512xf32> -> vector<9x512xf32>
    %423 = vector.extract_strided_slice %59 {offsets = [3, 0], sizes = [1, 512], strides = [1, 1]} : vector<4x512xf32> to vector<1x512xf32>
    %424 = vector.extract_strided_slice %399 {offsets = [1, 0], sizes = [7, 512], strides = [1, 1]} : vector<9x512xf32> to vector<7x512xf32>
    %cst_132 = arith.constant 4.000000e+00 : f32
    %425 = vector.broadcast %cst_132 : f32 to vector<1x512xf32>
    %426 = tpu.concatenate %424, %425 in 0 : vector<7x512xf32>, vector<1x512xf32> -> vector<8x512xf32>
    %427 = vector.extract_strided_slice %399 {offsets = [0, 0], sizes = [8, 512], strides = [1, 1]} : vector<9x512xf32> to vector<8x512xf32>
    %428 = vector.broadcast %423 : vector<1x512xf32> to vector<8x512xf32>
    %429 = arith.cmpf oge, %428, %427 : vector<8x512xf32>
    %430 = vector.broadcast %423 : vector<1x512xf32> to vector<8x512xf32>
    %431 = arith.cmpf olt, %430, %426 : vector<8x512xf32>
    %432 = arith.andi %429, %431 : vector<8x512xi1>
    %433 = arith.extui %432 : vector<8x512xi1> to vector<8x512xi32>
    %434 = arith.sitofp %433 : vector<8x512xi32> to vector<8x512xf32>
    %435 = vector.extract_strided_slice %399 {offsets = [0, 0], sizes = [8, 512], strides = [1, 1]} : vector<9x512xf32> to vector<8x512xf32>
    %436 = vector.extract_strided_slice %402 {offsets = [0, 0], sizes = [8, 512], strides = [1, 1]} : vector<9x512xf32> to vector<8x512xf32>
    %437 = vector.extract_strided_slice %422 {offsets = [0, 0], sizes = [8, 512], strides = [1, 1]} : vector<9x512xf32> to vector<8x512xf32>
    %438 = vector.extract_strided_slice %422 {offsets = [1, 0], sizes = [8, 512], strides = [1, 1]} : vector<9x512xf32> to vector<8x512xf32>
    %439 = arith.mulf %434, %435 : vector<8x512xf32>
    %cst_133 = arith.constant dense<0.000000e+00> : vector<512xf32>
    %440 = vector.multi_reduction <add>, %439, %cst_133 [0] : vector<8x512xf32> to vector<512xf32>
    %441 = vector.shape_cast %440 : vector<512xf32> to vector<1x512xf32>
    %442 = arith.mulf %434, %405 : vector<8x512xf32>
    %cst_134 = arith.constant dense<0.000000e+00> : vector<512xf32>
    %443 = vector.multi_reduction <add>, %442, %cst_134 [0] : vector<8x512xf32> to vector<512xf32>
    %444 = vector.shape_cast %443 : vector<512xf32> to vector<1x512xf32>
    %445 = arith.mulf %434, %436 : vector<8x512xf32>
    %cst_135 = arith.constant dense<0.000000e+00> : vector<512xf32>
    %446 = vector.multi_reduction <add>, %445, %cst_135 [0] : vector<8x512xf32> to vector<512xf32>
    %447 = vector.shape_cast %446 : vector<512xf32> to vector<1x512xf32>
    %448 = arith.mulf %434, %408 : vector<8x512xf32>
    %cst_136 = arith.constant dense<0.000000e+00> : vector<512xf32>
    %449 = vector.multi_reduction <add>, %448, %cst_136 [0] : vector<8x512xf32> to vector<512xf32>
    %450 = vector.shape_cast %449 : vector<512xf32> to vector<1x512xf32>
    %451 = arith.mulf %434, %437 : vector<8x512xf32>
    %cst_137 = arith.constant dense<0.000000e+00> : vector<512xf32>
    %452 = vector.multi_reduction <add>, %451, %cst_137 [0] : vector<8x512xf32> to vector<512xf32>
    %453 = vector.shape_cast %452 : vector<512xf32> to vector<1x512xf32>
    %454 = arith.mulf %434, %438 : vector<8x512xf32>
    %cst_138 = arith.constant dense<0.000000e+00> : vector<512xf32>
    %455 = vector.multi_reduction <add>, %454, %cst_138 [0] : vector<8x512xf32> to vector<512xf32>
    %456 = vector.shape_cast %455 : vector<512xf32> to vector<1x512xf32>
    %457 = tpu.concatenate %144, %243, %342, %441 in 0 : vector<1x512xf32>, vector<1x512xf32>, vector<1x512xf32>, vector<1x512xf32> -> vector<4x512xf32>
    %458 = tpu.concatenate %147, %246, %345, %444 in 0 : vector<1x512xf32>, vector<1x512xf32>, vector<1x512xf32>, vector<1x512xf32> -> vector<4x512xf32>
    %459 = tpu.concatenate %150, %249, %348, %447 in 0 : vector<1x512xf32>, vector<1x512xf32>, vector<1x512xf32>, vector<1x512xf32> -> vector<4x512xf32>
    %460 = tpu.concatenate %153, %252, %351, %450 in 0 : vector<1x512xf32>, vector<1x512xf32>, vector<1x512xf32>, vector<1x512xf32> -> vector<4x512xf32>
    %461 = tpu.concatenate %156, %255, %354, %453 in 0 : vector<1x512xf32>, vector<1x512xf32>, vector<1x512xf32>, vector<1x512xf32> -> vector<4x512xf32>
    %462 = tpu.concatenate %159, %258, %357, %456 in 0 : vector<1x512xf32>, vector<1x512xf32>, vector<1x512xf32>, vector<1x512xf32> -> vector<4x512xf32>
    %cst_139 = arith.constant 1.000000e+00 : f32
    %463 = vector.broadcast %cst_139 : f32 to vector<4x512xf32>
    %464 = arith.divf %463, %458 : vector<4x512xf32>
    %465 = arith.mulf %460, %464 : vector<4x512xf32>
    %466 = arith.subf %59, %457 : vector<4x512xf32>
    %467 = arith.mulf %466, %464 : vector<4x512xf32>
    %468 = arith.mulf %467, %467 : vector<4x512xf32>
    %cst_140 = arith.constant 1.000000e+00 : f32
    %469 = vector.broadcast %cst_140 : f32 to vector<4x512xf32>
    %470 = arith.subf %469, %467 : vector<4x512xf32>
    %471 = arith.mulf %467, %470 : vector<4x512xf32>
    %cst_141 = arith.constant 1.000000e+00 : f32
    %472 = vector.broadcast %cst_141 : f32 to vector<4x512xf32>
    %473 = arith.subf %472, %467 : vector<4x512xf32>
    %474 = arith.mulf %465, %468 : vector<4x512xf32>
    %475 = arith.mulf %461, %471 : vector<4x512xf32>
    %476 = arith.addf %474, %475 : vector<4x512xf32>
    %477 = arith.mulf %460, %476 : vector<4x512xf32>
    %478 = arith.addf %461, %462 : vector<4x512xf32>
    %cst_142 = arith.constant 2.000000e+00 : f32
    %479 = vector.broadcast %cst_142 : f32 to vector<4x512xf32>
    %480 = arith.mulf %479, %465 : vector<4x512xf32>
    %481 = arith.subf %478, %480 : vector<4x512xf32>
    %482 = arith.mulf %481, %471 : vector<4x512xf32>
    %483 = arith.addf %465, %482 : vector<4x512xf32>
    %484 = arith.divf %477, %483 : vector<4x512xf32>
    %485 = arith.addf %459, %484 : vector<4x512xf32>
    %486 = arith.mulf %465, %465 : vector<4x512xf32>
    %487 = arith.mulf %462, %468 : vector<4x512xf32>
    %cst_143 = arith.constant 2.000000e+00 : f32
    %488 = vector.broadcast %cst_143 : f32 to vector<4x512xf32>
    %489 = arith.mulf %488, %465 : vector<4x512xf32>
    %490 = arith.mulf %489, %471 : vector<4x512xf32>
    %491 = arith.addf %487, %490 : vector<4x512xf32>
    %492 = arith.mulf %461, %473 : vector<4x512xf32>
    %493 = arith.mulf %492, %473 : vector<4x512xf32>
    %494 = arith.addf %491, %493 : vector<4x512xf32>
    %495 = arith.mulf %486, %494 : vector<4x512xf32>
    %496 = math.log %495 : vector<4x512xf32>
    %497 = math.log %483 : vector<4x512xf32>
    %cst_144 = arith.constant 2.000000e+00 : f32
    %498 = vector.broadcast %cst_144 : f32 to vector<4x512xf32>
    %499 = arith.mulf %498, %497 : vector<4x512xf32>
    %500 = arith.subf %496, %499 : vector<4x512xf32>
    %cst_145 = arith.constant -3.000000e+00 : f32
    %501 = vector.broadcast %cst_145 : f32 to vector<4x512xf32>
    %502 = arith.cmpf oge, %54, %501 : vector<4x512xf32>
    %cst_146 = arith.constant 3.000000e+00 : f32
    %503 = vector.broadcast %cst_146 : f32 to vector<4x512xf32>
    %504 = arith.cmpf ole, %54, %503 : vector<4x512xf32>
    %505 = arith.andi %502, %504 : vector<4x512xi1>
    %506 = arith.select %505, %485, %54 : vector<4x512xi1>, vector<4x512xf32>
    %cst_147 = arith.constant 0.000000e+00 : f32
    %507 = vector.broadcast %cst_147 : f32 to vector<4x512xf32>
    %508 = arith.select %505, %500, %507 : vector<4x512xi1>, vector<4x512xf32>
    %509 = arith.addf %55, %506 : vector<4x512xf32>
    %c0_148 = arith.constant 0 : index
    %c0_149 = arith.constant 0 : index
    %510 = vector.load %arg12[%c0_148, %c0_149] : memref<4x512xf32, #tpu.memory_space<vmem>>, vector<4x512xf32>
    tpu.vector_store %arg12[%c0_148, %c0_149], %509 {strides = array<i32>} : memref<4x512xf32, #tpu.memory_space<vmem>>, vector<4x512xf32>,
    %cst_150 = arith.constant dense<0.000000e+00> : vector<512xf32>
    %511 = vector.multi_reduction <add>, %508, %cst_150 [0] : vector<4x512xf32> to vector<512xf32>
    %512 = vector.shape_cast %511 : vector<512xf32> to vector<1x512xf32>
    %c0_151 = arith.constant 0 : index
    %c0_152 = arith.constant 0 : index
    %513 = vector.load %arg13[%c0_151, %c0_152] : memref<1x512xf32, #tpu.memory_space<vmem>>, vector<1x512xf32>
    tpu.vector_store %arg13[%c0_151, %c0_152], %512 {strides = array<i32>} : memref<1x512xf32, #tpu.memory_space<vmem>>, vector<1x512xf32>,
    return
  }
  func.func @transform_0(%arg0: i32) -> (i32, i32) {
    %c0_i32 = arith.constant 0 : i32
    %c0_i32_0 = arith.constant 0 : i32
    return %c0_i32, %arg0 : i32, i32
  }
  func.func @transform_1(%arg0: i32) -> (i32, i32) {
    %c0_i32 = arith.constant 0 : i32
    %c0_i32_0 = arith.constant 0 : i32
    return %c0_i32, %arg0 : i32, i32
  }
  func.func @transform_2(%arg0: i32) -> (i32, i32) {
    %c0_i32 = arith.constant 0 : i32
    %c0_i32_0 = arith.constant 0 : i32
    return %c0_i32, %arg0 : i32, i32
  }
  func.func @transform_3(%arg0: i32) -> (i32, i32) {
    %c0_i32 = arith.constant 0 : i32
    %c0_i32_0 = arith.constant 0 : i32
    %c0_i32_1 = arith.constant 0 : i32
    return %c0_i32, %c0_i32_0 : i32, i32
  }
  func.func @transform_4(%arg0: i32) -> (i32, i32) {
    %c0_i32 = arith.constant 0 : i32
    %c0_i32_0 = arith.constant 0 : i32
    %c0_i32_1 = arith.constant 0 : i32
    return %c0_i32, %c0_i32_0 : i32, i32
  }
  func.func @transform_5(%arg0: i32) -> (i32, i32) {
    %c0_i32 = arith.constant 0 : i32
    %c0_i32_0 = arith.constant 0 : i32
    %c0_i32_1 = arith.constant 0 : i32
    return %c0_i32, %c0_i32_0 : i32, i32
  }
  func.func @transform_6(%arg0: i32) -> (i32, i32) {
    %c0_i32 = arith.constant 0 : i32
    %c0_i32_0 = arith.constant 0 : i32
    %c0_i32_1 = arith.constant 0 : i32
    return %c0_i32, %c0_i32_0 : i32, i32
  }
  func.func @transform_7(%arg0: i32) -> (i32, i32) {
    %c0_i32 = arith.constant 0 : i32
    %c0_i32_0 = arith.constant 0 : i32
    %c0_i32_1 = arith.constant 0 : i32
    return %c0_i32, %c0_i32_0 : i32, i32
  }
  func.func @transform_8(%arg0: i32) -> (i32, i32) {
    %c0_i32 = arith.constant 0 : i32
    %c0_i32_0 = arith.constant 0 : i32
    %c0_i32_1 = arith.constant 0 : i32
    return %c0_i32, %c0_i32_0 : i32, i32
  }
  func.func @transform_9(%arg0: i32) -> (i32, i32) {
    %c0_i32 = arith.constant 0 : i32
    %c0_i32_0 = arith.constant 0 : i32
    %c0_i32_1 = arith.constant 0 : i32
    return %c0_i32, %c0_i32_0 : i32, i32
  }
  func.func @transform_10(%arg0: i32) -> (i32, i32) {
    %c0_i32 = arith.constant 0 : i32
    %c0_i32_0 = arith.constant 0 : i32
    %c0_i32_1 = arith.constant 0 : i32
    return %c0_i32, %c0_i32_0 : i32, i32
  }
  func.func @transform_11(%arg0: i32) -> (i32, i32) {
    %c0_i32 = arith.constant 0 : i32
    %c0_i32_0 = arith.constant 0 : i32
    return %c0_i32, %arg0 : i32, i32
  }
  func.func @transform_12(%arg0: i32) -> (i32, i32) {
    %c0_i32 = arith.constant 0 : i32
    %c0_i32_0 = arith.constant 0 : i32
    return %c0_i32, %arg0 : i32, i32
  }
}

</mosaic_0001>

<llo_original>
// kernel: tpu_custom_call.1
$region0: #{tpu_custom_call.1}
  #allocation0 [shape = 'u32[]', space=smem, size = 0x4, offset = 0x4, fixed_abs, tag = 'smem constant byte address 0x4 - core index']
  #allocation1 [shape = 'u32[72,128]{1,0:T(1,128)}', space=vmem, size = 0x9000, scoped, tag = 'internal scratch']
  %s0 = inlined_call_operand.hbm [shape: f32[45,1024], index: 0, kind: input, shape index: {}]
  %s1 = inlined_call_operand.vmem [shape: f32[4,1024], index: 1, kind: input, shape index: {}]
  %s2 = inlined_call_operand.vmem [shape: f32[4,1024], index: 2, kind: input, shape index: {}]
  %s3 = inlined_call_operand.vmem [shape: f32[9,512], index: 3, kind: input, shape index: {}]
  %s4 = inlined_call_operand.vmem [shape: f32[9,8], index: 4, kind: input, shape index: {}]
  %s5 = inlined_call_operand.vmem [shape: f32[32,45], index: 5, kind: input, shape index: {}]
  %s6 = inlined_call_operand.vmem [shape: f32[32,1], index: 6, kind: input, shape index: {}]
  %s7 = inlined_call_operand.hbm [shape: f32[32,32], index: 7, kind: input, shape index: {}]
  %s8 = inlined_call_operand.vmem [shape: f32[32,1], index: 8, kind: input, shape index: {}]
  %s9 = inlined_call_operand.hbm [shape: f32[96,288], index: 9, kind: input, shape index: {}]
  %s10 = inlined_call_operand.vmem [shape: f32[96,1], index: 10, kind: input, shape index: {}]
  %s11 = inlined_call_operand.hbm [shape: f32[4,1024], index: 11, kind: output, shape index: {0}]
  %s12 = inlined_call_operand.hbm [shape: f32[1,1024], index: 12, kind: output, shape index: {1}]
  %13 = xla_tuple %s11, %s12
  %s14 = sld [smem:[#allocation0]]
  $region97: #{tpu_custom_call.1} parent=0
    _
  %s16 = ssub.s32 1, %s14
  %s17 = scalar_select 0, %s16, %s14
  $region1: #{tpu_custom_call.1} parent=0
    #allocation2 [shape = 'u8[196608]{0}', space=vmem, size = 0x30000, scoped, tag = 'input window, operand 0']
    #allocation3 [shape = 's32[2]{0}', space=sflag, size = 0x8, scoped, tag = 'scoped memory for tpu_custom_call.1']
    #allocation4 [shape = 's32[2]{0}', space=sflag, size = 0x8, scoped, tag = 'scoped memory for tpu_custom_call.1']
    #allocation5 [shape = 'u8[16384]{0}', space=vmem, size = 0x4000, scoped, tag = 'input window, operand 7, single buffered']
    #allocation6 [shape = 's32[1]{0}', space=sflag, size = 0x4, scoped, tag = 'scoped memory for tpu_custom_call.1']
    #allocation7 [shape = 'u8[147456]{0}', space=vmem, size = 0x24000, scoped, tag = 'input window, operand 9, single buffered']
    #allocation8 [shape = 'u8[16384]{0}', space=vmem, size = 0x4000, scoped, tag = 'output window, operand 0']
    #allocation9 [shape = 'u8[4096]{0}', space=vmem, size = 0x1000, scoped, tag = 'output window, operand 1']
    #allocation10 [shape = 's32[2]{0}', space=sflag, size = 0x8, scoped, tag = 'scoped memory for tpu_custom_call.1']
    %18 = vsyncpa [#allocation3], 0
    %s19 = scalar_lea.sflag [#allocation3], 1
    %20 = vsyncpa %s19, 0
    %21 = vsyncpa [#allocation6], 0
    %22 = vsyncpa [#allocation4], 0
    %s23 = scalar_lea.sflag [#allocation4], 1
    %24 = vsyncpa %s23, 0
    %25 = vsyncpa [#allocation10], 0
    %s26 = scalar_lea.sflag [#allocation10], 1
    %27 = vsyncpa %s26, 0
    loop: start=0, step=1, limit=4
    $region2: #{tpu_custom_call.1} parent=1 // loop_pre_header
      _
    $region3: #{tpu_custom_call.1} parent=1 // loop_header
      %s29 = sphi 0, %s33
      %p30 = scmp.ge.s32.totalorder %s29, 4
      %s39 = sphi 0, %s41
      %s42 = sphi 0, %s39
      %s43 = sphi 0, %s42
      %s59 = sphi 0, %s43
      %s65 = sphi 0, %s67
      %s68 = sphi 0, %s65
      %s69 = sphi 0, %s68
      %s85 = sphi 0, %s69
      %s91 = sphi 0, %s93
      %s94 = sphi 0, %s91
      %s95 = sphi 0, %s94
      %s111 = sphi 0, %s95
      %s115 = sphi 0, %s115
      %s117 = sphi 0, %s115
      %s118 = sphi 0, %s117
      %s132 = sphi 0, %s118
      %s136 = sphi 0, %s136
      %s138 = sphi 0, %s136
      %s139 = sphi 0, %s138
      %s153 = sphi 0, %s139
      %s157 = sphi 0, %s157
      %s159 = sphi 0, %s157
      %s160 = sphi 0, %s159
      %s174 = sphi 0, %s160
      %s178 = sphi 0, %s178
      %s180 = sphi 0, %s178
      %s181 = sphi 0, %s180
      %s195 = sphi 0, %s181
      %s199 = sphi 0, %s199
      %s201 = sphi 0, %s199
      %s202 = sphi 0, %s201
      %s216 = sphi 0, %s202
      %s220 = sphi 0, %s220
      %s222 = sphi 0, %s220
      %s223 = sphi 0, %s222
      %s237 = sphi 0, %s223
      %s241 = sphi 0, %s241
      %s243 = sphi 0, %s241
      %s244 = sphi 0, %s243
      %s258 = sphi 0, %s244
      %s262 = sphi 0, %s262
      %s264 = sphi 0, %s262
      %s265 = sphi 0, %s264
      %s279 = sphi 0, %s265
      %s285 = sphi 0, %s287
      %s288 = sphi 0, %s285
      %s289 = sphi 0, %s288
      %s305 = sphi 0, %s289
      %s311 = sphi 0, %s313
      %s314 = sphi 0, %s311
      %s315 = sphi 0, %s314
      %s331 = sphi 0, %s315
    $region4: #{tpu_custom_call.1} parent=1 // loop_header_branch
      %32 = sbr.rel (%p30) target = $region8
    $region5: #{tpu_custom_call.1} parent=1 // loop_body
      %s34 = ssub.s32 %s29, 1
      %s35 = ssub.s32 %s29, 2
      %s36 = sadd.s32 %s29, 1
      %s37 = ssub.s32 %s29, %s36
      %p38 = scmp.eq.s32.totalorder %s37, 0
      %s40 = sadd.s32 %s39, 1
      %s41 = scalar_select %p38, %s39, %s40
      %p44 = pneg %p38
      %p45 = scmp.eq.s32.totalorder %s29, 1
      %p46 = por %p44, %p45
      %p47 = scmp.ne.s32.totalorder %s39, %s42
      %p48 = scmp.eq.s32.totalorder %s29, 0
      %p49 = por %p47, %p48
      %p50 = scmp.ne.s32.totalorder %s39, %s42
      %p51 = scmp.eq.s32.totalorder %s34, 1
      %p52 = por %p50, %p51
      %p53 = scmp.ne.s32.totalorder %s42, %s43
      %p54 = scmp.eq.s32.totalorder %s34, 0
      %p55 = por %p53, %p54
      %p56 = scmp.ne.s32.totalorder %s42, %s43
      %p57 = scmp.eq.s32.totalorder %s35, 1
      %p58 = por %p56, %p57
      %p60 = scmp.ne.s32.totalorder %s43, %s59
      %p61 = scmp.eq.s32.totalorder %s35, 0
      %p62 = por %p60, %p61
      %s63 = ssub.s32 %s29, %s36
      %p64 = scmp.eq.s32.totalorder %s63, 0
      %s66 = sadd.s32 %s65, 1
      %s67 = scalar_select %p64, %s65, %s66
      %p70 = pneg %p64
      %p71 = scmp.eq.s32.totalorder %s29, 1
      %p72 = por %p70, %p71
      %p73 = scmp.ne.s32.totalorder %s65, %s68
      %p74 = scmp.eq.s32.totalorder %s29, 0
      %p75 = por %p73, %p74
      %p76 = scmp.ne.s32.totalorder %s65, %s68
      %p77 = scmp.eq.s32.totalorder %s34, 1
      %p78 = por %p76, %p77
      %p79 = scmp.ne.s32.totalorder %s68, %s69
      %p80 = scmp.eq.s32.totalorder %s34, 0
      %p81 = por %p79, %p80
      %p82 = scmp.ne.s32.totalorder %s68, %s69
      %p83 = scmp.eq.s32.totalorder %s35, 1
      %p84 = por %p82, %p83
      %p86 = scmp.ne.s32.totalorder %s69, %s85
      %p87 = scmp.eq.s32.totalorder %s35, 0
      %p88 = por %p86, %p87
      %s89 = ssub.s32 %s29, %s36
      %p90 = scmp.eq.s32.totalorder %s89, 0
      %s92 = sadd.s32 %s91, 1
      %s93 = scalar_select %p90, %s91, %s92
      %p96 = pneg %p90
      %p97 = scmp.eq.s32.totalorder %s29, 1
      %p98 = por %p96, %p97
      %p99 = scmp.ne.s32.totalorder %s91, %s94
      %p100 = scmp.eq.s32.totalorder %s29, 0
      %p101 = por %p99, %p100
      %p102 = scmp.ne.s32.totalorder %s91, %s94
      %p103 = scmp.eq.s32.totalorder %s34, 1
      %p104 = por %p102, %p103
      %p105 = scmp.ne.s32.totalorder %s94, %s95
      %p106 = scmp.eq.s32.totalorder %s34, 0
      %p107 = por %p105, %p106
      %p108 = scmp.ne.s32.totalorder %s94, %s95
      %p109 = scmp.eq.s32.totalorder %s35, 1
      %p110 = por %p108, %p109
      %p112 = scmp.ne.s32.totalorder %s95, %s111
      %p113 = scmp.eq.s32.totalorder %s35, 0
      %p114 = por %p112, %p113
      %s116 = sadd.s32 %s115, 1
      %p119 = scmp.eq.s32.totalorder %s29, 1
      %p120 = scmp.ne.s32.totalorder %s115, %s117
      %p121 = scmp.eq.s32.totalorder %s29, 0
      %p122 = por %p120, %p121
      %p123 = scmp.ne.s32.totalorder %s115, %s117
      %p124 = scmp.eq.s32.totalorder %s34, 1
      %p125 = por %p123, %p124
      %p126 = scmp.ne.s32.totalorder %s117, %s118
      %p127 = scmp.eq.s32.totalorder %s34, 0
      %p128 = por %p126, %p127
      %p129 = scmp.ne.s32.totalorder %s117, %s118
      %p130 = scmp.eq.s32.totalorder %s35, 1
      %p131 = por %p129, %p130
      %p133 = scmp.ne.s32.totalorder %s118, %s132
      %p134 = scmp.eq.s32.totalorder %s35, 0
      %p135 = por %p133, %p134
      %s137 = sadd.s32 %s136, 1
      %p140 = scmp.eq.s32.totalorder %s29, 1
      %p141 = scmp.ne.s32.totalorder %s136, %s138
      %p142 = scmp.eq.s32.totalorder %s29, 0
      %p143 = por %p141, %p142
      %p144 = scmp.ne.s32.totalorder %s136, %s138
      %p145 = scmp.eq.s32.totalorder %s34, 1
      %p146 = por %p144, %p145
      %p147 = scmp.ne.s32.totalorder %s138, %s139
      %p148 = scmp.eq.s32.totalorder %s34, 0
      %p149 = por %p147, %p148
      %p150 = scmp.ne.s32.totalorder %s138, %s139
      %p151 = scmp.eq.s32.totalorder %s35, 1
      %p152 = por %p150, %p151
      %p154 = scmp.ne.s32.totalorder %s139, %s153
      %p155 = scmp.eq.s32.totalorder %s35, 0
      %p156 = por %p154, %p155
      %s158 = sadd.s32 %s157, 1
      %p161 = scmp.eq.s32.totalorder %s29, 1
      %p162 = scmp.ne.s32.totalorder %s157, %s159
      %p163 = scmp.eq.s32.totalorder %s29, 0
      %p164 = por %p162, %p163
      %p165 = scmp.ne.s32.totalorder %s157, %s159
      %p166 = scmp.eq.s32.totalorder %s34, 1
      %p167 = por %p165, %p166
      %p168 = scmp.ne.s32.totalorder %s159, %s160
      %p169 = scmp.eq.s32.totalorder %s34, 0
      %p170 = por %p168, %p169
      %p171 = scmp.ne.s32.totalorder %s159, %s160
      %p172 = scmp.eq.s32.totalorder %s35, 1
      %p173 = por %p171, %p172
      %p175 = scmp.ne.s32.totalorder %s160, %s174
      %p176 = scmp.eq.s32.totalorder %s35, 0
      %p177 = por %p175, %p176
      %s179 = sadd.s32 %s178, 1
      %p182 = scmp.eq.s32.totalorder %s29, 1
      %p183 = scmp.ne.s32.totalorder %s178, %s180
      %p184 = scmp.eq.s32.totalorder %s29, 0
      %p185 = por %p183, %p184
      %p186 = scmp.ne.s32.totalorder %s178, %s180
      %p187 = scmp.eq.s32.totalorder %s34, 1
      %p188 = por %p186, %p187
      %p189 = scmp.ne.s32.totalorder %s180, %s181
      %p190 = scmp.eq.s32.totalorder %s34, 0
      %p191 = por %p189, %p190
      %p192 = scmp.ne.s32.totalorder %s180, %s181
      %p193 = scmp.eq.s32.totalorder %s35, 1
      %p194 = por %p192, %p193
      %p196 = scmp.ne.s32.totalorder %s181, %s195
      %p197 = scmp.eq.s32.totalorder %s35, 0
      %p198 = por %p196, %p197
      %s200 = sadd.s32 %s199, 1
      %p203 = scmp.eq.s32.totalorder %s29, 1
      %p204 = scmp.ne.s32.totalorder %s199, %s201
      %p205 = scmp.eq.s32.totalorder %s29, 0
      %p206 = por %p204, %p205
      %p207 = scmp.ne.s32.totalorder %s199, %s201
      %p208 = scmp.eq.s32.totalorder %s34, 1
      %p209 = por %p207, %p208
      %p210 = scmp.ne.s32.totalorder %s201, %s202
      %p211 = scmp.eq.s32.totalorder %s34, 0
      %p212 = por %p210, %p211
      %p213 = scmp.ne.s32.totalorder %s201, %s202
      %p214 = scmp.eq.s32.totalorder %s35, 1
      %p215 = por %p213, %p214
      %p217 = scmp.ne.s32.totalorder %s202, %s216
      %p218 = scmp.eq.s32.totalorder %s35, 0
      %p219 = por %p217, %p218
      %s221 = sadd.s32 %s220, 1
      %p224 = scmp.eq.s32.totalorder %s29, 1
      %p225 = scmp.ne.s32.totalorder %s220, %s222
      %p226 = scmp.eq.s32.totalorder %s29, 0
      %p227 = por %p225, %p226
      %p228 = scmp.ne.s32.totalorder %s220, %s222
      %p229 = scmp.eq.s32.totalorder %s34, 1
      %p230 = por %p228, %p229
      %p231 = scmp.ne.s32.totalorder %s222, %s223
      %p232 = scmp.eq.s32.totalorder %s34, 0
      %p233 = por %p231, %p232
      %p234 = scmp.ne.s32.totalorder %s222, %s223
      %p235 = scmp.eq.s32.totalorder %s35, 1
      %p236 = por %p234, %p235
      %p238 = scmp.ne.s32.totalorder %s223, %s237
      %p239 = scmp.eq.s32.totalorder %s35, 0
      %p240 = por %p238, %p239
      %s242 = sadd.s32 %s241, 1
      %p245 = scmp.eq.s32.totalorder %s29, 1
      %p246 = scmp.ne.s32.totalorder %s241, %s243
      %p247 = scmp.eq.s32.totalorder %s29, 0
      %p248 = por %p246, %p247
      %p249 = scmp.ne.s32.totalorder %s241, %s243
      %p250 = scmp.eq.s32.totalorder %s34, 1
      %p251 = por %p249, %p250
      %p252 = scmp.ne.s32.totalorder %s243, %s244
      %p253 = scmp.eq.s32.totalorder %s34, 0
      %p254 = por %p252, %p253
      %p255 = scmp.ne.s32.totalorder %s243, %s244
      %p256 = scmp.eq.s32.totalorder %s35, 1
      %p257 = por %p255, %p256
      %p259 = scmp.ne.s32.totalorder %s244, %s258
      %p260 = scmp.eq.s32.totalorder %s35, 0
      %p261 = por %p259, %p260
      %s263 = sadd.s32 %s262, 1
      %p266 = scmp.eq.s32.totalorder %s29, 1
      %p267 = scmp.ne.s32.totalorder %s262, %s264
      %p268 = scmp.eq.s32.totalorder %s29, 0
      %p269 = por %p267, %p268
      %p270 = scmp.ne.s32.totalorder %s262, %s264
      %p271 = scmp.eq.s32.totalorder %s34, 1
      %p272 = por %p270, %p271
      %p273 = scmp.ne.s32.totalorder %s264, %s265
      %p274 = scmp.eq.s32.totalorder %s34, 0
      %p275 = por %p273, %p274
      %p276 = scmp.ne.s32.totalorder %s264, %s265
      %p277 = scmp.eq.s32.totalorder %s35, 1
      %p278 = por %p276, %p277
      %p280 = scmp.ne.s32.totalorder %s265, %s279
      %p281 = scmp.eq.s32.totalorder %s35, 0
      %p282 = por %p280, %p281
      %s283 = ssub.s32 %s29, %s36
      %p284 = scmp.eq.s32.totalorder %s283, 0
      %s286 = sadd.s32 %s285, 1
      %s287 = scalar_select %p284, %s285, %s286
      %p290 = pneg %p284
      %p291 = scmp.eq.s32.totalorder %s29, 1
      %p292 = por %p290, %p291
      %p293 = scmp.ne.s32.totalorder %s285, %s288
      %p294 = scmp.eq.s32.totalorder %s29, 0
      %p295 = por %p293, %p294
      %p296 = scmp.ne.s32.totalorder %s285, %s288
      %p297 = scmp.eq.s32.totalorder %s34, 1
      %p298 = por %p296, %p297
      %p299 = scmp.ne.s32.totalorder %s288, %s289
      %p300 = scmp.eq.s32.totalorder %s34, 0
      %p301 = por %p299, %p300
      %p302 = scmp.ne.s32.totalorder %s288, %s289
      %p303 = scmp.eq.s32.totalorder %s35, 1
      %p304 = por %p302, %p303
      %p306 = scmp.ne.s32.totalorder %s289, %s305
      %p307 = scmp.eq.s32.totalorder %s35, 0
      %p308 = por %p306, %p307
      %s309 = ssub.s32 %s29, %s36
      %p310 = scmp.eq.s32.totalorder %s309, 0
      %s312 = sadd.s32 %s311, 1
      %s313 = scalar_select %p310, %s311, %s312
      %p316 = pneg %p310
      %p317 = scmp.eq.s32.totalorder %s29, 1
      %p318 = por %p316, %p317
      %p319 = scmp.ne.s32.totalorder %s311, %s314
      %p320 = scmp.eq.s32.totalorder %s29, 0
      %p321 = por %p319, %p320
      %p322 = scmp.ne.s32.totalorder %s311, %s314
      %p323 = scmp.eq.s32.totalorder %s34, 1
      %p324 = por %p322, %p323
      %p325 = scmp.ne.s32.totalorder %s314, %s315
      %p326 = scmp.eq.s32.totalorder %s34, 0
      %p327 = por %p325, %p326
      %p328 = scmp.ne.s32.totalorder %s314, %s315
      %p329 = scmp.eq.s32.totalorder %s35, 1
      %p330 = por %p328, %p329
      %p332 = scmp.ne.s32.totalorder %s315, %s331
      %p333 = scmp.eq.s32.totalorder %s35, 0
      %p334 = por %p332, %p333
      %p335 = scmp.le.s32.totalorder 1, %s29
      %p336 = scmp.lt.s32.totalorder %s29, 3
      %p337 = pnand %p335, %p336
      %p338 = pneg %p337
      // Predicated region
      $region9: #{tpu_custom_call.1} parent=5 // pred_check
        _
      $region10: #{tpu_custom_call.1} parent=5 // pred_check_branch
        %340 = sbr.rel (%p337) target = $region12
      $region11: #{tpu_custom_call.1} parent=5 // pred_region
        %s341 = ssub.s32 %s29, 1
        // Predicated region
        $region13: #{tpu_custom_call.1} parent=11 // pred_check
          %p342 = pneg %p128
        $region14: #{tpu_custom_call.1} parent=11 // pred_check_branch
          %344 = sbr.rel (%p342) target = $region16
        $region15: #{tpu_custom_call.1} parent=11 // pred_region
          _
        $region16: #{tpu_custom_call.1} parent=11 // pred_fallthru
          _
        // Predicated region
        $region17: #{tpu_custom_call.1} parent=11 // pred_check
          %p345 = pneg %p149
        $region18: #{tpu_custom_call.1} parent=11 // pred_check_branch
          %347 = sbr.rel (%p345) target = $region20
        $region19: #{tpu_custom_call.1} parent=11 // pred_region
          _
        $region20: #{tpu_custom_call.1} parent=11 // pred_fallthru
          _
        // Predicated region
        $region21: #{tpu_custom_call.1} parent=11 // pred_check
          %p348 = pneg %p170
        $region22: #{tpu_custom_call.1} parent=11 // pred_check_branch
          %350 = sbr.rel (%p348) target = $region24
        $region23: #{tpu_custom_call.1} parent=11 // pred_region
          _
        $region24: #{tpu_custom_call.1} parent=11 // pred_fallthru
          _
        // Predicated region
        $region25: #{tpu_custom_call.1} parent=11 // pred_check
          %p351 = pneg %p191
        $region26: #{tpu_custom_call.1} parent=11 // pred_check_branch
          %353 = sbr.rel (%p351) target = $region28
        $region27: #{tpu_custom_call.1} parent=11 // pred_region
          _
        $region28: #{tpu_custom_call.1} parent=11 // pred_fallthru
          _
        // Predicated region
        $region29: #{tpu_custom_call.1} parent=11 // pred_check
          %p354 = pneg %p212
        $region30: #{tpu_custom_call.1} parent=11 // pred_check_branch
          %356 = sbr.rel (%p354) target = $region32
        $region31: #{tpu_custom_call.1} parent=11 // pred_region
          %358 = vsyncadd [#allocation6], 0
          %s359 = sshll.u32 %s7, 4
          %s360 = int_to_ptr.hbm [resolvable:$true] %s359
          %s361 = sshll.u32 [#allocation5], 4
          %s362 = int_to_ptr.vmem [resolvable:$true] %s361
          %367 = dma.hbm_to_vmem [thread:$0]  %s360, 512, %s362, [#allocation6], 128, 128, 8
        $region32: #{tpu_custom_call.1} parent=11 // pred_fallthru
          _
        // Predicated region
        $region33: #{tpu_custom_call.1} parent=11 // pred_check
          %p368 = pneg %p233
        $region34: #{tpu_custom_call.1} parent=11 // pred_check_branch
          %370 = sbr.rel (%p368) target = $region36
        $region35: #{tpu_custom_call.1} parent=11 // pred_region
          _
        $region36: #{tpu_custom_call.1} parent=11 // pred_fallthru
          _
        // Predicated region
        $region37: #{tpu_custom_call.1} parent=11 // pred_check
          %p371 = pneg %p254
        $region38: #{tpu_custom_call.1} parent=11 // pred_check_branch
          %373 = sbr.rel (%p371) target = $region40
        $region39: #{tpu_custom_call.1} parent=11 // pred_region
          %375 = vsyncadd [#allocation6], 0
          %s376 = sshll.u32 %s9, 4
          %s377 = int_to_ptr.hbm [resolvable:$true] %s376
          %s378 = sshll.u32 [#allocation7], 4
          %s379 = int_to_ptr.vmem [resolvable:$true] %s378
          %384 = dma.hbm_to_vmem [thread:$0]  %s377, 4608, %s379, [#allocation6], 384, 384, 24
        $region40: #{tpu_custom_call.1} parent=11 // pred_fallthru
          _
        // Predicated region
        $region41: #{tpu_custom_call.1} parent=11 // pred_check
          %p385 = pneg %p275
        $region42: #{tpu_custom_call.1} parent=11 // pred_check_branch
          %387 = sbr.rel (%p385) target = $region44
        $region43: #{tpu_custom_call.1} parent=11 // pred_region
          _
        $region44: #{tpu_custom_call.1} parent=11 // pred_fallthru
          _
      $region12: #{tpu_custom_call.1} parent=5 // pred_fallthru
        _
      %p388 = scmp.lt.s32.totalorder %s29, 2
      // Predicated region
      $region45: #{tpu_custom_call.1} parent=5 // pred_check
        %p389 = pneg %p388
      $region46: #{tpu_custom_call.1} parent=5 // pred_check_branch
        %391 = sbr.rel (%p389) target = $region48
      $region47: #{tpu_custom_call.1} parent=5 // pred_region
        // Predicated region
        $region49: #{tpu_custom_call.1} parent=47 // pred_check
          %p392 = pneg %p49
        $region50: #{tpu_custom_call.1} parent=47 // pred_check_branch
          %394 = sbr.rel (%p392) target = $region52
        $region51: #{tpu_custom_call.1} parent=47 // pred_region
          %s395 = sand.u32 %s39, 1
          %s396 = scalar_lea.sflag [#allocation3], %s395
          %s397 = sand.u32 %s39, 1
          %s398 = smul.addr %s397, 192
          %s399 = scalar_lea.vmem [#allocation2], %s398
          %s400 = smul.u32 4, %s29
          %402 = vsyncadd %s396, 0
          %s403 = smul.addr %s400, 8
          %s404 = scalar_lea.hbm %s0, %s403
          %s405 = sshll.u32 %s404, 4
          %s406 = int_to_ptr.hbm [resolvable:$true] %s405
          %s407 = sshll.u32 %s399, 4
          %s408 = int_to_ptr.vmem [resolvable:$true] %s407
          %413 = dma.hbm_to_vmem [thread:$0]  %s406, 3072, %s408, %s396, 1024, 512, 32
        $region52: #{tpu_custom_call.1} parent=47 // pred_fallthru
          _
        // Predicated region
        $region53: #{tpu_custom_call.1} parent=47 // pred_check
          %p414 = pneg %p75
        $region54: #{tpu_custom_call.1} parent=47 // pred_check_branch
          %416 = sbr.rel (%p414) target = $region56
        $region55: #{tpu_custom_call.1} parent=47 // pred_region
          %s417 = smul.u32 4, %s29
          %p418 = scmp.lt.s32.totalorder %s417, 7
          %s419 = scalar_select %p418, %s417, 7
          %s420 = smul.addr %s419, 4
          %s421 = scalar_lea.vmem %s1, %s420
          %s422 = smul.u32 4, %s29
        $region56: #{tpu_custom_call.1} parent=47 // pred_fallthru
          _
        // Predicated region
        $region57: #{tpu_custom_call.1} parent=47 // pred_check
          %p423 = pneg %p101
        $region58: #{tpu_custom_call.1} parent=47 // pred_check_branch
          %425 = sbr.rel (%p423) target = $region60
        $region59: #{tpu_custom_call.1} parent=47 // pred_region
          %s426 = smul.u32 4, %s29
          %p427 = scmp.lt.s32.totalorder %s426, 7
          %s428 = scalar_select %p427, %s426, 7
          %s429 = smul.addr %s428, 4
          %s430 = scalar_lea.vmem %s2, %s429
          %s431 = smul.u32 4, %s29
        $region60: #{tpu_custom_call.1} parent=47 // pred_fallthru
          _
      $region48: #{tpu_custom_call.1} parent=5 // pred_fallthru
        _
      %p432 = scmp.le.s32.totalorder 1, %s29
      %p433 = scmp.lt.s32.totalorder %s29, 3
      %p434 = pnand %p432, %p433
      %p435 = pneg %p434
      // Predicated region
      $region61: #{tpu_custom_call.1} parent=5 // pred_check
        _
      $region62: #{tpu_custom_call.1} parent=5 // pred_check_branch
        %437 = sbr.rel (%p434) target = $region64
      $region63: #{tpu_custom_call.1} parent=5 // pred_region
        %s438 = ssub.s32 %s29, 1
        %s439 = sand.u32 %s42, 1
        %s440 = scalar_lea.sflag [#allocation3], %s439
        %s441 = sand.u32 %s42, 1
        %s442 = smul.addr %s441, 192
        %s443 = scalar_lea.vmem [#allocation2], %s442
        // Predicated region
        $region65: #{tpu_custom_call.1} parent=63 // pred_check
          %p444 = pneg %p55
        $region66: #{tpu_custom_call.1} parent=63 // pred_check_branch
          %446 = sbr.rel (%p444) target = $region68
        $region67: #{tpu_custom_call.1} parent=63 // pred_region
          %448 = dma.done %s440, 3072
        $region68: #{tpu_custom_call.1} parent=63 // pred_fallthru
          _
        // Predicated region
        $region69: #{tpu_custom_call.1} parent=63 // pred_check
          %p449 = pneg %p212
        $region70: #{tpu_custom_call.1} parent=63 // pred_check_branch
          %451 = sbr.rel (%p449) target = $region72
        $region71: #{tpu_custom_call.1} parent=63 // pred_region
          %453 = dma.done [#allocation6], 512
        $region72: #{tpu_custom_call.1} parent=63 // pred_fallthru
          _
        // Predicated region
        $region73: #{tpu_custom_call.1} parent=63 // pred_check
          %p454 = pneg %p254
        $region74: #{tpu_custom_call.1} parent=63 // pred_check_branch
          %456 = sbr.rel (%p454) target = $region76
        $region75: #{tpu_custom_call.1} parent=63 // pred_region
          %458 = dma.done [#allocation6], 4608
        $region76: #{tpu_custom_call.1} parent=63 // pred_fallthru
          _
        %s459 = sand.u32 %s42, 1
        %s460 = scalar_lea.sflag [#allocation3], %s459
        %s461 = sand.u32 %s42, 1
        %s462 = smul.addr %s461, 192
        %s463 = scalar_lea.vmem [#allocation2], %s462
        %p464 = pneg %p55
        %p465 = pneg %p52
        %s466 = smul.u32 4, %s34
        %p467 = scmp.lt.s32.totalorder %s466, 7
        %s468 = scalar_select %p467, %s466, 7
        %s469 = smul.addr %s468, 4
        %s470 = scalar_lea.vmem %s1, %s469
        %p471 = pneg %p81
        %p472 = pneg %p78
        %s473 = smul.u32 4, %s34
        %p474 = scmp.lt.s32.totalorder %s473, 7
        %s475 = scalar_select %p474, %s473, 7
        %s476 = smul.addr %s475, 4
        %s477 = scalar_lea.vmem %s2, %s476
        %p478 = pneg %p107
        %p479 = pneg %p104
        %p480 = pneg %p128
        %p481 = pneg %p125
        %p482 = pneg %p149
        %p483 = pneg %p146
        %p484 = pneg %p170
        %p485 = pneg %p167
        %p486 = pneg %p191
        %p487 = pneg %p188
        %p488 = pneg %p212
        %p489 = pneg %p209
        %p490 = pneg %p233
        %p491 = pneg %p230
        %p492 = pneg %p254
        %p493 = pneg %p251
        %p494 = pneg %p275
        %p495 = pneg %p272
        %p496 = pneg %p301
        %p497 = pneg %p298
        %s498 = sand.u32 %s288, 1
        %s499 = scalar_lea.sflag [#allocation4], %s498
        %s500 = sand.u32 %s288, 1
        %s501 = smul.addr %s500, 16
        %s502 = scalar_lea.vmem [#allocation8], %s501
        %p503 = pneg %p327
        %p504 = pneg %p324
        %s505 = sand.u32 %s314, 1
        %s506 = scalar_lea.sflag [#allocation10], %s505
        %s507 = sand.u32 %s314, 1
        %s508 = smul.addr %s507, 4
        %s509 = scalar_lea.vmem [#allocation9], %s508
        %s510 = smul.u32 4, %s34
        %s511 = smul.u32 4, %s34
        %p512 = scmp.lt.s32.totalorder %s511, 7
        %s513 = scalar_select %p512, %s511, 7
        %s514 = smul.addr %s513, 4
        %s515 = scalar_lea.vmem %s1, %s514
        %s516 = smul.u32 4, %s34
        %s517 = smul.u32 4, %s34
        %p518 = scmp.lt.s32.totalorder %s517, 7
        %s519 = scalar_select %p518, %s517, 7
        %s520 = smul.addr %s519, 4
        %s521 = scalar_lea.vmem %s2, %s520
        %s522 = smul.u32 4, %s34
        %s523 = smul.u32 4, %s34
        %s524 = smul.u32 4, %s34
        %v525 = vld [vmem:[%s5] sm:$0xff]
        %v526 = vld [vmem:[%s5 + $0x8] sm:$0xff]
        %v527 = vld [vmem:[%s5 + $0x10] sm:$0xff]
        %v528 = vld [vmem:[%s5 + $0x18] sm:$0xff]
        %v529 = vld [vmem:[%s443] sm:$0xff]
        %v530 = vld [vmem:[%s443 + $0x8] sm:$0xff]
        %v531 = vld [vmem:[%s443 + $0x10] sm:$0xff]
        %v532 = vld [vmem:[%s443 + $0x18] sm:$0xff]
        %v533 = vld [vmem:[%s443 + $0x20] sm:$0xff]
        %v534 = vld [vmem:[%s443 + $0x28] sm:$0xff]
        %v535 = vld [vmem:[%s443 + $0x30] sm:$0xff]
        %v536 = vld [vmem:[%s443 + $0x38] sm:$0xff]
        %v537 = vld [vmem:[%s443 + $0x40] sm:$0xff]
        %v538 = vld [vmem:[%s443 + $0x48] sm:$0xff]
        %v539 = vld [vmem:[%s443 + $0x50] sm:$0xff]
        %v540 = vld [vmem:[%s443 + $0x58] sm:$0xff]
        %v541 = vld [vmem:[%s443 + $0x60] sm:$0xff]
        %v542 = vld [vmem:[%s443 + $0x68] sm:$0xff]
        %v543 = vld [vmem:[%s443 + $0x70] sm:$0xff]
        %v544 = vld [vmem:[%s443 + $0x78] sm:$0xff]
        %v545 = vld [vmem:[%s443 + $0x80] sm:$0xff]
        %v546 = vld [vmem:[%s443 + $0x88] sm:$0xff]
        %v547 = vld [vmem:[%s443 + $0x90] sm:$0xff]
        %v548 = vld [vmem:[%s443 + $0x98] sm:$0xff]
        %v549 = vld [vmem:[%s443 + $0xa0] sm:$0x1f]
        %v550 = vld [vmem:[%s443 + $0xa8] sm:$0x1f]
        %v551 = vld [vmem:[%s443 + $0xb0] sm:$0x1f]
        %v552 = vld [vmem:[%s443 + $0xb8] sm:$0x1f]
        %v553 = vld [vmem:[%s6] sm:$0xff]
        %v554 = vld [vmem:[%s6 + $0x8] sm:$0xff]
        %v555 = vld [vmem:[%s6 + $0x10] sm:$0xff]
        %v556 = vld [vmem:[%s6 + $0x18] sm:$0xff]
        %558 = vset.pattern.permute.xlu0 0
        %559 = vperm.xlu0 %558, %v553
        %v560 = vpop.permute.xlu0 %559
        %563 = vset.pattern.permute.xlu0 0
        %564 = vperm.xlu0 %563, %v554
        %v565 = vpop.permute.xlu0 %564
        %568 = vset.pattern.permute.xlu0 0
        %569 = vperm.xlu0 %568, %v555
        %v570 = vpop.permute.xlu0 %569
        %573 = vset.pattern.permute.xlu0 0
        %574 = vperm.xlu0 %573, %v556
        %v575 = vpop.permute.xlu0 %574
        %vm577 = vcmask 367616
        %v579 = vsel %vm577, %v525, 0
        %v582 = vsel %vm577, %v526, 0
        %v585 = vsel %vm577, %v527, 0
        %v588 = vsel %vm577, %v528, 0
        %vm590 = vcmask 1044480
        %v592 = vsel %vm590, %v549, 0
        %v595 = vsel %vm590, %v550, 0
        %v598 = vsel %vm590, %v551, 0
        %v601 = vsel %vm590, %v552, 0
        %603 = vmatpush.msra.mxu0 0.0
        %604 = vmatpush.msra.mxu0 0.0
        %605 = vmatpush.msra.mxu0 0.0
        %606 = vmatpush.msra.mxu0 0.0
        %607 = vmatpush.msra.mxu0 0.0
        %608 = vmatpush.msra.mxu0 0.0
        %609 = vmatpush.msra.mxu0 0.0
        %610 = vmatpush.msra.mxu0 0.0
        %611 = vmatpush.msra.mxu0 0.0
        %612 = vmatpush.msra.mxu0 0.0
        %613 = vmatpush.msra.mxu0 %v592
        %614 = vmatpush.msra.mxu0 %v545
        %615 = vmatpush.msra.mxu0 %v541
        %616 = vmatpush.msra.mxu0 %v537
        %617 = vmatpush.msra.mxu0 %v533
        %618 = vmatpush.msra.mxu0 %v529
        %619 = vmatmul.f32.gmra.mxu0 %v579
        %v620 = vpop.f32.mrf.mxu0
        %v621 = vadd.f32 %v560, %v620
        %622 = vmatmul.f32.gmra.mxu0 %v582
        %v623 = vpop.f32.mrf.mxu0
        %v624 = vadd.f32 %v565, %v623
        %625 = vmatmul.f32.gmra.mxu0 %v585
        %v626 = vpop.f32.mrf.mxu0
        %v627 = vadd.f32 %v570, %v626
        %628 = vmatmul.f32.gmra.mxu0 %v588
        %v629 = vpop.f32.mrf.mxu0
        %v630 = vadd.f32 %v575, %v629
        %631 = vdwg.mxu0
        %632 = vmatpush.msra.mxu0 0.0
        %633 = vmatpush.msra.mxu0 0.0
        %634 = vmatpush.msra.mxu0 0.0
        %635 = vmatpush.msra.mxu0 0.0
        %636 = vmatpush.msra.mxu0 0.0
        %637 = vmatpush.msra.mxu0 0.0
        %638 = vmatpush.msra.mxu0 0.0
        %639 = vmatpush.msra.mxu0 0.0
        %640 = vmatpush.msra.mxu0 0.0
        %641 = vmatpush.msra.mxu0 0.0
        %642 = vmatpush.msra.mxu0 %v595
        %643 = vmatpush.msra.mxu0 %v546
        %644 = vmatpush.msra.mxu0 %v542
        %645 = vmatpush.msra.mxu0 %v538
        %646 = vmatpush.msra.mxu0 %v534
        %647 = vmatpush.msra.mxu0 %v530
        %648 = vmatmul.f32.gmra.mxu0 %v579
        %v649 = vpop.f32.mrf.mxu0
        %v650 = vadd.f32 %v560, %v649
        %651 = vmatmul.f32.gmra.mxu0 %v582
        %v652 = vpop.f32.mrf.mxu0
        %v653 = vadd.f32 %v565, %v652
        %654 = vmatmul.f32.gmra.mxu0 %v585
        %v655 = vpop.f32.mrf.mxu0
        %v656 = vadd.f32 %v570, %v655
        %657 = vmatmul.f32.gmra.mxu0 %v588
        %v658 = vpop.f32.mrf.mxu0
        %v659 = vadd.f32 %v575, %v658
        %660 = vdwg.mxu0
        %661 = vmatpush.msra.mxu0 0.0
        %662 = vmatpush.msra.mxu0 0.0
        %663 = vmatpush.msra.mxu0 0.0
        %664 = vmatpush.msra.mxu0 0.0
        %665 = vmatpush.msra.mxu0 0.0
        %666 = vmatpush.msra.mxu0 0.0
        %667 = vmatpush.msra.mxu0 0.0
        %668 = vmatpush.msra.mxu0 0.0
        %669 = vmatpush.msra.mxu0 0.0
        %670 = vmatpush.msra.mxu0 0.0
        %671 = vmatpush.msra.mxu0 %v598
        %672 = vmatpush.msra.mxu0 %v547
        %673 = vmatpush.msra.mxu0 %v543
        %674 = vmatpush.msra.mxu0 %v539
        %675 = vmatpush.msra.mxu0 %v535
        %676 = vmatpush.msra.mxu0 %v531
        %677 = vmatmul.f32.gmra.mxu0 %v579
        %v678 = vpop.f32.mrf.mxu0
        %v679 = vadd.f32 %v560, %v678
        %680 = vmatmul.f32.gmra.mxu0 %v582
        %v681 = vpop.f32.mrf.mxu0
        %v682 = vadd.f32 %v565, %v681
        %683 = vmatmul.f32.gmra.mxu0 %v585
        %v684 = vpop.f32.mrf.mxu0
        %v685 = vadd.f32 %v570, %v684
        %686 = vmatmul.f32.gmra.mxu0 %v588
        %v687 = vpop.f32.mrf.mxu0
        %v688 = vadd.f32 %v575, %v687
        %689 = vdwg.mxu0
        %690 = vmatpush.msra.mxu0 0.0
        %691 = vmatpush.msra.mxu0 0.0
        %692 = vmatpush.msra.mxu0 0.0
        %693 = vmatpush.msra.mxu0 0.0
        %694 = vmatpush.msra.mxu0 0.0
        %695 = vmatpush.msra.mxu0 0.0
        %696 = vmatpush.msra.mxu0 0.0
        %697 = vmatpush.msra.mxu0 0.0
        %698 = vmatpush.msra.mxu0 0.0
        %699 = vmatpush.msra.mxu0 0.0
        %700 = vmatpush.msra.mxu0 %v601
        %701 = vmatpush.msra.mxu0 %v548
        %702 = vmatpush.msra.mxu0 %v544
        %703 = vmatpush.msra.mxu0 %v540
        %704 = vmatpush.msra.mxu0 %v536
        %705 = vmatpush.msra.mxu0 %v532
        %706 = vmatmul.f32.gmra.mxu0 %v579
        %v707 = vpop.f32.mrf.mxu0
        %v708 = vadd.f32 %v560, %v707
        %709 = vmatmul.f32.gmra.mxu0 %v582
        %v710 = vpop.f32.mrf.mxu0
        %v711 = vadd.f32 %v565, %v710
        %712 = vmatmul.f32.gmra.mxu0 %v585
        %v713 = vpop.f32.mrf.mxu0
        %v714 = vadd.f32 %v570, %v713
        %715 = vmatmul.f32.gmra.mxu0 %v588
        %v716 = vpop.f32.mrf.mxu0
        %v717 = vadd.f32 %v575, %v716
        %718 = vdwg.mxu0
        %v719 = vmax.f32 %v621, 0.0
        %v720 = vmax.f32 %v650, 0.0
        %v721 = vmax.f32 %v679, 0.0
        %v722 = vmax.f32 %v708, 0.0
        %v723 = vmax.f32 %v624, 0.0
        %v724 = vmax.f32 %v653, 0.0
        %v725 = vmax.f32 %v682, 0.0
        %v726 = vmax.f32 %v711, 0.0
        %v727 = vmax.f32 %v627, 0.0
        %v728 = vmax.f32 %v656, 0.0
        %v729 = vmax.f32 %v685, 0.0
        %v730 = vmax.f32 %v714, 0.0
        %v731 = vmax.f32 %v630, 0.0
        %v732 = vmax.f32 %v659, 0.0
        %v733 = vmax.f32 %v688, 0.0
        %v734 = vmax.f32 %v717, 0.0
        %v735 = vld [vmem:[#allocation5] sm:$0xff]
        %v736 = vld [vmem:[#allocation5 + $0x8] sm:$0xff]
        %v737 = vld [vmem:[#allocation5 + $0x10] sm:$0xff]
        %v738 = vld [vmem:[#allocation5 + $0x18] sm:$0xff]
        %v739 = vld [vmem:[%s8] sm:$0xff]
        %v740 = vld [vmem:[%s8 + $0x8] sm:$0xff]
        %v741 = vld [vmem:[%s8 + $0x10] sm:$0xff]
        %v742 = vld [vmem:[%s8 + $0x18] sm:$0xff]
        %744 = vset.pattern.permute.xlu0 0
        %745 = vperm.xlu0 %744, %v739
        %v746 = vpop.permute.xlu0 %745
        %749 = vset.pattern.permute.xlu0 0
        %750 = vperm.xlu0 %749, %v740
        %v751 = vpop.permute.xlu0 %750
        %754 = vset.pattern.permute.xlu0 0
        %755 = vperm.xlu0 %754, %v741
        %v756 = vpop.permute.xlu0 %755
        %759 = vset.pattern.permute.xlu0 0
        %760 = vperm.xlu0 %759, %v742
        %v761 = vpop.permute.xlu0 %760
        %vm763 = vcmask 261120
        %v765 = vsel %vm763, %v735, 0
        %v768 = vsel %vm763, %v736, 0
        %v771 = vsel %vm763, %v737, 0
        %v774 = vsel %vm763, %v738, 0
        %776 = vmatpush.msra.mxu0 0.0
        %777 = vmatpush.msra.mxu0 0.0
        %778 = vmatpush.msra.mxu0 0.0
        %779 = vmatpush.msra.mxu0 0.0
        %780 = vmatpush.msra.mxu0 0.0
        %781 = vmatpush.msra.mxu0 0.0
        %782 = vmatpush.msra.mxu0 0.0
        %783 = vmatpush.msra.mxu0 0.0
        %784 = vmatpush.msra.mxu0 0.0
        %785 = vmatpush.msra.mxu0 0.0
        %786 = vmatpush.msra.mxu0 0.0
        %787 = vmatpush.msra.mxu0 0.0
        %788 = vmatpush.msra.mxu0 %v731
        %789 = vmatpush.msra.mxu0 %v727
        %790 = vmatpush.msra.mxu0 %v723
        %791 = vmatpush.msra.mxu0 %v719
        %792 = vmatmul.f32.gmra.mxu0 %v765
        %v793 = vpop.f32.mrf.mxu0
        %v794 = vadd.f32 %v746, %v793
        %795 = vmatmul.f32.gmra.mxu0 %v768
        %v796 = vpop.f32.mrf.mxu0
        %v797 = vadd.f32 %v751, %v796
        %798 = vmatmul.f32.gmra.mxu0 %v771
        %v799 = vpop.f32.mrf.mxu0
        %v800 = vadd.f32 %v756, %v799
        %801 = vmatmul.f32.gmra.mxu0 %v774
        %v802 = vpop.f32.mrf.mxu0
        %v803 = vadd.f32 %v761, %v802
        %804 = vdwg.mxu0
        %805 = vmatpush.msra.mxu0 0.0
        %806 = vmatpush.msra.mxu0 0.0
        %807 = vmatpush.msra.mxu0 0.0
        %808 = vmatpush.msra.mxu0 0.0
        %809 = vmatpush.msra.mxu0 0.0
        %810 = vmatpush.msra.mxu0 0.0
        %811 = vmatpush.msra.mxu0 0.0
        %812 = vmatpush.msra.mxu0 0.0
        %813 = vmatpush.msra.mxu0 0.0
        %814 = vmatpush.msra.mxu0 0.0
        %815 = vmatpush.msra.mxu0 0.0
        %816 = vmatpush.msra.mxu0 0.0
        %817 = vmatpush.msra.mxu0 %v732
        %818 = vmatpush.msra.mxu0 %v728
        %819 = vmatpush.msra.mxu0 %v724
        %820 = vmatpush.msra.mxu0 %v720
        %821 = vmatmul.f32.gmra.mxu0 %v765
        %v822 = vpop.f32.mrf.mxu0
        %v823 = vadd.f32 %v746, %v822
        %824 = vmatmul.f32.gmra.mxu0 %v768
        %v825 = vpop.f32.mrf.mxu0
        %v826 = vadd.f32 %v751, %v825
        %827 = vmatmul.f32.gmra.mxu0 %v771
        %v828 = vpop.f32.mrf.mxu0
        %v829 = vadd.f32 %v756, %v828
        %830 = vmatmul.f32.gmra.mxu0 %v774
        %v831 = vpop.f32.mrf.mxu0
        %v832 = vadd.f32 %v761, %v831
        %833 = vdwg.mxu0
        %834 = vmatpush.msra.mxu0 0.0
        %835 = vmatpush.msra.mxu0 0.0
        %836 = vmatpush.msra.mxu0 0.0
        %837 = vmatpush.msra.mxu0 0.0
        %838 = vmatpush.msra.mxu0 0.0
        %839 = vmatpush.msra.mxu0 0.0
        %840 = vmatpush.msra.mxu0 0.0
        %841 = vmatpush.msra.mxu0 0.0
        %842 = vmatpush.msra.mxu0 0.0
        %843 = vmatpush.msra.mxu0 0.0
        %844 = vmatpush.msra.mxu0 0.0
        %845 = vmatpush.msra.mxu0 0.0
        %846 = vmatpush.msra.mxu0 %v733
        %847 = vmatpush.msra.mxu0 %v729
        %848 = vmatpush.msra.mxu0 %v725
        %849 = vmatpush.msra.mxu0 %v721
        %850 = vmatmul.f32.gmra.mxu0 %v765
        %v851 = vpop.f32.mrf.mxu0
        %v852 = vadd.f32 %v746, %v851
        %853 = vmatmul.f32.gmra.mxu0 %v768
        %v854 = vpop.f32.mrf.mxu0
        %v855 = vadd.f32 %v751, %v854
        %856 = vmatmul.f32.gmra.mxu0 %v771
        %v857 = vpop.f32.mrf.mxu0
        %v858 = vadd.f32 %v756, %v857
        %859 = vmatmul.f32.gmra.mxu0 %v774
        %v860 = vpop.f32.mrf.mxu0
        %v861 = vadd.f32 %v761, %v860
        %862 = vdwg.mxu0
        %863 = vmatpush.msra.mxu0 0.0
        %864 = vmatpush.msra.mxu0 0.0
        %865 = vmatpush.msra.mxu0 0.0
        %866 = vmatpush.msra.mxu0 0.0
        %867 = vmatpush.msra.mxu0 0.0
        %868 = vmatpush.msra.mxu0 0.0
        %869 = vmatpush.msra.mxu0 0.0
        %870 = vmatpush.msra.mxu0 0.0
        %871 = vmatpush.msra.mxu0 0.0
        %872 = vmatpush.msra.mxu0 0.0
        %873 = vmatpush.msra.mxu0 0.0
        %874 = vmatpush.msra.mxu0 0.0
        %875 = vmatpush.msra.mxu0 %v734
        %876 = vmatpush.msra.mxu0 %v730
        %877 = vmatpush.msra.mxu0 %v726
        %878 = vmatpush.msra.mxu0 %v722
        %879 = vmatmul.f32.gmra.mxu0 %v765
        %v880 = vpop.f32.mrf.mxu0
        %v881 = vadd.f32 %v746, %v880
        %882 = vmatmul.f32.gmra.mxu0 %v768
        %v883 = vpop.f32.mrf.mxu0
        %v884 = vadd.f32 %v751, %v883
        %885 = vmatmul.f32.gmra.mxu0 %v771
        %v886 = vpop.f32.mrf.mxu0
        %v887 = vadd.f32 %v756, %v886
        %888 = vmatmul.f32.gmra.mxu0 %v774
        %v889 = vpop.f32.mrf.mxu0
        %v890 = vadd.f32 %v761, %v889
        %891 = vdwg.mxu0
        %v892 = vmax.f32 %v794, 0.0
        %v893 = vmax.f32 %v823, 0.0
        %v894 = vmax.f32 %v852, 0.0
        %v895 = vmax.f32 %v881, 0.0
        %v896 = vmax.f32 %v797, 0.0
        %v897 = vmax.f32 %v826, 0.0
        %v898 = vmax.f32 %v855, 0.0
        %v899 = vmax.f32 %v884, 0.0
        %v900 = vmax.f32 %v800, 0.0
        %v901 = vmax.f32 %v829, 0.0
        %v902 = vmax.f32 %v858, 0.0
        %v903 = vmax.f32 %v887, 0.0
        %v904 = vmax.f32 %v803, 0.0
        %v905 = vmax.f32 %v832, 0.0
        %v906 = vmax.f32 %v861, 0.0
        %v907 = vmax.f32 %v890, 0.0
        %v908 = vld [vmem:[%s3] sm:$0xff]
        %v909 = vld [vmem:[%s3 + $0x8] sm:$0xff]
        %v910 = vld [vmem:[%s3 + $0x10] sm:$0xff]
        %v911 = vld [vmem:[%s3 + $0x18] sm:$0xff]
        %v912 = vld [vmem:[%s3 + $0x20] sm:$0x1]
        %v913 = vld [vmem:[%s3 + $0x28] sm:$0x1]
        %v914 = vld [vmem:[%s3 + $0x30] sm:$0x1]
        %v915 = vld [vmem:[%s3 + $0x38] sm:$0x1]
        %916 = vrot.lane.b32.xlu0 %v892, 17
        %v917 = vpop.permute.xlu0 %916
        %918 = vrot.lane.b32.xlu0 %v896, 17
        %v919 = vpop.permute.xlu0 %918
        %920 = vrot.lane.b32.xlu0 %v900, 17
        %v921 = vpop.permute.xlu0 %920
        %922 = vrot.lane.b32.xlu0 %v904, 17
        %v923 = vpop.permute.xlu0 %922
        %924 = vrot.lane.b32.xlu0 %v893, 17
        %v925 = vpop.permute.xlu0 %924
        %926 = vrot.lane.b32.xlu0 %v897, 17
        %v927 = vpop.permute.xlu0 %926
        %928 = vrot.lane.b32.xlu0 %v901, 17
        %v929 = vpop.permute.xlu0 %928
        %930 = vrot.lane.b32.xlu0 %v905, 17
        %v931 = vpop.permute.xlu0 %930
        %932 = vrot.lane.b32.xlu0 %v894, 17
        %v933 = vpop.permute.xlu0 %932
        %934 = vrot.lane.b32.xlu0 %v898, 17
        %v935 = vpop.permute.xlu0 %934
        %936 = vrot.lane.b32.xlu0 %v902, 17
        %v937 = vpop.permute.xlu0 %936
        %938 = vrot.lane.b32.xlu0 %v906, 17
        %v939 = vpop.permute.xlu0 %938
        %940 = vrot.lane.b32.xlu0 %v895, 17
        %v941 = vpop.permute.xlu0 %940
        %942 = vrot.lane.b32.xlu0 %v899, 17
        %v943 = vpop.permute.xlu0 %942
        %944 = vrot.lane.b32.xlu0 %v903, 17
        %v945 = vpop.permute.xlu0 %944
        %946 = vrot.lane.b32.xlu0 %v907, 17
        %v947 = vpop.permute.xlu0 %946
        %v948 = vlaneseq
        %v949 = vand.u32 %v948, 127
        %vm950 = vcmp.lt.s32.totalorder %v949, 17
        %v951 = vsel %vm950, %v933, %v941
        %v952 = vsel %vm950, %v935, %v943
        %v953 = vsel %vm950, %v937, %v945
        %v954 = vsel %vm950, %v939, %v947
        %v955 = vsel %vm950, %v925, %v933
        %v956 = vsel %vm950, %v927, %v935
        %v957 = vsel %vm950, %v929, %v937
        %v958 = vsel %vm950, %v931, %v939
        %v959 = vsel %vm950, %v917, %v925
        %v960 = vsel %vm950, %v919, %v927
        %v961 = vsel %vm950, %v921, %v929
        %v962 = vsel %vm950, %v923, %v931
        %v963 = vsel %vm950, %v941, %v917
        %v964 = vsel %vm950, %v943, %v919
        %v965 = vsel %vm950, %v945, %v921
        %v966 = vsel %vm950, %v947, %v923
        %v967 = vperm.slane %v908, 0
        %v968 = vperm.slane %v909, 0
        %v969 = vperm.slane %v910, 0
        %v970 = vperm.slane %v911, 0
        %v971 = vmul.f32 %v963, %v967
        %v972 = vmul.f32 %v959, %v968
        %v973 = vmul.f32 %v955, %v969
        %v974 = vmul.f32 %v951, %v970
        %v975 = vmul.f32 %v964, %v967
        %v976 = vmul.f32 %v960, %v968
        %v977 = vmul.f32 %v956, %v969
        %v978 = vmul.f32 %v952, %v970
        %v979 = vmul.f32 %v965, %v967
        %v980 = vmul.f32 %v961, %v968
        %v981 = vmul.f32 %v957, %v969
        %v982 = vmul.f32 %v953, %v970
        %v983 = vmul.f32 %v966, %v967
        %v984 = vmul.f32 %v962, %v968
        %v985 = vmul.f32 %v958, %v969
        %v986 = vmul.f32 %v954, %v970
        %987 = vrot.lane.b32.xlu0 %v892, 16
        %v988 = vpop.permute.xlu0 %987
        %989 = vrot.lane.b32.xlu0 %v896, 16
        %v990 = vpop.permute.xlu0 %989
        %991 = vrot.lane.b32.xlu0 %v900, 16
        %v992 = vpop.permute.xlu0 %991
        %993 = vrot.lane.b32.xlu0 %v904, 16
        %v994 = vpop.permute.xlu0 %993
        %995 = vrot.lane.b32.xlu0 %v893, 16
        %v996 = vpop.permute.xlu0 %995
        %997 = vrot.lane.b32.xlu0 %v897, 16
        %v998 = vpop.permute.xlu0 %997
        %999 = vrot.lane.b32.xlu0 %v901, 16
        %v1000 = vpop.permute.xlu0 %999
        %1001 = vrot.lane.b32.xlu0 %v905, 16
        %v1002 = vpop.permute.xlu0 %1001
        %1003 = vrot.lane.b32.xlu0 %v894, 16
        %v1004 = vpop.permute.xlu0 %1003
        %1005 = vrot.lane.b32.xlu0 %v898, 16
        %v1006 = vpop.permute.xlu0 %1005
        %1007 = vrot.lane.b32.xlu0 %v902, 16
        %v1008 = vpop.permute.xlu0 %1007
        %1009 = vrot.lane.b32.xlu0 %v906, 16
        %v1010 = vpop.permute.xlu0 %1009
        %1011 = vrot.lane.b32.xlu0 %v895, 16
        %v1012 = vpop.permute.xlu0 %1011
        %1013 = vrot.lane.b32.xlu0 %v899, 16
        %v1014 = vpop.permute.xlu0 %1013
        %1015 = vrot.lane.b32.xlu0 %v903, 16
        %v1016 = vpop.permute.xlu0 %1015
        %1017 = vrot.lane.b32.xlu0 %v907, 16
        %v1018 = vpop.permute.xlu0 %1017
        %vm1019 = vcmp.lt.s32.totalorder %v949, 16
        %v1020 = vsel %vm1019, %v1004, %v1012
        %v1021 = vsel %vm1019, %v1006, %v1014
        %v1022 = vsel %vm1019, %v1008, %v1016
        %v1023 = vsel %vm1019, %v1010, %v1018
        %v1024 = vsel %vm1019, %v996, %v1004
        %v1025 = vsel %vm1019, %v998, %v1006
        %v1026 = vsel %vm1019, %v1000, %v1008
        %v1027 = vsel %vm1019, %v1002, %v1010
        %v1028 = vsel %vm1019, %v988, %v996
        %v1029 = vsel %vm1019, %v990, %v998
        %v1030 = vsel %vm1019, %v992, %v1000
        %v1031 = vsel %vm1019, %v994, %v1002
        %v1032 = vsel %vm1019, %v1012, %v988
        %v1033 = vsel %vm1019, %v1014, %v990
        %v1034 = vsel %vm1019, %v1016, %v992
        %v1035 = vsel %vm1019, %v1018, %v994
        %v1036 = vperm.slane %v908, 1
        %v1037 = vperm.slane %v909, 1
        %v1038 = vperm.slane %v910, 1
        %v1039 = vperm.slane %v911, 1
        %v1040 = vmul.f32 %v1032, %v1036
        %v1041 = vmul.f32 %v1028, %v1037
        %v1042 = vmul.f32 %v1024, %v1038
        %v1043 = vmul.f32 %v1020, %v1039
        %v1044 = vmul.f32 %v1033, %v1036
        %v1045 = vmul.f32 %v1029, %v1037
        %v1046 = vmul.f32 %v1025, %v1038
        %v1047 = vmul.f32 %v1021, %v1039
        %v1048 = vmul.f32 %v1034, %v1036
        %v1049 = vmul.f32 %v1030, %v1037
        %v1050 = vmul.f32 %v1026, %v1038
        %v1051 = vmul.f32 %v1022, %v1039
        %v1052 = vmul.f32 %v1035, %v1036
        %v1053 = vmul.f32 %v1031, %v1037
        %v1054 = vmul.f32 %v1027, %v1038
        %v1055 = vmul.f32 %v1023, %v1039
        %1056 = vrot.lane.b32.xlu0 %v892, 15
        %v1057 = vpop.permute.xlu0 %1056
        %1058 = vrot.lane.b32.xlu0 %v896, 15
        %v1059 = vpop.permute.xlu0 %1058
        %1060 = vrot.lane.b32.xlu0 %v900, 15
        %v1061 = vpop.permute.xlu0 %1060
        %1062 = vrot.lane.b32.xlu0 %v904, 15
        %v1063 = vpop.permute.xlu0 %1062
        %1064 = vrot.lane.b32.xlu0 %v893, 15
        %v1065 = vpop.permute.xlu0 %1064
        %1066 = vrot.lane.b32.xlu0 %v897, 15
        %v1067 = vpop.permute.xlu0 %1066
        %1068 = vrot.lane.b32.xlu0 %v901, 15
        %v1069 = vpop.permute.xlu0 %1068
        %1070 = vrot.lane.b32.xlu0 %v905, 15
        %v1071 = vpop.permute.xlu0 %1070
        %1072 = vrot.lane.b32.xlu0 %v894, 15
        %v1073 = vpop.permute.xlu0 %1072
        %1074 = vrot.lane.b32.xlu0 %v898, 15
        %v1075 = vpop.permute.xlu0 %1074
        %1076 = vrot.lane.b32.xlu0 %v902, 15
        %v1077 = vpop.permute.xlu0 %1076
        %1078 = vrot.lane.b32.xlu0 %v906, 15
        %v1079 = vpop.permute.xlu0 %1078
        %1080 = vrot.lane.b32.xlu0 %v895, 15
        %v1081 = vpop.permute.xlu0 %1080
        %1082 = vrot.lane.b32.xlu0 %v899, 15
        %v1083 = vpop.permute.xlu0 %1082
        %1084 = vrot.lane.b32.xlu0 %v903, 15
        %v1085 = vpop.permute.xlu0 %1084
        %1086 = vrot.lane.b32.xlu0 %v907, 15
        %v1087 = vpop.permute.xlu0 %1086
        %vm1088 = vcmp.lt.s32.totalorder %v949, 15
        %v1089 = vsel %vm1088, %v1073, %v1081
        %v1090 = vsel %vm1088, %v1075, %v1083
        %v1091 = vsel %vm1088, %v1077, %v1085
        %v1092 = vsel %vm1088, %v1079, %v1087
        %v1093 = vsel %vm1088, %v1065, %v1073
        %v1094 = vsel %vm1088, %v1067, %v1075
        %v1095 = vsel %vm1088, %v1069, %v1077
        %v1096 = vsel %vm1088, %v1071, %v1079
        %v1097 = vsel %vm1088, %v1057, %v1065
        %v1098 = vsel %vm1088, %v1059, %v1067
        %v1099 = vsel %vm1088, %v1061, %v1069
        %v1100 = vsel %vm1088, %v1063, %v1071
        %v1101 = vsel %vm1088, %v1081, %v1057
        %v1102 = vsel %vm1088, %v1083, %v1059
        %v1103 = vsel %vm1088, %v1085, %v1061
        %v1104 = vsel %vm1088, %v1087, %v1063
        %v1105 = vperm.slane %v908, 2
        %v1106 = vperm.slane %v909, 2
        %v1107 = vperm.slane %v910, 2
        %v1108 = vperm.slane %v911, 2
        %v1109 = vmul.f32 %v1101, %v1105
        %v1110 = vmul.f32 %v1097, %v1106
        %v1111 = vmul.f32 %v1093, %v1107
        %v1112 = vmul.f32 %v1089, %v1108
        %v1113 = vmul.f32 %v1102, %v1105
        %v1114 = vmul.f32 %v1098, %v1106
        %v1115 = vmul.f32 %v1094, %v1107
        %v1116 = vmul.f32 %v1090, %v1108
        %v1117 = vmul.f32 %v1103, %v1105
        %v1118 = vmul.f32 %v1099, %v1106
        %v1119 = vmul.f32 %v1095, %v1107
        %v1120 = vmul.f32 %v1091, %v1108
        %v1121 = vmul.f32 %v1104, %v1105
        %v1122 = vmul.f32 %v1100, %v1106
        %v1123 = vmul.f32 %v1096, %v1107
        %v1124 = vmul.f32 %v1092, %v1108
        %1125 = vrot.lane.b32.xlu0 %v892, 1
        %v1126 = vpop.permute.xlu0 %1125
        %1127 = vrot.lane.b32.xlu0 %v896, 1
        %v1128 = vpop.permute.xlu0 %1127
        %1129 = vrot.lane.b32.xlu0 %v900, 1
        %v1130 = vpop.permute.xlu0 %1129
        %1131 = vrot.lane.b32.xlu0 %v904, 1
        %v1132 = vpop.permute.xlu0 %1131
        %1133 = vrot.lane.b32.xlu0 %v893, 1
        %v1134 = vpop.permute.xlu0 %1133
        %1135 = vrot.lane.b32.xlu0 %v897, 1
        %v1136 = vpop.permute.xlu0 %1135
        %1137 = vrot.lane.b32.xlu0 %v901, 1
        %v1138 = vpop.permute.xlu0 %1137
        %1139 = vrot.lane.b32.xlu0 %v905, 1
        %v1140 = vpop.permute.xlu0 %1139
        %1141 = vrot.lane.b32.xlu0 %v894, 1
        %v1142 = vpop.permute.xlu0 %1141
        %1143 = vrot.lane.b32.xlu0 %v898, 1
        %v1144 = vpop.permute.xlu0 %1143
        %1145 = vrot.lane.b32.xlu0 %v902, 1
        %v1146 = vpop.permute.xlu0 %1145
        %1147 = vrot.lane.b32.xlu0 %v906, 1
        %v1148 = vpop.permute.xlu0 %1147
        %1149 = vrot.lane.b32.xlu0 %v895, 1
        %v1150 = vpop.permute.xlu0 %1149
        %1151 = vrot.lane.b32.xlu0 %v899, 1
        %v1152 = vpop.permute.xlu0 %1151
        %1153 = vrot.lane.b32.xlu0 %v903, 1
        %v1154 = vpop.permute.xlu0 %1153
        %1155 = vrot.lane.b32.xlu0 %v907, 1
        %v1156 = vpop.permute.xlu0 %1155
        %vm1157 = vcmp.lt.s32.totalorder %v949, 1
        %v1158 = vsel %vm1157, %v1142, %v1150
        %v1159 = vsel %vm1157, %v1144, %v1152
        %v1160 = vsel %vm1157, %v1146, %v1154
        %v1161 = vsel %vm1157, %v1148, %v1156
        %v1162 = vsel %vm1157, %v1134, %v1142
        %v1163 = vsel %vm1157, %v1136, %v1144
        %v1164 = vsel %vm1157, %v1138, %v1146
        %v1165 = vsel %vm1157, %v1140, %v1148
        %v1166 = vsel %vm1157, %v1126, %v1134
        %v1167 = vsel %vm1157, %v1128, %v1136
        %v1168 = vsel %vm1157, %v1130, %v1138
        %v1169 = vsel %vm1157, %v1132, %v1140
        %v1170 = vsel %vm1157, %v1150, %v1126
        %v1171 = vsel %vm1157, %v1152, %v1128
        %v1172 = vsel %vm1157, %v1154, %v1130
        %v1173 = vsel %vm1157, %v1156, %v1132
        %v1174 = vperm.slane %v908, 3
        %v1175 = vperm.slane %v909, 3
        %v1176 = vperm.slane %v910, 3
        %v1177 = vperm.slane %v911, 3
        %v1178 = vmul.f32 %v1170, %v1174
        %v1179 = vmul.f32 %v1166, %v1175
        %v1180 = vmul.f32 %v1162, %v1176
        %v1181 = vmul.f32 %v1158, %v1177
        %v1182 = vmul.f32 %v1171, %v1174
        %v1183 = vmul.f32 %v1167, %v1175
        %v1184 = vmul.f32 %v1163, %v1176
        %v1185 = vmul.f32 %v1159, %v1177
        %v1186 = vmul.f32 %v1172, %v1174
        %v1187 = vmul.f32 %v1168, %v1175
        %v1188 = vmul.f32 %v1164, %v1176
        %v1189 = vmul.f32 %v1160, %v1177
        %v1190 = vmul.f32 %v1173, %v1174
        %v1191 = vmul.f32 %v1169, %v1175
        %v1192 = vmul.f32 %v1165, %v1176
        %v1193 = vmul.f32 %v1161, %v1177
        %1194 = vrot.lane.b32.xlu0 %v892, 127
        %v1195 = vpop.permute.xlu0 %1194
        %1196 = vrot.lane.b32.xlu0 %v896, 127
        %v1197 = vpop.permute.xlu0 %1196
        %1198 = vrot.lane.b32.xlu0 %v900, 127
        %v1199 = vpop.permute.xlu0 %1198
        %1200 = vrot.lane.b32.xlu0 %v904, 127
        %v1201 = vpop.permute.xlu0 %1200
        %1202 = vrot.lane.b32.xlu0 %v893, 127
        %v1203 = vpop.permute.xlu0 %1202
        %1204 = vrot.lane.b32.xlu0 %v897, 127
        %v1205 = vpop.permute.xlu0 %1204
        %1206 = vrot.lane.b32.xlu0 %v901, 127
        %v1207 = vpop.permute.xlu0 %1206
        %1208 = vrot.lane.b32.xlu0 %v905, 127
        %v1209 = vpop.permute.xlu0 %1208
        %1210 = vrot.lane.b32.xlu0 %v894, 127
        %v1211 = vpop.permute.xlu0 %1210
        %1212 = vrot.lane.b32.xlu0 %v898, 127
        %v1213 = vpop.permute.xlu0 %1212
        %1214 = vrot.lane.b32.xlu0 %v902, 127
        %v1215 = vpop.permute.xlu0 %1214
        %1216 = vrot.lane.b32.xlu0 %v906, 127
        %v1217 = vpop.permute.xlu0 %1216
        %1218 = vrot.lane.b32.xlu0 %v895, 127
        %v1219 = vpop.permute.xlu0 %1218
        %1220 = vrot.lane.b32.xlu0 %v899, 127
        %v1221 = vpop.permute.xlu0 %1220
        %1222 = vrot.lane.b32.xlu0 %v903, 127
        %v1223 = vpop.permute.xlu0 %1222
        %1224 = vrot.lane.b32.xlu0 %v907, 127
        %v1225 = vpop.permute.xlu0 %1224
        %vm1226 = vcmp.lt.s32.totalorder %v949, 127
        %v1227 = vsel %vm1226, %v1211, %v1219
        %v1228 = vsel %vm1226, %v1213, %v1221
        %v1229 = vsel %vm1226, %v1215, %v1223
        %v1230 = vsel %vm1226, %v1217, %v1225
        %v1231 = vsel %vm1226, %v1203, %v1211
        %v1232 = vsel %vm1226, %v1205, %v1213
        %v1233 = vsel %vm1226, %v1207, %v1215
        %v1234 = vsel %vm1226, %v1209, %v1217
        %v1235 = vsel %vm1226, %v1195, %v1203
        %v1236 = vsel %vm1226, %v1197, %v1205
        %v1237 = vsel %vm1226, %v1199, %v1207
        %v1238 = vsel %vm1226, %v1201, %v1209
        %v1239 = vsel %vm1226, %v1219, %v1195
        %v1240 = vsel %vm1226, %v1221, %v1197
        %v1241 = vsel %vm1226, %v1223, %v1199
        %v1242 = vsel %vm1226, %v1225, %v1201
        %v1243 = vperm.slane %v908, 5
        %v1244 = vperm.slane %v909, 5
        %v1245 = vperm.slane %v910, 5
        %v1246 = vperm.slane %v911, 5
        %v1247 = vmul.f32 %v1235, %v1243
        %v1248 = vmul.f32 %v1231, %v1244
        %v1249 = vmul.f32 %v1227, %v1245
        %v1250 = vmul.f32 %v1239, %v1246
        %v1251 = vmul.f32 %v1236, %v1243
        %v1252 = vmul.f32 %v1232, %v1244
        %v1253 = vmul.f32 %v1228, %v1245
        %v1254 = vmul.f32 %v1240, %v1246
        %v1255 = vmul.f32 %v1237, %v1243
        %v1256 = vmul.f32 %v1233, %v1244
        %v1257 = vmul.f32 %v1229, %v1245
        %v1258 = vmul.f32 %v1241, %v1246
        %v1259 = vmul.f32 %v1238, %v1243
        %v1260 = vmul.f32 %v1234, %v1244
        %v1261 = vmul.f32 %v1230, %v1245
        %v1262 = vmul.f32 %v1242, %v1246
        %1263 = vrot.lane.b32.xlu0 %v892, 113
        %v1264 = vpop.permute.xlu0 %1263
        %1265 = vrot.lane.b32.xlu0 %v896, 113
        %v1266 = vpop.permute.xlu0 %1265
        %1267 = vrot.lane.b32.xlu0 %v900, 113
        %v1268 = vpop.permute.xlu0 %1267
        %1269 = vrot.lane.b32.xlu0 %v904, 113
        %v1270 = vpop.permute.xlu0 %1269
        %1271 = vrot.lane.b32.xlu0 %v893, 113
        %v1272 = vpop.permute.xlu0 %1271
        %1273 = vrot.lane.b32.xlu0 %v897, 113
        %v1274 = vpop.permute.xlu0 %1273
        %1275 = vrot.lane.b32.xlu0 %v901, 113
        %v1276 = vpop.permute.xlu0 %1275
        %1277 = vrot.lane.b32.xlu0 %v905, 113
        %v1278 = vpop.permute.xlu0 %1277
        %1279 = vrot.lane.b32.xlu0 %v894, 113
        %v1280 = vpop.permute.xlu0 %1279
        %1281 = vrot.lane.b32.xlu0 %v898, 113
        %v1282 = vpop.permute.xlu0 %1281
        %1283 = vrot.lane.b32.xlu0 %v902, 113
        %v1284 = vpop.permute.xlu0 %1283
        %1285 = vrot.lane.b32.xlu0 %v906, 113
        %v1286 = vpop.permute.xlu0 %1285
        %1287 = vrot.lane.b32.xlu0 %v895, 113
        %v1288 = vpop.permute.xlu0 %1287
        %1289 = vrot.lane.b32.xlu0 %v899, 113
        %v1290 = vpop.permute.xlu0 %1289
        %1291 = vrot.lane.b32.xlu0 %v903, 113
        %v1292 = vpop.permute.xlu0 %1291
        %1293 = vrot.lane.b32.xlu0 %v907, 113
        %v1294 = vpop.permute.xlu0 %1293
        %vm1295 = vcmp.lt.s32.totalorder %v949, 113
        %v1296 = vsel %vm1295, %v1280, %v1288
        %v1297 = vsel %vm1295, %v1282, %v1290
        %v1298 = vsel %vm1295, %v1284, %v1292
        %v1299 = vsel %vm1295, %v1286, %v1294
        %v1300 = vsel %vm1295, %v1272, %v1280
        %v1301 = vsel %vm1295, %v1274, %v1282
        %v1302 = vsel %vm1295, %v1276, %v1284
        %v1303 = vsel %vm1295, %v1278, %v1286
        %v1304 = vsel %vm1295, %v1264, %v1272
        %v1305 = vsel %vm1295, %v1266, %v1274
        %v1306 = vsel %vm1295, %v1268, %v1276
        %v1307 = vsel %vm1295, %v1270, %v1278
        %v1308 = vsel %vm1295, %v1288, %v1264
        %v1309 = vsel %vm1295, %v1290, %v1266
        %v1310 = vsel %vm1295, %v1292, %v1268
        %v1311 = vsel %vm1295, %v1294, %v1270
        %v1312 = vperm.slane %v908, 6
        %v1313 = vperm.slane %v909, 6
        %v1314 = vperm.slane %v910, 6
        %v1315 = vperm.slane %v911, 6
        %v1316 = vmul.f32 %v1304, %v1312
        %v1317 = vmul.f32 %v1300, %v1313
        %v1318 = vmul.f32 %v1296, %v1314
        %v1319 = vmul.f32 %v1308, %v1315
        %v1320 = vmul.f32 %v1305, %v1312
        %v1321 = vmul.f32 %v1301, %v1313
        %v1322 = vmul.f32 %v1297, %v1314
        %v1323 = vmul.f32 %v1309, %v1315
        %v1324 = vmul.f32 %v1306, %v1312
        %v1325 = vmul.f32 %v1302, %v1313
        %v1326 = vmul.f32 %v1298, %v1314
        %v1327 = vmul.f32 %v1310, %v1315
        %v1328 = vmul.f32 %v1307, %v1312
        %v1329 = vmul.f32 %v1303, %v1313
        %v1330 = vmul.f32 %v1299, %v1314
        %v1331 = vmul.f32 %v1311, %v1315
        %1332 = vrot.lane.b32.xlu0 %v892, 112
        %v1333 = vpop.permute.xlu0 %1332
        %1334 = vrot.lane.b32.xlu0 %v896, 112
        %v1335 = vpop.permute.xlu0 %1334
        %1336 = vrot.lane.b32.xlu0 %v900, 112
        %v1337 = vpop.permute.xlu0 %1336
        %1338 = vrot.lane.b32.xlu0 %v904, 112
        %v1339 = vpop.permute.xlu0 %1338
        %1340 = vrot.lane.b32.xlu0 %v893, 112
        %v1341 = vpop.permute.xlu0 %1340
        %1342 = vrot.lane.b32.xlu0 %v897, 112
        %v1343 = vpop.permute.xlu0 %1342
        %1344 = vrot.lane.b32.xlu0 %v901, 112
        %v1345 = vpop.permute.xlu0 %1344
        %1346 = vrot.lane.b32.xlu0 %v905, 112
        %v1347 = vpop.permute.xlu0 %1346
        %1348 = vrot.lane.b32.xlu0 %v894, 112
        %v1349 = vpop.permute.xlu0 %1348
        %1350 = vrot.lane.b32.xlu0 %v898, 112
        %v1351 = vpop.permute.xlu0 %1350
        %1352 = vrot.lane.b32.xlu0 %v902, 112
        %v1353 = vpop.permute.xlu0 %1352
        %1354 = vrot.lane.b32.xlu0 %v906, 112
        %v1355 = vpop.permute.xlu0 %1354
        %1356 = vrot.lane.b32.xlu0 %v895, 112
        %v1357 = vpop.permute.xlu0 %1356
        %1358 = vrot.lane.b32.xlu0 %v899, 112
        %v1359 = vpop.permute.xlu0 %1358
        %1360 = vrot.lane.b32.xlu0 %v903, 112
        %v1361 = vpop.permute.xlu0 %1360
        %1362 = vrot.lane.b32.xlu0 %v907, 112
        %v1363 = vpop.permute.xlu0 %1362
        %vm1364 = vcmp.lt.s32.totalorder %v949, 112
        %v1365 = vsel %vm1364, %v1349, %v1357
        %v1366 = vsel %vm1364, %v1351, %v1359
        %v1367 = vsel %vm1364, %v1353, %v1361
        %v1368 = vsel %vm1364, %v1355, %v1363
        %v1369 = vsel %vm1364, %v1341, %v1349
        %v1370 = vsel %vm1364, %v1343, %v1351
        %v1371 = vsel %vm1364, %v1345, %v1353
        %v1372 = vsel %vm1364, %v1347, %v1355
        %v1373 = vsel %vm1364, %v1333, %v1341
        %v1374 = vsel %vm1364, %v1335, %v1343
        %v1375 = vsel %vm1364, %v1337, %v1345
        %v1376 = vsel %vm1364, %v1339, %v1347
        %v1377 = vsel %vm1364, %v1357, %v1333
        %v1378 = vsel %vm1364, %v1359, %v1335
        %v1379 = vsel %vm1364, %v1361, %v1337
        %v1380 = vsel %vm1364, %v1363, %v1339
        %v1381 = vperm.slane %v908, 7
        %v1382 = vperm.slane %v909, 7
        %v1383 = vperm.slane %v910, 7
        %v1384 = vperm.slane %v911, 7
        %v1385 = vmul.f32 %v1373, %v1381
        %v1386 = vmul.f32 %v1369, %v1382
        %v1387 = vmul.f32 %v1365, %v1383
        %v1388 = vmul.f32 %v1377, %v1384
        %v1389 = vmul.f32 %v1374, %v1381
        %v1390 = vmul.f32 %v1370, %v1382
        %v1391 = vmul.f32 %v1366, %v1383
        %v1392 = vmul.f32 %v1378, %v1384
        %v1393 = vmul.f32 %v1375, %v1381
        %v1394 = vmul.f32 %v1371, %v1382
        %v1395 = vmul.f32 %v1367, %v1383
        %v1396 = vmul.f32 %v1379, %v1384
        %v1397 = vmul.f32 %v1376, %v1381
        %v1398 = vmul.f32 %v1372, %v1382
        %v1399 = vmul.f32 %v1368, %v1383
        %v1400 = vmul.f32 %v1380, %v1384
        %1401 = vrot.lane.b32.xlu0 %v892, 111
        %v1402 = vpop.permute.xlu0 %1401
        %1403 = vrot.lane.b32.xlu0 %v896, 111
        %v1404 = vpop.permute.xlu0 %1403
        %1405 = vrot.lane.b32.xlu0 %v900, 111
        %v1406 = vpop.permute.xlu0 %1405
        %1407 = vrot.lane.b32.xlu0 %v904, 111
        %v1408 = vpop.permute.xlu0 %1407
        %1409 = vrot.lane.b32.xlu0 %v893, 111
        %v1410 = vpop.permute.xlu0 %1409
        %1411 = vrot.lane.b32.xlu0 %v897, 111
        %v1412 = vpop.permute.xlu0 %1411
        %1413 = vrot.lane.b32.xlu0 %v901, 111
        %v1414 = vpop.permute.xlu0 %1413
        %1415 = vrot.lane.b32.xlu0 %v905, 111
        %v1416 = vpop.permute.xlu0 %1415
        %1417 = vrot.lane.b32.xlu0 %v894, 111
        %v1418 = vpop.permute.xlu0 %1417
        %1419 = vrot.lane.b32.xlu0 %v898, 111
        %v1420 = vpop.permute.xlu0 %1419
        %1421 = vrot.lane.b32.xlu0 %v902, 111
        %v1422 = vpop.permute.xlu0 %1421
        %1423 = vrot.lane.b32.xlu0 %v906, 111
        %v1424 = vpop.permute.xlu0 %1423
        %1425 = vrot.lane.b32.xlu0 %v895, 111
        %v1426 = vpop.permute.xlu0 %1425
        %1427 = vrot.lane.b32.xlu0 %v899, 111
        %v1428 = vpop.permute.xlu0 %1427
        %1429 = vrot.lane.b32.xlu0 %v903, 111
        %v1430 = vpop.permute.xlu0 %1429
        %1431 = vrot.lane.b32.xlu0 %v907, 111
        %v1432 = vpop.permute.xlu0 %1431
        %vm1433 = vcmp.lt.s32.totalorder %v949, 111
        %v1434 = vsel %vm1433, %v1418, %v1426
        %v1435 = vsel %vm1433, %v1420, %v1428
        %v1436 = vsel %vm1433, %v1422, %v1430
        %v1437 = vsel %vm1433, %v1424, %v1432
        %v1438 = vsel %vm1433, %v1410, %v1418
        %v1439 = vsel %vm1433, %v1412, %v1420
        %v1440 = vsel %vm1433, %v1414, %v1422
        %v1441 = vsel %vm1433, %v1416, %v1424
        %v1442 = vsel %vm1433, %v1402, %v1410
        %v1443 = vsel %vm1433, %v1404, %v1412
        %v1444 = vsel %vm1433, %v1406, %v1414
        %v1445 = vsel %vm1433, %v1408, %v1416
        %v1446 = vsel %vm1433, %v1426, %v1402
        %v1447 = vsel %vm1433, %v1428, %v1404
        %v1448 = vsel %vm1433, %v1430, %v1406
        %v1449 = vsel %vm1433, %v1432, %v1408
        %v1450 = vperm.slane %v912, 0
        %v1451 = vperm.slane %v913, 0
        %v1452 = vperm.slane %v914, 0
        %v1453 = vperm.slane %v915, 0
        %v1454 = vmul.f32 %v1442, %v1450
        %v1455 = vmul.f32 %v1438, %v1451
        %v1456 = vmul.f32 %v1434, %v1452
        %v1457 = vmul.f32 %v1446, %v1453
        %v1458 = vmul.f32 %v1443, %v1450
        %v1459 = vmul.f32 %v1439, %v1451
        %v1460 = vmul.f32 %v1435, %v1452
        %v1461 = vmul.f32 %v1447, %v1453
        %v1462 = vmul.f32 %v1444, %v1450
        %v1463 = vmul.f32 %v1440, %v1451
        %v1464 = vmul.f32 %v1436, %v1452
        %v1465 = vmul.f32 %v1448, %v1453
        %v1466 = vmul.f32 %v1445, %v1450
        %v1467 = vmul.f32 %v1441, %v1451
        %v1468 = vmul.f32 %v1437, %v1452
        %v1469 = vmul.f32 %v1449, %v1453
        %v1470 = vld [vmem:[#allocation7] sm:$0xff]
        %v1471 = vld [vmem:[#allocation7 + $0x8] sm:$0xff]
        %v1472 = vld [vmem:[#allocation7 + $0x10] sm:$0xff]
        %v1473 = vld [vmem:[#allocation7 + $0x18] sm:$0xff]
        %v1474 = vld [vmem:[#allocation7 + $0x20] sm:$0xff]
        %v1475 = vld [vmem:[#allocation7 + $0x28] sm:$0xff]
        %v1476 = vld [vmem:[#allocation7 + $0x30] sm:$0xff]
        %v1477 = vld [vmem:[#allocation7 + $0x38] sm:$0xff]
        %v1478 = vld [vmem:[#allocation7 + $0x40] sm:$0xff]
        %v1479 = vld [vmem:[#allocation7 + $0x48] sm:$0xff]
        %v1480 = vld [vmem:[#allocation7 + $0x50] sm:$0xff]
        %v1481 = vld [vmem:[#allocation7 + $0x58] sm:$0xff]
        %v1482 = vld [vmem:[#allocation7 + $0x60] sm:$0xff]
        %v1483 = vld [vmem:[#allocation7 + $0x68] sm:$0xff]
        %v1484 = vld [vmem:[#allocation7 + $0x70] sm:$0xff]
        %v1485 = vld [vmem:[#allocation7 + $0x78] sm:$0xff]
        %v1486 = vld [vmem:[#allocation7 + $0x80] sm:$0xff]
        %v1487 = vld [vmem:[#allocation7 + $0x88] sm:$0xff]
        %v1488 = vld [vmem:[#allocation7 + $0x90] sm:$0xff]
        %v1489 = vld [vmem:[#allocation7 + $0x98] sm:$0xff]
        %v1490 = vld [vmem:[#allocation7 + $0xa0] sm:$0xff]
        %v1491 = vld [vmem:[#allocation7 + $0xa8] sm:$0xff]
        %v1492 = vld [vmem:[#allocation7 + $0xb0] sm:$0xff]
        %v1493 = vld [vmem:[#allocation7 + $0xb8] sm:$0xff]
        %v1494 = vld [vmem:[#allocation7 + $0xc0] sm:$0xff]
        %v1495 = vld [vmem:[#allocation7 + $0xc8] sm:$0xff]
        %v1496 = vld [vmem:[#allocation7 + $0xd0] sm:$0xff]
        %v1497 = vld [vmem:[#allocation7 + $0xd8] sm:$0xff]
        %v1498 = vld [vmem:[#allocation7 + $0xe0] sm:$0xff]
        %v1499 = vld [vmem:[#allocation7 + $0xe8] sm:$0xff]
        %v1500 = vld [vmem:[#allocation7 + $0xf0] sm:$0xff]
        %v1501 = vld [vmem:[#allocation7 + $0xf8] sm:$0xff]
        %v1502 = vld [vmem:[#allocation7 + $0x100] sm:$0xff]
        %v1503 = vld [vmem:[#allocation7 + $0x108] sm:$0xff]
        %v1504 = vld [vmem:[#allocation7 + $0x110] sm:$0xff]
        %v1505 = vld [vmem:[#allocation7 + $0x118] sm:$0xff]
        %v1506 = vld [vmem:[%s10] sm:$0xff]
        %v1507 = vld [vmem:[%s10 + $0x8] sm:$0xff]
        %v1508 = vld [vmem:[%s10 + $0x10] sm:$0xff]
        %v1509 = vld [vmem:[%s10 + $0x18] sm:$0xff]
        %v1510 = vld [vmem:[%s10 + $0x20] sm:$0xff]
        %v1511 = vld [vmem:[%s10 + $0x28] sm:$0xff]
        %v1512 = vld [vmem:[%s10 + $0x30] sm:$0xff]
        %v1513 = vld [vmem:[%s10 + $0x38] sm:$0xff]
        %v1514 = vld [vmem:[%s10 + $0x40] sm:$0xff]
        %v1515 = vld [vmem:[%s10 + $0x48] sm:$0xff]
        %v1516 = vld [vmem:[%s10 + $0x50] sm:$0xff]
        %v1517 = vld [vmem:[%s10 + $0x58] sm:$0xff]
        %1519 = vset.pattern.permute.xlu0 0
        %1520 = vperm.xlu0 %1519, %v1506
        %v1521 = vpop.permute.xlu0 %1520
        %1524 = vset.pattern.permute.xlu0 0
        %1525 = vperm.xlu0 %1524, %v1507
        %v1526 = vpop.permute.xlu0 %1525
        %1529 = vset.pattern.permute.xlu0 0
        %1530 = vperm.xlu0 %1529, %v1508
        %v1531 = vpop.permute.xlu0 %1530
        %1534 = vset.pattern.permute.xlu0 0
        %1535 = vperm.xlu0 %1534, %v1509
        %v1536 = vpop.permute.xlu0 %1535
        %1539 = vset.pattern.permute.xlu0 0
        %1540 = vperm.xlu0 %1539, %v1510
        %v1541 = vpop.permute.xlu0 %1540
        %1544 = vset.pattern.permute.xlu0 0
        %1545 = vperm.xlu0 %1544, %v1511
        %v1546 = vpop.permute.xlu0 %1545
        %1549 = vset.pattern.permute.xlu0 0
        %1550 = vperm.xlu0 %1549, %v1512
        %v1551 = vpop.permute.xlu0 %1550
        %1554 = vset.pattern.permute.xlu0 0
        %1555 = vperm.xlu0 %1554, %v1513
        %v1556 = vpop.permute.xlu0 %1555
        %1559 = vset.pattern.permute.xlu0 0
        %1560 = vperm.xlu0 %1559, %v1514
        %v1561 = vpop.permute.xlu0 %1560
        %1564 = vset.pattern.permute.xlu0 0
        %1565 = vperm.xlu0 %1564, %v1515
        %v1566 = vpop.permute.xlu0 %1565
        %1569 = vset.pattern.permute.xlu0 0
        %1570 = vperm.xlu0 %1569, %v1516
        %v1571 = vpop.permute.xlu0 %1570
        %1574 = vset.pattern.permute.xlu0 0
        %1575 = vperm.xlu0 %1574, %v1517
        %v1576 = vpop.permute.xlu0 %1575
        %v1579 = vsel %vm763, %v1472, 0
        %v1582 = vsel %vm763, %v1475, 0
        %v1585 = vsel %vm763, %v1478, 0
        %v1588 = vsel %vm763, %v1481, 0
        %v1591 = vsel %vm763, %v1484, 0
        %v1594 = vsel %vm763, %v1487, 0
        %v1597 = vsel %vm763, %v1490, 0
        %v1600 = vsel %vm763, %v1493, 0
        %v1603 = vsel %vm763, %v1496, 0
        %v1606 = vsel %vm763, %v1499, 0
        %v1609 = vsel %vm763, %v1502, 0
        %v1612 = vsel %vm763, %v1505, 0
        %1614 = vmatpush.msra.mxu0 %v1190
        %1615 = vmatpush.msra.mxu0 %v1186
        %1616 = vmatpush.msra.mxu0 %v1182
        %1617 = vmatpush.msra.mxu0 %v1178
        %1618 = vmatpush.msra.mxu0 %v1121
        %1619 = vmatpush.msra.mxu0 %v1117
        %1620 = vmatpush.msra.mxu0 %v1113
        %1621 = vmatpush.msra.mxu0 %v1109
        %1622 = vmatpush.msra.mxu0 %v1052
        %1623 = vmatpush.msra.mxu0 %v1048
        %1624 = vmatpush.msra.mxu0 %v1044
        %1625 = vmatpush.msra.mxu0 %v1040
        %1626 = vmatpush.msra.mxu0 %v983
        %1627 = vmatpush.msra.mxu0 %v979
        %1628 = vmatpush.msra.mxu0 %v975
        %1629 = vmatpush.msra.mxu0 %v971
        %1630 = vmatmul.f32.gmra.mxu0 %v1470
        %v1631 = vpop.f32.mrf.mxu0
        %v1632 = vadd.f32 %v1521, %v1631
        %1633 = vmatmul.f32.gmra.mxu0 %v1473
        %v1634 = vpop.f32.mrf.mxu0
        %v1635 = vadd.f32 %v1526, %v1634
        %1636 = vmatmul.f32.gmra.mxu0 %v1476
        %v1637 = vpop.f32.mrf.mxu0
        %v1638 = vadd.f32 %v1531, %v1637
        %1639 = vmatmul.f32.gmra.mxu0 %v1479
        %v1640 = vpop.f32.mrf.mxu0
        %v1641 = vadd.f32 %v1536, %v1640
        %1642 = vmatmul.f32.gmra.mxu0 %v1482
        %v1643 = vpop.f32.mrf.mxu0
        %v1644 = vadd.f32 %v1541, %v1643
        %1645 = vmatmul.f32.gmra.mxu0 %v1485
        %v1646 = vpop.f32.mrf.mxu0
        %v1647 = vadd.f32 %v1546, %v1646
        %1648 = vmatmul.f32.gmra.mxu0 %v1488
        %v1649 = vpop.f32.mrf.mxu0
        %v1650 = vadd.f32 %v1551, %v1649
        %1651 = vmatmul.f32.gmra.mxu0 %v1491
        %v1652 = vpop.f32.mrf.mxu0
        %v1653 = vadd.f32 %v1556, %v1652
        %1654 = vmatmul.f32.gmra.mxu0 %v1494
        %v1655 = vpop.f32.mrf.mxu0
        %v1656 = vadd.f32 %v1561, %v1655
        %1657 = vmatmul.f32.gmra.mxu0 %v1497
        %v1658 = vpop.f32.mrf.mxu0
        %v1659 = vadd.f32 %v1566, %v1658
        %1660 = vmatmul.f32.gmra.mxu0 %v1500
        %v1661 = vpop.f32.mrf.mxu0
        %v1662 = vadd.f32 %v1571, %v1661
        %1663 = vmatmul.f32.gmra.mxu0 %v1503
        %v1664 = vpop.f32.mrf.mxu0
        %v1665 = vadd.f32 %v1576, %v1664
        %1666 = vdwg.mxu0
        %1667 = vmatpush.msra.mxu0 %v1397
        %1668 = vmatpush.msra.mxu0 %v1393
        %1669 = vmatpush.msra.mxu0 %v1389
        %1670 = vmatpush.msra.mxu0 %v1385
        %1671 = vmatpush.msra.mxu0 %v1328
        %1672 = vmatpush.msra.mxu0 %v1324
        %1673 = vmatpush.msra.mxu0 %v1320
        %1674 = vmatpush.msra.mxu0 %v1316
        %1675 = vmatpush.msra.mxu0 %v1259
        %1676 = vmatpush.msra.mxu0 %v1255
        %1677 = vmatpush.msra.mxu0 %v1251
        %1678 = vmatpush.msra.mxu0 %v1247
        %1679 = vmatpush.msra.mxu0 %v904
        %1680 = vmatpush.msra.mxu0 %v900
        %1681 = vmatpush.msra.mxu0 %v896
        %1682 = vmatpush.msra.mxu0 %v892
        %1683 = vmatmul.f32.gmra.mxu0 %v1471
        %v1684 = vpop.f32.mrf.mxu0
        %v1685 = vadd.f32 %v1632, %v1684
        %1686 = vmatmul.f32.gmra.mxu0 %v1474
        %v1687 = vpop.f32.mrf.mxu0
        %v1688 = vadd.f32 %v1635, %v1687
        %1689 = vmatmul.f32.gmra.mxu0 %v1477
        %v1690 = vpop.f32.mrf.mxu0
        %v1691 = vadd.f32 %v1638, %v1690
        %1692 = vmatmul.f32.gmra.mxu0 %v1480
        %v1693 = vpop.f32.mrf.mxu0
        %v1694 = vadd.f32 %v1641, %v1693
        %1695 = vmatmul.f32.gmra.mxu0 %v1483
        %v1696 = vpop.f32.mrf.mxu0
        %v1697 = vadd.f32 %v1644, %v1696
        %1698 = vmatmul.f32.gmra.mxu0 %v1486
        %v1699 = vpop.f32.mrf.mxu0
        %v1700 = vadd.f32 %v1647, %v1699
        %1701 = vmatmul.f32.gmra.mxu0 %v1489
        %v1702 = vpop.f32.mrf.mxu0
        %v1703 = vadd.f32 %v1650, %v1702
        %1704 = vmatmul.f32.gmra.mxu0 %v1492
        %v1705 = vpop.f32.mrf.mxu0
        %v1706 = vadd.f32 %v1653, %v1705
        %1707 = vmatmul.f32.gmra.mxu0 %v1495
        %v1708 = vpop.f32.mrf.mxu0
        %v1709 = vadd.f32 %v1656, %v1708
        %1710 = vmatmul.f32.gmra.mxu0 %v1498
        %v1711 = vpop.f32.mrf.mxu0
        %v1712 = vadd.f32 %v1659, %v1711
        %1713 = vmatmul.f32.gmra.mxu0 %v1501
        %v1714 = vpop.f32.mrf.mxu0
        %v1715 = vadd.f32 %v1662, %v1714
        %1716 = vmatmul.f32.gmra.mxu0 %v1504
        %v1717 = vpop.f32.mrf.mxu0
        %v1718 = vadd.f32 %v1665, %v1717
        %1719 = vdwg.mxu0
        %1720 = vmatpush.msra.mxu0 0.0
        %1721 = vmatpush.msra.mxu0 0.0
        %1722 = vmatpush.msra.mxu0 0.0
        %1723 = vmatpush.msra.mxu0 0.0
        %1724 = vmatpush.msra.mxu0 0.0
        %1725 = vmatpush.msra.mxu0 0.0
        %1726 = vmatpush.msra.mxu0 0.0
        %1727 = vmatpush.msra.mxu0 0.0
        %1728 = vmatpush.msra.mxu0 0.0
        %1729 = vmatpush.msra.mxu0 0.0
        %1730 = vmatpush.msra.mxu0 0.0
        %1731 = vmatpush.msra.mxu0 0.0
        %1732 = vmatpush.msra.mxu0 %v1466
        %1733 = vmatpush.msra.mxu0 %v1462
        %1734 = vmatpush.msra.mxu0 %v1458
        %1735 = vmatpush.msra.mxu0 %v1454
        %1736 = vmatmul.f32.gmra.mxu0 %v1579
        %v1737 = vpop.f32.mrf.mxu0
        %v1738 = vadd.f32 %v1685, %v1737
        %1739 = vmatmul.f32.gmra.mxu0 %v1582
        %v1740 = vpop.f32.mrf.mxu0
        %v1741 = vadd.f32 %v1688, %v1740
        %1742 = vmatmul.f32.gmra.mxu0 %v1585
        %v1743 = vpop.f32.mrf.mxu0
        %v1744 = vadd.f32 %v1691, %v1743
        %1745 = vmatmul.f32.gmra.mxu0 %v1588
        %v1746 = vpop.f32.mrf.mxu0
        %v1747 = vadd.f32 %v1694, %v1746
        %1748 = vmatmul.f32.gmra.mxu0 %v1591
        %v1749 = vpop.f32.mrf.mxu0
        %v1750 = vadd.f32 %v1697, %v1749
        %1751 = vmatmul.f32.gmra.mxu0 %v1594
        %v1752 = vpop.f32.mrf.mxu0
        %v1753 = vadd.f32 %v1700, %v1752
        %1754 = vmatmul.f32.gmra.mxu0 %v1597
        %v1755 = vpop.f32.mrf.mxu0
        %v1756 = vadd.f32 %v1703, %v1755
        %1757 = vmatmul.f32.gmra.mxu0 %v1600
        %v1758 = vpop.f32.mrf.mxu0
        %v1759 = vadd.f32 %v1706, %v1758
        %1760 = vmatmul.f32.gmra.mxu0 %v1603
        %v1761 = vpop.f32.mrf.mxu0
        %v1762 = vadd.f32 %v1709, %v1761
        %1763 = vmatmul.f32.gmra.mxu0 %v1606
        %v1764 = vpop.f32.mrf.mxu0
        %v1765 = vadd.f32 %v1712, %v1764
        %1766 = vmatmul.f32.gmra.mxu0 %v1609
        %v1767 = vpop.f32.mrf.mxu0
        %v1768 = vadd.f32 %v1715, %v1767
        %1769 = vmatmul.f32.gmra.mxu0 %v1612
        %v1770 = vpop.f32.mrf.mxu0
        %v1771 = vadd.f32 %v1718, %v1770
        %1772 = vdwg.mxu0
        %1773 = vmatpush.msra.mxu0 %v1191
        %1774 = vmatpush.msra.mxu0 %v1187
        %1775 = vmatpush.msra.mxu0 %v1183
        %1776 = vmatpush.msra.mxu0 %v1179
        %1777 = vmatpush.msra.mxu0 %v1122
        %1778 = vmatpush.msra.mxu0 %v1118
        %1779 = vmatpush.msra.mxu0 %v1114
        %1780 = vmatpush.msra.mxu0 %v1110
        %1781 = vmatpush.msra.mxu0 %v1053
        %1782 = vmatpush.msra.mxu0 %v1049
        %1783 = vmatpush.msra.mxu0 %v1045
        %1784 = vmatpush.msra.mxu0 %v1041
        %1785 = vmatpush.msra.mxu0 %v984
        %1786 = vmatpush.msra.mxu0 %v980
        %1787 = vmatpush.msra.mxu0 %v976
        %1788 = vmatpush.msra.mxu0 %v972
        %1789 = vmatmul.f32.gmra.mxu0 %v1470
        %v1790 = vpop.f32.mrf.mxu0
        %v1791 = vadd.f32 %v1521, %v1790
        %1792 = vmatmul.f32.gmra.mxu0 %v1473
        %v1793 = vpop.f32.mrf.mxu0
        %v1794 = vadd.f32 %v1526, %v1793
        %1795 = vmatmul.f32.gmra.mxu0 %v1476
        %v1796 = vpop.f32.mrf.mxu0
        %v1797 = vadd.f32 %v1531, %v1796
        %1798 = vmatmul.f32.gmra.mxu0 %v1479
        %v1799 = vpop.f32.mrf.mxu0
        %v1800 = vadd.f32 %v1536, %v1799
        %1801 = vmatmul.f32.gmra.mxu0 %v1482
        %v1802 = vpop.f32.mrf.mxu0
        %v1803 = vadd.f32 %v1541, %v1802
        %1804 = vmatmul.f32.gmra.mxu0 %v1485
        %v1805 = vpop.f32.mrf.mxu0
        %v1806 = vadd.f32 %v1546, %v1805
        %1807 = vmatmul.f32.gmra.mxu0 %v1488
        %v1808 = vpop.f32.mrf.mxu0
        %v1809 = vadd.f32 %v1551, %v1808
        %1810 = vmatmul.f32.gmra.mxu0 %v1491
        %v1811 = vpop.f32.mrf.mxu0
        %v1812 = vadd.f32 %v1556, %v1811
        %1813 = vmatmul.f32.gmra.mxu0 %v1494
        %v1814 = vpop.f32.mrf.mxu0
        %v1815 = vadd.f32 %v1561, %v1814
        %1816 = vmatmul.f32.gmra.mxu0 %v1497
        %v1817 = vpop.f32.mrf.mxu0
        %v1818 = vadd.f32 %v1566, %v1817
        %1819 = vmatmul.f32.gmra.mxu0 %v1500
        %v1820 = vpop.f32.mrf.mxu0
        %v1821 = vadd.f32 %v1571, %v1820
        %1822 = vmatmul.f32.gmra.mxu0 %v1503
        %v1823 = vpop.f32.mrf.mxu0
        %v1824 = vadd.f32 %v1576, %v1823
        %1825 = vdwg.mxu0
        %1826 = vmatpush.msra.mxu0 %v1398
        %1827 = vmatpush.msra.mxu0 %v1394
        %1828 = vmatpush.msra.mxu0 %v1390
        %1829 = vmatpush.msra.mxu0 %v1386
        %1830 = vmatpush.msra.mxu0 %v1329
        %1831 = vmatpush.msra.mxu0 %v1325
        %1832 = vmatpush.msra.mxu0 %v1321
        %1833 = vmatpush.msra.mxu0 %v1317
        %1834 = vmatpush.msra.mxu0 %v1260
        %1835 = vmatpush.msra.mxu0 %v1256
        %1836 = vmatpush.msra.mxu0 %v1252
        %1837 = vmatpush.msra.mxu0 %v1248
        %1838 = vmatpush.msra.mxu0 %v905
        %1839 = vmatpush.msra.mxu0 %v901
        %1840 = vmatpush.msra.mxu0 %v897
        %1841 = vmatpush.msra.mxu0 %v893
        %1842 = vmatmul.f32.gmra.mxu0 %v1471
        %v1843 = vpop.f32.mrf.mxu0
        %v1844 = vadd.f32 %v1791, %v1843
        %1845 = vmatmul.f32.gmra.mxu0 %v1474
        %v1846 = vpop.f32.mrf.mxu0
        %v1847 = vadd.f32 %v1794, %v1846
        %1848 = vmatmul.f32.gmra.mxu0 %v1477
        %v1849 = vpop.f32.mrf.mxu0
        %v1850 = vadd.f32 %v1797, %v1849
        %1851 = vmatmul.f32.gmra.mxu0 %v1480
        %v1852 = vpop.f32.mrf.mxu0
        %v1853 = vadd.f32 %v1800, %v1852
        %1854 = vmatmul.f32.gmra.mxu0 %v1483
        %v1855 = vpop.f32.mrf.mxu0
        %v1856 = vadd.f32 %v1803, %v1855
        %1857 = vmatmul.f32.gmra.mxu0 %v1486
        %v1858 = vpop.f32.mrf.mxu0
        %v1859 = vadd.f32 %v1806, %v1858
        %1860 = vmatmul.f32.gmra.mxu0 %v1489
        %v1861 = vpop.f32.mrf.mxu0
        %v1862 = vadd.f32 %v1809, %v1861
        %1863 = vmatmul.f32.gmra.mxu0 %v1492
        %v1864 = vpop.f32.mrf.mxu0
        %v1865 = vadd.f32 %v1812, %v1864
        %1866 = vmatmul.f32.gmra.mxu0 %v1495
        %v1867 = vpop.f32.mrf.mxu0
        %v1868 = vadd.f32 %v1815, %v1867
        %1869 = vmatmul.f32.gmra.mxu0 %v1498
        %v1870 = vpop.f32.mrf.mxu0
        %v1871 = vadd.f32 %v1818, %v1870
        %1872 = vmatmul.f32.gmra.mxu0 %v1501
        %v1873 = vpop.f32.mrf.mxu0
        %v1874 = vadd.f32 %v1821, %v1873
        %1875 = vmatmul.f32.gmra.mxu0 %v1504
        %v1876 = vpop.f32.mrf.mxu0
        %v1877 = vadd.f32 %v1824, %v1876
        %1878 = vdwg.mxu0
        %1879 = vmatpush.msra.mxu0 0.0
        %1880 = vmatpush.msra.mxu0 0.0
        %1881 = vmatpush.msra.mxu0 0.0
        %1882 = vmatpush.msra.mxu0 0.0
        %1883 = vmatpush.msra.mxu0 0.0
        %1884 = vmatpush.msra.mxu0 0.0
        %1885 = vmatpush.msra.mxu0 0.0
        %1886 = vmatpush.msra.mxu0 0.0
        %1887 = vmatpush.msra.mxu0 0.0
        %1888 = vmatpush.msra.mxu0 0.0
        %1889 = vmatpush.msra.mxu0 0.0
        %1890 = vmatpush.msra.mxu0 0.0
        %1891 = vmatpush.msra.mxu0 %v1467
        %1892 = vmatpush.msra.mxu0 %v1463
        %1893 = vmatpush.msra.mxu0 %v1459
        %1894 = vmatpush.msra.mxu0 %v1455
        %1895 = vmatmul.f32.gmra.mxu0 %v1579
        %v1896 = vpop.f32.mrf.mxu0
        %v1897 = vadd.f32 %v1844, %v1896
        %1898 = vmatmul.f32.gmra.mxu0 %v1582
        %v1899 = vpop.f32.mrf.mxu0
        %v1900 = vadd.f32 %v1847, %v1899
        %1901 = vmatmul.f32.gmra.mxu0 %v1585
        %v1902 = vpop.f32.mrf.mxu0
        %v1903 = vadd.f32 %v1850, %v1902
        %1904 = vmatmul.f32.gmra.mxu0 %v1588
        %v1905 = vpop.f32.mrf.mxu0
        %v1906 = vadd.f32 %v1853, %v1905
        %1907 = vmatmul.f32.gmra.mxu0 %v1591
        %v1908 = vpop.f32.mrf.mxu0
        %v1909 = vadd.f32 %v1856, %v1908
        %1910 = vmatmul.f32.gmra.mxu0 %v1594
        %v1911 = vpop.f32.mrf.mxu0
        %v1912 = vadd.f32 %v1859, %v1911
        %1913 = vmatmul.f32.gmra.mxu0 %v1597
        %v1914 = vpop.f32.mrf.mxu0
        %v1915 = vadd.f32 %v1862, %v1914
        %1916 = vmatmul.f32.gmra.mxu0 %v1600
        %v1917 = vpop.f32.mrf.mxu0
        %v1918 = vadd.f32 %v1865, %v1917
        %1919 = vmatmul.f32.gmra.mxu0 %v1603
        %v1920 = vpop.f32.mrf.mxu0
        %v1921 = vadd.f32 %v1868, %v1920
        %1922 = vmatmul.f32.gmra.mxu0 %v1606
        %v1923 = vpop.f32.mrf.mxu0
        %v1924 = vadd.f32 %v1871, %v1923
        %1925 = vmatmul.f32.gmra.mxu0 %v1609
        %v1926 = vpop.f32.mrf.mxu0
        %v1927 = vadd.f32 %v1874, %v1926
        %1928 = vmatmul.f32.gmra.mxu0 %v1612
        %v1929 = vpop.f32.mrf.mxu0
        %v1930 = vadd.f32 %v1877, %v1929
        %1931 = vdwg.mxu0
        %1932 = vmatpush.msra.mxu0 %v1192
        %1933 = vmatpush.msra.mxu0 %v1188
        %1934 = vmatpush.msra.mxu0 %v1184
        %1935 = vmatpush.msra.mxu0 %v1180
        %1936 = vmatpush.msra.mxu0 %v1123
        %1937 = vmatpush.msra.mxu0 %v1119
        %1938 = vmatpush.msra.mxu0 %v1115
        %1939 = vmatpush.msra.mxu0 %v1111
        %1940 = vmatpush.msra.mxu0 %v1054
        %1941 = vmatpush.msra.mxu0 %v1050
        %1942 = vmatpush.msra.mxu0 %v1046
        %1943 = vmatpush.msra.mxu0 %v1042
        %1944 = vmatpush.msra.mxu0 %v985
        %1945 = vmatpush.msra.mxu0 %v981
        %1946 = vmatpush.msra.mxu0 %v977
        %1947 = vmatpush.msra.mxu0 %v973
        %1948 = vmatmul.f32.gmra.mxu0 %v1470
        %v1949 = vpop.f32.mrf.mxu0
        %v1950 = vadd.f32 %v1521, %v1949
        %1951 = vmatmul.f32.gmra.mxu0 %v1473
        %v1952 = vpop.f32.mrf.mxu0
        %v1953 = vadd.f32 %v1526, %v1952
        %1954 = vmatmul.f32.gmra.mxu0 %v1476
        %v1955 = vpop.f32.mrf.mxu0
        %v1956 = vadd.f32 %v1531, %v1955
        %1957 = vmatmul.f32.gmra.mxu0 %v1479
        %v1958 = vpop.f32.mrf.mxu0
        %v1959 = vadd.f32 %v1536, %v1958
        %1960 = vmatmul.f32.gmra.mxu0 %v1482
        %v1961 = vpop.f32.mrf.mxu0
        %v1962 = vadd.f32 %v1541, %v1961
        %1963 = vmatmul.f32.gmra.mxu0 %v1485
        %v1964 = vpop.f32.mrf.mxu0
        %v1965 = vadd.f32 %v1546, %v1964
        %1966 = vmatmul.f32.gmra.mxu0 %v1488
        %v1967 = vpop.f32.mrf.mxu0
        %v1968 = vadd.f32 %v1551, %v1967
        %1969 = vmatmul.f32.gmra.mxu0 %v1491
        %v1970 = vpop.f32.mrf.mxu0
        %v1971 = vadd.f32 %v1556, %v1970
        %1972 = vmatmul.f32.gmra.mxu0 %v1494
        %v1973 = vpop.f32.mrf.mxu0
        %v1974 = vadd.f32 %v1561, %v1973
        %1975 = vmatmul.f32.gmra.mxu0 %v1497
        %v1976 = vpop.f32.mrf.mxu0
        %v1977 = vadd.f32 %v1566, %v1976
        %1978 = vmatmul.f32.gmra.mxu0 %v1500
        %v1979 = vpop.f32.mrf.mxu0
        %v1980 = vadd.f32 %v1571, %v1979
        %1981 = vmatmul.f32.gmra.mxu0 %v1503
        %v1982 = vpop.f32.mrf.mxu0
        %v1983 = vadd.f32 %v1576, %v1982
        %1984 = vdwg.mxu0
        %1985 = vmatpush.msra.mxu0 %v1399
        %1986 = vmatpush.msra.mxu0 %v1395
        %1987 = vmatpush.msra.mxu0 %v1391
        %1988 = vmatpush.msra.mxu0 %v1387
        %1989 = vmatpush.msra.mxu0 %v1330
        %1990 = vmatpush.msra.mxu0 %v1326
        %1991 = vmatpush.msra.mxu0 %v1322
        %1992 = vmatpush.msra.mxu0 %v1318
        %1993 = vmatpush.msra.mxu0 %v1261
        %1994 = vmatpush.msra.mxu0 %v1257
        %1995 = vmatpush.msra.mxu0 %v1253
        %1996 = vmatpush.msra.mxu0 %v1249
        %1997 = vmatpush.msra.mxu0 %v906
        %1998 = vmatpush.msra.mxu0 %v902
        %1999 = vmatpush.msra.mxu0 %v898
        %2000 = vmatpush.msra.mxu0 %v894
        %2001 = vmatmul.f32.gmra.mxu0 %v1471
        %v2002 = vpop.f32.mrf.mxu0
        %v2003 = vadd.f32 %v1950, %v2002
        %2004 = vmatmul.f32.gmra.mxu0 %v1474
        %v2005 = vpop.f32.mrf.mxu0
        %v2006 = vadd.f32 %v1953, %v2005
        %2007 = vmatmul.f32.gmra.mxu0 %v1477
        %v2008 = vpop.f32.mrf.mxu0
        %v2009 = vadd.f32 %v1956, %v2008
        %2010 = vmatmul.f32.gmra.mxu0 %v1480
        %v2011 = vpop.f32.mrf.mxu0
        %v2012 = vadd.f32 %v1959, %v2011
        %2013 = vmatmul.f32.gmra.mxu0 %v1483
        %v2014 = vpop.f32.mrf.mxu0
        %v2015 = vadd.f32 %v1962, %v2014
        %2016 = vmatmul.f32.gmra.mxu0 %v1486
        %v2017 = vpop.f32.mrf.mxu0
        %v2018 = vadd.f32 %v1965, %v2017
        %2019 = vmatmul.f32.gmra.mxu0 %v1489
        %v2020 = vpop.f32.mrf.mxu0
        %v2021 = vadd.f32 %v1968, %v2020
        %2022 = vmatmul.f32.gmra.mxu0 %v1492
        %v2023 = vpop.f32.mrf.mxu0
        %v2024 = vadd.f32 %v1971, %v2023
        %2025 = vmatmul.f32.gmra.mxu0 %v1495
        %v2026 = vpop.f32.mrf.mxu0
        %v2027 = vadd.f32 %v1974, %v2026
        %2028 = vmatmul.f32.gmra.mxu0 %v1498
        %v2029 = vpop.f32.mrf.mxu0
        %v2030 = vadd.f32 %v1977, %v2029
        %2031 = vmatmul.f32.gmra.mxu0 %v1501
        %v2032 = vpop.f32.mrf.mxu0
        %v2033 = vadd.f32 %v1980, %v2032
        %2034 = vmatmul.f32.gmra.mxu0 %v1504
        %v2035 = vpop.f32.mrf.mxu0
        %v2036 = vadd.f32 %v1983, %v2035
        %2037 = vdwg.mxu0
        %2038 = vmatpush.msra.mxu0 0.0
        %2039 = vmatpush.msra.mxu0 0.0
        %2040 = vmatpush.msra.mxu0 0.0
        %2041 = vmatpush.msra.mxu0 0.0
        %2042 = vmatpush.msra.mxu0 0.0
        %2043 = vmatpush.msra.mxu0 0.0
        %2044 = vmatpush.msra.mxu0 0.0
        %2045 = vmatpush.msra.mxu0 0.0
        %2046 = vmatpush.msra.mxu0 0.0
        %2047 = vmatpush.msra.mxu0 0.0
        %2048 = vmatpush.msra.mxu0 0.0
        %2049 = vmatpush.msra.mxu0 0.0
        %2050 = vmatpush.msra.mxu0 %v1468
        %2051 = vmatpush.msra.mxu0 %v1464
        %2052 = vmatpush.msra.mxu0 %v1460
        %2053 = vmatpush.msra.mxu0 %v1456
        %2054 = vmatmul.f32.gmra.mxu0 %v1579
        %v2055 = vpop.f32.mrf.mxu0
        %v2056 = vadd.f32 %v2003, %v2055
        %2057 = vmatmul.f32.gmra.mxu0 %v1582
        %v2058 = vpop.f32.mrf.mxu0
        %v2059 = vadd.f32 %v2006, %v2058
        %2060 = vmatmul.f32.gmra.mxu0 %v1585
        %v2061 = vpop.f32.mrf.mxu0
        %v2062 = vadd.f32 %v2009, %v2061
        %2063 = vmatmul.f32.gmra.mxu0 %v1588
        %v2064 = vpop.f32.mrf.mxu0
        %v2065 = vadd.f32 %v2012, %v2064
        %2066 = vmatmul.f32.gmra.mxu0 %v1591
        %v2067 = vpop.f32.mrf.mxu0
        %v2068 = vadd.f32 %v2015, %v2067
        %2069 = vmatmul.f32.gmra.mxu0 %v1594
        %v2070 = vpop.f32.mrf.mxu0
        %v2071 = vadd.f32 %v2018, %v2070
        %2072 = vmatmul.f32.gmra.mxu0 %v1597
        %v2073 = vpop.f32.mrf.mxu0
        %v2074 = vadd.f32 %v2021, %v2073
        %2075 = vmatmul.f32.gmra.mxu0 %v1600
        %v2076 = vpop.f32.mrf.mxu0
        %v2077 = vadd.f32 %v2024, %v2076
        %2078 = vmatmul.f32.gmra.mxu0 %v1603
        %v2079 = vpop.f32.mrf.mxu0
        %v2080 = vadd.f32 %v2027, %v2079
        %2081 = vmatmul.f32.gmra.mxu0 %v1606
        %v2082 = vpop.f32.mrf.mxu0
        %v2083 = vadd.f32 %v2030, %v2082
        %2084 = vmatmul.f32.gmra.mxu0 %v1609
        %v2085 = vpop.f32.mrf.mxu0
        %v2086 = vadd.f32 %v2033, %v2085
        %2087 = vmatmul.f32.gmra.mxu0 %v1612
        %v2088 = vpop.f32.mrf.mxu0
        %v2089 = vadd.f32 %v2036, %v2088
        %2090 = vdwg.mxu0
        %2091 = vmatpush.msra.mxu0 %v1193
        %2092 = vmatpush.msra.mxu0 %v1189
        %2093 = vmatpush.msra.mxu0 %v1185
        %2094 = vmatpush.msra.mxu0 %v1181
        %2095 = vmatpush.msra.mxu0 %v1124
        %2096 = vmatpush.msra.mxu0 %v1120
        %2097 = vmatpush.msra.mxu0 %v1116
        %2098 = vmatpush.msra.mxu0 %v1112
        %2099 = vmatpush.msra.mxu0 %v1055
        %2100 = vmatpush.msra.mxu0 %v1051
        %2101 = vmatpush.msra.mxu0 %v1047
        %2102 = vmatpush.msra.mxu0 %v1043
        %2103 = vmatpush.msra.mxu0 %v986
        %2104 = vmatpush.msra.mxu0 %v982
        %2105 = vmatpush.msra.mxu0 %v978
        %2106 = vmatpush.msra.mxu0 %v974
        %2107 = vmatmul.f32.gmra.mxu0 %v1470
        %v2108 = vpop.f32.mrf.mxu0
        %v2109 = vadd.f32 %v1521, %v2108
        %2110 = vmatmul.f32.gmra.mxu0 %v1473
        %v2111 = vpop.f32.mrf.mxu0
        %v2112 = vadd.f32 %v1526, %v2111
        %2113 = vmatmul.f32.gmra.mxu0 %v1476
        %v2114 = vpop.f32.mrf.mxu0
        %v2115 = vadd.f32 %v1531, %v2114
        %2116 = vmatmul.f32.gmra.mxu0 %v1479
        %v2117 = vpop.f32.mrf.mxu0
        %v2118 = vadd.f32 %v1536, %v2117
        %2119 = vmatmul.f32.gmra.mxu0 %v1482
        %v2120 = vpop.f32.mrf.mxu0
        %v2121 = vadd.f32 %v1541, %v2120
        %2122 = vmatmul.f32.gmra.mxu0 %v1485
        %v2123 = vpop.f32.mrf.mxu0
        %v2124 = vadd.f32 %v1546, %v2123
        %2125 = vmatmul.f32.gmra.mxu0 %v1488
        %v2126 = vpop.f32.mrf.mxu0
        %v2127 = vadd.f32 %v1551, %v2126
        %2128 = vmatmul.f32.gmra.mxu0 %v1491
        %v2129 = vpop.f32.mrf.mxu0
        %v2130 = vadd.f32 %v1556, %v2129
        %2131 = vmatmul.f32.gmra.mxu0 %v1494
        %v2132 = vpop.f32.mrf.mxu0
        %v2133 = vadd.f32 %v1561, %v2132
        %2134 = vmatmul.f32.gmra.mxu0 %v1497
        %v2135 = vpop.f32.mrf.mxu0
        %v2136 = vadd.f32 %v1566, %v2135
        %2137 = vmatmul.f32.gmra.mxu0 %v1500
        %v2138 = vpop.f32.mrf.mxu0
        %v2139 = vadd.f32 %v1571, %v2138
        %2140 = vmatmul.f32.gmra.mxu0 %v1503
        %v2141 = vpop.f32.mrf.mxu0
        %v2142 = vadd.f32 %v1576, %v2141
        %2143 = vdwg.mxu0
        %2144 = vmatpush.msra.mxu0 %v1400
        %2145 = vmatpush.msra.mxu0 %v1396
        %2146 = vmatpush.msra.mxu0 %v1392
        %2147 = vmatpush.msra.mxu0 %v1388
        %2148 = vmatpush.msra.mxu0 %v1331
        %2149 = vmatpush.msra.mxu0 %v1327
        %2150 = vmatpush.msra.mxu0 %v1323
        %2151 = vmatpush.msra.mxu0 %v1319
        %2152 = vmatpush.msra.mxu0 %v1262
        %2153 = vmatpush.msra.mxu0 %v1258
        %2154 = vmatpush.msra.mxu0 %v1254
        %2155 = vmatpush.msra.mxu0 %v1250
        %2156 = vmatpush.msra.mxu0 %v907
        %2157 = vmatpush.msra.mxu0 %v903
        %2158 = vmatpush.msra.mxu0 %v899
        %2159 = vmatpush.msra.mxu0 %v895
        %2160 = vmatmul.f32.gmra.mxu0 %v1471
        %v2161 = vpop.f32.mrf.mxu0
        %v2162 = vadd.f32 %v2109, %v2161
        %2163 = vmatmul.f32.gmra.mxu0 %v1474
        %v2164 = vpop.f32.mrf.mxu0
        %v2165 = vadd.f32 %v2112, %v2164
        %2166 = vmatmul.f32.gmra.mxu0 %v1477
        %v2167 = vpop.f32.mrf.mxu0
        %v2168 = vadd.f32 %v2115, %v2167
        %2169 = vmatmul.f32.gmra.mxu0 %v1480
        %v2170 = vpop.f32.mrf.mxu0
        %v2171 = vadd.f32 %v2118, %v2170
        %2172 = vmatmul.f32.gmra.mxu0 %v1483
        %v2173 = vpop.f32.mrf.mxu0
        %v2174 = vadd.f32 %v2121, %v2173
        %2175 = vmatmul.f32.gmra.mxu0 %v1486
        %v2176 = vpop.f32.mrf.mxu0
        %v2177 = vadd.f32 %v2124, %v2176
        %2178 = vmatmul.f32.gmra.mxu0 %v1489
        %v2179 = vpop.f32.mrf.mxu0
        %v2180 = vadd.f32 %v2127, %v2179
        %2181 = vmatmul.f32.gmra.mxu0 %v1492
        %v2182 = vpop.f32.mrf.mxu0
        %v2183 = vadd.f32 %v2130, %v2182
        %2184 = vmatmul.f32.gmra.mxu0 %v1495
        %v2185 = vpop.f32.mrf.mxu0
        %v2186 = vadd.f32 %v2133, %v2185
        %2187 = vmatmul.f32.gmra.mxu0 %v1498
        %v2188 = vpop.f32.mrf.mxu0
        %v2189 = vadd.f32 %v2136, %v2188
        %2190 = vmatmul.f32.gmra.mxu0 %v1501
        %v2191 = vpop.f32.mrf.mxu0
        %v2192 = vadd.f32 %v2139, %v2191
        %2193 = vmatmul.f32.gmra.mxu0 %v1504
        %v2194 = vpop.f32.mrf.mxu0
        %v2195 = vadd.f32 %v2142, %v2194
        %2196 = vdwg.mxu0
        %2197 = vmatpush.msra.mxu0 0.0
        %2198 = vmatpush.msra.mxu0 0.0
        %2199 = vmatpush.msra.mxu0 0.0
        %2200 = vmatpush.msra.mxu0 0.0
        %2201 = vmatpush.msra.mxu0 0.0
        %2202 = vmatpush.msra.mxu0 0.0
        %2203 = vmatpush.msra.mxu0 0.0
        %2204 = vmatpush.msra.mxu0 0.0
        %2205 = vmatpush.msra.mxu0 0.0
        %2206 = vmatpush.msra.mxu0 0.0
        %2207 = vmatpush.msra.mxu0 0.0
        %2208 = vmatpush.msra.mxu0 0.0
        %2209 = vmatpush.msra.mxu0 %v1469
        %2210 = vmatpush.msra.mxu0 %v1465
        %2211 = vmatpush.msra.mxu0 %v1461
        %2212 = vmatpush.msra.mxu0 %v1457
        %2213 = vmatmul.f32.gmra.mxu0 %v1579
        %v2214 = vpop.f32.mrf.mxu0
        %v2215 = vadd.f32 %v2162, %v2214
        %2216 = vmatmul.f32.gmra.mxu0 %v1582
        %v2217 = vpop.f32.mrf.mxu0
        %v2218 = vadd.f32 %v2165, %v2217
        %2219 = vmatmul.f32.gmra.mxu0 %v1585
        %v2220 = vpop.f32.mrf.mxu0
        %v2221 = vadd.f32 %v2168, %v2220
        %2222 = vmatmul.f32.gmra.mxu0 %v1588
        %v2223 = vpop.f32.mrf.mxu0
        %v2224 = vadd.f32 %v2171, %v2223
        %2225 = vmatmul.f32.gmra.mxu0 %v1591
        %v2226 = vpop.f32.mrf.mxu0
        %v2227 = vadd.f32 %v2174, %v2226
        %2228 = vmatmul.f32.gmra.mxu0 %v1594
        %v2229 = vpop.f32.mrf.mxu0
        %v2230 = vadd.f32 %v2177, %v2229
        %2231 = vmatmul.f32.gmra.mxu0 %v1597
        %v2232 = vpop.f32.mrf.mxu0
        %v2233 = vadd.f32 %v2180, %v2232
        %2234 = vmatmul.f32.gmra.mxu0 %v1600
        %v2235 = vpop.f32.mrf.mxu0
        %v2236 = vadd.f32 %v2183, %v2235
        %2237 = vmatmul.f32.gmra.mxu0 %v1603
        %v2238 = vpop.f32.mrf.mxu0
        %v2239 = vadd.f32 %v2186, %v2238
        %2240 = vmatmul.f32.gmra.mxu0 %v1606
        %v2241 = vpop.f32.mrf.mxu0
        %v2242 = vadd.f32 %v2189, %v2241
        %2243 = vmatmul.f32.gmra.mxu0 %v1609
        %v2244 = vpop.f32.mrf.mxu0
        %v2245 = vadd.f32 %v2192, %v2244
        %2246 = vmatmul.f32.gmra.mxu0 %v1612
        %v2247 = vpop.f32.mrf.mxu0
        %v2248 = vadd.f32 %v2195, %v2247
        %2249 = vdwg.mxu0
        %v2250 = vld [vmem:[%s515] sm:$0xff]
        %v2251 = vld [vmem:[%s515 + $0x8] sm:$0xff]
        %v2252 = vld [vmem:[%s521] sm:$0xff]
        %v2253 = vld [vmem:[%s521 + $0x8] sm:$0xff]
        %v2254 = vmax.f32 %v2250, -3.0
        %v2255 = vmax.f32 %v2251, -3.0
        %v2256 = vmin.f32 %v2254, 3.0
        %v2257 = vmin.f32 %v2255, 3.0
        %v2258 = vld [vmem:[%s4] sm:$0xff]
        %v2259 = vld [vmem:[%s4 + $0x8] sm:$0x1]
        %v2260 = vrot.slane %v1738, 4
        %v2261 = vmax.f32 %v1738, %v2260
        %v2262 = vrot.slane %v2261, 2
        %v2263 = vmax.f32 %v2261, %v2262
        %v2264 = vrot.slane %v2263, 1
        %v2265 = vmax.f32 %v2263, %v2264
        %v2266 = vrot.slane %v1897, 4
        %v2267 = vmax.f32 %v1897, %v2266
        %v2268 = vrot.slane %v2267, 2
        %v2269 = vmax.f32 %v2267, %v2268
        %v2270 = vrot.slane %v2269, 1
        %v2271 = vmax.f32 %v2269, %v2270
        %v2272 = vrot.slane %v2056, 4
        %v2273 = vmax.f32 %v2056, %v2272
        %v2274 = vrot.slane %v2273, 2
        %v2275 = vmax.f32 %v2273, %v2274
        %v2276 = vrot.slane %v2275, 1
        %v2277 = vmax.f32 %v2275, %v2276
        %v2278 = vrot.slane %v2215, 4
        %v2279 = vmax.f32 %v2215, %v2278
        %v2280 = vrot.slane %v2279, 2
        %v2281 = vmax.f32 %v2279, %v2280
        %v2282 = vrot.slane %v2281, 1
        %v2283 = vmax.f32 %v2281, %v2282
        %v2284 = vsub.f32 %v1738, %v2265
        %v2285 = vsub.f32 %v1897, %v2271
        %v2286 = vsub.f32 %v2056, %v2277
        %v2287 = vsub.f32 %v2215, %v2283
        %v2288 = vmul.f32 %v2284, 1.442695
        %v2289 = vpow.pop %v2288
        %v2290 = vmul.f32 %v2285, 1.442695
        %v2291 = vpow.pop %v2290
        %v2292 = vmul.f32 %v2286, 1.442695
        %v2293 = vpow.pop %v2292
        %v2294 = vmul.f32 %v2287, 1.442695
        %v2295 = vpow.pop %v2294
        %v2296 = vrot.slane %v2289, 4
        %v2297 = vadd.f32 %v2289, %v2296
        %v2298 = vrot.slane %v2297, 2
        %v2299 = vadd.f32 %v2297, %v2298
        %v2300 = vrot.slane %v2299, 1
        %v2301 = vadd.f32 %v2299, %v2300
        %v2302 = vrot.slane %v2291, 4
        %v2303 = vadd.f32 %v2291, %v2302
        %v2304 = vrot.slane %v2303, 2
        %v2305 = vadd.f32 %v2303, %v2304
        %v2306 = vrot.slane %v2305, 1
        %v2307 = vadd.f32 %v2305, %v2306
        %v2308 = vrot.slane %v2293, 4
        %v2309 = vadd.f32 %v2293, %v2308
        %v2310 = vrot.slane %v2309, 2
        %v2311 = vadd.f32 %v2309, %v2310
        %v2312 = vrot.slane %v2311, 1
        %v2313 = vadd.f32 %v2311, %v2312
        %v2314 = vrot.slane %v2295, 4
        %v2315 = vadd.f32 %v2295, %v2314
        %v2316 = vrot.slane %v2315, 2
        %v2317 = vadd.f32 %v2315, %v2316
        %v2318 = vrot.slane %v2317, 1
        %v2319 = vadd.f32 %v2317, %v2318
        %v2320 = vrcp.pop %v2301
        %v2321 = vmul.f32 %v2301, %v2320
        %v2322 = vsub.f32 1.0, %v2321
        %v2323 = vmul.f32 %v2320, %v2322
        %v2324 = vadd.f32 %v2320, %v2323
        %vm2325 = vweird.f32 %v2301
        %vm2326 = vweird.f32 %v2320
        %vm2327 = vmor %vm2325, %vm2326
        %v2328 = vsel %vm2327, %v2320, %v2324
        %v2329 = vand.u32 2147483647, %v2301
        %vm2330 = vcmp.eq.f32.partialorder %v2329, 8.507059e+37
        %v2331 = vand.u32 %v2301, 2147483648
        %v2332 = vor.u32 1.1754944e-38, %v2331
        %v2333 = vsel %vm2330, %v2332, %v2328
        %v2334 = vmul.f32 %v2289, %v2333
        %v2335 = vrcp.pop %v2307
        %v2336 = vmul.f32 %v2307, %v2335
        %v2337 = vsub.f32 1.0, %v2336
        %v2338 = vmul.f32 %v2335, %v2337
        %v2339 = vadd.f32 %v2335, %v2338
        %vm2340 = vweird.f32 %v2307
        %vm2341 = vweird.f32 %v2335
        %vm2342 = vmor %vm2340, %vm2341
        %v2343 = vsel %vm2342, %v2335, %v2339
        %v2344 = vand.u32 2147483647, %v2307
        %vm2345 = vcmp.eq.f32.partialorder %v2344, 8.507059e+37
        %v2346 = vand.u32 %v2307, 2147483648
        %v2347 = vor.u32 1.1754944e-38, %v2346
        %v2348 = vsel %vm2345, %v2347, %v2343
        %v2349 = vmul.f32 %v2291, %v2348
        %v2350 = vrcp.pop %v2313
        %v2351 = vmul.f32 %v2313, %v2350
        %v2352 = vsub.f32 1.0, %v2351
        %v2353 = vmul.f32 %v2350, %v2352
        %v2354 = vadd.f32 %v2350, %v2353
        %vm2355 = vweird.f32 %v2313
        %vm2356 = vweird.f32 %v2350
        %vm2357 = vmor %vm2355, %vm2356
        %v2358 = vsel %vm2357, %v2350, %v2354
        %v2359 = vand.u32 2147483647, %v2313
        %vm2360 = vcmp.eq.f32.partialorder %v2359, 8.507059e+37
        %v2361 = vand.u32 %v2313, 2147483648
        %v2362 = vor.u32 1.1754944e-38, %v2361
        %v2363 = vsel %vm2360, %v2362, %v2358
        %v2364 = vmul.f32 %v2293, %v2363
        %v2365 = vrcp.pop %v2319
        %v2366 = vmul.f32 %v2319, %v2365
        %v2367 = vsub.f32 1.0, %v2366
        %v2368 = vmul.f32 %v2365, %v2367
        %v2369 = vadd.f32 %v2365, %v2368
        %vm2370 = vweird.f32 %v2319
        %vm2371 = vweird.f32 %v2365
        %vm2372 = vmor %vm2370, %vm2371
        %v2373 = vsel %vm2372, %v2365, %v2369
        %v2374 = vand.u32 2147483647, %v2319
        %vm2375 = vcmp.eq.f32.partialorder %v2374, 8.507059e+37
        %v2376 = vand.u32 %v2319, 2147483648
        %v2377 = vor.u32 1.1754944e-38, %v2376
        %v2378 = vsel %vm2375, %v2377, %v2373
        %v2379 = vmul.f32 %v2295, %v2378
        %v2380 = vmul.f32 %v2334, 0.992
        %v2381 = vmul.f32 %v2349, 0.992
        %v2382 = vmul.f32 %v2364, 0.992
        %v2383 = vmul.f32 %v2379, 0.992
        %v2384 = vadd.f32 %v2380, 0.001
        %v2385 = vadd.f32 %v2381, 0.001
        %v2386 = vadd.f32 %v2382, 0.001
        %v2387 = vadd.f32 %v2383, 0.001
        %v2388 = vrot.slane %v1741, 4
        %v2389 = vmax.f32 %v1741, %v2388
        %v2390 = vrot.slane %v2389, 2
        %v2391 = vmax.f32 %v2389, %v2390
        %v2392 = vrot.slane %v2391, 1
        %v2393 = vmax.f32 %v2391, %v2392
        %v2394 = vrot.slane %v1900, 4
        %v2395 = vmax.f32 %v1900, %v2394
        %v2396 = vrot.slane %v2395, 2
        %v2397 = vmax.f32 %v2395, %v2396
        %v2398 = vrot.slane %v2397, 1
        %v2399 = vmax.f32 %v2397, %v2398
        %v2400 = vrot.slane %v2059, 4
        %v2401 = vmax.f32 %v2059, %v2400
        %v2402 = vrot.slane %v2401, 2
        %v2403 = vmax.f32 %v2401, %v2402
        %v2404 = vrot.slane %v2403, 1
        %v2405 = vmax.f32 %v2403, %v2404
        %v2406 = vrot.slane %v2218, 4
        %v2407 = vmax.f32 %v2218, %v2406
        %v2408 = vrot.slane %v2407, 2
        %v2409 = vmax.f32 %v2407, %v2408
        %v2410 = vrot.slane %v2409, 1
        %v2411 = vmax.f32 %v2409, %v2410
        %v2412 = vsub.f32 %v1741, %v2393
        %v2413 = vsub.f32 %v1900, %v2399
        %v2414 = vsub.f32 %v2059, %v2405
        %v2415 = vsub.f32 %v2218, %v2411
        %v2416 = vmul.f32 %v2412, 1.442695
        %v2417 = vpow.pop %v2416
        %v2418 = vmul.f32 %v2413, 1.442695
        %v2419 = vpow.pop %v2418
        %v2420 = vmul.f32 %v2414, 1.442695
        %v2421 = vpow.pop %v2420
        %v2422 = vmul.f32 %v2415, 1.442695
        %v2423 = vpow.pop %v2422
        %v2424 = vrot.slane %v2417, 4
        %v2425 = vadd.f32 %v2417, %v2424
        %v2426 = vrot.slane %v2425, 2
        %v2427 = vadd.f32 %v2425, %v2426
        %v2428 = vrot.slane %v2427, 1
        %v2429 = vadd.f32 %v2427, %v2428
        %v2430 = vrot.slane %v2419, 4
        %v2431 = vadd.f32 %v2419, %v2430
        %v2432 = vrot.slane %v2431, 2
        %v2433 = vadd.f32 %v2431, %v2432
        %v2434 = vrot.slane %v2433, 1
        %v2435 = vadd.f32 %v2433, %v2434
        %v2436 = vrot.slane %v2421, 4
        %v2437 = vadd.f32 %v2421, %v2436
        %v2438 = vrot.slane %v2437, 2
        %v2439 = vadd.f32 %v2437, %v2438
        %v2440 = vrot.slane %v2439, 1
        %v2441 = vadd.f32 %v2439, %v2440
        %v2442 = vrot.slane %v2423, 4
        %v2443 = vadd.f32 %v2423, %v2442
        %v2444 = vrot.slane %v2443, 2
        %v2445 = vadd.f32 %v2443, %v2444
        %v2446 = vrot.slane %v2445, 1
        %v2447 = vadd.f32 %v2445, %v2446
        %v2448 = vrcp.pop %v2429
        %v2449 = vmul.f32 %v2429, %v2448
        %v2450 = vsub.f32 1.0, %v2449
        %v2451 = vmul.f32 %v2448, %v2450
        %v2452 = vadd.f32 %v2448, %v2451
        %vm2453 = vweird.f32 %v2429
        %vm2454 = vweird.f32 %v2448
        %vm2455 = vmor %vm2453, %vm2454
        %v2456 = vsel %vm2455, %v2448, %v2452
        %v2457 = vand.u32 2147483647, %v2429
        %vm2458 = vcmp.eq.f32.partialorder %v2457, 8.507059e+37
        %v2459 = vand.u32 %v2429, 2147483648
        %v2460 = vor.u32 1.1754944e-38, %v2459
        %v2461 = vsel %vm2458, %v2460, %v2456
        %v2462 = vmul.f32 %v2417, %v2461
        %v2463 = vrcp.pop %v2435
        %v2464 = vmul.f32 %v2435, %v2463
        %v2465 = vsub.f32 1.0, %v2464
        %v2466 = vmul.f32 %v2463, %v2465
        %v2467 = vadd.f32 %v2463, %v2466
        %vm2468 = vweird.f32 %v2435
        %vm2469 = vweird.f32 %v2463
        %vm2470 = vmor %vm2468, %vm2469
        %v2471 = vsel %vm2470, %v2463, %v2467
        %v2472 = vand.u32 2147483647, %v2435
        %vm2473 = vcmp.eq.f32.partialorder %v2472, 8.507059e+37
        %v2474 = vand.u32 %v2435, 2147483648
        %v2475 = vor.u32 1.1754944e-38, %v2474
        %v2476 = vsel %vm2473, %v2475, %v2471
        %v2477 = vmul.f32 %v2419, %v2476
        %v2478 = vrcp.pop %v2441
        %v2479 = vmul.f32 %v2441, %v2478
        %v2480 = vsub.f32 1.0, %v2479
        %v2481 = vmul.f32 %v2478, %v2480
        %v2482 = vadd.f32 %v2478, %v2481
        %vm2483 = vweird.f32 %v2441
        %vm2484 = vweird.f32 %v2478
        %vm2485 = vmor %vm2483, %vm2484
        %v2486 = vsel %vm2485, %v2478, %v2482
        %v2487 = vand.u32 2147483647, %v2441
        %vm2488 = vcmp.eq.f32.partialorder %v2487, 8.507059e+37
        %v2489 = vand.u32 %v2441, 2147483648
        %v2490 = vor.u32 1.1754944e-38, %v2489
        %v2491 = vsel %vm2488, %v2490, %v2486
        %v2492 = vmul.f32 %v2421, %v2491
        %v2493 = vrcp.pop %v2447
        %v2494 = vmul.f32 %v2447, %v2493
        %v2495 = vsub.f32 1.0, %v2494
        %v2496 = vmul.f32 %v2493, %v2495
        %v2497 = vadd.f32 %v2493, %v2496
        %vm2498 = vweird.f32 %v2447
        %vm2499 = vweird.f32 %v2493
        %vm2500 = vmor %vm2498, %vm2499
        %v2501 = vsel %vm2500, %v2493, %v2497
        %v2502 = vand.u32 2147483647, %v2447
        %vm2503 = vcmp.eq.f32.partialorder %v2502, 8.507059e+37
        %v2504 = vand.u32 %v2447, 2147483648
        %v2505 = vor.u32 1.1754944e-38, %v2504
        %v2506 = vsel %vm2503, %v2505, %v2501
        %v2507 = vmul.f32 %v2423, %v2506
        %v2508 = vmul.f32 %v2462, 0.992
        %v2509 = vmul.f32 %v2477, 0.992
        %v2510 = vmul.f32 %v2492, 0.992
        %v2511 = vmul.f32 %v2507, 0.992
        %v2512 = vadd.f32 %v2508, 0.001
        %v2513 = vadd.f32 %v2509, 0.001
        %v2514 = vadd.f32 %v2510, 0.001
        %v2515 = vadd.f32 %v2511, 0.001
        %vm2516 = vcmask 64512
        %v2518 = vsel %vm2516, %v2258, 0
        %v2521 = vsel %vm2516, %v2259, 0
        %2523 = vmatpush.msra.mxu0 0.0
        %2524 = vmatpush.msra.mxu0 0.0
        %2525 = vmatpush.msra.mxu0 0.0
        %2526 = vmatpush.msra.mxu0 0.0
        %2527 = vmatpush.msra.mxu0 0.0
        %2528 = vmatpush.msra.mxu0 0.0
        %2529 = vmatpush.msra.mxu0 0.0
        %2530 = vmatpush.msra.mxu0 0.0
        %2531 = vmatpush.msra.mxu0 0.0
        %2532 = vmatpush.msra.mxu0 0.0
        %2533 = vmatpush.msra.mxu0 0.0
        %2534 = vmatpush.msra.mxu0 0.0
        %2535 = vmatpush.msra.mxu0 0.0
        %2536 = vmatpush.msra.mxu0 0.0
        %2537 = vmatpush.msra.mxu0 0.0
        %2538 = vmatpush.msra.mxu0 %v2384
        %2539 = vmatmul.f32.gmra.mxu0 %v2518
        %v2540 = vpop.f32.mrf.mxu0
        %v2541 = vadd.f32 0.0, %v2540
        %2542 = vmatmul.f32.gmra.mxu0 %v2521
        %v2543 = vpop.f32.mrf.mxu0
        %2544 = vdwg.mxu0
        %2545 = vmatpush.msra.mxu0 0.0
        %2546 = vmatpush.msra.mxu0 0.0
        %2547 = vmatpush.msra.mxu0 0.0
        %2548 = vmatpush.msra.mxu0 0.0
        %2549 = vmatpush.msra.mxu0 0.0
        %2550 = vmatpush.msra.mxu0 0.0
        %2551 = vmatpush.msra.mxu0 0.0
        %2552 = vmatpush.msra.mxu0 0.0
        %2553 = vmatpush.msra.mxu0 0.0
        %2554 = vmatpush.msra.mxu0 0.0
        %2555 = vmatpush.msra.mxu0 0.0
        %2556 = vmatpush.msra.mxu0 0.0
        %2557 = vmatpush.msra.mxu0 0.0
        %2558 = vmatpush.msra.mxu0 0.0
        %2559 = vmatpush.msra.mxu0 0.0
        %2560 = vmatpush.msra.mxu0 %v2385
        %2561 = vmatmul.f32.gmra.mxu0 %v2518
        %v2562 = vpop.f32.mrf.mxu0
        %v2563 = vadd.f32 0.0, %v2562
        %2564 = vmatmul.f32.gmra.mxu0 %v2521
        %v2565 = vpop.f32.mrf.mxu0
        %2566 = vdwg.mxu0
        %2567 = vmatpush.msra.mxu0 0.0
        %2568 = vmatpush.msra.mxu0 0.0
        %2569 = vmatpush.msra.mxu0 0.0
        %2570 = vmatpush.msra.mxu0 0.0
        %2571 = vmatpush.msra.mxu0 0.0
        %2572 = vmatpush.msra.mxu0 0.0
        %2573 = vmatpush.msra.mxu0 0.0
        %2574 = vmatpush.msra.mxu0 0.0
        %2575 = vmatpush.msra.mxu0 0.0
        %2576 = vmatpush.msra.mxu0 0.0
        %2577 = vmatpush.msra.mxu0 0.0
        %2578 = vmatpush.msra.mxu0 0.0
        %2579 = vmatpush.msra.mxu0 0.0
        %2580 = vmatpush.msra.mxu0 0.0
        %2581 = vmatpush.msra.mxu0 0.0
        %2582 = vmatpush.msra.mxu0 %v2386
        %2583 = vmatmul.f32.gmra.mxu0 %v2518
        %v2584 = vpop.f32.mrf.mxu0
        %v2585 = vadd.f32 0.0, %v2584
        %2586 = vmatmul.f32.gmra.mxu0 %v2521
        %v2587 = vpop.f32.mrf.mxu0
        %2588 = vdwg.mxu0
        %2589 = vmatpush.msra.mxu0 0.0
        %2590 = vmatpush.msra.mxu0 0.0
        %2591 = vmatpush.msra.mxu0 0.0
        %2592 = vmatpush.msra.mxu0 0.0
        %2593 = vmatpush.msra.mxu0 0.0
        %2594 = vmatpush.msra.mxu0 0.0
        %2595 = vmatpush.msra.mxu0 0.0
        %2596 = vmatpush.msra.mxu0 0.0
        %2597 = vmatpush.msra.mxu0 0.0
        %2598 = vmatpush.msra.mxu0 0.0
        %2599 = vmatpush.msra.mxu0 0.0
        %2600 = vmatpush.msra.mxu0 0.0
        %2601 = vmatpush.msra.mxu0 0.0
        %2602 = vmatpush.msra.mxu0 0.0
        %2603 = vmatpush.msra.mxu0 0.0
        %2604 = vmatpush.msra.mxu0 %v2387
        %2605 = vmatmul.f32.gmra.mxu0 %v2518
        %v2606 = vpop.f32.mrf.mxu0
        %v2607 = vadd.f32 0.0, %v2606
        %2608 = vmatmul.f32.gmra.mxu0 %v2521
        %v2609 = vpop.f32.mrf.mxu0
        %2610 = vdwg.mxu0
        %v2611 = vmul.f32 %v2541, 6.0
        %v2612 = vmul.f32 %v2563, 6.0
        %v2613 = vmul.f32 %v2585, 6.0
        %v2614 = vmul.f32 %v2607, 6.0
        %v2615 = vadd.f32 %v2611, -3.0
        %v2616 = vadd.f32 %v2612, -3.0
        %v2617 = vadd.f32 %v2613, -3.0
        %v2618 = vadd.f32 %v2614, -3.0
        %2619 = vmatpush.msra.mxu0 0.0
        %2620 = vmatpush.msra.mxu0 0.0
        %2621 = vmatpush.msra.mxu0 0.0
        %2622 = vmatpush.msra.mxu0 0.0
        %2623 = vmatpush.msra.mxu0 0.0
        %2624 = vmatpush.msra.mxu0 0.0
        %2625 = vmatpush.msra.mxu0 0.0
        %2626 = vmatpush.msra.mxu0 0.0
        %2627 = vmatpush.msra.mxu0 0.0
        %2628 = vmatpush.msra.mxu0 0.0
        %2629 = vmatpush.msra.mxu0 0.0
        %2630 = vmatpush.msra.mxu0 0.0
        %2631 = vmatpush.msra.mxu0 0.0
        %2632 = vmatpush.msra.mxu0 0.0
        %2633 = vmatpush.msra.mxu0 0.0
        %2634 = vmatpush.msra.mxu0 %v2512
        %2635 = vmatmul.f32.gmra.mxu0 %v2518
        %v2636 = vpop.f32.mrf.mxu0
        %v2637 = vadd.f32 0.0, %v2636
        %2638 = vmatmul.f32.gmra.mxu0 %v2521
        %v2639 = vpop.f32.mrf.mxu0
        %2640 = vdwg.mxu0
        %2641 = vmatpush.msra.mxu0 0.0
        %2642 = vmatpush.msra.mxu0 0.0
        %2643 = vmatpush.msra.mxu0 0.0
        %2644 = vmatpush.msra.mxu0 0.0
        %2645 = vmatpush.msra.mxu0 0.0
        %2646 = vmatpush.msra.mxu0 0.0
        %2647 = vmatpush.msra.mxu0 0.0
        %2648 = vmatpush.msra.mxu0 0.0
        %2649 = vmatpush.msra.mxu0 0.0
        %2650 = vmatpush.msra.mxu0 0.0
        %2651 = vmatpush.msra.mxu0 0.0
        %2652 = vmatpush.msra.mxu0 0.0
        %2653 = vmatpush.msra.mxu0 0.0
        %2654 = vmatpush.msra.mxu0 0.0
        %2655 = vmatpush.msra.mxu0 0.0
        %2656 = vmatpush.msra.mxu0 %v2513
        %2657 = vmatmul.f32.gmra.mxu0 %v2518
        %v2658 = vpop.f32.mrf.mxu0
        %v2659 = vadd.f32 0.0, %v2658
        %2660 = vmatmul.f32.gmra.mxu0 %v2521
        %v2661 = vpop.f32.mrf.mxu0
        %2662 = vdwg.mxu0
        %2663 = vmatpush.msra.mxu0 0.0
        %2664 = vmatpush.msra.mxu0 0.0
        %2665 = vmatpush.msra.mxu0 0.0
        %2666 = vmatpush.msra.mxu0 0.0
        %2667 = vmatpush.msra.mxu0 0.0
        %2668 = vmatpush.msra.mxu0 0.0
        %2669 = vmatpush.msra.mxu0 0.0
        %2670 = vmatpush.msra.mxu0 0.0
        %2671 = vmatpush.msra.mxu0 0.0
        %2672 = vmatpush.msra.mxu0 0.0
        %2673 = vmatpush.msra.mxu0 0.0
        %2674 = vmatpush.msra.mxu0 0.0
        %2675 = vmatpush.msra.mxu0 0.0
        %2676 = vmatpush.msra.mxu0 0.0
        %2677 = vmatpush.msra.mxu0 0.0
        %2678 = vmatpush.msra.mxu0 %v2514
        %2679 = vmatmul.f32.gmra.mxu0 %v2518
        %v2680 = vpop.f32.mrf.mxu0
        %v2681 = vadd.f32 0.0, %v2680
        %2682 = vmatmul.f32.gmra.mxu0 %v2521
        %v2683 = vpop.f32.mrf.mxu0
        %2684 = vdwg.mxu0
        %2685 = vmatpush.msra.mxu0 0.0
        %2686 = vmatpush.msra.mxu0 0.0
        %2687 = vmatpush.msra.mxu0 0.0
        %2688 = vmatpush.msra.mxu0 0.0
        %2689 = vmatpush.msra.mxu0 0.0
        %2690 = vmatpush.msra.mxu0 0.0
        %2691 = vmatpush.msra.mxu0 0.0
        %2692 = vmatpush.msra.mxu0 0.0
        %2693 = vmatpush.msra.mxu0 0.0
        %2694 = vmatpush.msra.mxu0 0.0
        %2695 = vmatpush.msra.mxu0 0.0
        %2696 = vmatpush.msra.mxu0 0.0
        %2697 = vmatpush.msra.mxu0 0.0
        %2698 = vmatpush.msra.mxu0 0.0
        %2699 = vmatpush.msra.mxu0 0.0
        %2700 = vmatpush.msra.mxu0 %v2515
        %2701 = vmatmul.f32.gmra.mxu0 %v2518
        %v2702 = vpop.f32.mrf.mxu0
        %v2703 = vadd.f32 0.0, %v2702
        %2704 = vmatmul.f32.gmra.mxu0 %v2521
        %v2705 = vpop.f32.mrf.mxu0
        %2706 = vdwg.mxu0
        %v2707 = vmul.f32 %v2637, 6.0
        %v2708 = vmul.f32 %v2659, 6.0
        %v2709 = vmul.f32 %v2681, 6.0
        %v2710 = vmul.f32 %v2703, 6.0
        %v2711 = vadd.f32 %v2707, -3.0
        %v2712 = vadd.f32 %v2708, -3.0
        %v2713 = vadd.f32 %v2709, -3.0
        %v2714 = vadd.f32 %v2710, -3.0
        %v2719 = vrot.slane %v2615, 7
        %v2720 = vrot.slane %v2616, 7
        %v2721 = vrot.slane %v2617, 7
        %v2722 = vrot.slane %v2618, 7
        %v2727 = vsub.f32 %v2615, %v2719
        %v2728 = vsub.f32 %v2616, %v2720
        %v2729 = vsub.f32 %v2617, %v2721
        %v2730 = vsub.f32 %v2618, %v2722
        %v2731 = vsub.f32 3.0, %v2719
        %v2732 = vsub.f32 3.0, %v2720
        %v2733 = vsub.f32 3.0, %v2721
        %v2734 = vsub.f32 3.0, %v2722
        %v2739 = vrot.slane %v2711, 7
        %v2740 = vrot.slane %v2712, 7
        %v2741 = vrot.slane %v2713, 7
        %v2742 = vrot.slane %v2714, 7
        %v2747 = vsub.f32 %v2711, %v2739
        %v2748 = vsub.f32 %v2712, %v2740
        %v2749 = vsub.f32 %v2713, %v2741
        %v2750 = vsub.f32 %v2714, %v2742
        %v2751 = vsub.f32 3.0, %v2739
        %v2752 = vsub.f32 3.0, %v2740
        %v2753 = vsub.f32 3.0, %v2741
        %v2754 = vsub.f32 3.0, %v2742
        %v2755 = vmax.f32 %v1744, 0.0
        %v2756 = vmax.f32 %v1903, 0.0
        %v2757 = vmax.f32 %v2062, 0.0
        %v2758 = vmax.f32 %v2221, 0.0
        %v2759 = vand.u32 2147483647, %v1744
        %v2760 = vand.u32 2147483647, %v1903
        %v2761 = vand.u32 2147483647, %v2062
        %v2762 = vand.u32 2147483647, %v2221
        %v2763 = vsub.f32 0.0, %v2759
        %v2764 = vsub.f32 0.0, %v2760
        %v2765 = vsub.f32 0.0, %v2761
        %v2766 = vsub.f32 0.0, %v2762
        %v2767 = vmul.f32 %v2763, 1.442695
        %v2768 = vpow.pop %v2767
        %v2769 = vmul.f32 %v2764, 1.442695
        %v2770 = vpow.pop %v2769
        %v2771 = vmul.f32 %v2765, 1.442695
        %v2772 = vpow.pop %v2771
        %v2773 = vmul.f32 %v2766, 1.442695
        %v2774 = vpow.pop %v2773
        %v2775 = vadd.f32 %v2768, 1.0
        %v2776 = vadd.f32 %v2770, 1.0
        %v2777 = vadd.f32 %v2772, 1.0
        %v2778 = vadd.f32 %v2774, 1.0
        %v2779 = vlog2.pop %v2775
        %v2780 = vmul.f32 %v2779, 0.6931472
        %v2781 = vlog2.pop %v2776
        %v2782 = vmul.f32 %v2781, 0.6931472
        %v2783 = vlog2.pop %v2777
        %v2784 = vmul.f32 %v2783, 0.6931472
        %v2785 = vlog2.pop %v2778
        %v2786 = vmul.f32 %v2785, 0.6931472
        %v2787 = vadd.f32 %v2755, %v2780
        %v2788 = vadd.f32 %v2756, %v2782
        %v2789 = vadd.f32 %v2757, %v2784
        %v2790 = vadd.f32 %v2758, %v2786
        %v2791 = vadd.f32 %v2787, 0.001
        %v2792 = vadd.f32 %v2788, 0.001
        %v2793 = vadd.f32 %v2789, 0.001
        %v2794 = vadd.f32 %v2790, 0.001
        %v2799 = vrot.slane %v2791, 7
        %v2800 = vrot.slane %v2792, 7
        %v2801 = vrot.slane %v2793, 7
        %v2802 = vrot.slane %v2794, 7
        %vm2807 = vcmask 1040384
        %v2808 = vsel %vm2807, 1.0, %v2799
        %v2809 = vsel %vm2807, 1.0, %v2800
        %v2810 = vsel %vm2807, 1.0, %v2801
        %v2811 = vsel %vm2807, 1.0, %v2802
        %v2812 = vrot.slane %v2615, 1
        %v2813 = vrot.slane %v2616, 1
        %v2814 = vrot.slane %v2617, 1
        %v2815 = vrot.slane %v2618, 1
        %vm2820 = vcmask 1046528
        %v2821 = vsel %vm2820, %v2812, 4.0
        %v2822 = vsel %vm2820, %v2813, 4.0
        %v2823 = vsel %vm2820, %v2814, 4.0
        %v2824 = vsel %vm2820, %v2815, 4.0
        %v2827 = vperm.slane %v2256, 0
        %v2828 = vperm.slane %v2256, 4
        %v2829 = vperm.slane %v2257, 0
        %v2830 = vperm.slane %v2257, 4
        %v2835 = vperm.slane %v2827, 0
        %v2836 = vperm.slane %v2828, 0
        %v2837 = vperm.slane %v2829, 0
        %v2838 = vperm.slane %v2830, 0
        %vm2839 = vcmp.ge.f32.partialorder %v2835, %v2615
        %vm2840 = vcmp.ge.f32.partialorder %v2836, %v2616
        %vm2841 = vcmp.ge.f32.partialorder %v2837, %v2617
        %vm2842 = vcmp.ge.f32.partialorder %v2838, %v2618
        %vm2843 = vcmp.lt.f32.partialorder %v2835, %v2821
        %vm2844 = vcmp.lt.f32.partialorder %v2836, %v2822
        %vm2845 = vcmp.lt.f32.partialorder %v2837, %v2823
        %vm2846 = vcmp.lt.f32.partialorder %v2838, %v2824
        %vm2847 = vmand %vm2839, %vm2843
        %vm2848 = vmand %vm2840, %vm2844
        %vm2849 = vmand %vm2841, %vm2845
        %vm2850 = vmand %vm2842, %vm2846
        %v2851 = vsel %vm2847, 1, 0
        %v2852 = vsel %vm2848, 1, 0
        %v2853 = vsel %vm2849, 1, 0
        %v2854 = vsel %vm2850, 1, 0
        %v2855 = vcvt.s32.f32 %v2851
        %v2856 = vcvt.s32.f32 %v2852
        %v2857 = vcvt.s32.f32 %v2853
        %v2858 = vcvt.s32.f32 %v2854
        %v2859 = vmul.f32 %v2855, %v2615
        %v2860 = vmul.f32 %v2856, %v2616
        %v2861 = vmul.f32 %v2857, %v2617
        %v2862 = vmul.f32 %v2858, %v2618
        %v2863 = vrot.slane %v2859, 4
        %v2864 = vadd.f32 %v2859, %v2863
        %v2865 = vrot.slane %v2864, 2
        %v2866 = vadd.f32 %v2864, %v2865
        %v2867 = vrot.slane %v2866, 1
        %v2868 = vadd.f32 %v2866, %v2867
        %v2869 = vrot.slane %v2860, 4
        %v2870 = vadd.f32 %v2860, %v2869
        %v2871 = vrot.slane %v2870, 2
        %v2872 = vadd.f32 %v2870, %v2871
        %v2873 = vrot.slane %v2872, 1
        %v2874 = vadd.f32 %v2872, %v2873
        %v2875 = vrot.slane %v2861, 4
        %v2876 = vadd.f32 %v2861, %v2875
        %v2877 = vrot.slane %v2876, 2
        %v2878 = vadd.f32 %v2876, %v2877
        %v2879 = vrot.slane %v2878, 1
        %v2880 = vadd.f32 %v2878, %v2879
        %v2881 = vrot.slane %v2862, 4
        %v2882 = vadd.f32 %v2862, %v2881
        %v2883 = vrot.slane %v2882, 2
        %v2884 = vadd.f32 %v2882, %v2883
        %v2885 = vrot.slane %v2884, 1
        %v2886 = vadd.f32 %v2884, %v2885
        %v2895 = vrot.slane %v2727, 1
        %v2896 = vrot.slane %v2731, 1
        %v2897 = vsel %vm2820, %v2895, %v2896
        %v2898 = vrot.slane %v2728, 1
        %v2899 = vrot.slane %v2732, 1
        %v2900 = vsel %vm2820, %v2898, %v2899
        %v2901 = vrot.slane %v2729, 1
        %v2902 = vrot.slane %v2733, 1
        %v2903 = vsel %vm2820, %v2901, %v2902
        %v2904 = vrot.slane %v2730, 1
        %v2905 = vrot.slane %v2734, 1
        %v2906 = vsel %vm2820, %v2904, %v2905
        %v2911 = vmul.f32 %v2855, %v2897
        %v2912 = vmul.f32 %v2856, %v2900
        %v2913 = vmul.f32 %v2857, %v2903
        %v2914 = vmul.f32 %v2858, %v2906
        %v2915 = vrot.slane %v2911, 4
        %v2916 = vadd.f32 %v2911, %v2915
        %v2917 = vrot.slane %v2916, 2
        %v2918 = vadd.f32 %v2916, %v2917
        %v2919 = vrot.slane %v2918, 1
        %v2920 = vadd.f32 %v2918, %v2919
        %v2921 = vrot.slane %v2912, 4
        %v2922 = vadd.f32 %v2912, %v2921
        %v2923 = vrot.slane %v2922, 2
        %v2924 = vadd.f32 %v2922, %v2923
        %v2925 = vrot.slane %v2924, 1
        %v2926 = vadd.f32 %v2924, %v2925
        %v2927 = vrot.slane %v2913, 4
        %v2928 = vadd.f32 %v2913, %v2927
        %v2929 = vrot.slane %v2928, 2
        %v2930 = vadd.f32 %v2928, %v2929
        %v2931 = vrot.slane %v2930, 1
        %v2932 = vadd.f32 %v2930, %v2931
        %v2933 = vrot.slane %v2914, 4
        %v2934 = vadd.f32 %v2914, %v2933
        %v2935 = vrot.slane %v2934, 2
        %v2936 = vadd.f32 %v2934, %v2935
        %v2937 = vrot.slane %v2936, 1
        %v2938 = vadd.f32 %v2936, %v2937
        %v2939 = vmul.f32 %v2855, %v2711
        %v2940 = vmul.f32 %v2856, %v2712
        %v2941 = vmul.f32 %v2857, %v2713
        %v2942 = vmul.f32 %v2858, %v2714
        %v2943 = vrot.slane %v2939, 4
        %v2944 = vadd.f32 %v2939, %v2943
        %v2945 = vrot.slane %v2944, 2
        %v2946 = vadd.f32 %v2944, %v2945
        %v2947 = vrot.slane %v2946, 1
        %v2948 = vadd.f32 %v2946, %v2947
        %v2949 = vrot.slane %v2940, 4
        %v2950 = vadd.f32 %v2940, %v2949
        %v2951 = vrot.slane %v2950, 2
        %v2952 = vadd.f32 %v2950, %v2951
        %v2953 = vrot.slane %v2952, 1
        %v2954 = vadd.f32 %v2952, %v2953
        %v2955 = vrot.slane %v2941, 4
        %v2956 = vadd.f32 %v2941, %v2955
        %v2957 = vrot.slane %v2956, 2
        %v2958 = vadd.f32 %v2956, %v2957
        %v2959 = vrot.slane %v2958, 1
        %v2960 = vadd.f32 %v2958, %v2959
        %v2961 = vrot.slane %v2942, 4
        %v2962 = vadd.f32 %v2942, %v2961
        %v2963 = vrot.slane %v2962, 2
        %v2964 = vadd.f32 %v2962, %v2963
        %v2965 = vrot.slane %v2964, 1
        %v2966 = vadd.f32 %v2964, %v2965
        %v2975 = vrot.slane %v2747, 1
        %v2976 = vrot.slane %v2751, 1
        %v2977 = vsel %vm2820, %v2975, %v2976
        %v2978 = vrot.slane %v2748, 1
        %v2979 = vrot.slane %v2752, 1
        %v2980 = vsel %vm2820, %v2978, %v2979
        %v2981 = vrot.slane %v2749, 1
        %v2982 = vrot.slane %v2753, 1
        %v2983 = vsel %vm2820, %v2981, %v2982
        %v2984 = vrot.slane %v2750, 1
        %v2985 = vrot.slane %v2754, 1
        %v2986 = vsel %vm2820, %v2984, %v2985
        %v2991 = vmul.f32 %v2855, %v2977
        %v2992 = vmul.f32 %v2856, %v2980
        %v2993 = vmul.f32 %v2857, %v2983
        %v2994 = vmul.f32 %v2858, %v2986
        %v2995 = vrot.slane %v2991, 4
        %v2996 = vadd.f32 %v2991, %v2995
        %v2997 = vrot.slane %v2996, 2
        %v2998 = vadd.f32 %v2996, %v2997
        %v2999 = vrot.slane %v2998, 1
        %v3000 = vadd.f32 %v2998, %v2999
        %v3001 = vrot.slane %v2992, 4
        %v3002 = vadd.f32 %v2992, %v3001
        %v3003 = vrot.slane %v3002, 2
        %v3004 = vadd.f32 %v3002, %v3003
        %v3005 = vrot.slane %v3004, 1
        %v3006 = vadd.f32 %v3004, %v3005
        %v3007 = vrot.slane %v2993, 4
        %v3008 = vadd.f32 %v2993, %v3007
        %v3009 = vrot.slane %v3008, 2
        %v3010 = vadd.f32 %v3008, %v3009
        %v3011 = vrot.slane %v3010, 1
        %v3012 = vadd.f32 %v3010, %v3011
        %v3013 = vrot.slane %v2994, 4
        %v3014 = vadd.f32 %v2994, %v3013
        %v3015 = vrot.slane %v3014, 2
        %v3016 = vadd.f32 %v3014, %v3015
        %v3017 = vrot.slane %v3016, 1
        %v3018 = vadd.f32 %v3016, %v3017
        %v3019 = vmul.f32 %v2855, %v2808
        %v3020 = vmul.f32 %v2856, %v2809
        %v3021 = vmul.f32 %v2857, %v2810
        %v3022 = vmul.f32 %v2858, %v2811
        %v3023 = vrot.slane %v3019, 4
        %v3024 = vadd.f32 %v3019, %v3023
        %v3025 = vrot.slane %v3024, 2
        %v3026 = vadd.f32 %v3024, %v3025
        %v3027 = vrot.slane %v3026, 1
        %v3028 = vadd.f32 %v3026, %v3027
        %v3029 = vrot.slane %v3020, 4
        %v3030 = vadd.f32 %v3020, %v3029
        %v3031 = vrot.slane %v3030, 2
        %v3032 = vadd.f32 %v3030, %v3031
        %v3033 = vrot.slane %v3032, 1
        %v3034 = vadd.f32 %v3032, %v3033
        %v3035 = vrot.slane %v3021, 4
        %v3036 = vadd.f32 %v3021, %v3035
        %v3037 = vrot.slane %v3036, 2
        %v3038 = vadd.f32 %v3036, %v3037
        %v3039 = vrot.slane %v3038, 1
        %v3040 = vadd.f32 %v3038, %v3039
        %v3041 = vrot.slane %v3022, 4
        %v3042 = vadd.f32 %v3022, %v3041
        %v3043 = vrot.slane %v3042, 2
        %v3044 = vadd.f32 %v3042, %v3043
        %v3045 = vrot.slane %v3044, 1
        %v3046 = vadd.f32 %v3044, %v3045
        %v3052 = vrot.slane %v2808, 1
        %v3053 = vrot.slane 1.0, 1
        %v3054 = vsel %vm2820, %v3052, %v3053
        %v3055 = vrot.slane %v2809, 1
        %v3056 = vsel %vm2820, %v3055, %v3053
        %v3057 = vrot.slane %v2810, 1
        %v3058 = vsel %vm2820, %v3057, %v3053
        %v3059 = vrot.slane %v2811, 1
        %v3060 = vsel %vm2820, %v3059, %v3053
        %v3065 = vmul.f32 %v2855, %v3054
        %v3066 = vmul.f32 %v2856, %v3056
        %v3067 = vmul.f32 %v2857, %v3058
        %v3068 = vmul.f32 %v2858, %v3060
        %v3069 = vrot.slane %v3065, 4
        %v3070 = vadd.f32 %v3065, %v3069
        %v3071 = vrot.slane %v3070, 2
        %v3072 = vadd.f32 %v3070, %v3071
        %v3073 = vrot.slane %v3072, 1
        %v3074 = vadd.f32 %v3072, %v3073
        %v3075 = vrot.slane %v3066, 4
        %v3076 = vadd.f32 %v3066, %v3075
        %v3077 = vrot.slane %v3076, 2
        %v3078 = vadd.f32 %v3076, %v3077
        %v3079 = vrot.slane %v3078, 1
        %v3080 = vadd.f32 %v3078, %v3079
        %v3081 = vrot.slane %v3067, 4
        %v3082 = vadd.f32 %v3067, %v3081
        %v3083 = vrot.slane %v3082, 2
        %v3084 = vadd.f32 %v3082, %v3083
        %v3085 = vrot.slane %v3084, 1
        %v3086 = vadd.f32 %v3084, %v3085
        %v3087 = vrot.slane %v3068, 4
        %v3088 = vadd.f32 %v3068, %v3087
        %v3089 = vrot.slane %v3088, 2
        %v3090 = vadd.f32 %v3088, %v3089
        %v3091 = vrot.slane %v3090, 1
        %v3092 = vadd.f32 %v3090, %v3091
        %v3093 = vrot.slane %v1747, 4
        %v3094 = vmax.f32 %v1747, %v3093
        %v3095 = vrot.slane %v3094, 2
        %v3096 = vmax.f32 %v3094, %v3095
        %v3097 = vrot.slane %v3096, 1
        %v3098 = vmax.f32 %v3096, %v3097
        %v3099 = vrot.slane %v1906, 4
        %v3100 = vmax.f32 %v1906, %v3099
        %v3101 = vrot.slane %v3100, 2
        %v3102 = vmax.f32 %v3100, %v3101
        %v3103 = vrot.slane %v3102, 1
        %v3104 = vmax.f32 %v3102, %v3103
        %v3105 = vrot.slane %v2065, 4
        %v3106 = vmax.f32 %v2065, %v3105
        %v3107 = vrot.slane %v3106, 2
        %v3108 = vmax.f32 %v3106, %v3107
        %v3109 = vrot.slane %v3108, 1
        %v3110 = vmax.f32 %v3108, %v3109
        %v3111 = vrot.slane %v2224, 4
        %v3112 = vmax.f32 %v2224, %v3111
        %v3113 = vrot.slane %v3112, 2
        %v3114 = vmax.f32 %v3112, %v3113
        %v3115 = vrot.slane %v3114, 1
        %v3116 = vmax.f32 %v3114, %v3115
        %v3117 = vsub.f32 %v1747, %v3098
        %v3118 = vsub.f32 %v1906, %v3104
        %v3119 = vsub.f32 %v2065, %v3110
        %v3120 = vsub.f32 %v2224, %v3116
        %v3121 = vmul.f32 %v3117, 1.442695
        %v3122 = vpow.pop %v3121
        %v3123 = vmul.f32 %v3118, 1.442695
        %v3124 = vpow.pop %v3123
        %v3125 = vmul.f32 %v3119, 1.442695
        %v3126 = vpow.pop %v3125
        %v3127 = vmul.f32 %v3120, 1.442695
        %v3128 = vpow.pop %v3127
        %v3129 = vrot.slane %v3122, 4
        %v3130 = vadd.f32 %v3122, %v3129
        %v3131 = vrot.slane %v3130, 2
        %v3132 = vadd.f32 %v3130, %v3131
        %v3133 = vrot.slane %v3132, 1
        %v3134 = vadd.f32 %v3132, %v3133
        %v3135 = vrot.slane %v3124, 4
        %v3136 = vadd.f32 %v3124, %v3135
        %v3137 = vrot.slane %v3136, 2
        %v3138 = vadd.f32 %v3136, %v3137
        %v3139 = vrot.slane %v3138, 1
        %v3140 = vadd.f32 %v3138, %v3139
        %v3141 = vrot.slane %v3126, 4
        %v3142 = vadd.f32 %v3126, %v3141
        %v3143 = vrot.slane %v3142, 2
        %v3144 = vadd.f32 %v3142, %v3143
        %v3145 = vrot.slane %v3144, 1
        %v3146 = vadd.f32 %v3144, %v3145
        %v3147 = vrot.slane %v3128, 4
        %v3148 = vadd.f32 %v3128, %v3147
        %v3149 = vrot.slane %v3148, 2
        %v3150 = vadd.f32 %v3148, %v3149
        %v3151 = vrot.slane %v3150, 1
        %v3152 = vadd.f32 %v3150, %v3151
        %v3153 = vrcp.pop %v3134
        %v3154 = vmul.f32 %v3134, %v3153
        %v3155 = vsub.f32 1.0, %v3154
        %v3156 = vmul.f32 %v3153, %v3155
        %v3157 = vadd.f32 %v3153, %v3156
        %vm3158 = vweird.f32 %v3134
        %vm3159 = vweird.f32 %v3153
        %vm3160 = vmor %vm3158, %vm3159
        %v3161 = vsel %vm3160, %v3153, %v3157
        %v3162 = vand.u32 2147483647, %v3134
        %vm3163 = vcmp.eq.f32.partialorder %v3162, 8.507059e+37
        %v3164 = vand.u32 %v3134, 2147483648
        %v3165 = vor.u32 1.1754944e-38, %v3164
        %v3166 = vsel %vm3163, %v3165, %v3161
        %v3167 = vmul.f32 %v3122, %v3166
        %v3168 = vrcp.pop %v3140
        %v3169 = vmul.f32 %v3140, %v3168
        %v3170 = vsub.f32 1.0, %v3169
        %v3171 = vmul.f32 %v3168, %v3170
        %v3172 = vadd.f32 %v3168, %v3171
        %vm3173 = vweird.f32 %v3140
        %vm3174 = vweird.f32 %v3168
        %vm3175 = vmor %vm3173, %vm3174
        %v3176 = vsel %vm3175, %v3168, %v3172
        %v3177 = vand.u32 2147483647, %v3140
        %vm3178 = vcmp.eq.f32.partialorder %v3177, 8.507059e+37
        %v3179 = vand.u32 %v3140, 2147483648
        %v3180 = vor.u32 1.1754944e-38, %v3179
        %v3181 = vsel %vm3178, %v3180, %v3176
        %v3182 = vmul.f32 %v3124, %v3181
        %v3183 = vrcp.pop %v3146
        %v3184 = vmul.f32 %v3146, %v3183
        %v3185 = vsub.f32 1.0, %v3184
        %v3186 = vmul.f32 %v3183, %v3185
        %v3187 = vadd.f32 %v3183, %v3186
        %vm3188 = vweird.f32 %v3146
        %vm3189 = vweird.f32 %v3183
        %vm3190 = vmor %vm3188, %vm3189
        %v3191 = vsel %vm3190, %v3183, %v3187
        %v3192 = vand.u32 2147483647, %v3146
        %vm3193 = vcmp.eq.f32.partialorder %v3192, 8.507059e+37
        %v3194 = vand.u32 %v3146, 2147483648
        %v3195 = vor.u32 1.1754944e-38, %v3194
        %v3196 = vsel %vm3193, %v3195, %v3191
        %v3197 = vmul.f32 %v3126, %v3196
        %v3198 = vrcp.pop %v3152
        %v3199 = vmul.f32 %v3152, %v3198
        %v3200 = vsub.f32 1.0, %v3199
        %v3201 = vmul.f32 %v3198, %v3200
        %v3202 = vadd.f32 %v3198, %v3201
        %vm3203 = vweird.f32 %v3152
        %vm3204 = vweird.f32 %v3198
        %vm3205 = vmor %vm3203, %vm3204
        %v3206 = vsel %vm3205, %v3198, %v3202
        %v3207 = vand.u32 2147483647, %v3152
        %vm3208 = vcmp.eq.f32.partialorder %v3207, 8.507059e+37
        %v3209 = vand.u32 %v3152, 2147483648
        %v3210 = vor.u32 1.1754944e-38, %v3209
        %v3211 = vsel %vm3208, %v3210, %v3206
        %v3212 = vmul.f32 %v3128, %v3211
        %v3213 = vmul.f32 %v3167, 0.992
        %v3214 = vmul.f32 %v3182, 0.992
        %v3215 = vmul.f32 %v3197, 0.992
        %v3216 = vmul.f32 %v3212, 0.992
        %v3217 = vadd.f32 %v3213, 0.001
        %v3218 = vadd.f32 %v3214, 0.001
        %v3219 = vadd.f32 %v3215, 0.001
        %v3220 = vadd.f32 %v3216, 0.001
        %v3221 = vrot.slane %v1750, 4
        %v3222 = vmax.f32 %v1750, %v3221
        %v3223 = vrot.slane %v3222, 2
        %v3224 = vmax.f32 %v3222, %v3223
        %v3225 = vrot.slane %v3224, 1
        %v3226 = vmax.f32 %v3224, %v3225
        %v3227 = vrot.slane %v1909, 4
        %v3228 = vmax.f32 %v1909, %v3227
        %v3229 = vrot.slane %v3228, 2
        %v3230 = vmax.f32 %v3228, %v3229
        %v3231 = vrot.slane %v3230, 1
        %v3232 = vmax.f32 %v3230, %v3231
        %v3233 = vrot.slane %v2068, 4
        %v3234 = vmax.f32 %v2068, %v3233
        %v3235 = vrot.slane %v3234, 2
        %v3236 = vmax.f32 %v3234, %v3235
        %v3237 = vrot.slane %v3236, 1
        %v3238 = vmax.f32 %v3236, %v3237
        %v3239 = vrot.slane %v2227, 4
        %v3240 = vmax.f32 %v2227, %v3239
        %v3241 = vrot.slane %v3240, 2
        %v3242 = vmax.f32 %v3240, %v3241
        %v3243 = vrot.slane %v3242, 1
        %v3244 = vmax.f32 %v3242, %v3243
        %v3245 = vsub.f32 %v1750, %v3226
        %v3246 = vsub.f32 %v1909, %v3232
        %v3247 = vsub.f32 %v2068, %v3238
        %v3248 = vsub.f32 %v2227, %v3244
        %v3249 = vmul.f32 %v3245, 1.442695
        %v3250 = vpow.pop %v3249
        %v3251 = vmul.f32 %v3246, 1.442695
        %v3252 = vpow.pop %v3251
        %v3253 = vmul.f32 %v3247, 1.442695
        %v3254 = vpow.pop %v3253
        %v3255 = vmul.f32 %v3248, 1.442695
        %v3256 = vpow.pop %v3255
        %v3257 = vrot.slane %v3250, 4
        %v3258 = vadd.f32 %v3250, %v3257
        %v3259 = vrot.slane %v3258, 2
        %v3260 = vadd.f32 %v3258, %v3259
        %v3261 = vrot.slane %v3260, 1
        %v3262 = vadd.f32 %v3260, %v3261
        %v3263 = vrot.slane %v3252, 4
        %v3264 = vadd.f32 %v3252, %v3263
        %v3265 = vrot.slane %v3264, 2
        %v3266 = vadd.f32 %v3264, %v3265
        %v3267 = vrot.slane %v3266, 1
        %v3268 = vadd.f32 %v3266, %v3267
        %v3269 = vrot.slane %v3254, 4
        %v3270 = vadd.f32 %v3254, %v3269
        %v3271 = vrot.slane %v3270, 2
        %v3272 = vadd.f32 %v3270, %v3271
        %v3273 = vrot.slane %v3272, 1
        %v3274 = vadd.f32 %v3272, %v3273
        %v3275 = vrot.slane %v3256, 4
        %v3276 = vadd.f32 %v3256, %v3275
        %v3277 = vrot.slane %v3276, 2
        %v3278 = vadd.f32 %v3276, %v3277
        %v3279 = vrot.slane %v3278, 1
        %v3280 = vadd.f32 %v3278, %v3279
        %v3281 = vrcp.pop %v3262
        %v3282 = vmul.f32 %v3262, %v3281
        %v3283 = vsub.f32 1.0, %v3282
        %v3284 = vmul.f32 %v3281, %v3283
        %v3285 = vadd.f32 %v3281, %v3284
        %vm3286 = vweird.f32 %v3262
        %vm3287 = vweird.f32 %v3281
        %vm3288 = vmor %vm3286, %vm3287
        %v3289 = vsel %vm3288, %v3281, %v3285
        %v3290 = vand.u32 2147483647, %v3262
        %vm3291 = vcmp.eq.f32.partialorder %v3290, 8.507059e+37
        %v3292 = vand.u32 %v3262, 2147483648
        %v3293 = vor.u32 1.1754944e-38, %v3292
        %v3294 = vsel %vm3291, %v3293, %v3289
        %v3295 = vmul.f32 %v3250, %v3294
        %v3296 = vrcp.pop %v3268
        %v3297 = vmul.f32 %v3268, %v3296
        %v3298 = vsub.f32 1.0, %v3297
        %v3299 = vmul.f32 %v3296, %v3298
        %v3300 = vadd.f32 %v3296, %v3299
        %vm3301 = vweird.f32 %v3268
        %vm3302 = vweird.f32 %v3296
        %vm3303 = vmor %vm3301, %vm3302
        %v3304 = vsel %vm3303, %v3296, %v3300
        %v3305 = vand.u32 2147483647, %v3268
        %vm3306 = vcmp.eq.f32.partialorder %v3305, 8.507059e+37
        %v3307 = vand.u32 %v3268, 2147483648
        %v3308 = vor.u32 1.1754944e-38, %v3307
        %v3309 = vsel %vm3306, %v3308, %v3304
        %v3310 = vmul.f32 %v3252, %v3309
        %v3311 = vrcp.pop %v3274
        %v3312 = vmul.f32 %v3274, %v3311
        %v3313 = vsub.f32 1.0, %v3312
        %v3314 = vmul.f32 %v3311, %v3313
        %v3315 = vadd.f32 %v3311, %v3314
        %vm3316 = vweird.f32 %v3274
        %vm3317 = vweird.f32 %v3311
        %vm3318 = vmor %vm3316, %vm3317
        %v3319 = vsel %vm3318, %v3311, %v3315
        %v3320 = vand.u32 2147483647, %v3274
        %vm3321 = vcmp.eq.f32.partialorder %v3320, 8.507059e+37
        %v3322 = vand.u32 %v3274, 2147483648
        %v3323 = vor.u32 1.1754944e-38, %v3322
        %v3324 = vsel %vm3321, %v3323, %v3319
        %v3325 = vmul.f32 %v3254, %v3324
        %v3326 = vrcp.pop %v3280
        %v3327 = vmul.f32 %v3280, %v3326
        %v3328 = vsub.f32 1.0, %v3327
        %v3329 = vmul.f32 %v3326, %v3328
        %v3330 = vadd.f32 %v3326, %v3329
        %vm3331 = vweird.f32 %v3280
        %vm3332 = vweird.f32 %v3326
        %vm3333 = vmor %vm3331, %vm3332
        %v3334 = vsel %vm3333, %v3326, %v3330
        %v3335 = vand.u32 2147483647, %v3280
        %vm3336 = vcmp.eq.f32.partialorder %v3335, 8.507059e+37
        %v3337 = vand.u32 %v3280, 2147483648
        %v3338 = vor.u32 1.1754944e-38, %v3337
        %v3339 = vsel %vm3336, %v3338, %v3334
        %v3340 = vmul.f32 %v3256, %v3339
        %v3341 = vmul.f32 %v3295, 0.992
        %v3342 = vmul.f32 %v3310, 0.992
        %v3343 = vmul.f32 %v3325, 0.992
        %v3344 = vmul.f32 %v3340, 0.992
        %v3345 = vadd.f32 %v3341, 0.001
        %v3346 = vadd.f32 %v3342, 0.001
        %v3347 = vadd.f32 %v3343, 0.001
        %v3348 = vadd.f32 %v3344, 0.001
        %3349 = vmatpush.msra.mxu0 0.0
        %3350 = vmatpush.msra.mxu0 0.0
        %3351 = vmatpush.msra.mxu0 0.0
        %3352 = vmatpush.msra.mxu0 0.0
        %3353 = vmatpush.msra.mxu0 0.0
        %3354 = vmatpush.msra.mxu0 0.0
        %3355 = vmatpush.msra.mxu0 0.0
        %3356 = vmatpush.msra.mxu0 0.0
        %3357 = vmatpush.msra.mxu0 0.0
        %3358 = vmatpush.msra.mxu0 0.0
        %3359 = vmatpush.msra.mxu0 0.0
        %3360 = vmatpush.msra.mxu0 0.0
        %3361 = vmatpush.msra.mxu0 0.0
        %3362 = vmatpush.msra.mxu0 0.0
        %3363 = vmatpush.msra.mxu0 0.0
        %3364 = vmatpush.msra.mxu0 %v3217
        %3365 = vmatmul.f32.gmra.mxu0 %v2518
        %v3366 = vpop.f32.mrf.mxu0
        %v3367 = vadd.f32 0.0, %v3366
        %3368 = vmatmul.f32.gmra.mxu0 %v2521
        %v3369 = vpop.f32.mrf.mxu0
        %3370 = vdwg.mxu0
        %3371 = vmatpush.msra.mxu0 0.0
        %3372 = vmatpush.msra.mxu0 0.0
        %3373 = vmatpush.msra.mxu0 0.0
        %3374 = vmatpush.msra.mxu0 0.0
        %3375 = vmatpush.msra.mxu0 0.0
        %3376 = vmatpush.msra.mxu0 0.0
        %3377 = vmatpush.msra.mxu0 0.0
        %3378 = vmatpush.msra.mxu0 0.0
        %3379 = vmatpush.msra.mxu0 0.0
        %3380 = vmatpush.msra.mxu0 0.0
        %3381 = vmatpush.msra.mxu0 0.0
        %3382 = vmatpush.msra.mxu0 0.0
        %3383 = vmatpush.msra.mxu0 0.0
        %3384 = vmatpush.msra.mxu0 0.0
        %3385 = vmatpush.msra.mxu0 0.0
        %3386 = vmatpush.msra.mxu0 %v3218
        %3387 = vmatmul.f32.gmra.mxu0 %v2518
        %v3388 = vpop.f32.mrf.mxu0
        %v3389 = vadd.f32 0.0, %v3388
        %3390 = vmatmul.f32.gmra.mxu0 %v2521
        %v3391 = vpop.f32.mrf.mxu0
        %3392 = vdwg.mxu0
        %3393 = vmatpush.msra.mxu0 0.0
        %3394 = vmatpush.msra.mxu0 0.0
        %3395 = vmatpush.msra.mxu0 0.0
        %3396 = vmatpush.msra.mxu0 0.0
        %3397 = vmatpush.msra.mxu0 0.0
        %3398 = vmatpush.msra.mxu0 0.0
        %3399 = vmatpush.msra.mxu0 0.0
        %3400 = vmatpush.msra.mxu0 0.0
        %3401 = vmatpush.msra.mxu0 0.0
        %3402 = vmatpush.msra.mxu0 0.0
        %3403 = vmatpush.msra.mxu0 0.0
        %3404 = vmatpush.msra.mxu0 0.0
        %3405 = vmatpush.msra.mxu0 0.0
        %3406 = vmatpush.msra.mxu0 0.0
        %3407 = vmatpush.msra.mxu0 0.0
        %3408 = vmatpush.msra.mxu0 %v3219
        %3409 = vmatmul.f32.gmra.mxu0 %v2518
        %v3410 = vpop.f32.mrf.mxu0
        %v3411 = vadd.f32 0.0, %v3410
        %3412 = vmatmul.f32.gmra.mxu0 %v2521
        %v3413 = vpop.f32.mrf.mxu0
        %3414 = vdwg.mxu0
        %3415 = vmatpush.msra.mxu0 0.0
        %3416 = vmatpush.msra.mxu0 0.0
        %3417 = vmatpush.msra.mxu0 0.0
        %3418 = vmatpush.msra.mxu0 0.0
        %3419 = vmatpush.msra.mxu0 0.0
        %3420 = vmatpush.msra.mxu0 0.0
        %3421 = vmatpush.msra.mxu0 0.0
        %3422 = vmatpush.msra.mxu0 0.0
        %3423 = vmatpush.msra.mxu0 0.0
        %3424 = vmatpush.msra.mxu0 0.0
        %3425 = vmatpush.msra.mxu0 0.0
        %3426 = vmatpush.msra.mxu0 0.0
        %3427 = vmatpush.msra.mxu0 0.0
        %3428 = vmatpush.msra.mxu0 0.0
        %3429 = vmatpush.msra.mxu0 0.0
        %3430 = vmatpush.msra.mxu0 %v3220
        %3431 = vmatmul.f32.gmra.mxu0 %v2518
        %v3432 = vpop.f32.mrf.mxu0
        %v3433 = vadd.f32 0.0, %v3432
        %3434 = vmatmul.f32.gmra.mxu0 %v2521
        %v3435 = vpop.f32.mrf.mxu0
        %3436 = vdwg.mxu0
        %v3437 = vmul.f32 %v3367, 6.0
        %v3438 = vmul.f32 %v3389, 6.0
        %v3439 = vmul.f32 %v3411, 6.0
        %v3440 = vmul.f32 %v3433, 6.0
        %v3441 = vadd.f32 %v3437, -3.0
        %v3442 = vadd.f32 %v3438, -3.0
        %v3443 = vadd.f32 %v3439, -3.0
        %v3444 = vadd.f32 %v3440, -3.0
        %3445 = vmatpush.msra.mxu0 0.0
        %3446 = vmatpush.msra.mxu0 0.0
        %3447 = vmatpush.msra.mxu0 0.0
        %3448 = vmatpush.msra.mxu0 0.0
        %3449 = vmatpush.msra.mxu0 0.0
        %3450 = vmatpush.msra.mxu0 0.0
        %3451 = vmatpush.msra.mxu0 0.0
        %3452 = vmatpush.msra.mxu0 0.0
        %3453 = vmatpush.msra.mxu0 0.0
        %3454 = vmatpush.msra.mxu0 0.0
        %3455 = vmatpush.msra.mxu0 0.0
        %3456 = vmatpush.msra.mxu0 0.0
        %3457 = vmatpush.msra.mxu0 0.0
        %3458 = vmatpush.msra.mxu0 0.0
        %3459 = vmatpush.msra.mxu0 0.0
        %3460 = vmatpush.msra.mxu0 %v3345
        %3461 = vmatmul.f32.gmra.mxu0 %v2518
        %v3462 = vpop.f32.mrf.mxu0
        %v3463 = vadd.f32 0.0, %v3462
        %3464 = vmatmul.f32.gmra.mxu0 %v2521
        %v3465 = vpop.f32.mrf.mxu0
        %3466 = vdwg.mxu0
        %3467 = vmatpush.msra.mxu0 0.0
        %3468 = vmatpush.msra.mxu0 0.0
        %3469 = vmatpush.msra.mxu0 0.0
        %3470 = vmatpush.msra.mxu0 0.0
        %3471 = vmatpush.msra.mxu0 0.0
        %3472 = vmatpush.msra.mxu0 0.0
        %3473 = vmatpush.msra.mxu0 0.0
        %3474 = vmatpush.msra.mxu0 0.0
        %3475 = vmatpush.msra.mxu0 0.0
        %3476 = vmatpush.msra.mxu0 0.0
        %3477 = vmatpush.msra.mxu0 0.0
        %3478 = vmatpush.msra.mxu0 0.0
        %3479 = vmatpush.msra.mxu0 0.0
        %3480 = vmatpush.msra.mxu0 0.0
        %3481 = vmatpush.msra.mxu0 0.0
        %3482 = vmatpush.msra.mxu0 %v3346
        %3483 = vmatmul.f32.gmra.mxu0 %v2518
        %v3484 = vpop.f32.mrf.mxu0
        %v3485 = vadd.f32 0.0, %v3484
        %3486 = vmatmul.f32.gmra.mxu0 %v2521
        %v3487 = vpop.f32.mrf.mxu0
        %3488 = vdwg.mxu0
        %3489 = vmatpush.msra.mxu0 0.0
        %3490 = vmatpush.msra.mxu0 0.0
        %3491 = vmatpush.msra.mxu0 0.0
        %3492 = vmatpush.msra.mxu0 0.0
        %3493 = vmatpush.msra.mxu0 0.0
        %3494 = vmatpush.msra.mxu0 0.0
        %3495 = vmatpush.msra.mxu0 0.0
        %3496 = vmatpush.msra.mxu0 0.0
        %3497 = vmatpush.msra.mxu0 0.0
        %3498 = vmatpush.msra.mxu0 0.0
        %3499 = vmatpush.msra.mxu0 0.0
        %3500 = vmatpush.msra.mxu0 0.0
        %3501 = vmatpush.msra.mxu0 0.0
        %3502 = vmatpush.msra.mxu0 0.0
        %3503 = vmatpush.msra.mxu0 0.0
        %3504 = vmatpush.msra.mxu0 %v3347
        %3505 = vmatmul.f32.gmra.mxu0 %v2518
        %v3506 = vpop.f32.mrf.mxu0
        %v3507 = vadd.f32 0.0, %v3506
        %3508 = vmatmul.f32.gmra.mxu0 %v2521
        %v3509 = vpop.f32.mrf.mxu0
        %3510 = vdwg.mxu0
        %3511 = vmatpush.msra.mxu0 0.0
        %3512 = vmatpush.msra.mxu0 0.0
        %3513 = vmatpush.msra.mxu0 0.0
        %3514 = vmatpush.msra.mxu0 0.0
        %3515 = vmatpush.msra.mxu0 0.0
        %3516 = vmatpush.msra.mxu0 0.0
        %3517 = vmatpush.msra.mxu0 0.0
        %3518 = vmatpush.msra.mxu0 0.0
        %3519 = vmatpush.msra.mxu0 0.0
        %3520 = vmatpush.msra.mxu0 0.0
        %3521 = vmatpush.msra.mxu0 0.0
        %3522 = vmatpush.msra.mxu0 0.0
        %3523 = vmatpush.msra.mxu0 0.0
        %3524 = vmatpush.msra.mxu0 0.0
        %3525 = vmatpush.msra.mxu0 0.0
        %3526 = vmatpush.msra.mxu0 %v3348
        %3527 = vmatmul.f32.gmra.mxu0 %v2518
        %v3528 = vpop.f32.mrf.mxu0
        %v3529 = vadd.f32 0.0, %v3528
        %3530 = vmatmul.f32.gmra.mxu0 %v2521
        %v3531 = vpop.f32.mrf.mxu0
        %3532 = vdwg.mxu0
        %v3533 = vmul.f32 %v3463, 6.0
        %v3534 = vmul.f32 %v3485, 6.0
        %v3535 = vmul.f32 %v3507, 6.0
        %v3536 = vmul.f32 %v3529, 6.0
        %v3537 = vadd.f32 %v3533, -3.0
        %v3538 = vadd.f32 %v3534, -3.0
        %v3539 = vadd.f32 %v3535, -3.0
        %v3540 = vadd.f32 %v3536, -3.0
        %v3545 = vrot.slane %v3441, 7
        %v3546 = vrot.slane %v3442, 7
        %v3547 = vrot.slane %v3443, 7
        %v3548 = vrot.slane %v3444, 7
        %v3553 = vsub.f32 %v3441, %v3545
        %v3554 = vsub.f32 %v3442, %v3546
        %v3555 = vsub.f32 %v3443, %v3547
        %v3556 = vsub.f32 %v3444, %v3548
        %v3557 = vsub.f32 3.0, %v3545
        %v3558 = vsub.f32 3.0, %v3546
        %v3559 = vsub.f32 3.0, %v3547
        %v3560 = vsub.f32 3.0, %v3548
        %v3565 = vrot.slane %v3537, 7
        %v3566 = vrot.slane %v3538, 7
        %v3567 = vrot.slane %v3539, 7
        %v3568 = vrot.slane %v3540, 7
        %v3573 = vsub.f32 %v3537, %v3565
        %v3574 = vsub.f32 %v3538, %v3566
        %v3575 = vsub.f32 %v3539, %v3567
        %v3576 = vsub.f32 %v3540, %v3568
        %v3577 = vsub.f32 3.0, %v3565
        %v3578 = vsub.f32 3.0, %v3566
        %v3579 = vsub.f32 3.0, %v3567
        %v3580 = vsub.f32 3.0, %v3568
        %v3581 = vmax.f32 %v1753, 0.0
        %v3582 = vmax.f32 %v1912, 0.0
        %v3583 = vmax.f32 %v2071, 0.0
        %v3584 = vmax.f32 %v2230, 0.0
        %v3585 = vand.u32 2147483647, %v1753
        %v3586 = vand.u32 2147483647, %v1912
        %v3587 = vand.u32 2147483647, %v2071
        %v3588 = vand.u32 2147483647, %v2230
        %v3589 = vsub.f32 0.0, %v3585
        %v3590 = vsub.f32 0.0, %v3586
        %v3591 = vsub.f32 0.0, %v3587
        %v3592 = vsub.f32 0.0, %v3588
        %v3593 = vmul.f32 %v3589, 1.442695
        %v3594 = vpow.pop %v3593
        %v3595 = vmul.f32 %v3590, 1.442695
        %v3596 = vpow.pop %v3595
        %v3597 = vmul.f32 %v3591, 1.442695
        %v3598 = vpow.pop %v3597
        %v3599 = vmul.f32 %v3592, 1.442695
        %v3600 = vpow.pop %v3599
        %v3601 = vadd.f32 %v3594, 1.0
        %v3602 = vadd.f32 %v3596, 1.0
        %v3603 = vadd.f32 %v3598, 1.0
        %v3604 = vadd.f32 %v3600, 1.0
        %v3605 = vlog2.pop %v3601
        %v3606 = vmul.f32 %v3605, 0.6931472
        %v3607 = vlog2.pop %v3602
        %v3608 = vmul.f32 %v3607, 0.6931472
        %v3609 = vlog2.pop %v3603
        %v3610 = vmul.f32 %v3609, 0.6931472
        %v3611 = vlog2.pop %v3604
        %v3612 = vmul.f32 %v3611, 0.6931472
        %v3613 = vadd.f32 %v3581, %v3606
        %v3614 = vadd.f32 %v3582, %v3608
        %v3615 = vadd.f32 %v3583, %v3610
        %v3616 = vadd.f32 %v3584, %v3612
        %v3617 = vadd.f32 %v3613, 0.001
        %v3618 = vadd.f32 %v3614, 0.001
        %v3619 = vadd.f32 %v3615, 0.001
        %v3620 = vadd.f32 %v3616, 0.001
        %v3625 = vrot.slane %v3617, 7
        %v3626 = vrot.slane %v3618, 7
        %v3627 = vrot.slane %v3619, 7
        %v3628 = vrot.slane %v3620, 7
        %v3633 = vsel %vm2807, 1.0, %v3625
        %v3634 = vsel %vm2807, 1.0, %v3626
        %v3635 = vsel %vm2807, 1.0, %v3627
        %v3636 = vsel %vm2807, 1.0, %v3628
        %v3637 = vrot.slane %v3441, 1
        %v3638 = vrot.slane %v3442, 1
        %v3639 = vrot.slane %v3443, 1
        %v3640 = vrot.slane %v3444, 1
        %v3645 = vsel %vm2820, %v3637, 4.0
        %v3646 = vsel %vm2820, %v3638, 4.0
        %v3647 = vsel %vm2820, %v3639, 4.0
        %v3648 = vsel %vm2820, %v3640, 4.0
        %v3649 = vperm.slane %v2256, 1
        %v3650 = vperm.slane %v2256, 5
        %v3651 = vperm.slane %v2257, 1
        %v3652 = vperm.slane %v2257, 5
        %v3657 = vperm.slane %v3649, 1
        %v3658 = vperm.slane %v3650, 1
        %v3659 = vperm.slane %v3651, 1
        %v3660 = vperm.slane %v3652, 1
        %vm3661 = vcmp.ge.f32.partialorder %v3657, %v3441
        %vm3662 = vcmp.ge.f32.partialorder %v3658, %v3442
        %vm3663 = vcmp.ge.f32.partialorder %v3659, %v3443
        %vm3664 = vcmp.ge.f32.partialorder %v3660, %v3444
        %vm3665 = vcmp.lt.f32.partialorder %v3657, %v3645
        %vm3666 = vcmp.lt.f32.partialorder %v3658, %v3646
        %vm3667 = vcmp.lt.f32.partialorder %v3659, %v3647
        %vm3668 = vcmp.lt.f32.partialorder %v3660, %v3648
        %vm3669 = vmand %vm3661, %vm3665
        %vm3670 = vmand %vm3662, %vm3666
        %vm3671 = vmand %vm3663, %vm3667
        %vm3672 = vmand %vm3664, %vm3668
        %v3673 = vsel %vm3669, 1, 0
        %v3674 = vsel %vm3670, 1, 0
        %v3675 = vsel %vm3671, 1, 0
        %v3676 = vsel %vm3672, 1, 0
        %v3677 = vcvt.s32.f32 %v3673
        %v3678 = vcvt.s32.f32 %v3674
        %v3679 = vcvt.s32.f32 %v3675
        %v3680 = vcvt.s32.f32 %v3676
        %v3681 = vmul.f32 %v3677, %v3441
        %v3682 = vmul.f32 %v3678, %v3442
        %v3683 = vmul.f32 %v3679, %v3443
        %v3684 = vmul.f32 %v3680, %v3444
        %v3685 = vrot.slane %v3681, 4
        %v3686 = vadd.f32 %v3681, %v3685
        %v3687 = vrot.slane %v3686, 2
        %v3688 = vadd.f32 %v3686, %v3687
        %v3689 = vrot.slane %v3688, 1
        %v3690 = vadd.f32 %v3688, %v3689
        %v3691 = vrot.slane %v3682, 4
        %v3692 = vadd.f32 %v3682, %v3691
        %v3693 = vrot.slane %v3692, 2
        %v3694 = vadd.f32 %v3692, %v3693
        %v3695 = vrot.slane %v3694, 1
        %v3696 = vadd.f32 %v3694, %v3695
        %v3697 = vrot.slane %v3683, 4
        %v3698 = vadd.f32 %v3683, %v3697
        %v3699 = vrot.slane %v3698, 2
        %v3700 = vadd.f32 %v3698, %v3699
        %v3701 = vrot.slane %v3700, 1
        %v3702 = vadd.f32 %v3700, %v3701
        %v3703 = vrot.slane %v3684, 4
        %v3704 = vadd.f32 %v3684, %v3703
        %v3705 = vrot.slane %v3704, 2
        %v3706 = vadd.f32 %v3704, %v3705
        %v3707 = vrot.slane %v3706, 1
        %v3708 = vadd.f32 %v3706, %v3707
        %v3717 = vrot.slane %v3553, 1
        %v3718 = vrot.slane %v3557, 1
        %v3719 = vsel %vm2820, %v3717, %v3718
        %v3720 = vrot.slane %v3554, 1
        %v3721 = vrot.slane %v3558, 1
        %v3722 = vsel %vm2820, %v3720, %v3721
        %v3723 = vrot.slane %v3555, 1
        %v3724 = vrot.slane %v3559, 1
        %v3725 = vsel %vm2820, %v3723, %v3724
        %v3726 = vrot.slane %v3556, 1
        %v3727 = vrot.slane %v3560, 1
        %v3728 = vsel %vm2820, %v3726, %v3727
        %v3733 = vmul.f32 %v3677, %v3719
        %v3734 = vmul.f32 %v3678, %v3722
        %v3735 = vmul.f32 %v3679, %v3725
        %v3736 = vmul.f32 %v3680, %v3728
        %v3737 = vrot.slane %v3733, 4
        %v3738 = vadd.f32 %v3733, %v3737
        %v3739 = vrot.slane %v3738, 2
        %v3740 = vadd.f32 %v3738, %v3739
        %v3741 = vrot.slane %v3740, 1
        %v3742 = vadd.f32 %v3740, %v3741
        %v3743 = vrot.slane %v3734, 4
        %v3744 = vadd.f32 %v3734, %v3743
        %v3745 = vrot.slane %v3744, 2
        %v3746 = vadd.f32 %v3744, %v3745
        %v3747 = vrot.slane %v3746, 1
        %v3748 = vadd.f32 %v3746, %v3747
        %v3749 = vrot.slane %v3735, 4
        %v3750 = vadd.f32 %v3735, %v3749
        %v3751 = vrot.slane %v3750, 2
        %v3752 = vadd.f32 %v3750, %v3751
        %v3753 = vrot.slane %v3752, 1
        %v3754 = vadd.f32 %v3752, %v3753
        %v3755 = vrot.slane %v3736, 4
        %v3756 = vadd.f32 %v3736, %v3755
        %v3757 = vrot.slane %v3756, 2
        %v3758 = vadd.f32 %v3756, %v3757
        %v3759 = vrot.slane %v3758, 1
        %v3760 = vadd.f32 %v3758, %v3759
        %v3761 = vmul.f32 %v3677, %v3537
        %v3762 = vmul.f32 %v3678, %v3538
        %v3763 = vmul.f32 %v3679, %v3539
        %v3764 = vmul.f32 %v3680, %v3540
        %v3765 = vrot.slane %v3761, 4
        %v3766 = vadd.f32 %v3761, %v3765
        %v3767 = vrot.slane %v3766, 2
        %v3768 = vadd.f32 %v3766, %v3767
        %v3769 = vrot.slane %v3768, 1
        %v3770 = vadd.f32 %v3768, %v3769
        %v3771 = vrot.slane %v3762, 4
        %v3772 = vadd.f32 %v3762, %v3771
        %v3773 = vrot.slane %v3772, 2
        %v3774 = vadd.f32 %v3772, %v3773
        %v3775 = vrot.slane %v3774, 1
        %v3776 = vadd.f32 %v3774, %v3775
        %v3777 = vrot.slane %v3763, 4
        %v3778 = vadd.f32 %v3763, %v3777
        %v3779 = vrot.slane %v3778, 2
        %v3780 = vadd.f32 %v3778, %v3779
        %v3781 = vrot.slane %v3780, 1
        %v3782 = vadd.f32 %v3780, %v3781
        %v3783 = vrot.slane %v3764, 4
        %v3784 = vadd.f32 %v3764, %v3783
        %v3785 = vrot.slane %v3784, 2
        %v3786 = vadd.f32 %v3784, %v3785
        %v3787 = vrot.slane %v3786, 1
        %v3788 = vadd.f32 %v3786, %v3787
        %v3797 = vrot.slane %v3573, 1
        %v3798 = vrot.slane %v3577, 1
        %v3799 = vsel %vm2820, %v3797, %v3798
        %v3800 = vrot.slane %v3574, 1
        %v3801 = vrot.slane %v3578, 1
        %v3802 = vsel %vm2820, %v3800, %v3801
        %v3803 = vrot.slane %v3575, 1
        %v3804 = vrot.slane %v3579, 1
        %v3805 = vsel %vm2820, %v3803, %v3804
        %v3806 = vrot.slane %v3576, 1
        %v3807 = vrot.slane %v3580, 1
        %v3808 = vsel %vm2820, %v3806, %v3807
        %v3813 = vmul.f32 %v3677, %v3799
        %v3814 = vmul.f32 %v3678, %v3802
        %v3815 = vmul.f32 %v3679, %v3805
        %v3816 = vmul.f32 %v3680, %v3808
        %v3817 = vrot.slane %v3813, 4
        %v3818 = vadd.f32 %v3813, %v3817
        %v3819 = vrot.slane %v3818, 2
        %v3820 = vadd.f32 %v3818, %v3819
        %v3821 = vrot.slane %v3820, 1
        %v3822 = vadd.f32 %v3820, %v3821
        %v3823 = vrot.slane %v3814, 4
        %v3824 = vadd.f32 %v3814, %v3823
        %v3825 = vrot.slane %v3824, 2
        %v3826 = vadd.f32 %v3824, %v3825
        %v3827 = vrot.slane %v3826, 1
        %v3828 = vadd.f32 %v3826, %v3827
        %v3829 = vrot.slane %v3815, 4
        %v3830 = vadd.f32 %v3815, %v3829
        %v3831 = vrot.slane %v3830, 2
        %v3832 = vadd.f32 %v3830, %v3831
        %v3833 = vrot.slane %v3832, 1
        %v3834 = vadd.f32 %v3832, %v3833
        %v3835 = vrot.slane %v3816, 4
        %v3836 = vadd.f32 %v3816, %v3835
        %v3837 = vrot.slane %v3836, 2
        %v3838 = vadd.f32 %v3836, %v3837
        %v3839 = vrot.slane %v3838, 1
        %v3840 = vadd.f32 %v3838, %v3839
        %v3841 = vmul.f32 %v3677, %v3633
        %v3842 = vmul.f32 %v3678, %v3634
        %v3843 = vmul.f32 %v3679, %v3635
        %v3844 = vmul.f32 %v3680, %v3636
        %v3845 = vrot.slane %v3841, 4
        %v3846 = vadd.f32 %v3841, %v3845
        %v3847 = vrot.slane %v3846, 2
        %v3848 = vadd.f32 %v3846, %v3847
        %v3849 = vrot.slane %v3848, 1
        %v3850 = vadd.f32 %v3848, %v3849
        %v3851 = vrot.slane %v3842, 4
        %v3852 = vadd.f32 %v3842, %v3851
        %v3853 = vrot.slane %v3852, 2
        %v3854 = vadd.f32 %v3852, %v3853
        %v3855 = vrot.slane %v3854, 1
        %v3856 = vadd.f32 %v3854, %v3855
        %v3857 = vrot.slane %v3843, 4
        %v3858 = vadd.f32 %v3843, %v3857
        %v3859 = vrot.slane %v3858, 2
        %v3860 = vadd.f32 %v3858, %v3859
        %v3861 = vrot.slane %v3860, 1
        %v3862 = vadd.f32 %v3860, %v3861
        %v3863 = vrot.slane %v3844, 4
        %v3864 = vadd.f32 %v3844, %v3863
        %v3865 = vrot.slane %v3864, 2
        %v3866 = vadd.f32 %v3864, %v3865
        %v3867 = vrot.slane %v3866, 1
        %v3868 = vadd.f32 %v3866, %v3867
        %v3873 = vrot.slane %v3633, 1
        %v3874 = vsel %vm2820, %v3873, %v3053
        %v3875 = vrot.slane %v3634, 1
        %v3876 = vsel %vm2820, %v3875, %v3053
        %v3877 = vrot.slane %v3635, 1
        %v3878 = vsel %vm2820, %v3877, %v3053
        %v3879 = vrot.slane %v3636, 1
        %v3880 = vsel %vm2820, %v3879, %v3053
        %v3885 = vmul.f32 %v3677, %v3874
        %v3886 = vmul.f32 %v3678, %v3876
        %v3887 = vmul.f32 %v3679, %v3878
        %v3888 = vmul.f32 %v3680, %v3880
        %v3889 = vrot.slane %v3885, 4
        %v3890 = vadd.f32 %v3885, %v3889
        %v3891 = vrot.slane %v3890, 2
        %v3892 = vadd.f32 %v3890, %v3891
        %v3893 = vrot.slane %v3892, 1
        %v3894 = vadd.f32 %v3892, %v3893
        %v3895 = vrot.slane %v3886, 4
        %v3896 = vadd.f32 %v3886, %v3895
        %v3897 = vrot.slane %v3896, 2
        %v3898 = vadd.f32 %v3896, %v3897
        %v3899 = vrot.slane %v3898, 1
        %v3900 = vadd.f32 %v3898, %v3899
        %v3901 = vrot.slane %v3887, 4
        %v3902 = vadd.f32 %v3887, %v3901
        %v3903 = vrot.slane %v3902, 2
        %v3904 = vadd.f32 %v3902, %v3903
        %v3905 = vrot.slane %v3904, 1
        %v3906 = vadd.f32 %v3904, %v3905
        %v3907 = vrot.slane %v3888, 4
        %v3908 = vadd.f32 %v3888, %v3907
        %v3909 = vrot.slane %v3908, 2
        %v3910 = vadd.f32 %v3908, %v3909
        %v3911 = vrot.slane %v3910, 1
        %v3912 = vadd.f32 %v3910, %v3911
        %v3913 = vrot.slane %v1756, 4
        %v3914 = vmax.f32 %v1756, %v3913
        %v3915 = vrot.slane %v3914, 2
        %v3916 = vmax.f32 %v3914, %v3915
        %v3917 = vrot.slane %v3916, 1
        %v3918 = vmax.f32 %v3916, %v3917
        %v3919 = vrot.slane %v1915, 4
        %v3920 = vmax.f32 %v1915, %v3919
        %v3921 = vrot.slane %v3920, 2
        %v3922 = vmax.f32 %v3920, %v3921
        %v3923 = vrot.slane %v3922, 1
        %v3924 = vmax.f32 %v3922, %v3923
        %v3925 = vrot.slane %v2074, 4
        %v3926 = vmax.f32 %v2074, %v3925
        %v3927 = vrot.slane %v3926, 2
        %v3928 = vmax.f32 %v3926, %v3927
        %v3929 = vrot.slane %v3928, 1
        %v3930 = vmax.f32 %v3928, %v3929
        %v3931 = vrot.slane %v2233, 4
        %v3932 = vmax.f32 %v2233, %v3931
        %v3933 = vrot.slane %v3932, 2
        %v3934 = vmax.f32 %v3932, %v3933
        %v3935 = vrot.slane %v3934, 1
        %v3936 = vmax.f32 %v3934, %v3935
        %v3937 = vsub.f32 %v1756, %v3918
        %v3938 = vsub.f32 %v1915, %v3924
        %v3939 = vsub.f32 %v2074, %v3930
        %v3940 = vsub.f32 %v2233, %v3936
        %v3941 = vmul.f32 %v3937, 1.442695
        %v3942 = vpow.pop %v3941
        %v3943 = vmul.f32 %v3938, 1.442695
        %v3944 = vpow.pop %v3943
        %v3945 = vmul.f32 %v3939, 1.442695
        %v3946 = vpow.pop %v3945
        %v3947 = vmul.f32 %v3940, 1.442695
        %v3948 = vpow.pop %v3947
        %v3949 = vrot.slane %v3942, 4
        %v3950 = vadd.f32 %v3942, %v3949
        %v3951 = vrot.slane %v3950, 2
        %v3952 = vadd.f32 %v3950, %v3951
        %v3953 = vrot.slane %v3952, 1
        %v3954 = vadd.f32 %v3952, %v3953
        %v3955 = vrot.slane %v3944, 4
        %v3956 = vadd.f32 %v3944, %v3955
        %v3957 = vrot.slane %v3956, 2
        %v3958 = vadd.f32 %v3956, %v3957
        %v3959 = vrot.slane %v3958, 1
        %v3960 = vadd.f32 %v3958, %v3959
        %v3961 = vrot.slane %v3946, 4
        %v3962 = vadd.f32 %v3946, %v3961
        %v3963 = vrot.slane %v3962, 2
        %v3964 = vadd.f32 %v3962, %v3963
        %v3965 = vrot.slane %v3964, 1
        %v3966 = vadd.f32 %v3964, %v3965
        %v3967 = vrot.slane %v3948, 4
        %v3968 = vadd.f32 %v3948, %v3967
        %v3969 = vrot.slane %v3968, 2
        %v3970 = vadd.f32 %v3968, %v3969
        %v3971 = vrot.slane %v3970, 1
        %v3972 = vadd.f32 %v3970, %v3971
        %v3973 = vrcp.pop %v3954
        %v3974 = vmul.f32 %v3954, %v3973
        %v3975 = vsub.f32 1.0, %v3974
        %v3976 = vmul.f32 %v3973, %v3975
        %v3977 = vadd.f32 %v3973, %v3976
        %vm3978 = vweird.f32 %v3954
        %vm3979 = vweird.f32 %v3973
        %vm3980 = vmor %vm3978, %vm3979
        %v3981 = vsel %vm3980, %v3973, %v3977
        %v3982 = vand.u32 2147483647, %v3954
        %vm3983 = vcmp.eq.f32.partialorder %v3982, 8.507059e+37
        %v3984 = vand.u32 %v3954, 2147483648
        %v3985 = vor.u32 1.1754944e-38, %v3984
        %v3986 = vsel %vm3983, %v3985, %v3981
        %v3987 = vmul.f32 %v3942, %v3986
        %v3988 = vrcp.pop %v3960
        %v3989 = vmul.f32 %v3960, %v3988
        %v3990 = vsub.f32 1.0, %v3989
        %v3991 = vmul.f32 %v3988, %v3990
        %v3992 = vadd.f32 %v3988, %v3991
        %vm3993 = vweird.f32 %v3960
        %vm3994 = vweird.f32 %v3988
        %vm3995 = vmor %vm3993, %vm3994
        %v3996 = vsel %vm3995, %v3988, %v3992
        %v3997 = vand.u32 2147483647, %v3960
        %vm3998 = vcmp.eq.f32.partialorder %v3997, 8.507059e+37
        %v3999 = vand.u32 %v3960, 2147483648
        %v4000 = vor.u32 1.1754944e-38, %v3999
        %v4001 = vsel %vm3998, %v4000, %v3996
        %v4002 = vmul.f32 %v3944, %v4001
        %v4003 = vrcp.pop %v3966
        %v4004 = vmul.f32 %v3966, %v4003
        %v4005 = vsub.f32 1.0, %v4004
        %v4006 = vmul.f32 %v4003, %v4005
        %v4007 = vadd.f32 %v4003, %v4006
        %vm4008 = vweird.f32 %v3966
        %vm4009 = vweird.f32 %v4003
        %vm4010 = vmor %vm4008, %vm4009
        %v4011 = vsel %vm4010, %v4003, %v4007
        %v4012 = vand.u32 2147483647, %v3966
        %vm4013 = vcmp.eq.f32.partialorder %v4012, 8.507059e+37
        %v4014 = vand.u32 %v3966, 2147483648
        %v4015 = vor.u32 1.1754944e-38, %v4014
        %v4016 = vsel %vm4013, %v4015, %v4011
        %v4017 = vmul.f32 %v3946, %v4016
        %v4018 = vrcp.pop %v3972
        %v4019 = vmul.f32 %v3972, %v4018
        %v4020 = vsub.f32 1.0, %v4019
        %v4021 = vmul.f32 %v4018, %v4020
        %v4022 = vadd.f32 %v4018, %v4021
        %vm4023 = vweird.f32 %v3972
        %vm4024 = vweird.f32 %v4018
        %vm4025 = vmor %vm4023, %vm4024
        %v4026 = vsel %vm4025, %v4018, %v4022
        %v4027 = vand.u32 2147483647, %v3972
        %vm4028 = vcmp.eq.f32.partialorder %v4027, 8.507059e+37
        %v4029 = vand.u32 %v3972, 2147483648
        %v4030 = vor.u32 1.1754944e-38, %v4029
        %v4031 = vsel %vm4028, %v4030, %v4026
        %v4032 = vmul.f32 %v3948, %v4031
        %v4033 = vmul.f32 %v3987, 0.992
        %v4034 = vmul.f32 %v4002, 0.992
        %v4035 = vmul.f32 %v4017, 0.992
        %v4036 = vmul.f32 %v4032, 0.992
        %v4037 = vadd.f32 %v4033, 0.001
        %v4038 = vadd.f32 %v4034, 0.001
        %v4039 = vadd.f32 %v4035, 0.001
        %v4040 = vadd.f32 %v4036, 0.001
        %v4041 = vrot.slane %v1759, 4
        %v4042 = vmax.f32 %v1759, %v4041
        %v4043 = vrot.slane %v4042, 2
        %v4044 = vmax.f32 %v4042, %v4043
        %v4045 = vrot.slane %v4044, 1
        %v4046 = vmax.f32 %v4044, %v4045
        %v4047 = vrot.slane %v1918, 4
        %v4048 = vmax.f32 %v1918, %v4047
        %v4049 = vrot.slane %v4048, 2
        %v4050 = vmax.f32 %v4048, %v4049
        %v4051 = vrot.slane %v4050, 1
        %v4052 = vmax.f32 %v4050, %v4051
        %v4053 = vrot.slane %v2077, 4
        %v4054 = vmax.f32 %v2077, %v4053
        %v4055 = vrot.slane %v4054, 2
        %v4056 = vmax.f32 %v4054, %v4055
        %v4057 = vrot.slane %v4056, 1
        %v4058 = vmax.f32 %v4056, %v4057
        %v4059 = vrot.slane %v2236, 4
        %v4060 = vmax.f32 %v2236, %v4059
        %v4061 = vrot.slane %v4060, 2
        %v4062 = vmax.f32 %v4060, %v4061
        %v4063 = vrot.slane %v4062, 1
        %v4064 = vmax.f32 %v4062, %v4063
        %v4065 = vsub.f32 %v1759, %v4046
        %v4066 = vsub.f32 %v1918, %v4052
        %v4067 = vsub.f32 %v2077, %v4058
        %v4068 = vsub.f32 %v2236, %v4064
        %v4069 = vmul.f32 %v4065, 1.442695
        %v4070 = vpow.pop %v4069
        %v4071 = vmul.f32 %v4066, 1.442695
        %v4072 = vpow.pop %v4071
        %v4073 = vmul.f32 %v4067, 1.442695
        %v4074 = vpow.pop %v4073
        %v4075 = vmul.f32 %v4068, 1.442695
        %v4076 = vpow.pop %v4075
        %v4077 = vrot.slane %v4070, 4
        %v4078 = vadd.f32 %v4070, %v4077
        %v4079 = vrot.slane %v4078, 2
        %v4080 = vadd.f32 %v4078, %v4079
        %v4081 = vrot.slane %v4080, 1
        %v4082 = vadd.f32 %v4080, %v4081
        %v4083 = vrot.slane %v4072, 4
        %v4084 = vadd.f32 %v4072, %v4083
        %v4085 = vrot.slane %v4084, 2
        %v4086 = vadd.f32 %v4084, %v4085
        %v4087 = vrot.slane %v4086, 1
        %v4088 = vadd.f32 %v4086, %v4087
        %v4089 = vrot.slane %v4074, 4
        %v4090 = vadd.f32 %v4074, %v4089
        %v4091 = vrot.slane %v4090, 2
        %v4092 = vadd.f32 %v4090, %v4091
        %v4093 = vrot.slane %v4092, 1
        %v4094 = vadd.f32 %v4092, %v4093
        %v4095 = vrot.slane %v4076, 4
        %v4096 = vadd.f32 %v4076, %v4095
        %v4097 = vrot.slane %v4096, 2
        %v4098 = vadd.f32 %v4096, %v4097
        %v4099 = vrot.slane %v4098, 1
        %v4100 = vadd.f32 %v4098, %v4099
        %v4101 = vrcp.pop %v4082
        %v4102 = vmul.f32 %v4082, %v4101
        %v4103 = vsub.f32 1.0, %v4102
        %v4104 = vmul.f32 %v4101, %v4103
        %v4105 = vadd.f32 %v4101, %v4104
        %vm4106 = vweird.f32 %v4082
        %vm4107 = vweird.f32 %v4101
        %vm4108 = vmor %vm4106, %vm4107
        %v4109 = vsel %vm4108, %v4101, %v4105
        %v4110 = vand.u32 2147483647, %v4082
        %vm4111 = vcmp.eq.f32.partialorder %v4110, 8.507059e+37
        %v4112 = vand.u32 %v4082, 2147483648
        %v4113 = vor.u32 1.1754944e-38, %v4112
        %v4114 = vsel %vm4111, %v4113, %v4109
        %v4115 = vmul.f32 %v4070, %v4114
        %v4116 = vrcp.pop %v4088
        %v4117 = vmul.f32 %v4088, %v4116
        %v4118 = vsub.f32 1.0, %v4117
        %v4119 = vmul.f32 %v4116, %v4118
        %v4120 = vadd.f32 %v4116, %v4119
        %vm4121 = vweird.f32 %v4088
        %vm4122 = vweird.f32 %v4116
        %vm4123 = vmor %vm4121, %vm4122
        %v4124 = vsel %vm4123, %v4116, %v4120
        %v4125 = vand.u32 2147483647, %v4088
        %vm4126 = vcmp.eq.f32.partialorder %v4125, 8.507059e+37
        %v4127 = vand.u32 %v4088, 2147483648
        %v4128 = vor.u32 1.1754944e-38, %v4127
        %v4129 = vsel %vm4126, %v4128, %v4124
        %v4130 = vmul.f32 %v4072, %v4129
        %v4131 = vrcp.pop %v4094
        %v4132 = vmul.f32 %v4094, %v4131
        %v4133 = vsub.f32 1.0, %v4132
        %v4134 = vmul.f32 %v4131, %v4133
        %v4135 = vadd.f32 %v4131, %v4134
        %vm4136 = vweird.f32 %v4094
        %vm4137 = vweird.f32 %v4131
        %vm4138 = vmor %vm4136, %vm4137
        %v4139 = vsel %vm4138, %v4131, %v4135
        %v4140 = vand.u32 2147483647, %v4094
        %vm4141 = vcmp.eq.f32.partialorder %v4140, 8.507059e+37
        %v4142 = vand.u32 %v4094, 2147483648
        %v4143 = vor.u32 1.1754944e-38, %v4142
        %v4144 = vsel %vm4141, %v4143, %v4139
        %v4145 = vmul.f32 %v4074, %v4144
        %v4146 = vrcp.pop %v4100
        %v4147 = vmul.f32 %v4100, %v4146
        %v4148 = vsub.f32 1.0, %v4147
        %v4149 = vmul.f32 %v4146, %v4148
        %v4150 = vadd.f32 %v4146, %v4149
        %vm4151 = vweird.f32 %v4100
        %vm4152 = vweird.f32 %v4146
        %vm4153 = vmor %vm4151, %vm4152
        %v4154 = vsel %vm4153, %v4146, %v4150
        %v4155 = vand.u32 2147483647, %v4100
        %vm4156 = vcmp.eq.f32.partialorder %v4155, 8.507059e+37
        %v4157 = vand.u32 %v4100, 2147483648
        %v4158 = vor.u32 1.1754944e-38, %v4157
        %v4159 = vsel %vm4156, %v4158, %v4154
        %v4160 = vmul.f32 %v4076, %v4159
        %v4161 = vmul.f32 %v4115, 0.992
        %v4162 = vmul.f32 %v4130, 0.992
        %v4163 = vmul.f32 %v4145, 0.992
        %v4164 = vmul.f32 %v4160, 0.992
        %v4165 = vadd.f32 %v4161, 0.001
        %v4166 = vadd.f32 %v4162, 0.001
        %v4167 = vadd.f32 %v4163, 0.001
        %v4168 = vadd.f32 %v4164, 0.001
        %4169 = vmatpush.msra.mxu0 0.0
        %4170 = vmatpush.msra.mxu0 0.0
        %4171 = vmatpush.msra.mxu0 0.0
        %4172 = vmatpush.msra.mxu0 0.0
        %4173 = vmatpush.msra.mxu0 0.0
        %4174 = vmatpush.msra.mxu0 0.0
        %4175 = vmatpush.msra.mxu0 0.0
        %4176 = vmatpush.msra.mxu0 0.0
        %4177 = vmatpush.msra.mxu0 0.0
        %4178 = vmatpush.msra.mxu0 0.0
        %4179 = vmatpush.msra.mxu0 0.0
        %4180 = vmatpush.msra.mxu0 0.0
        %4181 = vmatpush.msra.mxu0 0.0
        %4182 = vmatpush.msra.mxu0 0.0
        %4183 = vmatpush.msra.mxu0 0.0
        %4184 = vmatpush.msra.mxu0 %v4037
        %4185 = vmatmul.f32.gmra.mxu0 %v2518
        %v4186 = vpop.f32.mrf.mxu0
        %v4187 = vadd.f32 0.0, %v4186
        %4188 = vmatmul.f32.gmra.mxu0 %v2521
        %v4189 = vpop.f32.mrf.mxu0
        %4190 = vdwg.mxu0
        %4191 = vmatpush.msra.mxu0 0.0
        %4192 = vmatpush.msra.mxu0 0.0
        %4193 = vmatpush.msra.mxu0 0.0
        %4194 = vmatpush.msra.mxu0 0.0
        %4195 = vmatpush.msra.mxu0 0.0
        %4196 = vmatpush.msra.mxu0 0.0
        %4197 = vmatpush.msra.mxu0 0.0
        %4198 = vmatpush.msra.mxu0 0.0
        %4199 = vmatpush.msra.mxu0 0.0
        %4200 = vmatpush.msra.mxu0 0.0
        %4201 = vmatpush.msra.mxu0 0.0
        %4202 = vmatpush.msra.mxu0 0.0
        %4203 = vmatpush.msra.mxu0 0.0
        %4204 = vmatpush.msra.mxu0 0.0
        %4205 = vmatpush.msra.mxu0 0.0
        %4206 = vmatpush.msra.mxu0 %v4038
        %4207 = vmatmul.f32.gmra.mxu0 %v2518
        %v4208 = vpop.f32.mrf.mxu0
        %v4209 = vadd.f32 0.0, %v4208
        %4210 = vmatmul.f32.gmra.mxu0 %v2521
        %v4211 = vpop.f32.mrf.mxu0
        %4212 = vdwg.mxu0
        %4213 = vmatpush.msra.mxu0 0.0
        %4214 = vmatpush.msra.mxu0 0.0
        %4215 = vmatpush.msra.mxu0 0.0
        %4216 = vmatpush.msra.mxu0 0.0
        %4217 = vmatpush.msra.mxu0 0.0
        %4218 = vmatpush.msra.mxu0 0.0
        %4219 = vmatpush.msra.mxu0 0.0
        %4220 = vmatpush.msra.mxu0 0.0
        %4221 = vmatpush.msra.mxu0 0.0
        %4222 = vmatpush.msra.mxu0 0.0
        %4223 = vmatpush.msra.mxu0 0.0
        %4224 = vmatpush.msra.mxu0 0.0
        %4225 = vmatpush.msra.mxu0 0.0
        %4226 = vmatpush.msra.mxu0 0.0
        %4227 = vmatpush.msra.mxu0 0.0
        %4228 = vmatpush.msra.mxu0 %v4039
        %4229 = vmatmul.f32.gmra.mxu0 %v2518
        %v4230 = vpop.f32.mrf.mxu0
        %v4231 = vadd.f32 0.0, %v4230
        %4232 = vmatmul.f32.gmra.mxu0 %v2521
        %v4233 = vpop.f32.mrf.mxu0
        %4234 = vdwg.mxu0
        %4235 = vmatpush.msra.mxu0 0.0
        %4236 = vmatpush.msra.mxu0 0.0
        %4237 = vmatpush.msra.mxu0 0.0
        %4238 = vmatpush.msra.mxu0 0.0
        %4239 = vmatpush.msra.mxu0 0.0
        %4240 = vmatpush.msra.mxu0 0.0
        %4241 = vmatpush.msra.mxu0 0.0
        %4242 = vmatpush.msra.mxu0 0.0
        %4243 = vmatpush.msra.mxu0 0.0
        %4244 = vmatpush.msra.mxu0 0.0
        %4245 = vmatpush.msra.mxu0 0.0
        %4246 = vmatpush.msra.mxu0 0.0
        %4247 = vmatpush.msra.mxu0 0.0
        %4248 = vmatpush.msra.mxu0 0.0
        %4249 = vmatpush.msra.mxu0 0.0
        %4250 = vmatpush.msra.mxu0 %v4040
        %4251 = vmatmul.f32.gmra.mxu0 %v2518
        %v4252 = vpop.f32.mrf.mxu0
        %v4253 = vadd.f32 0.0, %v4252
        %4254 = vmatmul.f32.gmra.mxu0 %v2521
        %v4255 = vpop.f32.mrf.mxu0
        %4256 = vdwg.mxu0
        %v4257 = vmul.f32 %v4187, 6.0
        %v4258 = vmul.f32 %v4209, 6.0
        %v4259 = vmul.f32 %v4231, 6.0
        %v4260 = vmul.f32 %v4253, 6.0
        %v4261 = vadd.f32 %v4257, -3.0
        %v4262 = vadd.f32 %v4258, -3.0
        %v4263 = vadd.f32 %v4259, -3.0
        %v4264 = vadd.f32 %v4260, -3.0
        %4265 = vmatpush.msra.mxu0 0.0
        %4266 = vmatpush.msra.mxu0 0.0
        %4267 = vmatpush.msra.mxu0 0.0
        %4268 = vmatpush.msra.mxu0 0.0
        %4269 = vmatpush.msra.mxu0 0.0
        %4270 = vmatpush.msra.mxu0 0.0
        %4271 = vmatpush.msra.mxu0 0.0
        %4272 = vmatpush.msra.mxu0 0.0
        %4273 = vmatpush.msra.mxu0 0.0
        %4274 = vmatpush.msra.mxu0 0.0
        %4275 = vmatpush.msra.mxu0 0.0
        %4276 = vmatpush.msra.mxu0 0.0
        %4277 = vmatpush.msra.mxu0 0.0
        %4278 = vmatpush.msra.mxu0 0.0
        %4279 = vmatpush.msra.mxu0 0.0
        %4280 = vmatpush.msra.mxu0 %v4165
        %4281 = vmatmul.f32.gmra.mxu0 %v2518
        %v4282 = vpop.f32.mrf.mxu0
        %v4283 = vadd.f32 0.0, %v4282
        %4284 = vmatmul.f32.gmra.mxu0 %v2521
        %v4285 = vpop.f32.mrf.mxu0
        %4286 = vdwg.mxu0
        %4287 = vmatpush.msra.mxu0 0.0
        %4288 = vmatpush.msra.mxu0 0.0
        %4289 = vmatpush.msra.mxu0 0.0
        %4290 = vmatpush.msra.mxu0 0.0
        %4291 = vmatpush.msra.mxu0 0.0
        %4292 = vmatpush.msra.mxu0 0.0
        %4293 = vmatpush.msra.mxu0 0.0
        %4294 = vmatpush.msra.mxu0 0.0
        %4295 = vmatpush.msra.mxu0 0.0
        %4296 = vmatpush.msra.mxu0 0.0
        %4297 = vmatpush.msra.mxu0 0.0
        %4298 = vmatpush.msra.mxu0 0.0
        %4299 = vmatpush.msra.mxu0 0.0
        %4300 = vmatpush.msra.mxu0 0.0
        %4301 = vmatpush.msra.mxu0 0.0
        %4302 = vmatpush.msra.mxu0 %v4166
        %4303 = vmatmul.f32.gmra.mxu0 %v2518
        %v4304 = vpop.f32.mrf.mxu0
        %v4305 = vadd.f32 0.0, %v4304
        %4306 = vmatmul.f32.gmra.mxu0 %v2521
        %v4307 = vpop.f32.mrf.mxu0
        %4308 = vdwg.mxu0
        %4309 = vmatpush.msra.mxu0 0.0
        %4310 = vmatpush.msra.mxu0 0.0
        %4311 = vmatpush.msra.mxu0 0.0
        %4312 = vmatpush.msra.mxu0 0.0
        %4313 = vmatpush.msra.mxu0 0.0
        %4314 = vmatpush.msra.mxu0 0.0
        %4315 = vmatpush.msra.mxu0 0.0
        %4316 = vmatpush.msra.mxu0 0.0
        %4317 = vmatpush.msra.mxu0 0.0
        %4318 = vmatpush.msra.mxu0 0.0
        %4319 = vmatpush.msra.mxu0 0.0
        %4320 = vmatpush.msra.mxu0 0.0
        %4321 = vmatpush.msra.mxu0 0.0
        %4322 = vmatpush.msra.mxu0 0.0
        %4323 = vmatpush.msra.mxu0 0.0
        %4324 = vmatpush.msra.mxu0 %v4167
        %4325 = vmatmul.f32.gmra.mxu0 %v2518
        %v4326 = vpop.f32.mrf.mxu0
        %v4327 = vadd.f32 0.0, %v4326
        %4328 = vmatmul.f32.gmra.mxu0 %v2521
        %v4329 = vpop.f32.mrf.mxu0
        %4330 = vdwg.mxu0
        %4331 = vmatpush.msra.mxu0 0.0
        %4332 = vmatpush.msra.mxu0 0.0
        %4333 = vmatpush.msra.mxu0 0.0
        %4334 = vmatpush.msra.mxu0 0.0
        %4335 = vmatpush.msra.mxu0 0.0
        %4336 = vmatpush.msra.mxu0 0.0
        %4337 = vmatpush.msra.mxu0 0.0
        %4338 = vmatpush.msra.mxu0 0.0
        %4339 = vmatpush.msra.mxu0 0.0
        %4340 = vmatpush.msra.mxu0 0.0
        %4341 = vmatpush.msra.mxu0 0.0
        %4342 = vmatpush.msra.mxu0 0.0
        %4343 = vmatpush.msra.mxu0 0.0
        %4344 = vmatpush.msra.mxu0 0.0
        %4345 = vmatpush.msra.mxu0 0.0
        %4346 = vmatpush.msra.mxu0 %v4168
        %4347 = vmatmul.f32.gmra.mxu0 %v2518
        %v4348 = vpop.f32.mrf.mxu0
        %v4349 = vadd.f32 0.0, %v4348
        %4350 = vmatmul.f32.gmra.mxu0 %v2521
        %v4351 = vpop.f32.mrf.mxu0
        %4352 = vdwg.mxu0
        %v4353 = vmul.f32 %v4283, 6.0
        %v4354 = vmul.f32 %v4305, 6.0
        %v4355 = vmul.f32 %v4327, 6.0
        %v4356 = vmul.f32 %v4349, 6.0
        %v4357 = vadd.f32 %v4353, -3.0
        %v4358 = vadd.f32 %v4354, -3.0
        %v4359 = vadd.f32 %v4355, -3.0
        %v4360 = vadd.f32 %v4356, -3.0
        %v4365 = vrot.slane %v4261, 7
        %v4366 = vrot.slane %v4262, 7
        %v4367 = vrot.slane %v4263, 7
        %v4368 = vrot.slane %v4264, 7
        %v4373 = vsub.f32 %v4261, %v4365
        %v4374 = vsub.f32 %v4262, %v4366
        %v4375 = vsub.f32 %v4263, %v4367
        %v4376 = vsub.f32 %v4264, %v4368
        %v4377 = vsub.f32 3.0, %v4365
        %v4378 = vsub.f32 3.0, %v4366
        %v4379 = vsub.f32 3.0, %v4367
        %v4380 = vsub.f32 3.0, %v4368
        %v4385 = vrot.slane %v4357, 7
        %v4386 = vrot.slane %v4358, 7
        %v4387 = vrot.slane %v4359, 7
        %v4388 = vrot.slane %v4360, 7
        %v4393 = vsub.f32 %v4357, %v4385
        %v4394 = vsub.f32 %v4358, %v4386
        %v4395 = vsub.f32 %v4359, %v4387
        %v4396 = vsub.f32 %v4360, %v4388
        %v4397 = vsub.f32 3.0, %v4385
        %v4398 = vsub.f32 3.0, %v4386
        %v4399 = vsub.f32 3.0, %v4387
        %v4400 = vsub.f32 3.0, %v4388
        %v4401 = vmax.f32 %v1762, 0.0
        %v4402 = vmax.f32 %v1921, 0.0
        %v4403 = vmax.f32 %v2080, 0.0
        %v4404 = vmax.f32 %v2239, 0.0
        %v4405 = vand.u32 2147483647, %v1762
        %v4406 = vand.u32 2147483647, %v1921
        %v4407 = vand.u32 2147483647, %v2080
        %v4408 = vand.u32 2147483647, %v2239
        %v4409 = vsub.f32 0.0, %v4405
        %v4410 = vsub.f32 0.0, %v4406
        %v4411 = vsub.f32 0.0, %v4407
        %v4412 = vsub.f32 0.0, %v4408
        %v4413 = vmul.f32 %v4409, 1.442695
        %v4414 = vpow.pop %v4413
        %v4415 = vmul.f32 %v4410, 1.442695
        %v4416 = vpow.pop %v4415
        %v4417 = vmul.f32 %v4411, 1.442695
        %v4418 = vpow.pop %v4417
        %v4419 = vmul.f32 %v4412, 1.442695
        %v4420 = vpow.pop %v4419
        %v4421 = vadd.f32 %v4414, 1.0
        %v4422 = vadd.f32 %v4416, 1.0
        %v4423 = vadd.f32 %v4418, 1.0
        %v4424 = vadd.f32 %v4420, 1.0
        %v4425 = vlog2.pop %v4421
        %v4426 = vmul.f32 %v4425, 0.6931472
        %v4427 = vlog2.pop %v4422
        %v4428 = vmul.f32 %v4427, 0.6931472
        %v4429 = vlog2.pop %v4423
        %v4430 = vmul.f32 %v4429, 0.6931472
        %v4431 = vlog2.pop %v4424
        %v4432 = vmul.f32 %v4431, 0.6931472
        %v4433 = vadd.f32 %v4401, %v4426
        %v4434 = vadd.f32 %v4402, %v4428
        %v4435 = vadd.f32 %v4403, %v4430
        %v4436 = vadd.f32 %v4404, %v4432
        %v4437 = vadd.f32 %v4433, 0.001
        %v4438 = vadd.f32 %v4434, 0.001
        %v4439 = vadd.f32 %v4435, 0.001
        %v4440 = vadd.f32 %v4436, 0.001
        %v4445 = vrot.slane %v4437, 7
        %v4446 = vrot.slane %v4438, 7
        %v4447 = vrot.slane %v4439, 7
        %v4448 = vrot.slane %v4440, 7
        %v4453 = vsel %vm2807, 1.0, %v4445
        %v4454 = vsel %vm2807, 1.0, %v4446
        %v4455 = vsel %vm2807, 1.0, %v4447
        %v4456 = vsel %vm2807, 1.0, %v4448
        %v4457 = vrot.slane %v4261, 1
        %v4458 = vrot.slane %v4262, 1
        %v4459 = vrot.slane %v4263, 1
        %v4460 = vrot.slane %v4264, 1
        %v4465 = vsel %vm2820, %v4457, 4.0
        %v4466 = vsel %vm2820, %v4458, 4.0
        %v4467 = vsel %vm2820, %v4459, 4.0
        %v4468 = vsel %vm2820, %v4460, 4.0
        %v4469 = vperm.slane %v2256, 2
        %v4470 = vperm.slane %v2256, 6
        %v4471 = vperm.slane %v2257, 2
        %v4472 = vperm.slane %v2257, 6
        %v4477 = vperm.slane %v4469, 2
        %v4478 = vperm.slane %v4470, 2
        %v4479 = vperm.slane %v4471, 2
        %v4480 = vperm.slane %v4472, 2
        %vm4481 = vcmp.ge.f32.partialorder %v4477, %v4261
        %vm4482 = vcmp.ge.f32.partialorder %v4478, %v4262
        %vm4483 = vcmp.ge.f32.partialorder %v4479, %v4263
        %vm4484 = vcmp.ge.f32.partialorder %v4480, %v4264
        %vm4485 = vcmp.lt.f32.partialorder %v4477, %v4465
        %vm4486 = vcmp.lt.f32.partialorder %v4478, %v4466
        %vm4487 = vcmp.lt.f32.partialorder %v4479, %v4467
        %vm4488 = vcmp.lt.f32.partialorder %v4480, %v4468
        %vm4489 = vmand %vm4481, %vm4485
        %vm4490 = vmand %vm4482, %vm4486
        %vm4491 = vmand %vm4483, %vm4487
        %vm4492 = vmand %vm4484, %vm4488
        %v4493 = vsel %vm4489, 1, 0
        %v4494 = vsel %vm4490, 1, 0
        %v4495 = vsel %vm4491, 1, 0
        %v4496 = vsel %vm4492, 1, 0
        %v4497 = vcvt.s32.f32 %v4493
        %v4498 = vcvt.s32.f32 %v4494
        %v4499 = vcvt.s32.f32 %v4495
        %v4500 = vcvt.s32.f32 %v4496
        %v4501 = vmul.f32 %v4497, %v4261
        %v4502 = vmul.f32 %v4498, %v4262
        %v4503 = vmul.f32 %v4499, %v4263
        %v4504 = vmul.f32 %v4500, %v4264
        %v4505 = vrot.slane %v4501, 4
        %v4506 = vadd.f32 %v4501, %v4505
        %v4507 = vrot.slane %v4506, 2
        %v4508 = vadd.f32 %v4506, %v4507
        %v4509 = vrot.slane %v4508, 1
        %v4510 = vadd.f32 %v4508, %v4509
        %v4511 = vrot.slane %v4502, 4
        %v4512 = vadd.f32 %v4502, %v4511
        %v4513 = vrot.slane %v4512, 2
        %v4514 = vadd.f32 %v4512, %v4513
        %v4515 = vrot.slane %v4514, 1
        %v4516 = vadd.f32 %v4514, %v4515
        %v4517 = vrot.slane %v4503, 4
        %v4518 = vadd.f32 %v4503, %v4517
        %v4519 = vrot.slane %v4518, 2
        %v4520 = vadd.f32 %v4518, %v4519
        %v4521 = vrot.slane %v4520, 1
        %v4522 = vadd.f32 %v4520, %v4521
        %v4523 = vrot.slane %v4504, 4
        %v4524 = vadd.f32 %v4504, %v4523
        %v4525 = vrot.slane %v4524, 2
        %v4526 = vadd.f32 %v4524, %v4525
        %v4527 = vrot.slane %v4526, 1
        %v4528 = vadd.f32 %v4526, %v4527
        %v4537 = vrot.slane %v4373, 1
        %v4538 = vrot.slane %v4377, 1
        %v4539 = vsel %vm2820, %v4537, %v4538
        %v4540 = vrot.slane %v4374, 1
        %v4541 = vrot.slane %v4378, 1
        %v4542 = vsel %vm2820, %v4540, %v4541
        %v4543 = vrot.slane %v4375, 1
        %v4544 = vrot.slane %v4379, 1
        %v4545 = vsel %vm2820, %v4543, %v4544
        %v4546 = vrot.slane %v4376, 1
        %v4547 = vrot.slane %v4380, 1
        %v4548 = vsel %vm2820, %v4546, %v4547
        %v4553 = vmul.f32 %v4497, %v4539
        %v4554 = vmul.f32 %v4498, %v4542
        %v4555 = vmul.f32 %v4499, %v4545
        %v4556 = vmul.f32 %v4500, %v4548
        %v4557 = vrot.slane %v4553, 4
        %v4558 = vadd.f32 %v4553, %v4557
        %v4559 = vrot.slane %v4558, 2
        %v4560 = vadd.f32 %v4558, %v4559
        %v4561 = vrot.slane %v4560, 1
        %v4562 = vadd.f32 %v4560, %v4561
        %v4563 = vrot.slane %v4554, 4
        %v4564 = vadd.f32 %v4554, %v4563
        %v4565 = vrot.slane %v4564, 2
        %v4566 = vadd.f32 %v4564, %v4565
        %v4567 = vrot.slane %v4566, 1
        %v4568 = vadd.f32 %v4566, %v4567
        %v4569 = vrot.slane %v4555, 4
        %v4570 = vadd.f32 %v4555, %v4569
        %v4571 = vrot.slane %v4570, 2
        %v4572 = vadd.f32 %v4570, %v4571
        %v4573 = vrot.slane %v4572, 1
        %v4574 = vadd.f32 %v4572, %v4573
        %v4575 = vrot.slane %v4556, 4
        %v4576 = vadd.f32 %v4556, %v4575
        %v4577 = vrot.slane %v4576, 2
        %v4578 = vadd.f32 %v4576, %v4577
        %v4579 = vrot.slane %v4578, 1
        %v4580 = vadd.f32 %v4578, %v4579
        %v4581 = vmul.f32 %v4497, %v4357
        %v4582 = vmul.f32 %v4498, %v4358
        %v4583 = vmul.f32 %v4499, %v4359
        %v4584 = vmul.f32 %v4500, %v4360
        %v4585 = vrot.slane %v4581, 4
        %v4586 = vadd.f32 %v4581, %v4585
        %v4587 = vrot.slane %v4586, 2
        %v4588 = vadd.f32 %v4586, %v4587
        %v4589 = vrot.slane %v4588, 1
        %v4590 = vadd.f32 %v4588, %v4589
        %v4591 = vrot.slane %v4582, 4
        %v4592 = vadd.f32 %v4582, %v4591
        %v4593 = vrot.slane %v4592, 2
        %v4594 = vadd.f32 %v4592, %v4593
        %v4595 = vrot.slane %v4594, 1
        %v4596 = vadd.f32 %v4594, %v4595
        %v4597 = vrot.slane %v4583, 4
        %v4598 = vadd.f32 %v4583, %v4597
        %v4599 = vrot.slane %v4598, 2
        %v4600 = vadd.f32 %v4598, %v4599
        %v4601 = vrot.slane %v4600, 1
        %v4602 = vadd.f32 %v4600, %v4601
        %v4603 = vrot.slane %v4584, 4
        %v4604 = vadd.f32 %v4584, %v4603
        %v4605 = vrot.slane %v4604, 2
        %v4606 = vadd.f32 %v4604, %v4605
        %v4607 = vrot.slane %v4606, 1
        %v4608 = vadd.f32 %v4606, %v4607
        %v4617 = vrot.slane %v4393, 1
        %v4618 = vrot.slane %v4397, 1
        %v4619 = vsel %vm2820, %v4617, %v4618
        %v4620 = vrot.slane %v4394, 1
        %v4621 = vrot.slane %v4398, 1
        %v4622 = vsel %vm2820, %v4620, %v4621
        %v4623 = vrot.slane %v4395, 1
        %v4624 = vrot.slane %v4399, 1
        %v4625 = vsel %vm2820, %v4623, %v4624
        %v4626 = vrot.slane %v4396, 1
        %v4627 = vrot.slane %v4400, 1
        %v4628 = vsel %vm2820, %v4626, %v4627
        %v4633 = vmul.f32 %v4497, %v4619
        %v4634 = vmul.f32 %v4498, %v4622
        %v4635 = vmul.f32 %v4499, %v4625
        %v4636 = vmul.f32 %v4500, %v4628
        %v4637 = vrot.slane %v4633, 4
        %v4638 = vadd.f32 %v4633, %v4637
        %v4639 = vrot.slane %v4638, 2
        %v4640 = vadd.f32 %v4638, %v4639
        %v4641 = vrot.slane %v4640, 1
        %v4642 = vadd.f32 %v4640, %v4641
        %v4643 = vrot.slane %v4634, 4
        %v4644 = vadd.f32 %v4634, %v4643
        %v4645 = vrot.slane %v4644, 2
        %v4646 = vadd.f32 %v4644, %v4645
        %v4647 = vrot.slane %v4646, 1
        %v4648 = vadd.f32 %v4646, %v4647
        %v4649 = vrot.slane %v4635, 4
        %v4650 = vadd.f32 %v4635, %v4649
        %v4651 = vrot.slane %v4650, 2
        %v4652 = vadd.f32 %v4650, %v4651
        %v4653 = vrot.slane %v4652, 1
        %v4654 = vadd.f32 %v4652, %v4653
        %v4655 = vrot.slane %v4636, 4
        %v4656 = vadd.f32 %v4636, %v4655
        %v4657 = vrot.slane %v4656, 2
        %v4658 = vadd.f32 %v4656, %v4657
        %v4659 = vrot.slane %v4658, 1
        %v4660 = vadd.f32 %v4658, %v4659
        %v4661 = vmul.f32 %v4497, %v4453
        %v4662 = vmul.f32 %v4498, %v4454
        %v4663 = vmul.f32 %v4499, %v4455
        %v4664 = vmul.f32 %v4500, %v4456
        %v4665 = vrot.slane %v4661, 4
        %v4666 = vadd.f32 %v4661, %v4665
        %v4667 = vrot.slane %v4666, 2
        %v4668 = vadd.f32 %v4666, %v4667
        %v4669 = vrot.slane %v4668, 1
        %v4670 = vadd.f32 %v4668, %v4669
        %v4671 = vrot.slane %v4662, 4
        %v4672 = vadd.f32 %v4662, %v4671
        %v4673 = vrot.slane %v4672, 2
        %v4674 = vadd.f32 %v4672, %v4673
        %v4675 = vrot.slane %v4674, 1
        %v4676 = vadd.f32 %v4674, %v4675
        %v4677 = vrot.slane %v4663, 4
        %v4678 = vadd.f32 %v4663, %v4677
        %v4679 = vrot.slane %v4678, 2
        %v4680 = vadd.f32 %v4678, %v4679
        %v4681 = vrot.slane %v4680, 1
        %v4682 = vadd.f32 %v4680, %v4681
        %v4683 = vrot.slane %v4664, 4
        %v4684 = vadd.f32 %v4664, %v4683
        %v4685 = vrot.slane %v4684, 2
        %v4686 = vadd.f32 %v4684, %v4685
        %v4687 = vrot.slane %v4686, 1
        %v4688 = vadd.f32 %v4686, %v4687
        %v4693 = vrot.slane %v4453, 1
        %v4694 = vsel %vm2820, %v4693, %v3053
        %v4695 = vrot.slane %v4454, 1
        %v4696 = vsel %vm2820, %v4695, %v3053
        %v4697 = vrot.slane %v4455, 1
        %v4698 = vsel %vm2820, %v4697, %v3053
        %v4699 = vrot.slane %v4456, 1
        %v4700 = vsel %vm2820, %v4699, %v3053
        %v4705 = vmul.f32 %v4497, %v4694
        %v4706 = vmul.f32 %v4498, %v4696
        %v4707 = vmul.f32 %v4499, %v4698
        %v4708 = vmul.f32 %v4500, %v4700
        %v4709 = vrot.slane %v4705, 4
        %v4710 = vadd.f32 %v4705, %v4709
        %v4711 = vrot.slane %v4710, 2
        %v4712 = vadd.f32 %v4710, %v4711
        %v4713 = vrot.slane %v4712, 1
        %v4714 = vadd.f32 %v4712, %v4713
        %v4715 = vrot.slane %v4706, 4
        %v4716 = vadd.f32 %v4706, %v4715
        %v4717 = vrot.slane %v4716, 2
        %v4718 = vadd.f32 %v4716, %v4717
        %v4719 = vrot.slane %v4718, 1
        %v4720 = vadd.f32 %v4718, %v4719
        %v4721 = vrot.slane %v4707, 4
        %v4722 = vadd.f32 %v4707, %v4721
        %v4723 = vrot.slane %v4722, 2
        %v4724 = vadd.f32 %v4722, %v4723
        %v4725 = vrot.slane %v4724, 1
        %v4726 = vadd.f32 %v4724, %v4725
        %v4727 = vrot.slane %v4708, 4
        %v4728 = vadd.f32 %v4708, %v4727
        %v4729 = vrot.slane %v4728, 2
        %v4730 = vadd.f32 %v4728, %v4729
        %v4731 = vrot.slane %v4730, 1
        %v4732 = vadd.f32 %v4730, %v4731
        %v4733 = vrot.slane %v1765, 4
        %v4734 = vmax.f32 %v1765, %v4733
        %v4735 = vrot.slane %v4734, 2
        %v4736 = vmax.f32 %v4734, %v4735
        %v4737 = vrot.slane %v4736, 1
        %v4738 = vmax.f32 %v4736, %v4737
        %v4739 = vrot.slane %v1924, 4
        %v4740 = vmax.f32 %v1924, %v4739
        %v4741 = vrot.slane %v4740, 2
        %v4742 = vmax.f32 %v4740, %v4741
        %v4743 = vrot.slane %v4742, 1
        %v4744 = vmax.f32 %v4742, %v4743
        %v4745 = vrot.slane %v2083, 4
        %v4746 = vmax.f32 %v2083, %v4745
        %v4747 = vrot.slane %v4746, 2
        %v4748 = vmax.f32 %v4746, %v4747
        %v4749 = vrot.slane %v4748, 1
        %v4750 = vmax.f32 %v4748, %v4749
        %v4751 = vrot.slane %v2242, 4
        %v4752 = vmax.f32 %v2242, %v4751
        %v4753 = vrot.slane %v4752, 2
        %v4754 = vmax.f32 %v4752, %v4753
        %v4755 = vrot.slane %v4754, 1
        %v4756 = vmax.f32 %v4754, %v4755
        %v4757 = vsub.f32 %v1765, %v4738
        %v4758 = vsub.f32 %v1924, %v4744
        %v4759 = vsub.f32 %v2083, %v4750
        %v4760 = vsub.f32 %v2242, %v4756
        %v4761 = vmul.f32 %v4757, 1.442695
        %v4762 = vpow.pop %v4761
        %v4763 = vmul.f32 %v4758, 1.442695
        %v4764 = vpow.pop %v4763
        %v4765 = vmul.f32 %v4759, 1.442695
        %v4766 = vpow.pop %v4765
        %v4767 = vmul.f32 %v4760, 1.442695
        %v4768 = vpow.pop %v4767
        %v4769 = vrot.slane %v4762, 4
        %v4770 = vadd.f32 %v4762, %v4769
        %v4771 = vrot.slane %v4770, 2
        %v4772 = vadd.f32 %v4770, %v4771
        %v4773 = vrot.slane %v4772, 1
        %v4774 = vadd.f32 %v4772, %v4773
        %v4775 = vrot.slane %v4764, 4
        %v4776 = vadd.f32 %v4764, %v4775
        %v4777 = vrot.slane %v4776, 2
        %v4778 = vadd.f32 %v4776, %v4777
        %v4779 = vrot.slane %v4778, 1
        %v4780 = vadd.f32 %v4778, %v4779
        %v4781 = vrot.slane %v4766, 4
        %v4782 = vadd.f32 %v4766, %v4781
        %v4783 = vrot.slane %v4782, 2
        %v4784 = vadd.f32 %v4782, %v4783
        %v4785 = vrot.slane %v4784, 1
        %v4786 = vadd.f32 %v4784, %v4785
        %v4787 = vrot.slane %v4768, 4
        %v4788 = vadd.f32 %v4768, %v4787
        %v4789 = vrot.slane %v4788, 2
        %v4790 = vadd.f32 %v4788, %v4789
        %v4791 = vrot.slane %v4790, 1
        %v4792 = vadd.f32 %v4790, %v4791
        %v4793 = vrcp.pop %v4774
        %v4794 = vmul.f32 %v4774, %v4793
        %v4795 = vsub.f32 1.0, %v4794
        %v4796 = vmul.f32 %v4793, %v4795
        %v4797 = vadd.f32 %v4793, %v4796
        %vm4798 = vweird.f32 %v4774
        %vm4799 = vweird.f32 %v4793
        %vm4800 = vmor %vm4798, %vm4799
        %v4801 = vsel %vm4800, %v4793, %v4797
        %v4802 = vand.u32 2147483647, %v4774
        %vm4803 = vcmp.eq.f32.partialorder %v4802, 8.507059e+37
        %v4804 = vand.u32 %v4774, 2147483648
        %v4805 = vor.u32 1.1754944e-38, %v4804
        %v4806 = vsel %vm4803, %v4805, %v4801
        %v4807 = vmul.f32 %v4762, %v4806
        %v4808 = vrcp.pop %v4780
        %v4809 = vmul.f32 %v4780, %v4808
        %v4810 = vsub.f32 1.0, %v4809
        %v4811 = vmul.f32 %v4808, %v4810
        %v4812 = vadd.f32 %v4808, %v4811
        %vm4813 = vweird.f32 %v4780
        %vm4814 = vweird.f32 %v4808
        %vm4815 = vmor %vm4813, %vm4814
        %v4816 = vsel %vm4815, %v4808, %v4812
        %v4817 = vand.u32 2147483647, %v4780
        %vm4818 = vcmp.eq.f32.partialorder %v4817, 8.507059e+37
        %v4819 = vand.u32 %v4780, 2147483648
        %v4820 = vor.u32 1.1754944e-38, %v4819
        %v4821 = vsel %vm4818, %v4820, %v4816
        %v4822 = vmul.f32 %v4764, %v4821
        %v4823 = vrcp.pop %v4786
        %v4824 = vmul.f32 %v4786, %v4823
        %v4825 = vsub.f32 1.0, %v4824
        %v4826 = vmul.f32 %v4823, %v4825
        %v4827 = vadd.f32 %v4823, %v4826
        %vm4828 = vweird.f32 %v4786
        %vm4829 = vweird.f32 %v4823
        %vm4830 = vmor %vm4828, %vm4829
        %v4831 = vsel %vm4830, %v4823, %v4827
        %v4832 = vand.u32 2147483647, %v4786
        %vm4833 = vcmp.eq.f32.partialorder %v4832, 8.507059e+37
        %v4834 = vand.u32 %v4786, 2147483648
        %v4835 = vor.u32 1.1754944e-38, %v4834
        %v4836 = vsel %vm4833, %v4835, %v4831
        %v4837 = vmul.f32 %v4766, %v4836
        %v4838 = vrcp.pop %v4792
        %v4839 = vmul.f32 %v4792, %v4838
        %v4840 = vsub.f32 1.0, %v4839
        %v4841 = vmul.f32 %v4838, %v4840
        %v4842 = vadd.f32 %v4838, %v4841
        %vm4843 = vweird.f32 %v4792
        %vm4844 = vweird.f32 %v4838
        %vm4845 = vmor %vm4843, %vm4844
        %v4846 = vsel %vm4845, %v4838, %v4842
        %v4847 = vand.u32 2147483647, %v4792
        %vm4848 = vcmp.eq.f32.partialorder %v4847, 8.507059e+37
        %v4849 = vand.u32 %v4792, 2147483648
        %v4850 = vor.u32 1.1754944e-38, %v4849
        %v4851 = vsel %vm4848, %v4850, %v4846
        %v4852 = vmul.f32 %v4768, %v4851
        %v4853 = vmul.f32 %v4807, 0.992
        %v4854 = vmul.f32 %v4822, 0.992
        %v4855 = vmul.f32 %v4837, 0.992
        %v4856 = vmul.f32 %v4852, 0.992
        %v4857 = vadd.f32 %v4853, 0.001
        %v4858 = vadd.f32 %v4854, 0.001
        %v4859 = vadd.f32 %v4855, 0.001
        %v4860 = vadd.f32 %v4856, 0.001
        %v4861 = vrot.slane %v1768, 4
        %v4862 = vmax.f32 %v1768, %v4861
        %v4863 = vrot.slane %v4862, 2
        %v4864 = vmax.f32 %v4862, %v4863
        %v4865 = vrot.slane %v4864, 1
        %v4866 = vmax.f32 %v4864, %v4865
        %v4867 = vrot.slane %v1927, 4
        %v4868 = vmax.f32 %v1927, %v4867
        %v4869 = vrot.slane %v4868, 2
        %v4870 = vmax.f32 %v4868, %v4869
        %v4871 = vrot.slane %v4870, 1
        %v4872 = vmax.f32 %v4870, %v4871
        %v4873 = vrot.slane %v2086, 4
        %v4874 = vmax.f32 %v2086, %v4873
        %v4875 = vrot.slane %v4874, 2
        %v4876 = vmax.f32 %v4874, %v4875
        %v4877 = vrot.slane %v4876, 1
        %v4878 = vmax.f32 %v4876, %v4877
        %v4879 = vrot.slane %v2245, 4
        %v4880 = vmax.f32 %v2245, %v4879
        %v4881 = vrot.slane %v4880, 2
        %v4882 = vmax.f32 %v4880, %v4881
        %v4883 = vrot.slane %v4882, 1
        %v4884 = vmax.f32 %v4882, %v4883
        %v4885 = vsub.f32 %v1768, %v4866
        %v4886 = vsub.f32 %v1927, %v4872
        %v4887 = vsub.f32 %v2086, %v4878
        %v4888 = vsub.f32 %v2245, %v4884
        %v4889 = vmul.f32 %v4885, 1.442695
        %v4890 = vpow.pop %v4889
        %v4891 = vmul.f32 %v4886, 1.442695
        %v4892 = vpow.pop %v4891
        %v4893 = vmul.f32 %v4887, 1.442695
        %v4894 = vpow.pop %v4893
        %v4895 = vmul.f32 %v4888, 1.442695
        %v4896 = vpow.pop %v4895
        %v4897 = vrot.slane %v4890, 4
        %v4898 = vadd.f32 %v4890, %v4897
        %v4899 = vrot.slane %v4898, 2
        %v4900 = vadd.f32 %v4898, %v4899
        %v4901 = vrot.slane %v4900, 1
        %v4902 = vadd.f32 %v4900, %v4901
        %v4903 = vrot.slane %v4892, 4
        %v4904 = vadd.f32 %v4892, %v4903
        %v4905 = vrot.slane %v4904, 2
        %v4906 = vadd.f32 %v4904, %v4905
        %v4907 = vrot.slane %v4906, 1
        %v4908 = vadd.f32 %v4906, %v4907
        %v4909 = vrot.slane %v4894, 4
        %v4910 = vadd.f32 %v4894, %v4909
        %v4911 = vrot.slane %v4910, 2
        %v4912 = vadd.f32 %v4910, %v4911
        %v4913 = vrot.slane %v4912, 1
        %v4914 = vadd.f32 %v4912, %v4913
        %v4915 = vrot.slane %v4896, 4
        %v4916 = vadd.f32 %v4896, %v4915
        %v4917 = vrot.slane %v4916, 2
        %v4918 = vadd.f32 %v4916, %v4917
        %v4919 = vrot.slane %v4918, 1
        %v4920 = vadd.f32 %v4918, %v4919
        %v4921 = vrcp.pop %v4902
        %v4922 = vmul.f32 %v4902, %v4921
        %v4923 = vsub.f32 1.0, %v4922
        %v4924 = vmul.f32 %v4921, %v4923
        %v4925 = vadd.f32 %v4921, %v4924
        %vm4926 = vweird.f32 %v4902
        %vm4927 = vweird.f32 %v4921
        %vm4928 = vmor %vm4926, %vm4927
        %v4929 = vsel %vm4928, %v4921, %v4925
        %v4930 = vand.u32 2147483647, %v4902
        %vm4931 = vcmp.eq.f32.partialorder %v4930, 8.507059e+37
        %v4932 = vand.u32 %v4902, 2147483648
        %v4933 = vor.u32 1.1754944e-38, %v4932
        %v4934 = vsel %vm4931, %v4933, %v4929
        %v4935 = vmul.f32 %v4890, %v4934
        %v4936 = vrcp.pop %v4908
        %v4937 = vmul.f32 %v4908, %v4936
        %v4938 = vsub.f32 1.0, %v4937
        %v4939 = vmul.f32 %v4936, %v4938
        %v4940 = vadd.f32 %v4936, %v4939
        %vm4941 = vweird.f32 %v4908
        %vm4942 = vweird.f32 %v4936
        %vm4943 = vmor %vm4941, %vm4942
        %v4944 = vsel %vm4943, %v4936, %v4940
        %v4945 = vand.u32 2147483647, %v4908
        %vm4946 = vcmp.eq.f32.partialorder %v4945, 8.507059e+37
        %v4947 = vand.u32 %v4908, 2147483648
        %v4948 = vor.u32 1.1754944e-38, %v4947
        %v4949 = vsel %vm4946, %v4948, %v4944
        %v4950 = vmul.f32 %v4892, %v4949
        %v4951 = vrcp.pop %v4914
        %v4952 = vmul.f32 %v4914, %v4951
        %v4953 = vsub.f32 1.0, %v4952
        %v4954 = vmul.f32 %v4951, %v4953
        %v4955 = vadd.f32 %v4951, %v4954
        %vm4956 = vweird.f32 %v4914
        %vm4957 = vweird.f32 %v4951
        %vm4958 = vmor %vm4956, %vm4957
        %v4959 = vsel %vm4958, %v4951, %v4955
        %v4960 = vand.u32 2147483647, %v4914
        %vm4961 = vcmp.eq.f32.partialorder %v4960, 8.507059e+37
        %v4962 = vand.u32 %v4914, 2147483648
        %v4963 = vor.u32 1.1754944e-38, %v4962
        %v4964 = vsel %vm4961, %v4963, %v4959
        %v4965 = vmul.f32 %v4894, %v4964
        %v4966 = vrcp.pop %v4920
        %v4967 = vmul.f32 %v4920, %v4966
        %v4968 = vsub.f32 1.0, %v4967
        %v4969 = vmul.f32 %v4966, %v4968
        %v4970 = vadd.f32 %v4966, %v4969
        %vm4971 = vweird.f32 %v4920
        %vm4972 = vweird.f32 %v4966
        %vm4973 = vmor %vm4971, %vm4972
        %v4974 = vsel %vm4973, %v4966, %v4970
        %v4975 = vand.u32 2147483647, %v4920
        %vm4976 = vcmp.eq.f32.partialorder %v4975, 8.507059e+37
        %v4977 = vand.u32 %v4920, 2147483648
        %v4978 = vor.u32 1.1754944e-38, %v4977
        %v4979 = vsel %vm4976, %v4978, %v4974
        %v4980 = vmul.f32 %v4896, %v4979
        %v4981 = vmul.f32 %v4935, 0.992
        %v4982 = vmul.f32 %v4950, 0.992
        %v4983 = vmul.f32 %v4965, 0.992
        %v4984 = vmul.f32 %v4980, 0.992
        %v4985 = vadd.f32 %v4981, 0.001
        %v4986 = vadd.f32 %v4982, 0.001
        %v4987 = vadd.f32 %v4983, 0.001
        %v4988 = vadd.f32 %v4984, 0.001
        %4989 = vmatpush.msra.mxu0 0.0
        %4990 = vmatpush.msra.mxu0 0.0
        %4991 = vmatpush.msra.mxu0 0.0
        %4992 = vmatpush.msra.mxu0 0.0
        %4993 = vmatpush.msra.mxu0 0.0
        %4994 = vmatpush.msra.mxu0 0.0
        %4995 = vmatpush.msra.mxu0 0.0
        %4996 = vmatpush.msra.mxu0 0.0
        %4997 = vmatpush.msra.mxu0 0.0
        %4998 = vmatpush.msra.mxu0 0.0
        %4999 = vmatpush.msra.mxu0 0.0
        %5000 = vmatpush.msra.mxu0 0.0
        %5001 = vmatpush.msra.mxu0 0.0
        %5002 = vmatpush.msra.mxu0 0.0
        %5003 = vmatpush.msra.mxu0 0.0
        %5004 = vmatpush.msra.mxu0 %v4857
        %5005 = vmatmul.f32.gmra.mxu0 %v2518
        %v5006 = vpop.f32.mrf.mxu0
        %v5007 = vadd.f32 0.0, %v5006
        %5008 = vmatmul.f32.gmra.mxu0 %v2521
        %v5009 = vpop.f32.mrf.mxu0
        %5010 = vdwg.mxu0
        %5011 = vmatpush.msra.mxu0 0.0
        %5012 = vmatpush.msra.mxu0 0.0
        %5013 = vmatpush.msra.mxu0 0.0
        %5014 = vmatpush.msra.mxu0 0.0
        %5015 = vmatpush.msra.mxu0 0.0
        %5016 = vmatpush.msra.mxu0 0.0
        %5017 = vmatpush.msra.mxu0 0.0
        %5018 = vmatpush.msra.mxu0 0.0
        %5019 = vmatpush.msra.mxu0 0.0
        %5020 = vmatpush.msra.mxu0 0.0
        %5021 = vmatpush.msra.mxu0 0.0
        %5022 = vmatpush.msra.mxu0 0.0
        %5023 = vmatpush.msra.mxu0 0.0
        %5024 = vmatpush.msra.mxu0 0.0
        %5025 = vmatpush.msra.mxu0 0.0
        %5026 = vmatpush.msra.mxu0 %v4858
        %5027 = vmatmul.f32.gmra.mxu0 %v2518
        %v5028 = vpop.f32.mrf.mxu0
        %v5029 = vadd.f32 0.0, %v5028
        %5030 = vmatmul.f32.gmra.mxu0 %v2521
        %v5031 = vpop.f32.mrf.mxu0
        %5032 = vdwg.mxu0
        %5033 = vmatpush.msra.mxu0 0.0
        %5034 = vmatpush.msra.mxu0 0.0
        %5035 = vmatpush.msra.mxu0 0.0
        %5036 = vmatpush.msra.mxu0 0.0
        %5037 = vmatpush.msra.mxu0 0.0
        %5038 = vmatpush.msra.mxu0 0.0
        %5039 = vmatpush.msra.mxu0 0.0
        %5040 = vmatpush.msra.mxu0 0.0
        %5041 = vmatpush.msra.mxu0 0.0
        %5042 = vmatpush.msra.mxu0 0.0
        %5043 = vmatpush.msra.mxu0 0.0
        %5044 = vmatpush.msra.mxu0 0.0
        %5045 = vmatpush.msra.mxu0 0.0
        %5046 = vmatpush.msra.mxu0 0.0
        %5047 = vmatpush.msra.mxu0 0.0
        %5048 = vmatpush.msra.mxu0 %v4859
        %5049 = vmatmul.f32.gmra.mxu0 %v2518
        %v5050 = vpop.f32.mrf.mxu0
        %v5051 = vadd.f32 0.0, %v5050
        %5052 = vmatmul.f32.gmra.mxu0 %v2521
        %v5053 = vpop.f32.mrf.mxu0
        %5054 = vdwg.mxu0
        %5055 = vmatpush.msra.mxu0 0.0
        %5056 = vmatpush.msra.mxu0 0.0
        %5057 = vmatpush.msra.mxu0 0.0
        %5058 = vmatpush.msra.mxu0 0.0
        %5059 = vmatpush.msra.mxu0 0.0
        %5060 = vmatpush.msra.mxu0 0.0
        %5061 = vmatpush.msra.mxu0 0.0
        %5062 = vmatpush.msra.mxu0 0.0
        %5063 = vmatpush.msra.mxu0 0.0
        %5064 = vmatpush.msra.mxu0 0.0
        %5065 = vmatpush.msra.mxu0 0.0
        %5066 = vmatpush.msra.mxu0 0.0
        %5067 = vmatpush.msra.mxu0 0.0
        %5068 = vmatpush.msra.mxu0 0.0
        %5069 = vmatpush.msra.mxu0 0.0
        %5070 = vmatpush.msra.mxu0 %v4860
        %5071 = vmatmul.f32.gmra.mxu0 %v2518
        %v5072 = vpop.f32.mrf.mxu0
        %v5073 = vadd.f32 0.0, %v5072
        %5074 = vmatmul.f32.gmra.mxu0 %v2521
        %v5075 = vpop.f32.mrf.mxu0
        %5076 = vdwg.mxu0
        %v5077 = vmul.f32 %v5007, 6.0
        %v5078 = vmul.f32 %v5029, 6.0
        %v5079 = vmul.f32 %v5051, 6.0
        %v5080 = vmul.f32 %v5073, 6.0
        %v5081 = vadd.f32 %v5077, -3.0
        %v5082 = vadd.f32 %v5078, -3.0
        %v5083 = vadd.f32 %v5079, -3.0
        %v5084 = vadd.f32 %v5080, -3.0
        %5085 = vmatpush.msra.mxu0 0.0
        %5086 = vmatpush.msra.mxu0 0.0
        %5087 = vmatpush.msra.mxu0 0.0
        %5088 = vmatpush.msra.mxu0 0.0
        %5089 = vmatpush.msra.mxu0 0.0
        %5090 = vmatpush.msra.mxu0 0.0
        %5091 = vmatpush.msra.mxu0 0.0
        %5092 = vmatpush.msra.mxu0 0.0
        %5093 = vmatpush.msra.mxu0 0.0
        %5094 = vmatpush.msra.mxu0 0.0
        %5095 = vmatpush.msra.mxu0 0.0
        %5096 = vmatpush.msra.mxu0 0.0
        %5097 = vmatpush.msra.mxu0 0.0
        %5098 = vmatpush.msra.mxu0 0.0
        %5099 = vmatpush.msra.mxu0 0.0
        %5100 = vmatpush.msra.mxu0 %v4985
        %5101 = vmatmul.f32.gmra.mxu0 %v2518
        %v5102 = vpop.f32.mrf.mxu0
        %v5103 = vadd.f32 0.0, %v5102
        %5104 = vmatmul.f32.gmra.mxu0 %v2521
        %v5105 = vpop.f32.mrf.mxu0
        %5106 = vdwg.mxu0
        %5107 = vmatpush.msra.mxu0 0.0
        %5108 = vmatpush.msra.mxu0 0.0
        %5109 = vmatpush.msra.mxu0 0.0
        %5110 = vmatpush.msra.mxu0 0.0
        %5111 = vmatpush.msra.mxu0 0.0
        %5112 = vmatpush.msra.mxu0 0.0
        %5113 = vmatpush.msra.mxu0 0.0
        %5114 = vmatpush.msra.mxu0 0.0
        %5115 = vmatpush.msra.mxu0 0.0
        %5116 = vmatpush.msra.mxu0 0.0
        %5117 = vmatpush.msra.mxu0 0.0
        %5118 = vmatpush.msra.mxu0 0.0
        %5119 = vmatpush.msra.mxu0 0.0
        %5120 = vmatpush.msra.mxu0 0.0
        %5121 = vmatpush.msra.mxu0 0.0
        %5122 = vmatpush.msra.mxu0 %v4986
        %5123 = vmatmul.f32.gmra.mxu0 %v2518
        %v5124 = vpop.f32.mrf.mxu0
        %v5125 = vadd.f32 0.0, %v5124
        %5126 = vmatmul.f32.gmra.mxu0 %v2521
        %v5127 = vpop.f32.mrf.mxu0
        %5128 = vdwg.mxu0
        %5129 = vmatpush.msra.mxu0 0.0
        %5130 = vmatpush.msra.mxu0 0.0
        %5131 = vmatpush.msra.mxu0 0.0
        %5132 = vmatpush.msra.mxu0 0.0
        %5133 = vmatpush.msra.mxu0 0.0
        %5134 = vmatpush.msra.mxu0 0.0
        %5135 = vmatpush.msra.mxu0 0.0
        %5136 = vmatpush.msra.mxu0 0.0
        %5137 = vmatpush.msra.mxu0 0.0
        %5138 = vmatpush.msra.mxu0 0.0
        %5139 = vmatpush.msra.mxu0 0.0
        %5140 = vmatpush.msra.mxu0 0.0
        %5141 = vmatpush.msra.mxu0 0.0
        %5142 = vmatpush.msra.mxu0 0.0
        %5143 = vmatpush.msra.mxu0 0.0
        %5144 = vmatpush.msra.mxu0 %v4987
        %5145 = vmatmul.f32.gmra.mxu0 %v2518
        %v5146 = vpop.f32.mrf.mxu0
        %v5147 = vadd.f32 0.0, %v5146
        %5148 = vmatmul.f32.gmra.mxu0 %v2521
        %v5149 = vpop.f32.mrf.mxu0
        %5150 = vdwg.mxu0
        %5151 = vmatpush.msra.mxu0 0.0
        %5152 = vmatpush.msra.mxu0 0.0
        %5153 = vmatpush.msra.mxu0 0.0
        %5154 = vmatpush.msra.mxu0 0.0
        %5155 = vmatpush.msra.mxu0 0.0
        %5156 = vmatpush.msra.mxu0 0.0
        %5157 = vmatpush.msra.mxu0 0.0
        %5158 = vmatpush.msra.mxu0 0.0
        %5159 = vmatpush.msra.mxu0 0.0
        %5160 = vmatpush.msra.mxu0 0.0
        %5161 = vmatpush.msra.mxu0 0.0
        %5162 = vmatpush.msra.mxu0 0.0
        %5163 = vmatpush.msra.mxu0 0.0
        %5164 = vmatpush.msra.mxu0 0.0
        %5165 = vmatpush.msra.mxu0 0.0
        %5166 = vmatpush.msra.mxu0 %v4988
        %5167 = vmatmul.f32.gmra.mxu0 %v2518
        %v5168 = vpop.f32.mrf.mxu0
        %v5169 = vadd.f32 0.0, %v5168
        %5170 = vmatmul.f32.gmra.mxu0 %v2521
        %v5171 = vpop.f32.mrf.mxu0
        %5172 = vdwg.mxu0
        %v5173 = vmul.f32 %v5103, 6.0
        %v5174 = vmul.f32 %v5125, 6.0
        %v5175 = vmul.f32 %v5147, 6.0
        %v5176 = vmul.f32 %v5169, 6.0
        %v5177 = vadd.f32 %v5173, -3.0
        %v5178 = vadd.f32 %v5174, -3.0
        %v5179 = vadd.f32 %v5175, -3.0
        %v5180 = vadd.f32 %v5176, -3.0
        %v5185 = vrot.slane %v5081, 7
        %v5186 = vrot.slane %v5082, 7
        %v5187 = vrot.slane %v5083, 7
        %v5188 = vrot.slane %v5084, 7
        %v5193 = vsub.f32 %v5081, %v5185
        %v5194 = vsub.f32 %v5082, %v5186
        %v5195 = vsub.f32 %v5083, %v5187
        %v5196 = vsub.f32 %v5084, %v5188
        %v5197 = vsub.f32 3.0, %v5185
        %v5198 = vsub.f32 3.0, %v5186
        %v5199 = vsub.f32 3.0, %v5187
        %v5200 = vsub.f32 3.0, %v5188
        %v5205 = vrot.slane %v5177, 7
        %v5206 = vrot.slane %v5178, 7
        %v5207 = vrot.slane %v5179, 7
        %v5208 = vrot.slane %v5180, 7
        %v5213 = vsub.f32 %v5177, %v5205
        %v5214 = vsub.f32 %v5178, %v5206
        %v5215 = vsub.f32 %v5179, %v5207
        %v5216 = vsub.f32 %v5180, %v5208
        %v5217 = vsub.f32 3.0, %v5205
        %v5218 = vsub.f32 3.0, %v5206
        %v5219 = vsub.f32 3.0, %v5207
        %v5220 = vsub.f32 3.0, %v5208
        %v5221 = vmax.f32 %v1771, 0.0
        %v5222 = vmax.f32 %v1930, 0.0
        %v5223 = vmax.f32 %v2089, 0.0
        %v5224 = vmax.f32 %v2248, 0.0
        %v5225 = vand.u32 2147483647, %v1771
        %v5226 = vand.u32 2147483647, %v1930
        %v5227 = vand.u32 2147483647, %v2089
        %v5228 = vand.u32 2147483647, %v2248
        %v5229 = vsub.f32 0.0, %v5225
        %v5230 = vsub.f32 0.0, %v5226
        %v5231 = vsub.f32 0.0, %v5227
        %v5232 = vsub.f32 0.0, %v5228
        %v5233 = vmul.f32 %v5229, 1.442695
        %v5234 = vpow.pop %v5233
        %v5235 = vmul.f32 %v5230, 1.442695
        %v5236 = vpow.pop %v5235
        %v5237 = vmul.f32 %v5231, 1.442695
        %v5238 = vpow.pop %v5237
        %v5239 = vmul.f32 %v5232, 1.442695
        %v5240 = vpow.pop %v5239
        %v5241 = vadd.f32 %v5234, 1.0
        %v5242 = vadd.f32 %v5236, 1.0
        %v5243 = vadd.f32 %v5238, 1.0
        %v5244 = vadd.f32 %v5240, 1.0
        %v5245 = vlog2.pop %v5241
        %v5246 = vmul.f32 %v5245, 0.6931472
        %v5247 = vlog2.pop %v5242
        %v5248 = vmul.f32 %v5247, 0.6931472
        %v5249 = vlog2.pop %v5243
        %v5250 = vmul.f32 %v5249, 0.6931472
        %v5251 = vlog2.pop %v5244
        %v5252 = vmul.f32 %v5251, 0.6931472
        %v5253 = vadd.f32 %v5221, %v5246
        %v5254 = vadd.f32 %v5222, %v5248
        %v5255 = vadd.f32 %v5223, %v5250
        %v5256 = vadd.f32 %v5224, %v5252
        %v5257 = vadd.f32 %v5253, 0.001
        %v5258 = vadd.f32 %v5254, 0.001
        %v5259 = vadd.f32 %v5255, 0.001
        %v5260 = vadd.f32 %v5256, 0.001
        %v5265 = vrot.slane %v5257, 7
        %v5266 = vrot.slane %v5258, 7
        %v5267 = vrot.slane %v5259, 7
        %v5268 = vrot.slane %v5260, 7
        %v5273 = vsel %vm2807, 1.0, %v5265
        %v5274 = vsel %vm2807, 1.0, %v5266
        %v5275 = vsel %vm2807, 1.0, %v5267
        %v5276 = vsel %vm2807, 1.0, %v5268
        %v5277 = vrot.slane %v5081, 1
        %v5278 = vrot.slane %v5082, 1
        %v5279 = vrot.slane %v5083, 1
        %v5280 = vrot.slane %v5084, 1
        %v5285 = vsel %vm2820, %v5277, 4.0
        %v5286 = vsel %vm2820, %v5278, 4.0
        %v5287 = vsel %vm2820, %v5279, 4.0
        %v5288 = vsel %vm2820, %v5280, 4.0
        %v5289 = vperm.slane %v2256, 3
        %v5290 = vperm.slane %v2256, 7
        %v5291 = vperm.slane %v2257, 3
        %v5292 = vperm.slane %v2257, 7
        %v5297 = vperm.slane %v5289, 3
        %v5298 = vperm.slane %v5290, 3
        %v5299 = vperm.slane %v5291, 3
        %v5300 = vperm.slane %v5292, 3
        %vm5301 = vcmp.ge.f32.partialorder %v5297, %v5081
        %vm5302 = vcmp.ge.f32.partialorder %v5298, %v5082
        %vm5303 = vcmp.ge.f32.partialorder %v5299, %v5083
        %vm5304 = vcmp.ge.f32.partialorder %v5300, %v5084
        %vm5305 = vcmp.lt.f32.partialorder %v5297, %v5285
        %vm5306 = vcmp.lt.f32.partialorder %v5298, %v5286
        %vm5307 = vcmp.lt.f32.partialorder %v5299, %v5287
        %vm5308 = vcmp.lt.f32.partialorder %v5300, %v5288
        %vm5309 = vmand %vm5301, %vm5305
        %vm5310 = vmand %vm5302, %vm5306
        %vm5311 = vmand %vm5303, %vm5307
        %vm5312 = vmand %vm5304, %vm5308
        %v5313 = vsel %vm5309, 1, 0
        %v5314 = vsel %vm5310, 1, 0
        %v5315 = vsel %vm5311, 1, 0
        %v5316 = vsel %vm5312, 1, 0
        %v5317 = vcvt.s32.f32 %v5313
        %v5318 = vcvt.s32.f32 %v5314
        %v5319 = vcvt.s32.f32 %v5315
        %v5320 = vcvt.s32.f32 %v5316
        %v5321 = vmul.f32 %v5317, %v5081
        %v5322 = vmul.f32 %v5318, %v5082
        %v5323 = vmul.f32 %v5319, %v5083
        %v5324 = vmul.f32 %v5320, %v5084
        %v5325 = vrot.slane %v5321, 4
        %v5326 = vadd.f32 %v5321, %v5325
        %v5327 = vrot.slane %v5326, 2
        %v5328 = vadd.f32 %v5326, %v5327
        %v5329 = vrot.slane %v5328, 1
        %v5330 = vadd.f32 %v5328, %v5329
        %v5331 = vrot.slane %v5322, 4
        %v5332 = vadd.f32 %v5322, %v5331
        %v5333 = vrot.slane %v5332, 2
        %v5334 = vadd.f32 %v5332, %v5333
        %v5335 = vrot.slane %v5334, 1
        %v5336 = vadd.f32 %v5334, %v5335
        %v5337 = vrot.slane %v5323, 4
        %v5338 = vadd.f32 %v5323, %v5337
        %v5339 = vrot.slane %v5338, 2
        %v5340 = vadd.f32 %v5338, %v5339
        %v5341 = vrot.slane %v5340, 1
        %v5342 = vadd.f32 %v5340, %v5341
        %v5343 = vrot.slane %v5324, 4
        %v5344 = vadd.f32 %v5324, %v5343
        %v5345 = vrot.slane %v5344, 2
        %v5346 = vadd.f32 %v5344, %v5345
        %v5347 = vrot.slane %v5346, 1
        %v5348 = vadd.f32 %v5346, %v5347
        %v5357 = vrot.slane %v5193, 1
        %v5358 = vrot.slane %v5197, 1
        %v5359 = vsel %vm2820, %v5357, %v5358
        %v5360 = vrot.slane %v5194, 1
        %v5361 = vrot.slane %v5198, 1
        %v5362 = vsel %vm2820, %v5360, %v5361
        %v5363 = vrot.slane %v5195, 1
        %v5364 = vrot.slane %v5199, 1
        %v5365 = vsel %vm2820, %v5363, %v5364
        %v5366 = vrot.slane %v5196, 1
        %v5367 = vrot.slane %v5200, 1
        %v5368 = vsel %vm2820, %v5366, %v5367
        %v5373 = vmul.f32 %v5317, %v5359
        %v5374 = vmul.f32 %v5318, %v5362
        %v5375 = vmul.f32 %v5319, %v5365
        %v5376 = vmul.f32 %v5320, %v5368
        %v5377 = vrot.slane %v5373, 4
        %v5378 = vadd.f32 %v5373, %v5377
        %v5379 = vrot.slane %v5378, 2
        %v5380 = vadd.f32 %v5378, %v5379
        %v5381 = vrot.slane %v5380, 1
        %v5382 = vadd.f32 %v5380, %v5381
        %v5383 = vrot.slane %v5374, 4
        %v5384 = vadd.f32 %v5374, %v5383
        %v5385 = vrot.slane %v5384, 2
        %v5386 = vadd.f32 %v5384, %v5385
        %v5387 = vrot.slane %v5386, 1
        %v5388 = vadd.f32 %v5386, %v5387
        %v5389 = vrot.slane %v5375, 4
        %v5390 = vadd.f32 %v5375, %v5389
        %v5391 = vrot.slane %v5390, 2
        %v5392 = vadd.f32 %v5390, %v5391
        %v5393 = vrot.slane %v5392, 1
        %v5394 = vadd.f32 %v5392, %v5393
        %v5395 = vrot.slane %v5376, 4
        %v5396 = vadd.f32 %v5376, %v5395
        %v5397 = vrot.slane %v5396, 2
        %v5398 = vadd.f32 %v5396, %v5397
        %v5399 = vrot.slane %v5398, 1
        %v5400 = vadd.f32 %v5398, %v5399
        %v5401 = vmul.f32 %v5317, %v5177
        %v5402 = vmul.f32 %v5318, %v5178
        %v5403 = vmul.f32 %v5319, %v5179
        %v5404 = vmul.f32 %v5320, %v5180
        %v5405 = vrot.slane %v5401, 4
        %v5406 = vadd.f32 %v5401, %v5405
        %v5407 = vrot.slane %v5406, 2
        %v5408 = vadd.f32 %v5406, %v5407
        %v5409 = vrot.slane %v5408, 1
        %v5410 = vadd.f32 %v5408, %v5409
        %v5411 = vrot.slane %v5402, 4
        %v5412 = vadd.f32 %v5402, %v5411
        %v5413 = vrot.slane %v5412, 2
        %v5414 = vadd.f32 %v5412, %v5413
        %v5415 = vrot.slane %v5414, 1
        %v5416 = vadd.f32 %v5414, %v5415
        %v5417 = vrot.slane %v5403, 4
        %v5418 = vadd.f32 %v5403, %v5417
        %v5419 = vrot.slane %v5418, 2
        %v5420 = vadd.f32 %v5418, %v5419
        %v5421 = vrot.slane %v5420, 1
        %v5422 = vadd.f32 %v5420, %v5421
        %v5423 = vrot.slane %v5404, 4
        %v5424 = vadd.f32 %v5404, %v5423
        %v5425 = vrot.slane %v5424, 2
        %v5426 = vadd.f32 %v5424, %v5425
        %v5427 = vrot.slane %v5426, 1
        %v5428 = vadd.f32 %v5426, %v5427
        %v5437 = vrot.slane %v5213, 1
        %v5438 = vrot.slane %v5217, 1
        %v5439 = vsel %vm2820, %v5437, %v5438
        %v5440 = vrot.slane %v5214, 1
        %v5441 = vrot.slane %v5218, 1
        %v5442 = vsel %vm2820, %v5440, %v5441
        %v5443 = vrot.slane %v5215, 1
        %v5444 = vrot.slane %v5219, 1
        %v5445 = vsel %vm2820, %v5443, %v5444
        %v5446 = vrot.slane %v5216, 1
        %v5447 = vrot.slane %v5220, 1
        %v5448 = vsel %vm2820, %v5446, %v5447
        %v5453 = vmul.f32 %v5317, %v5439
        %v5454 = vmul.f32 %v5318, %v5442
        %v5455 = vmul.f32 %v5319, %v5445
        %v5456 = vmul.f32 %v5320, %v5448
        %v5457 = vrot.slane %v5453, 4
        %v5458 = vadd.f32 %v5453, %v5457
        %v5459 = vrot.slane %v5458, 2
        %v5460 = vadd.f32 %v5458, %v5459
        %v5461 = vrot.slane %v5460, 1
        %v5462 = vadd.f32 %v5460, %v5461
        %v5463 = vrot.slane %v5454, 4
        %v5464 = vadd.f32 %v5454, %v5463
        %v5465 = vrot.slane %v5464, 2
        %v5466 = vadd.f32 %v5464, %v5465
        %v5467 = vrot.slane %v5466, 1
        %v5468 = vadd.f32 %v5466, %v5467
        %v5469 = vrot.slane %v5455, 4
        %v5470 = vadd.f32 %v5455, %v5469
        %v5471 = vrot.slane %v5470, 2
        %v5472 = vadd.f32 %v5470, %v5471
        %v5473 = vrot.slane %v5472, 1
        %v5474 = vadd.f32 %v5472, %v5473
        %v5475 = vrot.slane %v5456, 4
        %v5476 = vadd.f32 %v5456, %v5475
        %v5477 = vrot.slane %v5476, 2
        %v5478 = vadd.f32 %v5476, %v5477
        %v5479 = vrot.slane %v5478, 1
        %v5480 = vadd.f32 %v5478, %v5479
        %v5481 = vmul.f32 %v5317, %v5273
        %v5482 = vmul.f32 %v5318, %v5274
        %v5483 = vmul.f32 %v5319, %v5275
        %v5484 = vmul.f32 %v5320, %v5276
        %v5485 = vrot.slane %v5481, 4
        %v5486 = vadd.f32 %v5481, %v5485
        %v5487 = vrot.slane %v5486, 2
        %v5488 = vadd.f32 %v5486, %v5487
        %v5489 = vrot.slane %v5488, 1
        %v5490 = vadd.f32 %v5488, %v5489
        %v5491 = vrot.slane %v5482, 4
        %v5492 = vadd.f32 %v5482, %v5491
        %v5493 = vrot.slane %v5492, 2
        %v5494 = vadd.f32 %v5492, %v5493
        %v5495 = vrot.slane %v5494, 1
        %v5496 = vadd.f32 %v5494, %v5495
        %v5497 = vrot.slane %v5483, 4
        %v5498 = vadd.f32 %v5483, %v5497
        %v5499 = vrot.slane %v5498, 2
        %v5500 = vadd.f32 %v5498, %v5499
        %v5501 = vrot.slane %v5500, 1
        %v5502 = vadd.f32 %v5500, %v5501
        %v5503 = vrot.slane %v5484, 4
        %v5504 = vadd.f32 %v5484, %v5503
        %v5505 = vrot.slane %v5504, 2
        %v5506 = vadd.f32 %v5504, %v5505
        %v5507 = vrot.slane %v5506, 1
        %v5508 = vadd.f32 %v5506, %v5507
        %v5513 = vrot.slane %v5273, 1
        %v5514 = vsel %vm2820, %v5513, %v3053
        %v5515 = vrot.slane %v5274, 1
        %v5516 = vsel %vm2820, %v5515, %v3053
        %v5517 = vrot.slane %v5275, 1
        %v5518 = vsel %vm2820, %v5517, %v3053
        %v5519 = vrot.slane %v5276, 1
        %v5520 = vsel %vm2820, %v5519, %v3053
        %v5525 = vmul.f32 %v5317, %v5514
        %v5526 = vmul.f32 %v5318, %v5516
        %v5527 = vmul.f32 %v5319, %v5518
        %v5528 = vmul.f32 %v5320, %v5520
        %v5529 = vrot.slane %v5525, 4
        %v5530 = vadd.f32 %v5525, %v5529
        %v5531 = vrot.slane %v5530, 2
        %v5532 = vadd.f32 %v5530, %v5531
        %v5533 = vrot.slane %v5532, 1
        %v5534 = vadd.f32 %v5532, %v5533
        %v5535 = vrot.slane %v5526, 4
        %v5536 = vadd.f32 %v5526, %v5535
        %v5537 = vrot.slane %v5536, 2
        %v5538 = vadd.f32 %v5536, %v5537
        %v5539 = vrot.slane %v5538, 1
        %v5540 = vadd.f32 %v5538, %v5539
        %v5541 = vrot.slane %v5527, 4
        %v5542 = vadd.f32 %v5527, %v5541
        %v5543 = vrot.slane %v5542, 2
        %v5544 = vadd.f32 %v5542, %v5543
        %v5545 = vrot.slane %v5544, 1
        %v5546 = vadd.f32 %v5544, %v5545
        %v5547 = vrot.slane %v5528, 4
        %v5548 = vadd.f32 %v5528, %v5547
        %v5549 = vrot.slane %v5548, 2
        %v5550 = vadd.f32 %v5548, %v5549
        %v5551 = vrot.slane %v5550, 1
        %v5552 = vadd.f32 %v5550, %v5551
        %v5553 = vsel %vm2807, %v2868, %v3690
        %v5554 = vsel %vm2807, %v2874, %v3696
        %v5555 = vsel %vm2807, %v2880, %v3702
        %v5556 = vsel %vm2807, %v2886, %v3708
        %vm5557 = vcmask 1041408
        %v5558 = vsel %vm5557, %v5553, %v4510
        %v5559 = vsel %vm5557, %v5554, %v4516
        %v5560 = vsel %vm5557, %v5555, %v4522
        %v5561 = vsel %vm5557, %v5556, %v4528
        %vm5562 = vcmask 1042432
        %v5563 = vsel %vm5562, %v5558, %v5330
        %v5564 = vsel %vm5562, %v5559, %v5336
        %v5565 = vsel %vm5562, %v5560, %v5342
        %v5566 = vsel %vm5562, %v5561, %v5348
        %v5567 = vsel %vm2807, %v2920, %v3742
        %v5568 = vsel %vm2807, %v2926, %v3748
        %v5569 = vsel %vm2807, %v2932, %v3754
        %v5570 = vsel %vm2807, %v2938, %v3760
        %v5571 = vsel %vm5557, %v5567, %v4562
        %v5572 = vsel %vm5557, %v5568, %v4568
        %v5573 = vsel %vm5557, %v5569, %v4574
        %v5574 = vsel %vm5557, %v5570, %v4580
        %v5575 = vsel %vm5562, %v5571, %v5382
        %v5576 = vsel %vm5562, %v5572, %v5388
        %v5577 = vsel %vm5562, %v5573, %v5394
        %v5578 = vsel %vm5562, %v5574, %v5400
        %v5579 = vsel %vm2807, %v2948, %v3770
        %v5580 = vsel %vm2807, %v2954, %v3776
        %v5581 = vsel %vm2807, %v2960, %v3782
        %v5582 = vsel %vm2807, %v2966, %v3788
        %v5583 = vsel %vm5557, %v5579, %v4590
        %v5584 = vsel %vm5557, %v5580, %v4596
        %v5585 = vsel %vm5557, %v5581, %v4602
        %v5586 = vsel %vm5557, %v5582, %v4608
        %v5587 = vsel %vm5562, %v5583, %v5410
        %v5588 = vsel %vm5562, %v5584, %v5416
        %v5589 = vsel %vm5562, %v5585, %v5422
        %v5590 = vsel %vm5562, %v5586, %v5428
        %v5591 = vsel %vm2807, %v3000, %v3822
        %v5592 = vsel %vm2807, %v3006, %v3828
        %v5593 = vsel %vm2807, %v3012, %v3834
        %v5594 = vsel %vm2807, %v3018, %v3840
        %v5595 = vsel %vm5557, %v5591, %v4642
        %v5596 = vsel %vm5557, %v5592, %v4648
        %v5597 = vsel %vm5557, %v5593, %v4654
        %v5598 = vsel %vm5557, %v5594, %v4660
        %v5599 = vsel %vm5562, %v5595, %v5462
        %v5600 = vsel %vm5562, %v5596, %v5468
        %v5601 = vsel %vm5562, %v5597, %v5474
        %v5602 = vsel %vm5562, %v5598, %v5480
        %v5603 = vsel %vm2807, %v3028, %v3850
        %v5604 = vsel %vm2807, %v3034, %v3856
        %v5605 = vsel %vm2807, %v3040, %v3862
        %v5606 = vsel %vm2807, %v3046, %v3868
        %v5607 = vsel %vm5557, %v5603, %v4670
        %v5608 = vsel %vm5557, %v5604, %v4676
        %v5609 = vsel %vm5557, %v5605, %v4682
        %v5610 = vsel %vm5557, %v5606, %v4688
        %v5611 = vsel %vm5562, %v5607, %v5490
        %v5612 = vsel %vm5562, %v5608, %v5496
        %v5613 = vsel %vm5562, %v5609, %v5502
        %v5614 = vsel %vm5562, %v5610, %v5508
        %v5615 = vsel %vm2807, %v3074, %v3894
        %v5616 = vsel %vm2807, %v3080, %v3900
        %v5617 = vsel %vm2807, %v3086, %v3906
        %v5618 = vsel %vm2807, %v3092, %v3912
        %v5619 = vsel %vm5557, %v5615, %v4714
        %v5620 = vsel %vm5557, %v5616, %v4720
        %v5621 = vsel %vm5557, %v5617, %v4726
        %v5622 = vsel %vm5557, %v5618, %v4732
        %v5623 = vsel %vm5562, %v5619, %v5534
        %v5624 = vsel %vm5562, %v5620, %v5540
        %v5625 = vsel %vm5562, %v5621, %v5546
        %v5626 = vsel %vm5562, %v5622, %v5552
        %v5627 = vrcp.pop %v5575
        %v5628 = vmul.f32 %v5575, %v5627
        %v5629 = vsub.f32 1.0, %v5628
        %v5630 = vmul.f32 %v5627, %v5629
        %v5631 = vadd.f32 %v5627, %v5630
        %vm5632 = vweird.f32 %v5575
        %vm5633 = vweird.f32 %v5627
        %vm5634 = vmor %vm5632, %vm5633
        %v5635 = vsel %vm5634, %v5627, %v5631
        %v5636 = vand.u32 2147483647, %v5575
        %vm5637 = vcmp.eq.f32.partialorder %v5636, 8.507059e+37
        %v5638 = vand.u32 %v5575, 2147483648
        %v5639 = vor.u32 1.1754944e-38, %v5638
        %v5640 = vsel %vm5637, %v5639, %v5635
        %v5641 = vmul.f32 1.0, %v5640
        %v5642 = vrcp.pop %v5576
        %v5643 = vmul.f32 %v5576, %v5642
        %v5644 = vsub.f32 1.0, %v5643
        %v5645 = vmul.f32 %v5642, %v5644
        %v5646 = vadd.f32 %v5642, %v5645
        %vm5647 = vweird.f32 %v5576
        %vm5648 = vweird.f32 %v5642
        %vm5649 = vmor %vm5647, %vm5648
        %v5650 = vsel %vm5649, %v5642, %v5646
        %v5651 = vand.u32 2147483647, %v5576
        %vm5652 = vcmp.eq.f32.partialorder %v5651, 8.507059e+37
        %v5653 = vand.u32 %v5576, 2147483648
        %v5654 = vor.u32 1.1754944e-38, %v5653
        %v5655 = vsel %vm5652, %v5654, %v5650
        %v5656 = vmul.f32 1.0, %v5655
        %v5657 = vrcp.pop %v5577
        %v5658 = vmul.f32 %v5577, %v5657
        %v5659 = vsub.f32 1.0, %v5658
        %v5660 = vmul.f32 %v5657, %v5659
        %v5661 = vadd.f32 %v5657, %v5660
        %vm5662 = vweird.f32 %v5577
        %vm5663 = vweird.f32 %v5657
        %vm5664 = vmor %vm5662, %vm5663
        %v5665 = vsel %vm5664, %v5657, %v5661
        %v5666 = vand.u32 2147483647, %v5577
        %vm5667 = vcmp.eq.f32.partialorder %v5666, 8.507059e+37
        %v5668 = vand.u32 %v5577, 2147483648
        %v5669 = vor.u32 1.1754944e-38, %v5668
        %v5670 = vsel %vm5667, %v5669, %v5665
        %v5671 = vmul.f32 1.0, %v5670
        %v5672 = vrcp.pop %v5578
        %v5673 = vmul.f32 %v5578, %v5672
        %v5674 = vsub.f32 1.0, %v5673
        %v5675 = vmul.f32 %v5672, %v5674
        %v5676 = vadd.f32 %v5672, %v5675
        %vm5677 = vweird.f32 %v5578
        %vm5678 = vweird.f32 %v5672
        %vm5679 = vmor %vm5677, %vm5678
        %v5680 = vsel %vm5679, %v5672, %v5676
        %v5681 = vand.u32 2147483647, %v5578
        %vm5682 = vcmp.eq.f32.partialorder %v5681, 8.507059e+37
        %v5683 = vand.u32 %v5578, 2147483648
        %v5684 = vor.u32 1.1754944e-38, %v5683
        %v5685 = vsel %vm5682, %v5684, %v5680
        %v5686 = vmul.f32 1.0, %v5685
        %v5687 = vmul.f32 %v5599, %v5641
        %v5688 = vmul.f32 %v5600, %v5656
        %v5689 = vmul.f32 %v5601, %v5671
        %v5690 = vmul.f32 %v5602, %v5686
        %v5695 = vrot.slane %v5564, 4
        %v5696 = vrot.slane %v5566, 4
        %vm5697 = vcmask 1043456
        %v5698 = vsel %vm5697, %v5563, %v5695
        %v5699 = vsel %vm5697, %v5565, %v5696
        %v5702 = vsub.f32 %v2256, %v5698
        %v5703 = vsub.f32 %v2257, %v5699
        %v5708 = vrot.slane %v5656, 4
        %v5709 = vrot.slane %v5686, 4
        %v5710 = vsel %vm5697, %v5641, %v5708
        %v5711 = vsel %vm5697, %v5671, %v5709
        %v5714 = vmul.f32 %v5702, %v5710
        %v5715 = vmul.f32 %v5703, %v5711
        %v5716 = vmul.f32 %v5714, %v5714
        %v5717 = vmul.f32 %v5715, %v5715
        %v5718 = vsub.f32 1.0, %v5714
        %v5719 = vsub.f32 1.0, %v5715
        %v5720 = vmul.f32 %v5714, %v5718
        %v5721 = vmul.f32 %v5715, %v5719
        %5724 = vst [vmem:[#allocation1] ss:$2 sm:$0xff] %v5716
        %s5725 = scalar_lea.vmem [#allocation1], 16
        %5726 = vst [vmem:[%s5725] ss:$2 sm:$0xff] %v5717
        %v5727 = vld.sshfl [vmem:[#allocation1] sm:$0xff pattern:$0x75316420]
        %v5728 = vld.sshfl [vmem:[#allocation1 + $0x8] sm:$0xff pattern:$0x75316420]
        %v5729 = vld.sshfl [vmem:[#allocation1 + $0x10] sm:$0xff pattern:$0x75316420]
        %v5730 = vld.sshfl [vmem:[#allocation1 + $0x18] sm:$0xff pattern:$0x75316420]
        %v5735 = vmul.f32 %v5687, %v5727
        %v5736 = vmul.f32 %v5688, %v5728
        %v5737 = vmul.f32 %v5689, %v5729
        %v5738 = vmul.f32 %v5690, %v5730
        %5741 = vst [vmem:[#allocation1] ss:$2 sm:$0xff] %v5720
        %s5742 = scalar_lea.vmem [#allocation1], 16
        %5743 = vst [vmem:[%s5742] ss:$2 sm:$0xff] %v5721
        %v5744 = vld.sshfl [vmem:[#allocation1] sm:$0xff pattern:$0x75316420]
        %v5745 = vld.sshfl [vmem:[#allocation1 + $0x8] sm:$0xff pattern:$0x75316420]
        %v5746 = vld.sshfl [vmem:[#allocation1 + $0x10] sm:$0xff pattern:$0x75316420]
        %v5747 = vld.sshfl [vmem:[#allocation1 + $0x18] sm:$0xff pattern:$0x75316420]
        %v5752 = vmul.f32 %v5611, %v5744
        %v5753 = vmul.f32 %v5612, %v5745
        %v5754 = vmul.f32 %v5613, %v5746
        %v5755 = vmul.f32 %v5614, %v5747
        %v5756 = vadd.f32 %v5735, %v5752
        %v5757 = vadd.f32 %v5736, %v5753
        %v5758 = vadd.f32 %v5737, %v5754
        %v5759 = vadd.f32 %v5738, %v5755
        %v5760 = vmul.f32 %v5599, %v5756
        %v5761 = vmul.f32 %v5600, %v5757
        %v5762 = vmul.f32 %v5601, %v5758
        %v5763 = vmul.f32 %v5602, %v5759
        %v5764 = vadd.f32 %v5611, %v5623
        %v5765 = vadd.f32 %v5612, %v5624
        %v5766 = vadd.f32 %v5613, %v5625
        %v5767 = vadd.f32 %v5614, %v5626
        %v5768 = vmul.f32 %v5687, 2.0
        %v5769 = vmul.f32 %v5688, 2.0
        %v5770 = vmul.f32 %v5689, 2.0
        %v5771 = vmul.f32 %v5690, 2.0
        %v5772 = vsub.f32 %v5764, %v5768
        %v5773 = vsub.f32 %v5765, %v5769
        %v5774 = vsub.f32 %v5766, %v5770
        %v5775 = vsub.f32 %v5767, %v5771
        %5776 = vst [vmem:[#allocation1] ss:$2 sm:$0xff] %v5720
        %s5777 = scalar_lea.vmem [#allocation1], 16
        %5778 = vst [vmem:[%s5777] ss:$2 sm:$0xff] %v5721
        %v5779 = vld.sshfl [vmem:[#allocation1] sm:$0xff pattern:$0x75316420]
        %v5780 = vld.sshfl [vmem:[#allocation1 + $0x8] sm:$0xff pattern:$0x75316420]
        %v5781 = vld.sshfl [vmem:[#allocation1 + $0x10] sm:$0xff pattern:$0x75316420]
        %v5782 = vld.sshfl [vmem:[#allocation1 + $0x18] sm:$0xff pattern:$0x75316420]
        %v5787 = vmul.f32 %v5772, %v5779
        %v5788 = vmul.f32 %v5773, %v5780
        %v5789 = vmul.f32 %v5774, %v5781
        %v5790 = vmul.f32 %v5775, %v5782
        %v5791 = vadd.f32 %v5687, %v5787
        %v5792 = vadd.f32 %v5688, %v5788
        %v5793 = vadd.f32 %v5689, %v5789
        %v5794 = vadd.f32 %v5690, %v5790
        %v5795 = vrcp.pop %v5791
        %v5796 = vmul.f32 %v5791, %v5795
        %v5797 = vsub.f32 1.0, %v5796
        %v5798 = vmul.f32 %v5795, %v5797
        %v5799 = vadd.f32 %v5795, %v5798
        %vm5800 = vweird.f32 %v5791
        %vm5801 = vweird.f32 %v5795
        %vm5802 = vmor %vm5800, %vm5801
        %v5803 = vsel %vm5802, %v5795, %v5799
        %v5804 = vand.u32 2147483647, %v5791
        %vm5805 = vcmp.eq.f32.partialorder %v5804, 8.507059e+37
        %v5806 = vand.u32 %v5791, 2147483648
        %v5807 = vor.u32 1.1754944e-38, %v5806
        %v5808 = vsel %vm5805, %v5807, %v5803
        %v5809 = vmul.f32 %v5760, %v5808
        %v5810 = vrcp.pop %v5792
        %v5811 = vmul.f32 %v5792, %v5810
        %v5812 = vsub.f32 1.0, %v5811
        %v5813 = vmul.f32 %v5810, %v5812
        %v5814 = vadd.f32 %v5810, %v5813
        %vm5815 = vweird.f32 %v5792
        %vm5816 = vweird.f32 %v5810
        %vm5817 = vmor %vm5815, %vm5816
        %v5818 = vsel %vm5817, %v5810, %v5814
        %v5819 = vand.u32 2147483647, %v5792
        %vm5820 = vcmp.eq.f32.partialorder %v5819, 8.507059e+37
        %v5821 = vand.u32 %v5792, 2147483648
        %v5822 = vor.u32 1.1754944e-38, %v5821
        %v5823 = vsel %vm5820, %v5822, %v5818
        %v5824 = vmul.f32 %v5761, %v5823
        %v5825 = vrcp.pop %v5793
        %v5826 = vmul.f32 %v5793, %v5825
        %v5827 = vsub.f32 1.0, %v5826
        %v5828 = vmul.f32 %v5825, %v5827
        %v5829 = vadd.f32 %v5825, %v5828
        %vm5830 = vweird.f32 %v5793
        %vm5831 = vweird.f32 %v5825
        %vm5832 = vmor %vm5830, %vm5831
        %v5833 = vsel %vm5832, %v5825, %v5829
        %v5834 = vand.u32 2147483647, %v5793
        %vm5835 = vcmp.eq.f32.partialorder %v5834, 8.507059e+37
        %v5836 = vand.u32 %v5793, 2147483648
        %v5837 = vor.u32 1.1754944e-38, %v5836
        %v5838 = vsel %vm5835, %v5837, %v5833
        %v5839 = vmul.f32 %v5762, %v5838
        %v5840 = vrcp.pop %v5794
        %v5841 = vmul.f32 %v5794, %v5840
        %v5842 = vsub.f32 1.0, %v5841
        %v5843 = vmul.f32 %v5840, %v5842
        %v5844 = vadd.f32 %v5840, %v5843
        %vm5845 = vweird.f32 %v5794
        %vm5846 = vweird.f32 %v5840
        %vm5847 = vmor %vm5845, %vm5846
        %v5848 = vsel %vm5847, %v5840, %v5844
        %v5849 = vand.u32 2147483647, %v5794
        %vm5850 = vcmp.eq.f32.partialorder %v5849, 8.507059e+37
        %v5851 = vand.u32 %v5794, 2147483648
        %v5852 = vor.u32 1.1754944e-38, %v5851
        %v5853 = vsel %vm5850, %v5852, %v5848
        %v5854 = vmul.f32 %v5763, %v5853
        %v5855 = vadd.f32 %v5587, %v5809
        %v5856 = vadd.f32 %v5588, %v5824
        %v5857 = vadd.f32 %v5589, %v5839
        %v5858 = vadd.f32 %v5590, %v5854
        %v5859 = vmul.f32 %v5687, %v5687
        %v5860 = vmul.f32 %v5688, %v5688
        %v5861 = vmul.f32 %v5689, %v5689
        %v5862 = vmul.f32 %v5690, %v5690
        %5863 = vst [vmem:[#allocation1] ss:$2 sm:$0xff] %v5716
        %s5864 = scalar_lea.vmem [#allocation1], 16
        %5865 = vst [vmem:[%s5864] ss:$2 sm:$0xff] %v5717
        %v5866 = vld.sshfl [vmem:[#allocation1] sm:$0xff pattern:$0x75316420]
        %v5867 = vld.sshfl [vmem:[#allocation1 + $0x8] sm:$0xff pattern:$0x75316420]
        %v5868 = vld.sshfl [vmem:[#allocation1 + $0x10] sm:$0xff pattern:$0x75316420]
        %v5869 = vld.sshfl [vmem:[#allocation1 + $0x18] sm:$0xff pattern:$0x75316420]
        %v5874 = vmul.f32 %v5623, %v5866
        %v5875 = vmul.f32 %v5624, %v5867
        %v5876 = vmul.f32 %v5625, %v5868
        %v5877 = vmul.f32 %v5626, %v5869
        %5878 = vst [vmem:[#allocation1] ss:$2 sm:$0xff] %v5720
        %s5879 = scalar_lea.vmem [#allocation1], 16
        %5880 = vst [vmem:[%s5879] ss:$2 sm:$0xff] %v5721
        %v5881 = vld.sshfl [vmem:[#allocation1] sm:$0xff pattern:$0x75316420]
        %v5882 = vld.sshfl [vmem:[#allocation1 + $0x8] sm:$0xff pattern:$0x75316420]
        %v5883 = vld.sshfl [vmem:[#allocation1 + $0x10] sm:$0xff pattern:$0x75316420]
        %v5884 = vld.sshfl [vmem:[#allocation1 + $0x18] sm:$0xff pattern:$0x75316420]
        %v5889 = vmul.f32 %v5768, %v5881
        %v5890 = vmul.f32 %v5769, %v5882
        %v5891 = vmul.f32 %v5770, %v5883
        %v5892 = vmul.f32 %v5771, %v5884
        %v5893 = vadd.f32 %v5874, %v5889
        %v5894 = vadd.f32 %v5875, %v5890
        %v5895 = vadd.f32 %v5876, %v5891
        %v5896 = vadd.f32 %v5877, %v5892
        %5899 = vst [vmem:[#allocation1] ss:$2 sm:$0xff] %v5718
        %s5900 = scalar_lea.vmem [#allocation1], 16
        %5901 = vst [vmem:[%s5900] ss:$2 sm:$0xff] %v5719
        %v5902 = vld.sshfl [vmem:[#allocation1] sm:$0xff pattern:$0x75316420]
        %v5903 = vld.sshfl [vmem:[#allocation1 + $0x8] sm:$0xff pattern:$0x75316420]
        %v5904 = vld.sshfl [vmem:[#allocation1 + $0x10] sm:$0xff pattern:$0x75316420]
        %v5905 = vld.sshfl [vmem:[#allocation1 + $0x18] sm:$0xff pattern:$0x75316420]
        %v5910 = vmul.f32 %v5611, %v5902
        %v5911 = vmul.f32 %v5612, %v5903
        %v5912 = vmul.f32 %v5613, %v5904
        %v5913 = vmul.f32 %v5614, %v5905
        %5914 = vst [vmem:[#allocation1] ss:$2 sm:$0xff] %v5718
        %s5915 = scalar_lea.vmem [#allocation1], 16
        %5916 = vst [vmem:[%s5915] ss:$2 sm:$0xff] %v5719
        %v5917 = vld.sshfl [vmem:[#allocation1] sm:$0xff pattern:$0x75316420]
        %v5918 = vld.sshfl [vmem:[#allocation1 + $0x8] sm:$0xff pattern:$0x75316420]
        %v5919 = vld.sshfl [vmem:[#allocation1 + $0x10] sm:$0xff pattern:$0x75316420]
        %v5920 = vld.sshfl [vmem:[#allocation1 + $0x18] sm:$0xff pattern:$0x75316420]
        %v5925 = vmul.f32 %v5910, %v5917
        %v5926 = vmul.f32 %v5911, %v5918
        %v5927 = vmul.f32 %v5912, %v5919
        %v5928 = vmul.f32 %v5913, %v5920
        %v5929 = vadd.f32 %v5893, %v5925
        %v5930 = vadd.f32 %v5894, %v5926
        %v5931 = vadd.f32 %v5895, %v5927
        %v5932 = vadd.f32 %v5896, %v5928
        %v5933 = vmul.f32 %v5859, %v5929
        %v5934 = vmul.f32 %v5860, %v5930
        %v5935 = vmul.f32 %v5861, %v5931
        %v5936 = vmul.f32 %v5862, %v5932
        %v5937 = vlog2.pop %v5933
        %v5938 = vmul.f32 %v5937, 0.6931472
        %v5939 = vlog2.pop %v5934
        %v5940 = vmul.f32 %v5939, 0.6931472
        %v5941 = vlog2.pop %v5935
        %v5942 = vmul.f32 %v5941, 0.6931472
        %v5943 = vlog2.pop %v5936
        %v5944 = vmul.f32 %v5943, 0.6931472
        %v5945 = vlog2.pop %v5791
        %v5946 = vmul.f32 %v5945, 0.6931472
        %v5947 = vlog2.pop %v5792
        %v5948 = vmul.f32 %v5947, 0.6931472
        %v5949 = vlog2.pop %v5793
        %v5950 = vmul.f32 %v5949, 0.6931472
        %v5951 = vlog2.pop %v5794
        %v5952 = vmul.f32 %v5951, 0.6931472
        %v5953 = vmul.f32 %v5946, 2.0
        %v5954 = vmul.f32 %v5948, 2.0
        %v5955 = vmul.f32 %v5950, 2.0
        %v5956 = vmul.f32 %v5952, 2.0
        %v5957 = vsub.f32 %v5938, %v5953
        %v5958 = vsub.f32 %v5940, %v5954
        %v5959 = vsub.f32 %v5942, %v5955
        %v5960 = vsub.f32 %v5944, %v5956
        %vm5961 = vcmp.ge.f32.partialorder %v2250, -3.0
        %vm5962 = vcmp.ge.f32.partialorder %v2251, -3.0
        %vm5963 = vcmp.le.f32.partialorder %v2250, 3.0
        %vm5964 = vcmp.le.f32.partialorder %v2251, 3.0
        %vm5965 = vmand %vm5961, %vm5963
        %vm5966 = vmand %vm5962, %vm5964
        %v5971 = vrot.slane %v5856, 4
        %v5972 = vrot.slane %v5858, 4
        %v5973 = vsel %vm5697, %v5855, %v5971
        %v5974 = vsel %vm5697, %v5857, %v5972
        %v5977 = vsel %vm5965, %v5973, %v2250
        %v5978 = vsel %vm5966, %v5974, %v2251
        %v5983 = vrot.slane %v5958, 4
        %v5984 = vrot.slane %v5960, 4
        %v5985 = vsel %vm5697, %v5957, %v5983
        %v5986 = vsel %vm5697, %v5959, %v5984
        %v5989 = vsel %vm5965, %v5985, 0.0
        %v5990 = vsel %vm5966, %v5986, 0.0
        %v5991 = vadd.f32 %v2252, %v5977
        %v5992 = vadd.f32 %v2253, %v5978
        %5993 = vst [vmem:[%s502] sm:$0xff] %v5991
        %5994 = vst [vmem:[%s502 + $0x8] sm:$0xff] %v5992
        %5997 = vst [vmem:[#allocation1] ss:$2 sm:$0xff] %v5989
        %s5998 = scalar_lea.vmem [#allocation1], 16
        %5999 = vst [vmem:[%s5998] ss:$2 sm:$0xff] %v5990
        %v6000 = vld.sshfl [vmem:[#allocation1] sm:$0xff pattern:$0x75316420]
        %v6001 = vld.sshfl [vmem:[#allocation1 + $0x8] sm:$0xff pattern:$0x75316420]
        %v6002 = vld.sshfl [vmem:[#allocation1 + $0x10] sm:$0xff pattern:$0x75316420]
        %v6003 = vld.sshfl [vmem:[#allocation1 + $0x18] sm:$0xff pattern:$0x75316420]
        %v6008 = vsel %vm5697, %v6000, 0.0
        %v6009 = vrot.slane %v6008, 4
        %v6010 = vadd.f32 %v6008, %v6009
        %v6011 = vrot.slane %v6010, 2
        %v6012 = vadd.f32 %v6010, %v6011
        %v6013 = vrot.slane %v6012, 1
        %v6014 = vadd.f32 %v6012, %v6013
        %v6015 = vsel %vm5697, %v6001, 0.0
        %v6016 = vrot.slane %v6015, 4
        %v6017 = vadd.f32 %v6015, %v6016
        %v6018 = vrot.slane %v6017, 2
        %v6019 = vadd.f32 %v6017, %v6018
        %v6020 = vrot.slane %v6019, 1
        %v6021 = vadd.f32 %v6019, %v6020
        %v6022 = vsel %vm5697, %v6002, 0.0
        %v6023 = vrot.slane %v6022, 4
        %v6024 = vadd.f32 %v6022, %v6023
        %v6025 = vrot.slane %v6024, 2
        %v6026 = vadd.f32 %v6024, %v6025
        %v6027 = vrot.slane %v6026, 1
        %v6028 = vadd.f32 %v6026, %v6027
        %v6029 = vsel %vm5697, %v6003, 0.0
        %v6030 = vrot.slane %v6029, 4
        %v6031 = vadd.f32 %v6029, %v6030
        %v6032 = vrot.slane %v6031, 2
        %v6033 = vadd.f32 %v6031, %v6032
        %v6034 = vrot.slane %v6033, 1
        %v6035 = vadd.f32 %v6033, %v6034
        %v6040 = vrot.slane %v6021, 7
        %v6041 = vrot.slane %v6028, 6
        %v6042 = vrot.slane %v6035, 5
        %v6043 = vsel %vm2807, %v6014, %v6040
        %vm6044 = vcmask 1042434
        %v6045 = vsel %vm6044, %v6041, %v6042
        %v6046 = vsel %vm5557, %v6043, %v6045
        %v6048 = vlaneseq
        %vm6049 = vcmp.ge.s32.totalorder %v6048, 0
        %vm6050 = vcmp.lt.s32.totalorder %v6048, 512
        %vm6051 = vmand %vm6049, %vm6050
        %6052 = vst.msk [vmem:[%s509] sm:$0xf] %vm6051, %v6046
        %s6053 = sand.u32 %s288, 1
        %s6054 = scalar_lea.sflag [#allocation4], %s6053
        %s6055 = sand.u32 %s288, 1
        %s6056 = smul.addr %s6055, 16
        %s6057 = scalar_lea.vmem [#allocation8], %s6056
        %s6058 = sand.u32 %s314, 1
        %s6059 = scalar_lea.sflag [#allocation10], %s6058
        %s6060 = sand.u32 %s314, 1
        %s6061 = smul.addr %s6060, 4
        %s6062 = scalar_lea.vmem [#allocation9], %s6061
        // Predicated region
        $region77: #{tpu_custom_call.1} parent=63 // pred_check
          %p6063 = pneg %p298
        $region78: #{tpu_custom_call.1} parent=63 // pred_check_branch
          %6065 = sbr.rel (%p6063) target = $region80
        $region79: #{tpu_custom_call.1} parent=63 // pred_region
          %s6066 = smul.u32 4, %s34
          %6068 = vsyncadd %s6054, 0
          %s6069 = smul.addr %s6066, 4
          %s6070 = scalar_lea.hbm %s11, %s6069
          %s6072 = sshll.u32 %s6057, 4
          %s6073 = int_to_ptr.vmem [resolvable:$true] %s6072
          %s6074 = sshll.u32 %s6070, 4
          %s6075 = int_to_ptr.hbm [resolvable:$true] %s6074
          %6077 = dma.vmem_to_hbm [thread:$0]  %s6073, 256, %s6075, %s6054
        $region80: #{tpu_custom_call.1} parent=63 // pred_fallthru
          _
        // Predicated region
        $region81: #{tpu_custom_call.1} parent=63 // pred_check
          %p6078 = pneg %p324
        $region82: #{tpu_custom_call.1} parent=63 // pred_check_branch
          %6080 = sbr.rel (%p6078) target = $region84
        $region83: #{tpu_custom_call.1} parent=63 // pred_region
          %s6081 = smul.u32 4, %s34
          %6083 = vsyncadd %s6059, 0
          %s6084 = scalar_lea.hbm %s12, %s6081
          %s6086 = sshll.u32 %s6062, 4
          %s6087 = int_to_ptr.vmem [resolvable:$true] %s6086
          %s6088 = sshll.u32 %s6084, 4
          %s6089 = int_to_ptr.hbm [resolvable:$true] %s6088
          %6091 = dma.vmem_to_hbm [thread:$0]  %s6087, 64, %s6089, %s6059
        $region84: #{tpu_custom_call.1} parent=63 // pred_fallthru
          _
      $region64: #{tpu_custom_call.1} parent=5 // pred_fallthru
        _
      %p6092 = scmp.le.s32.totalorder 2, %s29
      // Predicated region
      $region85: #{tpu_custom_call.1} parent=5 // pred_check
        %p6093 = pneg %p6092
      $region86: #{tpu_custom_call.1} parent=5 // pred_check_branch
        %6095 = sbr.rel (%p6093) target = $region88
      $region87: #{tpu_custom_call.1} parent=5 // pred_region
        %s6096 = ssub.s32 %s29, 2
        // Predicated region
        $region89: #{tpu_custom_call.1} parent=87 // pred_check
          %p6097 = pneg %p304
        $region90: #{tpu_custom_call.1} parent=87 // pred_check_branch
          %6099 = sbr.rel (%p6097) target = $region92
        $region91: #{tpu_custom_call.1} parent=87 // pred_region
          %s6100 = sand.u32 %s289, 1
          %s6101 = scalar_lea.sflag [#allocation4], %s6100
          %s6102 = sand.u32 %s289, 1
          %s6103 = smul.addr %s6102, 16
          %s6104 = scalar_lea.vmem [#allocation8], %s6103
          %6106 = dma.done %s6101, 256
        $region92: #{tpu_custom_call.1} parent=87 // pred_fallthru
          _
        // Predicated region
        $region93: #{tpu_custom_call.1} parent=87 // pred_check
          %p6107 = pneg %p330
        $region94: #{tpu_custom_call.1} parent=87 // pred_check_branch
          %6109 = sbr.rel (%p6107) target = $region96
        $region95: #{tpu_custom_call.1} parent=87 // pred_region
          %s6110 = sand.u32 %s315, 1
          %s6111 = scalar_lea.sflag [#allocation10], %s6110
          %s6112 = sand.u32 %s315, 1
          %s6113 = smul.addr %s6112, 4
          %s6114 = scalar_lea.vmem [#allocation9], %s6113
          %6116 = dma.done %s6111, 64
        $region96: #{tpu_custom_call.1} parent=87 // pred_fallthru
          _
      $region88: #{tpu_custom_call.1} parent=5 // pred_fallthru
        _
    $region6: #{tpu_custom_call.1} parent=1 // loop_footer
      %s33 = sadd.s32 1, %s29
    $region7: #{tpu_custom_call.1} parent=1 // loop_footer_branch
      %28 = sbr.rel target = $region3
    $region8: #{tpu_custom_call.1} parent=1 // loop_exit
      _
    %6117 = vsyncpa [#allocation3], 1
    %s6118 = scalar_lea.sflag [#allocation3], 1
    %6119 = vsyncpa %s6118, 1
    %6120 = vsyncpa [#allocation6], 1
    %6121 = vsyncpa [#allocation4], 1
    %s6122 = scalar_lea.sflag [#allocation4], 1
    %6123 = vsyncpa %s6122, 1
    %6124 = vsyncpa [#allocation10], 1
    %s6125 = scalar_lea.sflag [#allocation10], 1
    %6126 = vsyncpa %s6125, 1

</llo_original>
